<compile_context>
chip_gen: v7x
topology: tpu7x:2x2x1
jax: 0.10.0
libtpu: 0.0.40
codegen_flags: <defaults>
</compile_context>

<pallas_src>
import math
import jax
import jax.numpy as jnp
from jax.experimental import pallas as pl
from jax.experimental.pallas import tpu as pltpu

# ----------------------------- small config ---------------------------------
B = 4      # batch_size
L = 8      # max_length
D = 32     # model_dim
H = 4      # attention heads
N = 2      # encoder / decoder layers
V = 16     # vocab_size
DK = D // H
DV = D // H
EPS = 1e-5
POS = 1    # decode position used by the reference forward


# --------------------------- fully fused forward kernel ----------------------
def _transformer_kernel(x_ref,
                        ewqkv_ref, ebqkv_ref, ewoh_ref, ebo_ref,
                        efw1_ref, efb1_ref, efw2_ref, efb2_ref,
                        dsaln_ref, dwc_ref, dbc_ref, dwo_ref, dbo_ref,
                        dfw1_ref, dfb1_ref, dfw2_ref, dfb2_ref,
                        lnw_ref, lnb_ref, finw_ref, finb_ref,
                        out_ref):
    scale = 1.0 / math.sqrt(DK)
    inv_ld = 1.0 / (L * D)

    # hoisted LayerNorm affine broadcasts (shared by ~8 LN call sites)
    lnw = jnp.broadcast_to(lnw_ref[...], (B, L, D))
    lnb = jnp.broadcast_to(lnb_ref[...], (B, L, D))

    def add_ln(h, res):
        # residual add + LayerNorm over (L, D) per sample, one-pass statistics
        y = h + res
        s1 = jnp.sum(jnp.sum(y, axis=2, keepdims=True), axis=1, keepdims=True)
        s2 = jnp.sum(jnp.sum(y * y, axis=2, keepdims=True), axis=1, keepdims=True)
        mu = s1 * inv_ld
        var = s2 * inv_ld - mu * mu
        return (y - mu) * jax.lax.rsqrt(var + EPS) * lnw + lnb

    def batch_softmax(o):
        # torch.nn.Softmax() on a 3-D tensor -> dim=0 (batch axis)
        mx = jnp.max(o, axis=0, keepdims=True)
        e = jnp.exp(o - mx)
        # exact reciprocal keeps the reference check tight; approx=True is a free swap
        return e * pl.reciprocal(jnp.sum(e, axis=0, keepdims=True), approx=False)

    def ffn(hx, w1, b1, w2, b2):
        a = jnp.maximum(
            jnp.einsum('bld,de->ble', hx, w1,
                       preferred_element_type=jnp.float32) + b1, 0.0)
        return jnp.maximum(
            jnp.einsum('bld,de->ble', a, w2,
                       preferred_element_type=jnp.float32) + b2, 0.0)

    x = x_ref[...]                                    # (B, L, D)

    # ----- encoder stack (identity carry reproduced literally) -----
    identity = x
    for i in range(N):
        # fused Q|K|V projection: one (B*L, D) x (D, 3D) matmul
        qkv = jnp.einsum('bld,de->ble', x, ewqkv_ref[i],
                         preferred_element_type=jnp.float32) + ebqkv_ref[i]
        att = None
        for h in range(H):                             # static unroll over heads
            q_h = qkv[:, :, h * DK:(h + 1) * DK]
            k_h = qkv[:, :, D + h * DK:D + (h + 1) * DK]
            v_h = qkv[:, :, 2 * D + h * DK:2 * D + (h + 1) * DK]
            s = jnp.einsum('blk,bmk->blm', q_h, k_h,
                           preferred_element_type=jnp.float32) * scale
            oh = jnp.einsum('blm,bmv->blv', s, v_h,
                            preferred_element_type=jnp.float32)
            sm = batch_softmax(oh)
            # concat-then-Wo == sum over heads of sm_h @ Wo_h
            # (Wo pre-split per head and pre-transposed to (DV, D) on the host)
            c = jnp.einsum('blv,vd->bld', sm, ewoh_ref[i * H + h],
                           preferred_element_type=jnp.float32)
            att = c if att is None else att + c
        att = att + ebo_ref[i]
        out = add_ln(att, identity)
        identity = out
        out = add_ln(ffn(out, efw1_ref[i], efb1_ref[i], efw2_ref[i], efb2_ref[i]),
                     identity)
        x = out
    enc = x

    # ----- decoder: `outputs` stays the zero start_token every iteration -----
    #  * masked self-attn of zeros + LN  -> precomputed constant dsaln_ref[i]
    #  * cross attention with zero K/V   -> one (D, D) affine map of `enc`
    out = None
    for i in range(N):
        out1 = dsaln_ref[i]                            # (L, D), broadcast over batch
        o = jnp.einsum('bld,de->ble', enc, dwc_ref[i],
                       preferred_element_type=jnp.float32) + dbc_ref[i]
        cross = jnp.einsum('bld,de->ble', batch_softmax(o), dwo_ref[i],
                           preferred_element_type=jnp.float32) + dbo_ref[i]
        out2 = add_ln(cross, out1)
        out = add_ln(ffn(out2, dfw1_ref[i], dfb1_ref[i], dfw2_ref[i], dfb2_ref[i]),
                     out2)

    # ----- final vocab projection: the module only uses row pos=1 -----
    row = out[:, POS, :]                               # (B, D)
    out_ref[...] = jnp.einsum('bd,dv->bv', row, finw_ref[...],
                              preferred_element_type=jnp.float32) + finb_ref[...]


def transformer_forward(x, kp):
    args = (x,
            kp['enc_wqkv'], kp['enc_bqkv'], kp['enc_woh'], kp['enc_bo'],
            kp['enc_fw1'], kp['enc_fb1'], kp['enc_fw2'], kp['enc_fb2'],
            kp['dec_sa_ln'], kp['dec_wc'], kp['dec_bc'], kp['dec_woT'], kp['dec_bo'],
            kp['dec_fw1'], kp['dec_fb1'], kp['dec_fw2'], kp['dec_fb2'],
            kp['ln_w'], kp['ln_b'], kp['fin_wT'], kp['fin_b'])
    vmem = lambda: pl.BlockSpec(memory_space=pltpu.MemorySpace.VMEM)
    return pl.pallas_call(
        _transformer_kernel,
        in_specs=[vmem() for _ in args],
        out_specs=vmem(),
        out_shape=jax.ShapeDtypeStruct((B, V), jnp.float32),
    )(*args)

    # TODO(synk): the original forward's autoregressive while-loop
    # (next_element.item(), print, shape-inconsistent torch.cat) is host-side
    # data-dependent control flow that errors for batch>1; not translated.


# --------------------------- parameter init (PyTorch-style) ------------------
def _linear_params(key, out_f, in_f):
    kw, kb = jax.random.split(key)
    bound = 1.0 / math.sqrt(in_f)
    w = jax.random.uniform(kw, (out_f, in_f), jnp.float32, -bound, bound)
    b = jax.random.uniform(kb, (out_f,), jnp.float32, -bound, bound)
    return w, b


def _mha_params(key):
    keys = jax.random.split(key, 3 * H + 1)
    heads = []
    for i in range(H):
        wq, bq = _linear_params(keys[3 * i + 0], DK, D)
        wk, bk = _linear_params(keys[3 * i + 1], DK, D)
        wv, bv = _linear_params(keys[3 * i + 2], DV, D)
        heads.append(dict(wq=wq, bq=bq, wk=wk, bk=bk, wv=wv, bv=bv))
    wo, bo = _linear_params(keys[-1], D, H * DV)
    return dict(heads=heads, wo=wo, bo=bo)


def _ffn_params(key):
    k1, k2 = jax.random.split(key)
    w1, b1 = _linear_params(k1, D, D)
    w2, b2 = _linear_params(k2, D, D)
    return dict(w1=w1, b1=b1, w2=w2, b2=b2)


def init_params(key):
    keys = jax.random.split(key, 5 * N + 1)
    p = dict(
        enc_att=[_mha_params(keys[5 * i + 0]) for i in range(N)],
        enc_lin=[_ffn_params(keys[5 * i + 1]) for i in range(N)],
        dec_att_masked=[_mha_params(keys[5 * i + 2]) for i in range(N)],
        dec_att=[_mha_params(keys[5 * i + 3]) for i in range(N)],
        dec_lin=[_ffn_params(keys[5 * i + 4]) for i in range(N)],
        ln_w=jnp.ones((L, D), jnp.float32),
        ln_b=jnp.zeros((L, D), jnp.float32),
    )
    fw, fb = _linear_params(keys[-1], V, D)
    p['final_w'], p['final_b'] = fw, fb
    return p


# ------------- host-side precompute: fuse / transpose / collapse -------------
def prepare_kernel_params(p):
    ln_w, ln_b = p['ln_w'], p['ln_b']
    lq = L / math.sqrt(DK)

    # encoder attention: fused QKV (in->out) and per-head, pre-transposed Wo
    enc_wqkv, enc_bqkv, enc_woh, enc_bo = [], [], [], []
    for m in p['enc_att']:
        wq = jnp.concatenate([h['wq'].T for h in m['heads']], axis=1)   # (D, D)
        wk = jnp.concatenate([h['wk'].T for h in m['heads']], axis=1)
        wv = jnp.concatenate([h['wv'].T for h in m['heads']], axis=1)
        enc_wqkv.append(jnp.concatenate([wq, wk, wv], axis=1))          # (D, 3D)
        bq = jnp.concatenate([h['bq'] for h in m['heads']])
        bk = jnp.concatenate([h['bk'] for h in m['heads']])
        bv = jnp.concatenate([h['bv'] for h in m['heads']])
        enc_bqkv.append(jnp.concatenate([bq, bk, bv])[None, :])         # (1, 3D)
        enc_woh.append(jnp.stack(
            [m['wo'][:, h * DV:(h + 1) * DV].T for h in range(H)]))     # (H, DV, D)
        enc_bo.append(m['bo'][None, :])                                 # (1, D)

    def ffn_pack(fs):
        return (jnp.stack([f['w1'].T for f in fs]),
                jnp.stack([f['b1'][None, :] for f in fs]),
                jnp.stack([f['w2'].T for f in fs]),
                jnp.stack([f['b2'][None, :] for f in fs]))

    efw1, efb1, efw2, efb2 = ffn_pack(p['enc_lin'])
    dfw1, dfb1, dfw2, dfb2 = ffn_pack(p['dec_lin'])

    # decoder masked self-attention on all-zero inputs: post-(batch)softmax head
    # outputs are exactly 1/B everywhere -> MHA output is a constant (D,) vector;
    # fold the subsequent LayerNorm (of constant + 0) in as well.
    dec_sa_ln = []
    for m in p['dec_att_masked']:
        c = jnp.full((H * DV,), 1.0 / B, jnp.float32) @ m['wo'].T + m['bo']  # (D,)
        y = jnp.broadcast_to(c, (L, D))
        mu = jnp.mean(y)
        var = jnp.mean((y - mu) ** 2)
        dec_sa_ln.append((y - mu) * jax.lax.rsqrt(var + EPS) * ln_w + ln_b)  # (L, D)

    # decoder cross attention with zero K/V: pre-softmax head outputs are an
    # affine map of enc:  O[:, :, h*DV+d] = enc @ (L/sqrt(dk) * bv_h[d] * Wq_h^T bk_h)
    #                                      + L/sqrt(dk) * (bq_h . bk_h) * bv_h[d]
    dec_wc, dec_bc, dec_woT, dec_bo = [], [], [], []
    for m in p['dec_att']:
        cols, bias = [], []
        for h in m['heads']:
            wvec = h['wq'].T @ h['bk']                                   # (D,)
            cols.append(lq * wvec[:, None] * h['bv'][None, :])           # (D, DV)
            bias.append(lq * jnp.dot(h['bq'], h['bk']) * h['bv'])        # (DV,)
        dec_wc.append(jnp.concatenate(cols, axis=1))                     # (D, D)
        dec_bc.append(jnp.concatenate(bias)[None, :])                    # (1, D)
        dec_woT.append(m['wo'].T)                                        # (D, D)
        dec_bo.append(m['bo'][None, :])

    return dict(
        enc_wqkv=jnp.stack(enc_wqkv), enc_bqkv=jnp.stack(enc_bqkv),
        enc_woh=jnp.stack(enc_woh).reshape(N * H, DV, D), enc_bo=jnp.stack(enc_bo),
        enc_fw1=efw1, enc_fb1=efb1, enc_fw2=efw2, enc_fb2=efb2,
        dec_sa_ln=jnp.stack(dec_sa_ln),
        dec_wc=jnp.stack(dec_wc), dec_bc=jnp.stack(dec_bc),
        dec_woT=jnp.stack(dec_woT), dec_bo=jnp.stack(dec_bo),
        dec_fw1=dfw1, dec_fb1=dfb1, dec_fw2=dfw2, dec_fb2=dfb2,
        ln_w=ln_w, ln_b=ln_b,
        fin_wT=p['final_w'].T, fin_b=p['final_b'][None, :])


# --------------------- pure-JAX reference (PyTorch semantics) ----------------
_HI = jax.lax.Precision.HIGHEST


def _linear_ref(x, w, b):
    return jnp.einsum('...i,oi->...o', x, w, precision=_HI) + b


def _mha_ref(q, k, v, m):
    heads = []
    for hp in m['heads']:
        qh = _linear_ref(q, hp['wq'], hp['bq'])
        kh = _linear_ref(k, hp['wk'], hp['bk'])
        vh = _linear_ref(v, hp['wv'], hp['bv'])
        o = jnp.einsum('blk,bmk->blm', qh, kh, precision=_HI) / math.sqrt(DK)
        o = jnp.einsum('blm,bmv->blv', o, vh, precision=_HI)
        heads.append(jax.nn.softmax(o, axis=0))        # Softmax() on 3-D -> dim=0
    return _linear_ref(jnp.concatenate(heads, axis=2), m['wo'], m['bo'])


def _ln_ref(y, w, b):
    mu = jnp.mean(y, axis=(1, 2), keepdims=True)
    var = jnp.mean((y - mu) ** 2, axis=(1, 2), keepdims=True)
    return (y - mu) / jnp.sqrt(var + EPS) * w + b


def _ffn_ref(x, f):
    a = jnp.maximum(_linear_ref(x, f['w1'], f['b1']), 0.0)
    return jnp.maximum(_linear_ref(a, f['w2'], f['b2']), 0.0)


def transformer_reference(x, p):
    lnw, lnb = p['ln_w'], p['ln_b']
    identity = x
    for i in range(N):
        out = _ln_ref(_mha_ref(x, x, x, p['enc_att'][i]) + identity, lnw, lnb)
        identity = out
        out = _ln_ref(_ffn_ref(out, p['enc_lin'][i]) + identity, lnw, lnb)
        x = out
    enc = x
    zeros = jnp.zeros((B, L, D), jnp.float32)
    out = zeros
    for i in range(N):
        identity = zeros
        out = _ln_ref(_mha_ref(zeros, zeros, zeros, p['dec_att_masked'][i]) + identity,
                      lnw, lnb)
        identity = out
        out = _ln_ref(_mha_ref(enc, zeros, zeros, p['dec_att'][i]) + identity, lnw, lnb)
        identity = out
        out = _ln_ref(_ffn_ref(out, p['dec_lin'][i]) + identity, lnw, lnb)
    logits = _linear_ref(out, p['final_w'], p['final_b'])
    return logits[:, POS]


# ------------------------------------ main ------------------------------------
if __name__ == "__main__":
    key = jax.random.PRNGKey(0)
    kx, kp = jax.random.split(key)
    x = jax.random.normal(kx, (B, L, D), jnp.float32)
    params = init_params(kp)
    kparams = prepare_kernel_params(params)

    out = transformer_forward(x, kparams)
    jax.block_until_ready(out)
    assert out.shape == (B, V) and out.dtype == jnp.float32

    # tolerance accounts for MXU precision-mode differences vs the HIGHEST-precision
    # XLA reference; real algebra/structure bugs produce O(1) errors.
    ref = transformer_reference(x, params)
    err = float(jnp.max(jnp.abs(out - ref)))
    assert err < 5e-2, f"kernel/reference mismatch: max abs err = {err}"
    print("KERNEL_OK")
</pallas_src>

<mosaic_0001>
module attributes {stable_mosaic.version = 11 : i64} {
  func.func @_transformer_kernel(%arg0: memref<4x8x32xf32, #tpu.memory_space<vmem>>, %arg1: memref<2x32x96xf32, #tpu.memory_space<vmem>>, %arg2: memref<2x1x96xf32, #tpu.memory_space<vmem>>, %arg3: memref<8x8x32xf32, #tpu.memory_space<vmem>>, %arg4: memref<2x1x32xf32, #tpu.memory_space<vmem>>, %arg5: memref<2x32x32xf32, #tpu.memory_space<vmem>>, %arg6: memref<2x1x32xf32, #tpu.memory_space<vmem>>, %arg7: memref<2x32x32xf32, #tpu.memory_space<vmem>>, %arg8: memref<2x1x32xf32, #tpu.memory_space<vmem>>, %arg9: memref<2x8x32xf32, #tpu.memory_space<vmem>>, %arg10: memref<2x32x32xf32, #tpu.memory_space<vmem>>, %arg11: memref<2x1x32xf32, #tpu.memory_space<vmem>>, %arg12: memref<2x32x32xf32, #tpu.memory_space<vmem>>, %arg13: memref<2x1x32xf32, #tpu.memory_space<vmem>>, %arg14: memref<2x32x32xf32, #tpu.memory_space<vmem>>, %arg15: memref<2x1x32xf32, #tpu.memory_space<vmem>>, %arg16: memref<2x32x32xf32, #tpu.memory_space<vmem>>, %arg17: memref<2x1x32xf32, #tpu.memory_space<vmem>>, %arg18: memref<8x32xf32, #tpu.memory_space<vmem>>, %arg19: memref<8x32xf32, #tpu.memory_space<vmem>>, %arg20: memref<32x16xf32, #tpu.memory_space<vmem>>, %arg21: memref<1x16xf32, #tpu.memory_space<vmem>>, %arg22: memref<4x16xf32, #tpu.memory_space<vmem>>) attributes {dimension_semantics = [], scalar_prefetch = 0 : i64, scratch_operands = 0 : i64, tpu.core_type = #tpu.core_type<tc>} {
    %c0 = arith.constant 0 : index
    %c0_0 = arith.constant 0 : index
    %0 = vector.load %arg18[%c0, %c0_0] : memref<8x32xf32, #tpu.memory_space<vmem>>, vector<8x32xf32>
    %1 = vector.shape_cast %0 : vector<8x32xf32> to vector<1x8x32xf32>
    %2 = vector.broadcast %1 : vector<1x8x32xf32> to vector<4x8x32xf32>
    %c0_1 = arith.constant 0 : index
    %c0_2 = arith.constant 0 : index
    %3 = vector.load %arg19[%c0_1, %c0_2] : memref<8x32xf32, #tpu.memory_space<vmem>>, vector<8x32xf32>
    %4 = vector.shape_cast %3 : vector<8x32xf32> to vector<1x8x32xf32>
    %5 = vector.broadcast %4 : vector<1x8x32xf32> to vector<4x8x32xf32>
    %c0_3 = arith.constant 0 : index
    %c0_4 = arith.constant 0 : index
    %c0_5 = arith.constant 0 : index
    %6 = vector.load %arg0[%c0_3, %c0_4, %c0_5] : memref<4x8x32xf32, #tpu.memory_space<vmem>>, vector<4x8x32xf32>
    %c0_6 = arith.constant 0 : index
    %c0_7 = arith.constant 0 : index
    %c0_8 = arith.constant 0 : index
    %7 = vector.load %arg1[%c0_6, %c0_7, %c0_8] : memref<2x32x96xf32, #tpu.memory_space<vmem>>, vector<1x32x96xf32>
    %8 = vector.shape_cast %7 : vector<1x32x96xf32> to vector<32x96xf32>
    "tpu.trace_start"() <{level = 10 : i32, message = "bld,de->ble"}> : () -> ()
    %cst = arith.constant dense<0.000000e+00> : vector<4x8x96xf32>
    %9 = tpu.matmul %6, %8, %cst {dimension_numbers = #tpu.dot_dimension_numbers<[2], [0], [0, 1], [1], [0, 0, 0, 1, 1, 1], [], []>} : vector<4x8x32xf32>, vector<32x96xf32>, vector<4x8x96xf32> -> vector<4x8x96xf32>
    "tpu.trace_stop"() : () -> ()
    %c0_9 = arith.constant 0 : index
    %c0_10 = arith.constant 0 : index
    %c0_11 = arith.constant 0 : index
    %10 = vector.load %arg2[%c0_9, %c0_10, %c0_11] : memref<2x1x96xf32, #tpu.memory_space<vmem>>, vector<1x1x96xf32>
    %11 = vector.shape_cast %10 : vector<1x1x96xf32> to vector<1x96xf32>
    %12 = vector.shape_cast %11 : vector<1x96xf32> to vector<1x1x96xf32>
    %13 = vector.broadcast %12 : vector<1x1x96xf32> to vector<4x8x96xf32>
    %14 = arith.addf %9, %13 : vector<4x8x96xf32>
    %15 = vector.extract_strided_slice %14 {offsets = [0, 0, 0], sizes = [4, 8, 8], strides = [1, 1, 1]} : vector<4x8x96xf32> to vector<4x8x8xf32>
    %16 = vector.extract_strided_slice %14 {offsets = [0, 0, 32], sizes = [4, 8, 8], strides = [1, 1, 1]} : vector<4x8x96xf32> to vector<4x8x8xf32>
    %17 = vector.extract_strided_slice %14 {offsets = [0, 0, 64], sizes = [4, 8, 8], strides = [1, 1, 1]} : vector<4x8x96xf32> to vector<4x8x8xf32>
    "tpu.trace_start"() <{level = 10 : i32, message = "blk,bmk->blm"}> : () -> ()
    %cst_12 = arith.constant dense<0.000000e+00> : vector<4x8x8xf32>
    %18 = tpu.matmul %15, %16, %cst_12 {dimension_numbers = #tpu.dot_dimension_numbers<[2], [2], [1], [1], [0, 0, 0, 1, 1, 1], [0], [0]>} : vector<4x8x8xf32>, vector<4x8x8xf32>, vector<4x8x8xf32> -> vector<4x8x8xf32>
    "tpu.trace_stop"() : () -> ()
    %cst_13 = arith.constant 0.353553385 : f32
    %19 = vector.broadcast %cst_13 : f32 to vector<4x8x8xf32>
    %20 = arith.mulf %18, %19 : vector<4x8x8xf32>
    "tpu.trace_start"() <{level = 10 : i32, message = "blm,bmv->blv"}> : () -> ()
    %cst_14 = arith.constant dense<0.000000e+00> : vector<4x8x8xf32>
    %21 = tpu.matmul %20, %17, %cst_14 {dimension_numbers = #tpu.dot_dimension_numbers<[2], [1], [1], [2], [0, 0, 0, 1, 1, 2], [0], [0]>} : vector<4x8x8xf32>, vector<4x8x8xf32>, vector<4x8x8xf32> -> vector<4x8x8xf32>
    "tpu.trace_stop"() : () -> ()
    %cst_15 = arith.constant dense<0xFF800000> : vector<8x8xf32>
    %22 = vector.multi_reduction <maximumf>, %21, %cst_15 [0] : vector<4x8x8xf32> to vector<8x8xf32>
    %23 = vector.shape_cast %22 : vector<8x8xf32> to vector<1x8x8xf32>
    %24 = vector.broadcast %23 : vector<1x8x8xf32> to vector<4x8x8xf32>
    %25 = arith.subf %21, %24 : vector<4x8x8xf32>
    %26 = math.exp %25 : vector<4x8x8xf32>
    %cst_16 = arith.constant dense<0.000000e+00> : vector<8x8xf32>
    %27 = vector.multi_reduction <add>, %26, %cst_16 [0] : vector<4x8x8xf32> to vector<8x8xf32>
    %28 = vector.shape_cast %27 : vector<8x8xf32> to vector<1x8x8xf32>
    %29 = tpu.reciprocal %28 : vector<1x8x8xf32> -> vector<1x8x8xf32>
    %30 = vector.broadcast %29 : vector<1x8x8xf32> to vector<4x8x8xf32>
    %31 = arith.mulf %26, %30 : vector<4x8x8xf32>
    %c0_17 = arith.constant 0 : index
    %c0_18 = arith.constant 0 : index
    %c0_19 = arith.constant 0 : index
    %32 = vector.load %arg3[%c0_17, %c0_18, %c0_19] : memref<8x8x32xf32, #tpu.memory_space<vmem>>, vector<1x8x32xf32>
    %33 = vector.shape_cast %32 : vector<1x8x32xf32> to vector<8x32xf32>
    "tpu.trace_start"() <{level = 10 : i32, message = "blv,vd->bld"}> : () -> ()
    %cst_20 = arith.constant dense<0.000000e+00> : vector<4x8x32xf32>
    %34 = tpu.matmul %31, %33, %cst_20 {dimension_numbers = #tpu.dot_dimension_numbers<[2], [0], [0, 1], [1], [0, 0, 0, 1, 1, 1], [], []>} : vector<4x8x8xf32>, vector<8x32xf32>, vector<4x8x32xf32> -> vector<4x8x32xf32>
    "tpu.trace_stop"() : () -> ()
    %35 = vector.extract_strided_slice %14 {offsets = [0, 0, 8], sizes = [4, 8, 8], strides = [1, 1, 1]} : vector<4x8x96xf32> to vector<4x8x8xf32>
    %36 = vector.extract_strided_slice %14 {offsets = [0, 0, 40], sizes = [4, 8, 8], strides = [1, 1, 1]} : vector<4x8x96xf32> to vector<4x8x8xf32>
    %37 = vector.extract_strided_slice %14 {offsets = [0, 0, 72], sizes = [4, 8, 8], strides = [1, 1, 1]} : vector<4x8x96xf32> to vector<4x8x8xf32>
    "tpu.trace_start"() <{level = 10 : i32, message = "blk,bmk->blm"}> : () -> ()
    %cst_21 = arith.constant dense<0.000000e+00> : vector<4x8x8xf32>
    %38 = tpu.matmul %35, %36, %cst_21 {dimension_numbers = #tpu.dot_dimension_numbers<[2], [2], [1], [1], [0, 0, 0, 1, 1, 1], [0], [0]>} : vector<4x8x8xf32>, vector<4x8x8xf32>, vector<4x8x8xf32> -> vector<4x8x8xf32>
    "tpu.trace_stop"() : () -> ()
    %cst_22 = arith.constant 0.353553385 : f32
    %39 = vector.broadcast %cst_22 : f32 to vector<4x8x8xf32>
    %40 = arith.mulf %38, %39 : vector<4x8x8xf32>
    "tpu.trace_start"() <{level = 10 : i32, message = "blm,bmv->blv"}> : () -> ()
    %cst_23 = arith.constant dense<0.000000e+00> : vector<4x8x8xf32>
    %41 = tpu.matmul %40, %37, %cst_23 {dimension_numbers = #tpu.dot_dimension_numbers<[2], [1], [1], [2], [0, 0, 0, 1, 1, 2], [0], [0]>} : vector<4x8x8xf32>, vector<4x8x8xf32>, vector<4x8x8xf32> -> vector<4x8x8xf32>
    "tpu.trace_stop"() : () -> ()
    %cst_24 = arith.constant dense<0xFF800000> : vector<8x8xf32>
    %42 = vector.multi_reduction <maximumf>, %41, %cst_24 [0] : vector<4x8x8xf32> to vector<8x8xf32>
    %43 = vector.shape_cast %42 : vector<8x8xf32> to vector<1x8x8xf32>
    %44 = vector.broadcast %43 : vector<1x8x8xf32> to vector<4x8x8xf32>
    %45 = arith.subf %41, %44 : vector<4x8x8xf32>
    %46 = math.exp %45 : vector<4x8x8xf32>
    %cst_25 = arith.constant dense<0.000000e+00> : vector<8x8xf32>
    %47 = vector.multi_reduction <add>, %46, %cst_25 [0] : vector<4x8x8xf32> to vector<8x8xf32>
    %48 = vector.shape_cast %47 : vector<8x8xf32> to vector<1x8x8xf32>
    %49 = tpu.reciprocal %48 : vector<1x8x8xf32> -> vector<1x8x8xf32>
    %50 = vector.broadcast %49 : vector<1x8x8xf32> to vector<4x8x8xf32>
    %51 = arith.mulf %46, %50 : vector<4x8x8xf32>
    %c1 = arith.constant 1 : index
    %c0_26 = arith.constant 0 : index
    %c0_27 = arith.constant 0 : index
    %52 = vector.load %arg3[%c1, %c0_26, %c0_27] : memref<8x8x32xf32, #tpu.memory_space<vmem>>, vector<1x8x32xf32>
    %53 = vector.shape_cast %52 : vector<1x8x32xf32> to vector<8x32xf32>
    "tpu.trace_start"() <{level = 10 : i32, message = "blv,vd->bld"}> : () -> ()
    %cst_28 = arith.constant dense<0.000000e+00> : vector<4x8x32xf32>
    %54 = tpu.matmul %51, %53, %cst_28 {dimension_numbers = #tpu.dot_dimension_numbers<[2], [0], [0, 1], [1], [0, 0, 0, 1, 1, 1], [], []>} : vector<4x8x8xf32>, vector<8x32xf32>, vector<4x8x32xf32> -> vector<4x8x32xf32>
    "tpu.trace_stop"() : () -> ()
    %55 = arith.addf %34, %54 : vector<4x8x32xf32>
    %56 = vector.extract_strided_slice %14 {offsets = [0, 0, 16], sizes = [4, 8, 8], strides = [1, 1, 1]} : vector<4x8x96xf32> to vector<4x8x8xf32>
    %57 = vector.extract_strided_slice %14 {offsets = [0, 0, 48], sizes = [4, 8, 8], strides = [1, 1, 1]} : vector<4x8x96xf32> to vector<4x8x8xf32>
    %58 = vector.extract_strided_slice %14 {offsets = [0, 0, 80], sizes = [4, 8, 8], strides = [1, 1, 1]} : vector<4x8x96xf32> to vector<4x8x8xf32>
    "tpu.trace_start"() <{level = 10 : i32, message = "blk,bmk->blm"}> : () -> ()
    %cst_29 = arith.constant dense<0.000000e+00> : vector<4x8x8xf32>
    %59 = tpu.matmul %56, %57, %cst_29 {dimension_numbers = #tpu.dot_dimension_numbers<[2], [2], [1], [1], [0, 0, 0, 1, 1, 1], [0], [0]>} : vector<4x8x8xf32>, vector<4x8x8xf32>, vector<4x8x8xf32> -> vector<4x8x8xf32>
    "tpu.trace_stop"() : () -> ()
    %cst_30 = arith.constant 0.353553385 : f32
    %60 = vector.broadcast %cst_30 : f32 to vector<4x8x8xf32>
    %61 = arith.mulf %59, %60 : vector<4x8x8xf32>
    "tpu.trace_start"() <{level = 10 : i32, message = "blm,bmv->blv"}> : () -> ()
    %cst_31 = arith.constant dense<0.000000e+00> : vector<4x8x8xf32>
    %62 = tpu.matmul %61, %58, %cst_31 {dimension_numbers = #tpu.dot_dimension_numbers<[2], [1], [1], [2], [0, 0, 0, 1, 1, 2], [0], [0]>} : vector<4x8x8xf32>, vector<4x8x8xf32>, vector<4x8x8xf32> -> vector<4x8x8xf32>
    "tpu.trace_stop"() : () -> ()
    %cst_32 = arith.constant dense<0xFF800000> : vector<8x8xf32>
    %63 = vector.multi_reduction <maximumf>, %62, %cst_32 [0] : vector<4x8x8xf32> to vector<8x8xf32>
    %64 = vector.shape_cast %63 : vector<8x8xf32> to vector<1x8x8xf32>
    %65 = vector.broadcast %64 : vector<1x8x8xf32> to vector<4x8x8xf32>
    %66 = arith.subf %62, %65 : vector<4x8x8xf32>
    %67 = math.exp %66 : vector<4x8x8xf32>
    %cst_33 = arith.constant dense<0.000000e+00> : vector<8x8xf32>
    %68 = vector.multi_reduction <add>, %67, %cst_33 [0] : vector<4x8x8xf32> to vector<8x8xf32>
    %69 = vector.shape_cast %68 : vector<8x8xf32> to vector<1x8x8xf32>
    %70 = tpu.reciprocal %69 : vector<1x8x8xf32> -> vector<1x8x8xf32>
    %71 = vector.broadcast %70 : vector<1x8x8xf32> to vector<4x8x8xf32>
    %72 = arith.mulf %67, %71 : vector<4x8x8xf32>
    %c2 = arith.constant 2 : index
    %c0_34 = arith.constant 0 : index
    %c0_35 = arith.constant 0 : index
    %73 = vector.load %arg3[%c2, %c0_34, %c0_35] : memref<8x8x32xf32, #tpu.memory_space<vmem>>, vector<1x8x32xf32>
    %74 = vector.shape_cast %73 : vector<1x8x32xf32> to vector<8x32xf32>
    "tpu.trace_start"() <{level = 10 : i32, message = "blv,vd->bld"}> : () -> ()
    %cst_36 = arith.constant dense<0.000000e+00> : vector<4x8x32xf32>
    %75 = tpu.matmul %72, %74, %cst_36 {dimension_numbers = #tpu.dot_dimension_numbers<[2], [0], [0, 1], [1], [0, 0, 0, 1, 1, 1], [], []>} : vector<4x8x8xf32>, vector<8x32xf32>, vector<4x8x32xf32> -> vector<4x8x32xf32>
    "tpu.trace_stop"() : () -> ()
    %76 = arith.addf %55, %75 : vector<4x8x32xf32>
    %77 = vector.extract_strided_slice %14 {offsets = [0, 0, 24], sizes = [4, 8, 8], strides = [1, 1, 1]} : vector<4x8x96xf32> to vector<4x8x8xf32>
    %78 = vector.extract_strided_slice %14 {offsets = [0, 0, 56], sizes = [4, 8, 8], strides = [1, 1, 1]} : vector<4x8x96xf32> to vector<4x8x8xf32>
    %79 = vector.extract_strided_slice %14 {offsets = [0, 0, 88], sizes = [4, 8, 8], strides = [1, 1, 1]} : vector<4x8x96xf32> to vector<4x8x8xf32>
    "tpu.trace_start"() <{level = 10 : i32, message = "blk,bmk->blm"}> : () -> ()
    %cst_37 = arith.constant dense<0.000000e+00> : vector<4x8x8xf32>
    %80 = tpu.matmul %77, %78, %cst_37 {dimension_numbers = #tpu.dot_dimension_numbers<[2], [2], [1], [1], [0, 0, 0, 1, 1, 1], [0], [0]>} : vector<4x8x8xf32>, vector<4x8x8xf32>, vector<4x8x8xf32> -> vector<4x8x8xf32>
    "tpu.trace_stop"() : () -> ()
    %cst_38 = arith.constant 0.353553385 : f32
    %81 = vector.broadcast %cst_38 : f32 to vector<4x8x8xf32>
    %82 = arith.mulf %80, %81 : vector<4x8x8xf32>
    "tpu.trace_start"() <{level = 10 : i32, message = "blm,bmv->blv"}> : () -> ()
    %cst_39 = arith.constant dense<0.000000e+00> : vector<4x8x8xf32>
    %83 = tpu.matmul %82, %79, %cst_39 {dimension_numbers = #tpu.dot_dimension_numbers<[2], [1], [1], [2], [0, 0, 0, 1, 1, 2], [0], [0]>} : vector<4x8x8xf32>, vector<4x8x8xf32>, vector<4x8x8xf32> -> vector<4x8x8xf32>
    "tpu.trace_stop"() : () -> ()
    %cst_40 = arith.constant dense<0xFF800000> : vector<8x8xf32>
    %84 = vector.multi_reduction <maximumf>, %83, %cst_40 [0] : vector<4x8x8xf32> to vector<8x8xf32>
    %85 = vector.shape_cast %84 : vector<8x8xf32> to vector<1x8x8xf32>
    %86 = vector.broadcast %85 : vector<1x8x8xf32> to vector<4x8x8xf32>
    %87 = arith.subf %83, %86 : vector<4x8x8xf32>
    %88 = math.exp %87 : vector<4x8x8xf32>
    %cst_41 = arith.constant dense<0.000000e+00> : vector<8x8xf32>
    %89 = vector.multi_reduction <add>, %88, %cst_41 [0] : vector<4x8x8xf32> to vector<8x8xf32>
    %90 = vector.shape_cast %89 : vector<8x8xf32> to vector<1x8x8xf32>
    %91 = tpu.reciprocal %90 : vector<1x8x8xf32> -> vector<1x8x8xf32>
    %92 = vector.broadcast %91 : vector<1x8x8xf32> to vector<4x8x8xf32>
    %93 = arith.mulf %88, %92 : vector<4x8x8xf32>
    %c3 = arith.constant 3 : index
    %c0_42 = arith.constant 0 : index
    %c0_43 = arith.constant 0 : index
    %94 = vector.load %arg3[%c3, %c0_42, %c0_43] : memref<8x8x32xf32, #tpu.memory_space<vmem>>, vector<1x8x32xf32>
    %95 = vector.shape_cast %94 : vector<1x8x32xf32> to vector<8x32xf32>
    "tpu.trace_start"() <{level = 10 : i32, message = "blv,vd->bld"}> : () -> ()
    %cst_44 = arith.constant dense<0.000000e+00> : vector<4x8x32xf32>
    %96 = tpu.matmul %93, %95, %cst_44 {dimension_numbers = #tpu.dot_dimension_numbers<[2], [0], [0, 1], [1], [0, 0, 0, 1, 1, 1], [], []>} : vector<4x8x8xf32>, vector<8x32xf32>, vector<4x8x32xf32> -> vector<4x8x32xf32>
    "tpu.trace_stop"() : () -> ()
    %97 = arith.addf %76, %96 : vector<4x8x32xf32>
    %c0_45 = arith.constant 0 : index
    %c0_46 = arith.constant 0 : index
    %c0_47 = arith.constant 0 : index
    %98 = vector.load %arg4[%c0_45, %c0_46, %c0_47] : memref<2x1x32xf32, #tpu.memory_space<vmem>>, vector<1x1x32xf32>
    %99 = vector.shape_cast %98 : vector<1x1x32xf32> to vector<1x32xf32>
    %100 = vector.shape_cast %99 : vector<1x32xf32> to vector<1x1x32xf32>
    %101 = vector.broadcast %100 : vector<1x1x32xf32> to vector<4x8x32xf32>
    %102 = arith.addf %97, %101 : vector<4x8x32xf32>
    %103 = arith.addf %102, %6 : vector<4x8x32xf32>
    %cst_48 = arith.constant dense<0.000000e+00> : vector<4x8xf32>
    %104 = vector.multi_reduction <add>, %103, %cst_48 [2] : vector<4x8x32xf32> to vector<4x8xf32>
    %105 = vector.shape_cast %104 : vector<4x8xf32> to vector<4x8x1xf32>
    %cst_49 = arith.constant dense<0.000000e+00> : vector<4x1xf32>
    %106 = vector.multi_reduction <add>, %105, %cst_49 [1] : vector<4x8x1xf32> to vector<4x1xf32>
    %107 = vector.shape_cast %106 : vector<4x1xf32> to vector<4x1x1xf32>
    %108 = arith.mulf %103, %103 : vector<4x8x32xf32>
    %cst_50 = arith.constant dense<0.000000e+00> : vector<4x8xf32>
    %109 = vector.multi_reduction <add>, %108, %cst_50 [2] : vector<4x8x32xf32> to vector<4x8xf32>
    %110 = vector.shape_cast %109 : vector<4x8xf32> to vector<4x8x1xf32>
    %cst_51 = arith.constant dense<0.000000e+00> : vector<4x1xf32>
    %111 = vector.multi_reduction <add>, %110, %cst_51 [1] : vector<4x8x1xf32> to vector<4x1xf32>
    %112 = vector.shape_cast %111 : vector<4x1xf32> to vector<4x1x1xf32>
    %cst_52 = arith.constant 3.906250e-03 : f32
    %113 = vector.broadcast %cst_52 : f32 to vector<4x1x1xf32>
    %114 = arith.mulf %107, %113 : vector<4x1x1xf32>
    %cst_53 = arith.constant 3.906250e-03 : f32
    %115 = vector.broadcast %cst_53 : f32 to vector<4x1x1xf32>
    %116 = arith.mulf %112, %115 : vector<4x1x1xf32>
    %117 = arith.mulf %114, %114 : vector<4x1x1xf32>
    %118 = arith.subf %116, %117 : vector<4x1x1xf32>
    %119 = vector.broadcast %114 : vector<4x1x1xf32> to vector<4x8x32xf32>
    %120 = arith.subf %103, %119 : vector<4x8x32xf32>
    %cst_54 = arith.constant 9.99999974E-6 : f32
    %121 = vector.broadcast %cst_54 : f32 to vector<4x1x1xf32>
    %122 = arith.addf %118, %121 : vector<4x1x1xf32>
    %123 = math.rsqrt %122 : vector<4x1x1xf32>
    %124 = vector.broadcast %123 : vector<4x1x1xf32> to vector<4x8x32xf32>
    %125 = arith.mulf %120, %124 : vector<4x8x32xf32>
    %126 = arith.mulf %125, %2 : vector<4x8x32xf32>
    %127 = arith.addf %126, %5 : vector<4x8x32xf32>
    %c0_55 = arith.constant 0 : index
    %c0_56 = arith.constant 0 : index
    %c0_57 = arith.constant 0 : index
    %128 = vector.load %arg5[%c0_55, %c0_56, %c0_57] : memref<2x32x32xf32, #tpu.memory_space<vmem>>, vector<1x32x32xf32>
    %129 = vector.shape_cast %128 : vector<1x32x32xf32> to vector<32x32xf32>
    %c0_58 = arith.constant 0 : index
    %c0_59 = arith.constant 0 : index
    %c0_60 = arith.constant 0 : index
    %130 = vector.load %arg6[%c0_58, %c0_59, %c0_60] : memref<2x1x32xf32, #tpu.memory_space<vmem>>, vector<1x1x32xf32>
    %131 = vector.shape_cast %130 : vector<1x1x32xf32> to vector<1x32xf32>
    %c0_61 = arith.constant 0 : index
    %c0_62 = arith.constant 0 : index
    %c0_63 = arith.constant 0 : index
    %132 = vector.load %arg7[%c0_61, %c0_62, %c0_63] : memref<2x32x32xf32, #tpu.memory_space<vmem>>, vector<1x32x32xf32>
    %133 = vector.shape_cast %132 : vector<1x32x32xf32> to vector<32x32xf32>
    %c0_64 = arith.constant 0 : index
    %c0_65 = arith.constant 0 : index
    %c0_66 = arith.constant 0 : index
    %134 = vector.load %arg8[%c0_64, %c0_65, %c0_66] : memref<2x1x32xf32, #tpu.memory_space<vmem>>, vector<1x1x32xf32>
    %135 = vector.shape_cast %134 : vector<1x1x32xf32> to vector<1x32xf32>
    "tpu.trace_start"() <{level = 10 : i32, message = "bld,de->ble"}> : () -> ()
    %cst_67 = arith.constant dense<0.000000e+00> : vector<4x8x32xf32>
    %136 = tpu.matmul %127, %129, %cst_67 {dimension_numbers = #tpu.dot_dimension_numbers<[2], [0], [0, 1], [1], [0, 0, 0, 1, 1, 1], [], []>} : vector<4x8x32xf32>, vector<32x32xf32>, vector<4x8x32xf32> -> vector<4x8x32xf32>
    "tpu.trace_stop"() : () -> ()
    %137 = vector.shape_cast %131 : vector<1x32xf32> to vector<1x1x32xf32>
    %138 = vector.broadcast %137 : vector<1x1x32xf32> to vector<4x8x32xf32>
    %139 = arith.addf %136, %138 : vector<4x8x32xf32>
    %cst_68 = arith.constant 0.000000e+00 : f32
    %140 = vector.broadcast %cst_68 : f32 to vector<4x8x32xf32>
    %141 = arith.maximumf %139, %140 : vector<4x8x32xf32>
    "tpu.trace_start"() <{level = 10 : i32, message = "bld,de->ble"}> : () -> ()
    %cst_69 = arith.constant dense<0.000000e+00> : vector<4x8x32xf32>
    %142 = tpu.matmul %141, %133, %cst_69 {dimension_numbers = #tpu.dot_dimension_numbers<[2], [0], [0, 1], [1], [0, 0, 0, 1, 1, 1], [], []>} : vector<4x8x32xf32>, vector<32x32xf32>, vector<4x8x32xf32> -> vector<4x8x32xf32>
    "tpu.trace_stop"() : () -> ()
    %143 = vector.shape_cast %135 : vector<1x32xf32> to vector<1x1x32xf32>
    %144 = vector.broadcast %143 : vector<1x1x32xf32> to vector<4x8x32xf32>
    %145 = arith.addf %142, %144 : vector<4x8x32xf32>
    %cst_70 = arith.constant 0.000000e+00 : f32
    %146 = vector.broadcast %cst_70 : f32 to vector<4x8x32xf32>
    %147 = arith.maximumf %145, %146 : vector<4x8x32xf32>
    %148 = arith.addf %147, %127 : vector<4x8x32xf32>
    %cst_71 = arith.constant dense<0.000000e+00> : vector<4x8xf32>
    %149 = vector.multi_reduction <add>, %148, %cst_71 [2] : vector<4x8x32xf32> to vector<4x8xf32>
    %150 = vector.shape_cast %149 : vector<4x8xf32> to vector<4x8x1xf32>
    %cst_72 = arith.constant dense<0.000000e+00> : vector<4x1xf32>
    %151 = vector.multi_reduction <add>, %150, %cst_72 [1] : vector<4x8x1xf32> to vector<4x1xf32>
    %152 = vector.shape_cast %151 : vector<4x1xf32> to vector<4x1x1xf32>
    %153 = arith.mulf %148, %148 : vector<4x8x32xf32>
    %cst_73 = arith.constant dense<0.000000e+00> : vector<4x8xf32>
    %154 = vector.multi_reduction <add>, %153, %cst_73 [2] : vector<4x8x32xf32> to vector<4x8xf32>
    %155 = vector.shape_cast %154 : vector<4x8xf32> to vector<4x8x1xf32>
    %cst_74 = arith.constant dense<0.000000e+00> : vector<4x1xf32>
    %156 = vector.multi_reduction <add>, %155, %cst_74 [1] : vector<4x8x1xf32> to vector<4x1xf32>
    %157 = vector.shape_cast %156 : vector<4x1xf32> to vector<4x1x1xf32>
    %cst_75 = arith.constant 3.906250e-03 : f32
    %158 = vector.broadcast %cst_75 : f32 to vector<4x1x1xf32>
    %159 = arith.mulf %152, %158 : vector<4x1x1xf32>
    %cst_76 = arith.constant 3.906250e-03 : f32
    %160 = vector.broadcast %cst_76 : f32 to vector<4x1x1xf32>
    %161 = arith.mulf %157, %160 : vector<4x1x1xf32>
    %162 = arith.mulf %159, %159 : vector<4x1x1xf32>
    %163 = arith.subf %161, %162 : vector<4x1x1xf32>
    %164 = vector.broadcast %159 : vector<4x1x1xf32> to vector<4x8x32xf32>
    %165 = arith.subf %148, %164 : vector<4x8x32xf32>
    %cst_77 = arith.constant 9.99999974E-6 : f32
    %166 = vector.broadcast %cst_77 : f32 to vector<4x1x1xf32>
    %167 = arith.addf %163, %166 : vector<4x1x1xf32>
    %168 = math.rsqrt %167 : vector<4x1x1xf32>
    %169 = vector.broadcast %168 : vector<4x1x1xf32> to vector<4x8x32xf32>
    %170 = arith.mulf %165, %169 : vector<4x8x32xf32>
    %171 = arith.mulf %170, %2 : vector<4x8x32xf32>
    %172 = arith.addf %171, %5 : vector<4x8x32xf32>
    %c1_78 = arith.constant 1 : index
    %c0_79 = arith.constant 0 : index
    %c0_80 = arith.constant 0 : index
    %173 = vector.load %arg1[%c1_78, %c0_79, %c0_80] : memref<2x32x96xf32, #tpu.memory_space<vmem>>, vector<1x32x96xf32>
    %174 = vector.shape_cast %173 : vector<1x32x96xf32> to vector<32x96xf32>
    "tpu.trace_start"() <{level = 10 : i32, message = "bld,de->ble"}> : () -> ()
    %cst_81 = arith.constant dense<0.000000e+00> : vector<4x8x96xf32>
    %175 = tpu.matmul %172, %174, %cst_81 {dimension_numbers = #tpu.dot_dimension_numbers<[2], [0], [0, 1], [1], [0, 0, 0, 1, 1, 1], [], []>} : vector<4x8x32xf32>, vector<32x96xf32>, vector<4x8x96xf32> -> vector<4x8x96xf32>
    "tpu.trace_stop"() : () -> ()
    %c1_82 = arith.constant 1 : index
    %c0_83 = arith.constant 0 : index
    %c0_84 = arith.constant 0 : index
    %176 = vector.load %arg2[%c1_82, %c0_83, %c0_84] : memref<2x1x96xf32, #tpu.memory_space<vmem>>, vector<1x1x96xf32>
    %177 = vector.shape_cast %176 : vector<1x1x96xf32> to vector<1x96xf32>
    %178 = vector.shape_cast %177 : vector<1x96xf32> to vector<1x1x96xf32>
    %179 = vector.broadcast %178 : vector<1x1x96xf32> to vector<4x8x96xf32>
    %180 = arith.addf %175, %179 : vector<4x8x96xf32>
    %181 = vector.extract_strided_slice %180 {offsets = [0, 0, 0], sizes = [4, 8, 8], strides = [1, 1, 1]} : vector<4x8x96xf32> to vector<4x8x8xf32>
    %182 = vector.extract_strided_slice %180 {offsets = [0, 0, 32], sizes = [4, 8, 8], strides = [1, 1, 1]} : vector<4x8x96xf32> to vector<4x8x8xf32>
    %183 = vector.extract_strided_slice %180 {offsets = [0, 0, 64], sizes = [4, 8, 8], strides = [1, 1, 1]} : vector<4x8x96xf32> to vector<4x8x8xf32>
    "tpu.trace_start"() <{level = 10 : i32, message = "blk,bmk->blm"}> : () -> ()
    %cst_85 = arith.constant dense<0.000000e+00> : vector<4x8x8xf32>
    %184 = tpu.matmul %181, %182, %cst_85 {dimension_numbers = #tpu.dot_dimension_numbers<[2], [2], [1], [1], [0, 0, 0, 1, 1, 1], [0], [0]>} : vector<4x8x8xf32>, vector<4x8x8xf32>, vector<4x8x8xf32> -> vector<4x8x8xf32>
    "tpu.trace_stop"() : () -> ()
    %cst_86 = arith.constant 0.353553385 : f32
    %185 = vector.broadcast %cst_86 : f32 to vector<4x8x8xf32>
    %186 = arith.mulf %184, %185 : vector<4x8x8xf32>
    "tpu.trace_start"() <{level = 10 : i32, message = "blm,bmv->blv"}> : () -> ()
    %cst_87 = arith.constant dense<0.000000e+00> : vector<4x8x8xf32>
    %187 = tpu.matmul %186, %183, %cst_87 {dimension_numbers = #tpu.dot_dimension_numbers<[2], [1], [1], [2], [0, 0, 0, 1, 1, 2], [0], [0]>} : vector<4x8x8xf32>, vector<4x8x8xf32>, vector<4x8x8xf32> -> vector<4x8x8xf32>
    "tpu.trace_stop"() : () -> ()
    %cst_88 = arith.constant dense<0xFF800000> : vector<8x8xf32>
    %188 = vector.multi_reduction <maximumf>, %187, %cst_88 [0] : vector<4x8x8xf32> to vector<8x8xf32>
    %189 = vector.shape_cast %188 : vector<8x8xf32> to vector<1x8x8xf32>
    %190 = vector.broadcast %189 : vector<1x8x8xf32> to vector<4x8x8xf32>
    %191 = arith.subf %187, %190 : vector<4x8x8xf32>
    %192 = math.exp %191 : vector<4x8x8xf32>
    %cst_89 = arith.constant dense<0.000000e+00> : vector<8x8xf32>
    %193 = vector.multi_reduction <add>, %192, %cst_89 [0] : vector<4x8x8xf32> to vector<8x8xf32>
    %194 = vector.shape_cast %193 : vector<8x8xf32> to vector<1x8x8xf32>
    %195 = tpu.reciprocal %194 : vector<1x8x8xf32> -> vector<1x8x8xf32>
    %196 = vector.broadcast %195 : vector<1x8x8xf32> to vector<4x8x8xf32>
    %197 = arith.mulf %192, %196 : vector<4x8x8xf32>
    %c4 = arith.constant 4 : index
    %c0_90 = arith.constant 0 : index
    %c0_91 = arith.constant 0 : index
    %198 = vector.load %arg3[%c4, %c0_90, %c0_91] : memref<8x8x32xf32, #tpu.memory_space<vmem>>, vector<1x8x32xf32>
    %199 = vector.shape_cast %198 : vector<1x8x32xf32> to vector<8x32xf32>
    "tpu.trace_start"() <{level = 10 : i32, message = "blv,vd->bld"}> : () -> ()
    %cst_92 = arith.constant dense<0.000000e+00> : vector<4x8x32xf32>
    %200 = tpu.matmul %197, %199, %cst_92 {dimension_numbers = #tpu.dot_dimension_numbers<[2], [0], [0, 1], [1], [0, 0, 0, 1, 1, 1], [], []>} : vector<4x8x8xf32>, vector<8x32xf32>, vector<4x8x32xf32> -> vector<4x8x32xf32>
    "tpu.trace_stop"() : () -> ()
    %201 = vector.extract_strided_slice %180 {offsets = [0, 0, 8], sizes = [4, 8, 8], strides = [1, 1, 1]} : vector<4x8x96xf32> to vector<4x8x8xf32>
    %202 = vector.extract_strided_slice %180 {offsets = [0, 0, 40], sizes = [4, 8, 8], strides = [1, 1, 1]} : vector<4x8x96xf32> to vector<4x8x8xf32>
    %203 = vector.extract_strided_slice %180 {offsets = [0, 0, 72], sizes = [4, 8, 8], strides = [1, 1, 1]} : vector<4x8x96xf32> to vector<4x8x8xf32>
    "tpu.trace_start"() <{level = 10 : i32, message = "blk,bmk->blm"}> : () -> ()
    %cst_93 = arith.constant dense<0.000000e+00> : vector<4x8x8xf32>
    %204 = tpu.matmul %201, %202, %cst_93 {dimension_numbers = #tpu.dot_dimension_numbers<[2], [2], [1], [1], [0, 0, 0, 1, 1, 1], [0], [0]>} : vector<4x8x8xf32>, vector<4x8x8xf32>, vector<4x8x8xf32> -> vector<4x8x8xf32>
    "tpu.trace_stop"() : () -> ()
    %cst_94 = arith.constant 0.353553385 : f32
    %205 = vector.broadcast %cst_94 : f32 to vector<4x8x8xf32>
    %206 = arith.mulf %204, %205 : vector<4x8x8xf32>
    "tpu.trace_start"() <{level = 10 : i32, message = "blm,bmv->blv"}> : () -> ()
    %cst_95 = arith.constant dense<0.000000e+00> : vector<4x8x8xf32>
    %207 = tpu.matmul %206, %203, %cst_95 {dimension_numbers = #tpu.dot_dimension_numbers<[2], [1], [1], [2], [0, 0, 0, 1, 1, 2], [0], [0]>} : vector<4x8x8xf32>, vector<4x8x8xf32>, vector<4x8x8xf32> -> vector<4x8x8xf32>
    "tpu.trace_stop"() : () -> ()
    %cst_96 = arith.constant dense<0xFF800000> : vector<8x8xf32>
    %208 = vector.multi_reduction <maximumf>, %207, %cst_96 [0] : vector<4x8x8xf32> to vector<8x8xf32>
    %209 = vector.shape_cast %208 : vector<8x8xf32> to vector<1x8x8xf32>
    %210 = vector.broadcast %209 : vector<1x8x8xf32> to vector<4x8x8xf32>
    %211 = arith.subf %207, %210 : vector<4x8x8xf32>
    %212 = math.exp %211 : vector<4x8x8xf32>
    %cst_97 = arith.constant dense<0.000000e+00> : vector<8x8xf32>
    %213 = vector.multi_reduction <add>, %212, %cst_97 [0] : vector<4x8x8xf32> to vector<8x8xf32>
    %214 = vector.shape_cast %213 : vector<8x8xf32> to vector<1x8x8xf32>
    %215 = tpu.reciprocal %214 : vector<1x8x8xf32> -> vector<1x8x8xf32>
    %216 = vector.broadcast %215 : vector<1x8x8xf32> to vector<4x8x8xf32>
    %217 = arith.mulf %212, %216 : vector<4x8x8xf32>
    %c5 = arith.constant 5 : index
    %c0_98 = arith.constant 0 : index
    %c0_99 = arith.constant 0 : index
    %218 = vector.load %arg3[%c5, %c0_98, %c0_99] : memref<8x8x32xf32, #tpu.memory_space<vmem>>, vector<1x8x32xf32>
    %219 = vector.shape_cast %218 : vector<1x8x32xf32> to vector<8x32xf32>
    "tpu.trace_start"() <{level = 10 : i32, message = "blv,vd->bld"}> : () -> ()
    %cst_100 = arith.constant dense<0.000000e+00> : vector<4x8x32xf32>
    %220 = tpu.matmul %217, %219, %cst_100 {dimension_numbers = #tpu.dot_dimension_numbers<[2], [0], [0, 1], [1], [0, 0, 0, 1, 1, 1], [], []>} : vector<4x8x8xf32>, vector<8x32xf32>, vector<4x8x32xf32> -> vector<4x8x32xf32>
    "tpu.trace_stop"() : () -> ()
    %221 = arith.addf %200, %220 : vector<4x8x32xf32>
    %222 = vector.extract_strided_slice %180 {offsets = [0, 0, 16], sizes = [4, 8, 8], strides = [1, 1, 1]} : vector<4x8x96xf32> to vector<4x8x8xf32>
    %223 = vector.extract_strided_slice %180 {offsets = [0, 0, 48], sizes = [4, 8, 8], strides = [1, 1, 1]} : vector<4x8x96xf32> to vector<4x8x8xf32>
    %224 = vector.extract_strided_slice %180 {offsets = [0, 0, 80], sizes = [4, 8, 8], strides = [1, 1, 1]} : vector<4x8x96xf32> to vector<4x8x8xf32>
    "tpu.trace_start"() <{level = 10 : i32, message = "blk,bmk->blm"}> : () -> ()
    %cst_101 = arith.constant dense<0.000000e+00> : vector<4x8x8xf32>
    %225 = tpu.matmul %222, %223, %cst_101 {dimension_numbers = #tpu.dot_dimension_numbers<[2], [2], [1], [1], [0, 0, 0, 1, 1, 1], [0], [0]>} : vector<4x8x8xf32>, vector<4x8x8xf32>, vector<4x8x8xf32> -> vector<4x8x8xf32>
    "tpu.trace_stop"() : () -> ()
    %cst_102 = arith.constant 0.353553385 : f32
    %226 = vector.broadcast %cst_102 : f32 to vector<4x8x8xf32>
    %227 = arith.mulf %225, %226 : vector<4x8x8xf32>
    "tpu.trace_start"() <{level = 10 : i32, message = "blm,bmv->blv"}> : () -> ()
    %cst_103 = arith.constant dense<0.000000e+00> : vector<4x8x8xf32>
    %228 = tpu.matmul %227, %224, %cst_103 {dimension_numbers = #tpu.dot_dimension_numbers<[2], [1], [1], [2], [0, 0, 0, 1, 1, 2], [0], [0]>} : vector<4x8x8xf32>, vector<4x8x8xf32>, vector<4x8x8xf32> -> vector<4x8x8xf32>
    "tpu.trace_stop"() : () -> ()
    %cst_104 = arith.constant dense<0xFF800000> : vector<8x8xf32>
    %229 = vector.multi_reduction <maximumf>, %228, %cst_104 [0] : vector<4x8x8xf32> to vector<8x8xf32>
    %230 = vector.shape_cast %229 : vector<8x8xf32> to vector<1x8x8xf32>
    %231 = vector.broadcast %230 : vector<1x8x8xf32> to vector<4x8x8xf32>
    %232 = arith.subf %228, %231 : vector<4x8x8xf32>
    %233 = math.exp %232 : vector<4x8x8xf32>
    %cst_105 = arith.constant dense<0.000000e+00> : vector<8x8xf32>
    %234 = vector.multi_reduction <add>, %233, %cst_105 [0] : vector<4x8x8xf32> to vector<8x8xf32>
    %235 = vector.shape_cast %234 : vector<8x8xf32> to vector<1x8x8xf32>
    %236 = tpu.reciprocal %235 : vector<1x8x8xf32> -> vector<1x8x8xf32>
    %237 = vector.broadcast %236 : vector<1x8x8xf32> to vector<4x8x8xf32>
    %238 = arith.mulf %233, %237 : vector<4x8x8xf32>
    %c6 = arith.constant 6 : index
    %c0_106 = arith.constant 0 : index
    %c0_107 = arith.constant 0 : index
    %239 = vector.load %arg3[%c6, %c0_106, %c0_107] : memref<8x8x32xf32, #tpu.memory_space<vmem>>, vector<1x8x32xf32>
    %240 = vector.shape_cast %239 : vector<1x8x32xf32> to vector<8x32xf32>
    "tpu.trace_start"() <{level = 10 : i32, message = "blv,vd->bld"}> : () -> ()
    %cst_108 = arith.constant dense<0.000000e+00> : vector<4x8x32xf32>
    %241 = tpu.matmul %238, %240, %cst_108 {dimension_numbers = #tpu.dot_dimension_numbers<[2], [0], [0, 1], [1], [0, 0, 0, 1, 1, 1], [], []>} : vector<4x8x8xf32>, vector<8x32xf32>, vector<4x8x32xf32> -> vector<4x8x32xf32>
    "tpu.trace_stop"() : () -> ()
    %242 = arith.addf %221, %241 : vector<4x8x32xf32>
    %243 = vector.extract_strided_slice %180 {offsets = [0, 0, 24], sizes = [4, 8, 8], strides = [1, 1, 1]} : vector<4x8x96xf32> to vector<4x8x8xf32>
    %244 = vector.extract_strided_slice %180 {offsets = [0, 0, 56], sizes = [4, 8, 8], strides = [1, 1, 1]} : vector<4x8x96xf32> to vector<4x8x8xf32>
    %245 = vector.extract_strided_slice %180 {offsets = [0, 0, 88], sizes = [4, 8, 8], strides = [1, 1, 1]} : vector<4x8x96xf32> to vector<4x8x8xf32>
    "tpu.trace_start"() <{level = 10 : i32, message = "blk,bmk->blm"}> : () -> ()
    %cst_109 = arith.constant dense<0.000000e+00> : vector<4x8x8xf32>
    %246 = tpu.matmul %243, %244, %cst_109 {dimension_numbers = #tpu.dot_dimension_numbers<[2], [2], [1], [1], [0, 0, 0, 1, 1, 1], [0], [0]>} : vector<4x8x8xf32>, vector<4x8x8xf32>, vector<4x8x8xf32> -> vector<4x8x8xf32>
    "tpu.trace_stop"() : () -> ()
    %cst_110 = arith.constant 0.353553385 : f32
    %247 = vector.broadcast %cst_110 : f32 to vector<4x8x8xf32>
    %248 = arith.mulf %246, %247 : vector<4x8x8xf32>
    "tpu.trace_start"() <{level = 10 : i32, message = "blm,bmv->blv"}> : () -> ()
    %cst_111 = arith.constant dense<0.000000e+00> : vector<4x8x8xf32>
    %249 = tpu.matmul %248, %245, %cst_111 {dimension_numbers = #tpu.dot_dimension_numbers<[2], [1], [1], [2], [0, 0, 0, 1, 1, 2], [0], [0]>} : vector<4x8x8xf32>, vector<4x8x8xf32>, vector<4x8x8xf32> -> vector<4x8x8xf32>
    "tpu.trace_stop"() : () -> ()
    %cst_112 = arith.constant dense<0xFF800000> : vector<8x8xf32>
    %250 = vector.multi_reduction <maximumf>, %249, %cst_112 [0] : vector<4x8x8xf32> to vector<8x8xf32>
    %251 = vector.shape_cast %250 : vector<8x8xf32> to vector<1x8x8xf32>
    %252 = vector.broadcast %251 : vector<1x8x8xf32> to vector<4x8x8xf32>
    %253 = arith.subf %249, %252 : vector<4x8x8xf32>
    %254 = math.exp %253 : vector<4x8x8xf32>
    %cst_113 = arith.constant dense<0.000000e+00> : vector<8x8xf32>
    %255 = vector.multi_reduction <add>, %254, %cst_113 [0] : vector<4x8x8xf32> to vector<8x8xf32>
    %256 = vector.shape_cast %255 : vector<8x8xf32> to vector<1x8x8xf32>
    %257 = tpu.reciprocal %256 : vector<1x8x8xf32> -> vector<1x8x8xf32>
    %258 = vector.broadcast %257 : vector<1x8x8xf32> to vector<4x8x8xf32>
    %259 = arith.mulf %254, %258 : vector<4x8x8xf32>
    %c7 = arith.constant 7 : index
    %c0_114 = arith.constant 0 : index
    %c0_115 = arith.constant 0 : index
    %260 = vector.load %arg3[%c7, %c0_114, %c0_115] : memref<8x8x32xf32, #tpu.memory_space<vmem>>, vector<1x8x32xf32>
    %261 = vector.shape_cast %260 : vector<1x8x32xf32> to vector<8x32xf32>
    "tpu.trace_start"() <{level = 10 : i32, message = "blv,vd->bld"}> : () -> ()
    %cst_116 = arith.constant dense<0.000000e+00> : vector<4x8x32xf32>
    %262 = tpu.matmul %259, %261, %cst_116 {dimension_numbers = #tpu.dot_dimension_numbers<[2], [0], [0, 1], [1], [0, 0, 0, 1, 1, 1], [], []>} : vector<4x8x8xf32>, vector<8x32xf32>, vector<4x8x32xf32> -> vector<4x8x32xf32>
    "tpu.trace_stop"() : () -> ()
    %263 = arith.addf %242, %262 : vector<4x8x32xf32>
    %c1_117 = arith.constant 1 : index
    %c0_118 = arith.constant 0 : index
    %c0_119 = arith.constant 0 : index
    %264 = vector.load %arg4[%c1_117, %c0_118, %c0_119] : memref<2x1x32xf32, #tpu.memory_space<vmem>>, vector<1x1x32xf32>
    %265 = vector.shape_cast %264 : vector<1x1x32xf32> to vector<1x32xf32>
    %266 = vector.shape_cast %265 : vector<1x32xf32> to vector<1x1x32xf32>
    %267 = vector.broadcast %266 : vector<1x1x32xf32> to vector<4x8x32xf32>
    %268 = arith.addf %263, %267 : vector<4x8x32xf32>
    %269 = arith.addf %268, %127 : vector<4x8x32xf32>
    %cst_120 = arith.constant dense<0.000000e+00> : vector<4x8xf32>
    %270 = vector.multi_reduction <add>, %269, %cst_120 [2] : vector<4x8x32xf32> to vector<4x8xf32>
    %271 = vector.shape_cast %270 : vector<4x8xf32> to vector<4x8x1xf32>
    %cst_121 = arith.constant dense<0.000000e+00> : vector<4x1xf32>
    %272 = vector.multi_reduction <add>, %271, %cst_121 [1] : vector<4x8x1xf32> to vector<4x1xf32>
    %273 = vector.shape_cast %272 : vector<4x1xf32> to vector<4x1x1xf32>
    %274 = arith.mulf %269, %269 : vector<4x8x32xf32>
    %cst_122 = arith.constant dense<0.000000e+00> : vector<4x8xf32>
    %275 = vector.multi_reduction <add>, %274, %cst_122 [2] : vector<4x8x32xf32> to vector<4x8xf32>
    %276 = vector.shape_cast %275 : vector<4x8xf32> to vector<4x8x1xf32>
    %cst_123 = arith.constant dense<0.000000e+00> : vector<4x1xf32>
    %277 = vector.multi_reduction <add>, %276, %cst_123 [1] : vector<4x8x1xf32> to vector<4x1xf32>
    %278 = vector.shape_cast %277 : vector<4x1xf32> to vector<4x1x1xf32>
    %cst_124 = arith.constant 3.906250e-03 : f32
    %279 = vector.broadcast %cst_124 : f32 to vector<4x1x1xf32>
    %280 = arith.mulf %273, %279 : vector<4x1x1xf32>
    %cst_125 = arith.constant 3.906250e-03 : f32
    %281 = vector.broadcast %cst_125 : f32 to vector<4x1x1xf32>
    %282 = arith.mulf %278, %281 : vector<4x1x1xf32>
    %283 = arith.mulf %280, %280 : vector<4x1x1xf32>
    %284 = arith.subf %282, %283 : vector<4x1x1xf32>
    %285 = vector.broadcast %280 : vector<4x1x1xf32> to vector<4x8x32xf32>
    %286 = arith.subf %269, %285 : vector<4x8x32xf32>
    %cst_126 = arith.constant 9.99999974E-6 : f32
    %287 = vector.broadcast %cst_126 : f32 to vector<4x1x1xf32>
    %288 = arith.addf %284, %287 : vector<4x1x1xf32>
    %289 = math.rsqrt %288 : vector<4x1x1xf32>
    %290 = vector.broadcast %289 : vector<4x1x1xf32> to vector<4x8x32xf32>
    %291 = arith.mulf %286, %290 : vector<4x8x32xf32>
    %292 = arith.mulf %291, %2 : vector<4x8x32xf32>
    %293 = arith.addf %292, %5 : vector<4x8x32xf32>
    %c1_127 = arith.constant 1 : index
    %c0_128 = arith.constant 0 : index
    %c0_129 = arith.constant 0 : index
    %294 = vector.load %arg5[%c1_127, %c0_128, %c0_129] : memref<2x32x32xf32, #tpu.memory_space<vmem>>, vector<1x32x32xf32>
    %295 = vector.shape_cast %294 : vector<1x32x32xf32> to vector<32x32xf32>
    %c1_130 = arith.constant 1 : index
    %c0_131 = arith.constant 0 : index
    %c0_132 = arith.constant 0 : index
    %296 = vector.load %arg6[%c1_130, %c0_131, %c0_132] : memref<2x1x32xf32, #tpu.memory_space<vmem>>, vector<1x1x32xf32>
    %297 = vector.shape_cast %296 : vector<1x1x32xf32> to vector<1x32xf32>
    %c1_133 = arith.constant 1 : index
    %c0_134 = arith.constant 0 : index
    %c0_135 = arith.constant 0 : index
    %298 = vector.load %arg7[%c1_133, %c0_134, %c0_135] : memref<2x32x32xf32, #tpu.memory_space<vmem>>, vector<1x32x32xf32>
    %299 = vector.shape_cast %298 : vector<1x32x32xf32> to vector<32x32xf32>
    %c1_136 = arith.constant 1 : index
    %c0_137 = arith.constant 0 : index
    %c0_138 = arith.constant 0 : index
    %300 = vector.load %arg8[%c1_136, %c0_137, %c0_138] : memref<2x1x32xf32, #tpu.memory_space<vmem>>, vector<1x1x32xf32>
    %301 = vector.shape_cast %300 : vector<1x1x32xf32> to vector<1x32xf32>
    "tpu.trace_start"() <{level = 10 : i32, message = "bld,de->ble"}> : () -> ()
    %cst_139 = arith.constant dense<0.000000e+00> : vector<4x8x32xf32>
    %302 = tpu.matmul %293, %295, %cst_139 {dimension_numbers = #tpu.dot_dimension_numbers<[2], [0], [0, 1], [1], [0, 0, 0, 1, 1, 1], [], []>} : vector<4x8x32xf32>, vector<32x32xf32>, vector<4x8x32xf32> -> vector<4x8x32xf32>
    "tpu.trace_stop"() : () -> ()
    %303 = vector.shape_cast %297 : vector<1x32xf32> to vector<1x1x32xf32>
    %304 = vector.broadcast %303 : vector<1x1x32xf32> to vector<4x8x32xf32>
    %305 = arith.addf %302, %304 : vector<4x8x32xf32>
    %cst_140 = arith.constant 0.000000e+00 : f32
    %306 = vector.broadcast %cst_140 : f32 to vector<4x8x32xf32>
    %307 = arith.maximumf %305, %306 : vector<4x8x32xf32>
    "tpu.trace_start"() <{level = 10 : i32, message = "bld,de->ble"}> : () -> ()
    %cst_141 = arith.constant dense<0.000000e+00> : vector<4x8x32xf32>
    %308 = tpu.matmul %307, %299, %cst_141 {dimension_numbers = #tpu.dot_dimension_numbers<[2], [0], [0, 1], [1], [0, 0, 0, 1, 1, 1], [], []>} : vector<4x8x32xf32>, vector<32x32xf32>, vector<4x8x32xf32> -> vector<4x8x32xf32>
    "tpu.trace_stop"() : () -> ()
    %309 = vector.shape_cast %301 : vector<1x32xf32> to vector<1x1x32xf32>
    %310 = vector.broadcast %309 : vector<1x1x32xf32> to vector<4x8x32xf32>
    %311 = arith.addf %308, %310 : vector<4x8x32xf32>
    %cst_142 = arith.constant 0.000000e+00 : f32
    %312 = vector.broadcast %cst_142 : f32 to vector<4x8x32xf32>
    %313 = arith.maximumf %311, %312 : vector<4x8x32xf32>
    %314 = arith.addf %313, %293 : vector<4x8x32xf32>
    %cst_143 = arith.constant dense<0.000000e+00> : vector<4x8xf32>
    %315 = vector.multi_reduction <add>, %314, %cst_143 [2] : vector<4x8x32xf32> to vector<4x8xf32>
    %316 = vector.shape_cast %315 : vector<4x8xf32> to vector<4x8x1xf32>
    %cst_144 = arith.constant dense<0.000000e+00> : vector<4x1xf32>
    %317 = vector.multi_reduction <add>, %316, %cst_144 [1] : vector<4x8x1xf32> to vector<4x1xf32>
    %318 = vector.shape_cast %317 : vector<4x1xf32> to vector<4x1x1xf32>
    %319 = arith.mulf %314, %314 : vector<4x8x32xf32>
    %cst_145 = arith.constant dense<0.000000e+00> : vector<4x8xf32>
    %320 = vector.multi_reduction <add>, %319, %cst_145 [2] : vector<4x8x32xf32> to vector<4x8xf32>
    %321 = vector.shape_cast %320 : vector<4x8xf32> to vector<4x8x1xf32>
    %cst_146 = arith.constant dense<0.000000e+00> : vector<4x1xf32>
    %322 = vector.multi_reduction <add>, %321, %cst_146 [1] : vector<4x8x1xf32> to vector<4x1xf32>
    %323 = vector.shape_cast %322 : vector<4x1xf32> to vector<4x1x1xf32>
    %cst_147 = arith.constant 3.906250e-03 : f32
    %324 = vector.broadcast %cst_147 : f32 to vector<4x1x1xf32>
    %325 = arith.mulf %318, %324 : vector<4x1x1xf32>
    %cst_148 = arith.constant 3.906250e-03 : f32
    %326 = vector.broadcast %cst_148 : f32 to vector<4x1x1xf32>
    %327 = arith.mulf %323, %326 : vector<4x1x1xf32>
    %328 = arith.mulf %325, %325 : vector<4x1x1xf32>
    %329 = arith.subf %327, %328 : vector<4x1x1xf32>
    %330 = vector.broadcast %325 : vector<4x1x1xf32> to vector<4x8x32xf32>
    %331 = arith.subf %314, %330 : vector<4x8x32xf32>
    %cst_149 = arith.constant 9.99999974E-6 : f32
    %332 = vector.broadcast %cst_149 : f32 to vector<4x1x1xf32>
    %333 = arith.addf %329, %332 : vector<4x1x1xf32>
    %334 = math.rsqrt %333 : vector<4x1x1xf32>
    %335 = vector.broadcast %334 : vector<4x1x1xf32> to vector<4x8x32xf32>
    %336 = arith.mulf %331, %335 : vector<4x8x32xf32>
    %337 = arith.mulf %336, %2 : vector<4x8x32xf32>
    %338 = arith.addf %337, %5 : vector<4x8x32xf32>
    %c1_150 = arith.constant 1 : index
    %c0_151 = arith.constant 0 : index
    %c0_152 = arith.constant 0 : index
    %339 = vector.load %arg9[%c1_150, %c0_151, %c0_152] : memref<2x8x32xf32, #tpu.memory_space<vmem>>, vector<1x8x32xf32>
    %340 = vector.shape_cast %339 : vector<1x8x32xf32> to vector<8x32xf32>
    %c1_153 = arith.constant 1 : index
    %c0_154 = arith.constant 0 : index
    %c0_155 = arith.constant 0 : index
    %341 = vector.load %arg10[%c1_153, %c0_154, %c0_155] : memref<2x32x32xf32, #tpu.memory_space<vmem>>, vector<1x32x32xf32>
    %342 = vector.shape_cast %341 : vector<1x32x32xf32> to vector<32x32xf32>
    "tpu.trace_start"() <{level = 10 : i32, message = "bld,de->ble"}> : () -> ()
    %cst_156 = arith.constant dense<0.000000e+00> : vector<4x8x32xf32>
    %343 = tpu.matmul %338, %342, %cst_156 {dimension_numbers = #tpu.dot_dimension_numbers<[2], [0], [0, 1], [1], [0, 0, 0, 1, 1, 1], [], []>} : vector<4x8x32xf32>, vector<32x32xf32>, vector<4x8x32xf32> -> vector<4x8x32xf32>
    "tpu.trace_stop"() : () -> ()
    %c1_157 = arith.constant 1 : index
    %c0_158 = arith.constant 0 : index
    %c0_159 = arith.constant 0 : index
    %344 = vector.load %arg11[%c1_157, %c0_158, %c0_159] : memref<2x1x32xf32, #tpu.memory_space<vmem>>, vector<1x1x32xf32>
    %345 = vector.shape_cast %344 : vector<1x1x32xf32> to vector<1x32xf32>
    %346 = vector.shape_cast %345 : vector<1x32xf32> to vector<1x1x32xf32>
    %347 = vector.broadcast %346 : vector<1x1x32xf32> to vector<4x8x32xf32>
    %348 = arith.addf %343, %347 : vector<4x8x32xf32>
    %cst_160 = arith.constant dense<0xFF800000> : vector<8x32xf32>
    %349 = vector.multi_reduction <maximumf>, %348, %cst_160 [0] : vector<4x8x32xf32> to vector<8x32xf32>
    %350 = vector.shape_cast %349 : vector<8x32xf32> to vector<1x8x32xf32>
    %351 = vector.broadcast %350 : vector<1x8x32xf32> to vector<4x8x32xf32>
    %352 = arith.subf %348, %351 : vector<4x8x32xf32>
    %353 = math.exp %352 : vector<4x8x32xf32>
    %cst_161 = arith.constant dense<0.000000e+00> : vector<8x32xf32>
    %354 = vector.multi_reduction <add>, %353, %cst_161 [0] : vector<4x8x32xf32> to vector<8x32xf32>
    %355 = vector.shape_cast %354 : vector<8x32xf32> to vector<1x8x32xf32>
    %356 = tpu.reciprocal %355 : vector<1x8x32xf32> -> vector<1x8x32xf32>
    %357 = vector.broadcast %356 : vector<1x8x32xf32> to vector<4x8x32xf32>
    %358 = arith.mulf %353, %357 : vector<4x8x32xf32>
    %c1_162 = arith.constant 1 : index
    %c0_163 = arith.constant 0 : index
    %c0_164 = arith.constant 0 : index
    %359 = vector.load %arg12[%c1_162, %c0_163, %c0_164] : memref<2x32x32xf32, #tpu.memory_space<vmem>>, vector<1x32x32xf32>
    %360 = vector.shape_cast %359 : vector<1x32x32xf32> to vector<32x32xf32>
    "tpu.trace_start"() <{level = 10 : i32, message = "bld,de->ble"}> : () -> ()
    %cst_165 = arith.constant dense<0.000000e+00> : vector<4x8x32xf32>
    %361 = tpu.matmul %358, %360, %cst_165 {dimension_numbers = #tpu.dot_dimension_numbers<[2], [0], [0, 1], [1], [0, 0, 0, 1, 1, 1], [], []>} : vector<4x8x32xf32>, vector<32x32xf32>, vector<4x8x32xf32> -> vector<4x8x32xf32>
    "tpu.trace_stop"() : () -> ()
    %c1_166 = arith.constant 1 : index
    %c0_167 = arith.constant 0 : index
    %c0_168 = arith.constant 0 : index
    %362 = vector.load %arg13[%c1_166, %c0_167, %c0_168] : memref<2x1x32xf32, #tpu.memory_space<vmem>>, vector<1x1x32xf32>
    %363 = vector.shape_cast %362 : vector<1x1x32xf32> to vector<1x32xf32>
    %364 = vector.shape_cast %363 : vector<1x32xf32> to vector<1x1x32xf32>
    %365 = vector.broadcast %364 : vector<1x1x32xf32> to vector<4x8x32xf32>
    %366 = arith.addf %361, %365 : vector<4x8x32xf32>
    %367 = vector.shape_cast %340 : vector<8x32xf32> to vector<1x8x32xf32>
    %368 = vector.broadcast %367 : vector<1x8x32xf32> to vector<4x8x32xf32>
    %369 = arith.addf %366, %368 : vector<4x8x32xf32>
    %cst_169 = arith.constant dense<0.000000e+00> : vector<4x8xf32>
    %370 = vector.multi_reduction <add>, %369, %cst_169 [2] : vector<4x8x32xf32> to vector<4x8xf32>
    %371 = vector.shape_cast %370 : vector<4x8xf32> to vector<4x8x1xf32>
    %cst_170 = arith.constant dense<0.000000e+00> : vector<4x1xf32>
    %372 = vector.multi_reduction <add>, %371, %cst_170 [1] : vector<4x8x1xf32> to vector<4x1xf32>
    %373 = vector.shape_cast %372 : vector<4x1xf32> to vector<4x1x1xf32>
    %374 = arith.mulf %369, %369 : vector<4x8x32xf32>
    %cst_171 = arith.constant dense<0.000000e+00> : vector<4x8xf32>
    %375 = vector.multi_reduction <add>, %374, %cst_171 [2] : vector<4x8x32xf32> to vector<4x8xf32>
    %376 = vector.shape_cast %375 : vector<4x8xf32> to vector<4x8x1xf32>
    %cst_172 = arith.constant dense<0.000000e+00> : vector<4x1xf32>
    %377 = vector.multi_reduction <add>, %376, %cst_172 [1] : vector<4x8x1xf32> to vector<4x1xf32>
    %378 = vector.shape_cast %377 : vector<4x1xf32> to vector<4x1x1xf32>
    %cst_173 = arith.constant 3.906250e-03 : f32
    %379 = vector.broadcast %cst_173 : f32 to vector<4x1x1xf32>
    %380 = arith.mulf %373, %379 : vector<4x1x1xf32>
    %cst_174 = arith.constant 3.906250e-03 : f32
    %381 = vector.broadcast %cst_174 : f32 to vector<4x1x1xf32>
    %382 = arith.mulf %378, %381 : vector<4x1x1xf32>
    %383 = arith.mulf %380, %380 : vector<4x1x1xf32>
    %384 = arith.subf %382, %383 : vector<4x1x1xf32>
    %385 = vector.broadcast %380 : vector<4x1x1xf32> to vector<4x8x32xf32>
    %386 = arith.subf %369, %385 : vector<4x8x32xf32>
    %cst_175 = arith.constant 9.99999974E-6 : f32
    %387 = vector.broadcast %cst_175 : f32 to vector<4x1x1xf32>
    %388 = arith.addf %384, %387 : vector<4x1x1xf32>
    %389 = math.rsqrt %388 : vector<4x1x1xf32>
    %390 = vector.broadcast %389 : vector<4x1x1xf32> to vector<4x8x32xf32>
    %391 = arith.mulf %386, %390 : vector<4x8x32xf32>
    %392 = arith.mulf %391, %2 : vector<4x8x32xf32>
    %393 = arith.addf %392, %5 : vector<4x8x32xf32>
    %c1_176 = arith.constant 1 : index
    %c0_177 = arith.constant 0 : index
    %c0_178 = arith.constant 0 : index
    %394 = vector.load %arg14[%c1_176, %c0_177, %c0_178] : memref<2x32x32xf32, #tpu.memory_space<vmem>>, vector<1x32x32xf32>
    %395 = vector.shape_cast %394 : vector<1x32x32xf32> to vector<32x32xf32>
    %c1_179 = arith.constant 1 : index
    %c0_180 = arith.constant 0 : index
    %c0_181 = arith.constant 0 : index
    %396 = vector.load %arg15[%c1_179, %c0_180, %c0_181] : memref<2x1x32xf32, #tpu.memory_space<vmem>>, vector<1x1x32xf32>
    %397 = vector.shape_cast %396 : vector<1x1x32xf32> to vector<1x32xf32>
    %c1_182 = arith.constant 1 : index
    %c0_183 = arith.constant 0 : index
    %c0_184 = arith.constant 0 : index
    %398 = vector.load %arg16[%c1_182, %c0_183, %c0_184] : memref<2x32x32xf32, #tpu.memory_space<vmem>>, vector<1x32x32xf32>
    %399 = vector.shape_cast %398 : vector<1x32x32xf32> to vector<32x32xf32>
    %c1_185 = arith.constant 1 : index
    %c0_186 = arith.constant 0 : index
    %c0_187 = arith.constant 0 : index
    %400 = vector.load %arg17[%c1_185, %c0_186, %c0_187] : memref<2x1x32xf32, #tpu.memory_space<vmem>>, vector<1x1x32xf32>
    %401 = vector.shape_cast %400 : vector<1x1x32xf32> to vector<1x32xf32>
    "tpu.trace_start"() <{level = 10 : i32, message = "bld,de->ble"}> : () -> ()
    %cst_188 = arith.constant dense<0.000000e+00> : vector<4x8x32xf32>
    %402 = tpu.matmul %393, %395, %cst_188 {dimension_numbers = #tpu.dot_dimension_numbers<[2], [0], [0, 1], [1], [0, 0, 0, 1, 1, 1], [], []>} : vector<4x8x32xf32>, vector<32x32xf32>, vector<4x8x32xf32> -> vector<4x8x32xf32>
    "tpu.trace_stop"() : () -> ()
    %403 = vector.shape_cast %397 : vector<1x32xf32> to vector<1x1x32xf32>
    %404 = vector.broadcast %403 : vector<1x1x32xf32> to vector<4x8x32xf32>
    %405 = arith.addf %402, %404 : vector<4x8x32xf32>
    %cst_189 = arith.constant 0.000000e+00 : f32
    %406 = vector.broadcast %cst_189 : f32 to vector<4x8x32xf32>
    %407 = arith.maximumf %405, %406 : vector<4x8x32xf32>
    "tpu.trace_start"() <{level = 10 : i32, message = "bld,de->ble"}> : () -> ()
    %cst_190 = arith.constant dense<0.000000e+00> : vector<4x8x32xf32>
    %408 = tpu.matmul %407, %399, %cst_190 {dimension_numbers = #tpu.dot_dimension_numbers<[2], [0], [0, 1], [1], [0, 0, 0, 1, 1, 1], [], []>} : vector<4x8x32xf32>, vector<32x32xf32>, vector<4x8x32xf32> -> vector<4x8x32xf32>
    "tpu.trace_stop"() : () -> ()
    %409 = vector.shape_cast %401 : vector<1x32xf32> to vector<1x1x32xf32>
    %410 = vector.broadcast %409 : vector<1x1x32xf32> to vector<4x8x32xf32>
    %411 = arith.addf %408, %410 : vector<4x8x32xf32>
    %cst_191 = arith.constant 0.000000e+00 : f32
    %412 = vector.broadcast %cst_191 : f32 to vector<4x8x32xf32>
    %413 = arith.maximumf %411, %412 : vector<4x8x32xf32>
    %414 = arith.addf %413, %393 : vector<4x8x32xf32>
    %cst_192 = arith.constant dense<0.000000e+00> : vector<4x8xf32>
    %415 = vector.multi_reduction <add>, %414, %cst_192 [2] : vector<4x8x32xf32> to vector<4x8xf32>
    %416 = vector.shape_cast %415 : vector<4x8xf32> to vector<4x8x1xf32>
    %cst_193 = arith.constant dense<0.000000e+00> : vector<4x1xf32>
    %417 = vector.multi_reduction <add>, %416, %cst_193 [1] : vector<4x8x1xf32> to vector<4x1xf32>
    %418 = vector.shape_cast %417 : vector<4x1xf32> to vector<4x1x1xf32>
    %419 = arith.mulf %414, %414 : vector<4x8x32xf32>
    %cst_194 = arith.constant dense<0.000000e+00> : vector<4x8xf32>
    %420 = vector.multi_reduction <add>, %419, %cst_194 [2] : vector<4x8x32xf32> to vector<4x8xf32>
    %421 = vector.shape_cast %420 : vector<4x8xf32> to vector<4x8x1xf32>
    %cst_195 = arith.constant dense<0.000000e+00> : vector<4x1xf32>
    %422 = vector.multi_reduction <add>, %421, %cst_195 [1] : vector<4x8x1xf32> to vector<4x1xf32>
    %423 = vector.shape_cast %422 : vector<4x1xf32> to vector<4x1x1xf32>
    %cst_196 = arith.constant 3.906250e-03 : f32
    %424 = vector.broadcast %cst_196 : f32 to vector<4x1x1xf32>
    %425 = arith.mulf %418, %424 : vector<4x1x1xf32>
    %cst_197 = arith.constant 3.906250e-03 : f32
    %426 = vector.broadcast %cst_197 : f32 to vector<4x1x1xf32>
    %427 = arith.mulf %423, %426 : vector<4x1x1xf32>
    %428 = arith.mulf %425, %425 : vector<4x1x1xf32>
    %429 = arith.subf %427, %428 : vector<4x1x1xf32>
    %430 = vector.broadcast %425 : vector<4x1x1xf32> to vector<4x8x32xf32>
    %431 = arith.subf %414, %430 : vector<4x8x32xf32>
    %cst_198 = arith.constant 9.99999974E-6 : f32
    %432 = vector.broadcast %cst_198 : f32 to vector<4x1x1xf32>
    %433 = arith.addf %429, %432 : vector<4x1x1xf32>
    %434 = math.rsqrt %433 : vector<4x1x1xf32>
    %435 = vector.broadcast %434 : vector<4x1x1xf32> to vector<4x8x32xf32>
    %436 = arith.mulf %431, %435 : vector<4x8x32xf32>
    %437 = arith.mulf %436, %2 : vector<4x8x32xf32>
    %438 = arith.addf %437, %5 : vector<4x8x32xf32>
    %439 = vector.extract_strided_slice %438 {offsets = [0, 1, 0], sizes = [4, 1, 32], strides = [1, 1, 1]} : vector<4x8x32xf32> to vector<4x1x32xf32>
    %440 = vector.shape_cast %439 : vector<4x1x32xf32> to vector<4x32xf32>
    %c0_199 = arith.constant 0 : index
    %c0_200 = arith.constant 0 : index
    %441 = vector.load %arg20[%c0_199, %c0_200] : memref<32x16xf32, #tpu.memory_space<vmem>>, vector<32x16xf32>
    "tpu.trace_start"() <{level = 10 : i32, message = "bd,dv->bv"}> : () -> ()
    %cst_201 = arith.constant dense<0.000000e+00> : vector<4x16xf32>
    %442 = tpu.matmul %440, %441, %cst_201 {dimension_numbers = #tpu.dot_dimension_numbers<[1], [0], [0], [1], [0, 0, 1, 1], [], []>} : vector<4x32xf32>, vector<32x16xf32>, vector<4x16xf32> -> vector<4x16xf32>
    "tpu.trace_stop"() : () -> ()
    %c0_202 = arith.constant 0 : index
    %c0_203 = arith.constant 0 : index
    %443 = vector.load %arg21[%c0_202, %c0_203] : memref<1x16xf32, #tpu.memory_space<vmem>>, vector<1x16xf32>
    %444 = vector.broadcast %443 : vector<1x16xf32> to vector<4x16xf32>
    %445 = arith.addf %442, %444 : vector<4x16xf32>
    %c0_204 = arith.constant 0 : index
    %c0_205 = arith.constant 0 : index
    %446 = vector.load %arg22[%c0_204, %c0_205] : memref<4x16xf32, #tpu.memory_space<vmem>>, vector<4x16xf32>
    tpu.vector_store %arg22[%c0_204, %c0_205], %445 {strides = array<i32>} : memref<4x16xf32, #tpu.memory_space<vmem>>, vector<4x16xf32>,
    return
  }
}

</mosaic_0001>

<llo_original>
// kernel: tpu_custom_call.1
$region0: #{tpu_custom_call.1}
  #allocation0 [shape = 'u32[]', space=smem, size = 0x4, offset = 0x4, fixed_abs, tag = 'smem constant byte address 0x4 - core index']
  #allocation1 [shape = 'u32[144,128]{1,0:T(1,128)}', space=vmem, size = 0x12000, scoped, tag = 'internal scratch']
  %s0 = inlined_call_operand.hbm [shape: f32[4,8,32], index: 0, kind: input, shape index: {}]
  %s1 = inlined_call_operand.hbm [shape: f32[2,32,96], index: 1, kind: input, shape index: {}]
  %s2 = inlined_call_operand.hbm [shape: f32[2,1,96], index: 2, kind: input, shape index: {}]
  %s3 = inlined_call_operand.hbm [shape: f32[8,8,32], index: 3, kind: input, shape index: {}]
  %s4 = inlined_call_operand.hbm [shape: f32[2,1,32], index: 4, kind: input, shape index: {}]
  %s5 = inlined_call_operand.vmem [shape: f32[2,32,32], index: 5, kind: input, shape index: {}]
  %s6 = inlined_call_operand.hbm [shape: f32[2,1,32], index: 6, kind: input, shape index: {}]
  %s7 = inlined_call_operand.hbm [shape: f32[2,32,32], index: 7, kind: input, shape index: {}]
  %s8 = inlined_call_operand.hbm [shape: f32[2,1,32], index: 8, kind: input, shape index: {}]
  %s9 = inlined_call_operand.hbm [shape: f32[2,8,32], index: 9, kind: input, shape index: {}]
  %s10 = inlined_call_operand.hbm [shape: f32[2,32,32], index: 10, kind: input, shape index: {}]
  %s11 = inlined_call_operand.hbm [shape: f32[2,1,32], index: 11, kind: input, shape index: {}]
  %s12 = inlined_call_operand.hbm [shape: f32[2,32,32], index: 12, kind: input, shape index: {}]
  %s13 = inlined_call_operand.hbm [shape: f32[2,1,32], index: 13, kind: input, shape index: {}]
  %s14 = inlined_call_operand.hbm [shape: f32[2,32,32], index: 14, kind: input, shape index: {}]
  %s15 = inlined_call_operand.vmem [shape: f32[2,1,32], index: 15, kind: input, shape index: {}]
  %s16 = inlined_call_operand.hbm [shape: f32[2,32,32], index: 16, kind: input, shape index: {}]
  %s17 = inlined_call_operand.vmem [shape: f32[2,1,32], index: 17, kind: input, shape index: {}]
  %s18 = inlined_call_operand.vmem [shape: f32[8,32], index: 18, kind: input, shape index: {}]
  %s19 = inlined_call_operand.vmem [shape: f32[8,32], index: 19, kind: input, shape index: {}]
  %s20 = inlined_call_operand.vmem [shape: f32[32,16], index: 20, kind: input, shape index: {}]
  %s21 = inlined_call_operand.vmem [shape: f32[1,16], index: 21, kind: input, shape index: {}]
  %s22 = inlined_call_operand.hbm [shape: f32[4,16], index: 22, kind: output, shape index: {}]
  %s23 = sld [smem:[#allocation0]]
  $region158: #{tpu_custom_call.1} parent=0
    _
  %s25 = ssub.s32 1, %s23
  %s26 = scalar_select 0, %s25, %s23
  $region1: #{tpu_custom_call.1} parent=0
    #allocation2 [shape = 'u8[16384]{0}', space=vmem, size = 0x4000, scoped, tag = 'input window, operand 0, single buffered']
    #allocation3 [shape = 's32[1]{0}', space=sflag, size = 0x4, scoped, tag = 'scoped memory for tpu_custom_call.1']
    #allocation4 [shape = 's32[1]{0}', space=sflag, size = 0x4, scoped, tag = 'scoped memory for tpu_custom_call.1']
    #allocation5 [shape = 'u8[32768]{0}', space=vmem, size = 0x8000, scoped, tag = 'input window, operand 1, single buffered']
    #allocation6 [shape = 's32[1]{0}', space=sflag, size = 0x4, scoped, tag = 'scoped memory for tpu_custom_call.1']
    #allocation7 [shape = 'u8[1024]{0}', space=vmem, size = 0x400, scoped, tag = 'input window, operand 2, single buffered']
    #allocation8 [shape = 'u8[32768]{0}', space=vmem, size = 0x8000, scoped, tag = 'input window, operand 3, single buffered']
    #allocation9 [shape = 's32[1]{0}', space=sflag, size = 0x4, scoped, tag = 'scoped memory for tpu_custom_call.1']
    #allocation10 [shape = 'u8[1024]{0}', space=vmem, size = 0x400, scoped, tag = 'input window, operand 4, single buffered']
    #allocation11 [shape = 'u8[1024]{0}', space=vmem, size = 0x400, scoped, tag = 'input window, operand 6, single buffered']
    #allocation12 [shape = 's32[1]{0}', space=sflag, size = 0x4, scoped, tag = 'scoped memory for tpu_custom_call.1']
    #allocation13 [shape = 'u8[32768]{0}', space=vmem, size = 0x8000, scoped, tag = 'input window, operand 7, single buffered']
    #allocation14 [shape = 'u8[1024]{0}', space=vmem, size = 0x400, scoped, tag = 'input window, operand 8, single buffered']
    #allocation15 [shape = 's32[1]{0}', space=sflag, size = 0x4, scoped, tag = 'scoped memory for tpu_custom_call.1']
    #allocation16 [shape = 'u8[8192]{0}', space=vmem, size = 0x2000, scoped, tag = 'input window, operand 9, single buffered']
    #allocation17 [shape = 'u8[32768]{0}', space=vmem, size = 0x8000, scoped, tag = 'input window, operand 10, single buffered']
    #allocation18 [shape = 's32[1]{0}', space=sflag, size = 0x4, scoped, tag = 'scoped memory for tpu_custom_call.1']
    #allocation19 [shape = 'u8[1024]{0}', space=vmem, size = 0x400, scoped, tag = 'input window, operand 11, single buffered']
    #allocation20 [shape = 'u8[32768]{0}', space=vmem, size = 0x8000, scoped, tag = 'input window, operand 12, single buffered']
    #allocation21 [shape = 's32[1]{0}', space=sflag, size = 0x4, scoped, tag = 'scoped memory for tpu_custom_call.1']
    #allocation22 [shape = 'u8[1024]{0}', space=vmem, size = 0x400, scoped, tag = 'input window, operand 13, single buffered']
    #allocation23 [shape = 'u8[32768]{0}', space=vmem, size = 0x8000, scoped, tag = 'input window, operand 14, single buffered']
    #allocation24 [shape = 's32[1]{0}', space=sflag, size = 0x4, scoped, tag = 'scoped memory for tpu_custom_call.1']
    #allocation25 [shape = 'u8[32768]{0}', space=vmem, size = 0x8000, scoped, tag = 'input window, operand 16, single buffered']
    #allocation26 [shape = 'u8[2048]{0}', space=vmem, size = 0x800, scoped, tag = 'output window, operand 0, single buffered']
    %27 = vsyncpa [#allocation3], 0
    %28 = vsyncpa [#allocation6], 0
    %29 = vsyncpa [#allocation9], 0
    %30 = vsyncpa [#allocation12], 0
    %31 = vsyncpa [#allocation15], 0
    %32 = vsyncpa [#allocation18], 0
    %33 = vsyncpa [#allocation21], 0
    %34 = vsyncpa [#allocation24], 0
    %35 = vsyncpa [#allocation4], 0
    // Predicated region
    $region2: #{tpu_custom_call.1} parent=1 // pred_check
      _
    $region3: #{tpu_custom_call.1} parent=1 // pred_check_branch
      %37 = sbr.rel (0) target = $region5
    $region4: #{tpu_custom_call.1} parent=1 // pred_region
      %s39 = ssub.s32 512, 512
      %40 = vsyncadd [#allocation3], %s39
      %s41 = sshll.u32 [#allocation2], 4
      %s42 = int_to_ptr.vmem [resolvable:$true] %s41
      %47 = dma.hbm_to_vmem [thread:$0]  %s0, 512, %s42, [#allocation3], 128, 128, 8
    $region5: #{tpu_custom_call.1} parent=1 // pred_fallthru
      _
    // Predicated region
    $region6: #{tpu_custom_call.1} parent=1 // pred_check
      _
    $region7: #{tpu_custom_call.1} parent=1 // pred_check_branch
      %49 = sbr.rel (0) target = $region9
    $region8: #{tpu_custom_call.1} parent=1 // pred_region
      %s51 = ssub.s32 1024, 1024
      %52 = vsyncadd [#allocation6], %s51
      %s53 = sshll.u32 [#allocation5], 4
      %s54 = int_to_ptr.vmem [resolvable:$true] %s53
      %59 = dma.hbm_to_vmem [thread:$0]  %s1, 1024, %s54, [#allocation6], 128, 128, 8
    $region9: #{tpu_custom_call.1} parent=1 // pred_fallthru
      _
    // Predicated region
    $region10: #{tpu_custom_call.1} parent=1 // pred_check
      _
    $region11: #{tpu_custom_call.1} parent=1 // pred_check_branch
      %61 = sbr.rel (0) target = $region13
    $region12: #{tpu_custom_call.1} parent=1 // pred_region
      %s63 = ssub.s32 32, 32
      %64 = vsyncadd [#allocation6], %s63
      %s65 = sshll.u32 [#allocation7], 4
      %s66 = int_to_ptr.vmem [resolvable:$true] %s65
      %71 = dma.hbm_to_vmem [thread:$0]  %s2, 32, %s66, [#allocation6], 16, 16, 1
    $region13: #{tpu_custom_call.1} parent=1 // pred_fallthru
      _
    // Predicated region
    $region14: #{tpu_custom_call.1} parent=1 // pred_check
      _
    $region15: #{tpu_custom_call.1} parent=1 // pred_check_branch
      %73 = sbr.rel (0) target = $region17
    $region16: #{tpu_custom_call.1} parent=1 // pred_region
      %s75 = ssub.s32 1024, 1024
      %76 = vsyncadd [#allocation9], %s75
      %s77 = sshll.u32 [#allocation8], 4
      %s78 = int_to_ptr.vmem [resolvable:$true] %s77
      %83 = dma.hbm_to_vmem [thread:$0]  %s3, 1024, %s78, [#allocation9], 128, 128, 8
    $region17: #{tpu_custom_call.1} parent=1 // pred_fallthru
      _
    // Predicated region
    $region18: #{tpu_custom_call.1} parent=1 // pred_check
      _
    $region19: #{tpu_custom_call.1} parent=1 // pred_check_branch
      %85 = sbr.rel (0) target = $region21
    $region20: #{tpu_custom_call.1} parent=1 // pred_region
      %s87 = ssub.s32 32, 32
      %88 = vsyncadd [#allocation9], %s87
      %s89 = sshll.u32 [#allocation10], 4
      %s90 = int_to_ptr.vmem [resolvable:$true] %s89
      %95 = dma.hbm_to_vmem [thread:$0]  %s4, 32, %s90, [#allocation9], 16, 16, 1
    $region21: #{tpu_custom_call.1} parent=1 // pred_fallthru
      _
    // Predicated region
    $region22: #{tpu_custom_call.1} parent=1 // pred_check
      _
    $region23: #{tpu_custom_call.1} parent=1 // pred_check_branch
      %97 = sbr.rel (0) target = $region25
    $region24: #{tpu_custom_call.1} parent=1 // pred_region
      _
    $region25: #{tpu_custom_call.1} parent=1 // pred_fallthru
      _
    // Predicated region
    $region26: #{tpu_custom_call.1} parent=1 // pred_check
      _
    $region27: #{tpu_custom_call.1} parent=1 // pred_check_branch
      %99 = sbr.rel (0) target = $region29
    $region28: #{tpu_custom_call.1} parent=1 // pred_region
      %s101 = ssub.s32 32, 32
      %102 = vsyncadd [#allocation12], %s101
      %s103 = sshll.u32 [#allocation11], 4
      %s104 = int_to_ptr.vmem [resolvable:$true] %s103
      %109 = dma.hbm_to_vmem [thread:$0]  %s6, 32, %s104, [#allocation12], 16, 16, 1
    $region29: #{tpu_custom_call.1} parent=1 // pred_fallthru
      _
    // Predicated region
    $region30: #{tpu_custom_call.1} parent=1 // pred_check
      _
    $region31: #{tpu_custom_call.1} parent=1 // pred_check_branch
      %111 = sbr.rel (0) target = $region33
    $region32: #{tpu_custom_call.1} parent=1 // pred_region
      %s113 = ssub.s32 1024, 1024
      %114 = vsyncadd [#allocation12], %s113
      %s115 = sshll.u32 [#allocation13], 4
      %s116 = int_to_ptr.vmem [resolvable:$true] %s115
      %121 = dma.hbm_to_vmem [thread:$0]  %s7, 1024, %s116, [#allocation12], 128, 128, 8
    $region33: #{tpu_custom_call.1} parent=1 // pred_fallthru
      _
    // Predicated region
    $region34: #{tpu_custom_call.1} parent=1 // pred_check
      _
    $region35: #{tpu_custom_call.1} parent=1 // pred_check_branch
      %123 = sbr.rel (0) target = $region37
    $region36: #{tpu_custom_call.1} parent=1 // pred_region
      %s125 = ssub.s32 32, 32
      %126 = vsyncadd [#allocation15], %s125
      %s127 = sshll.u32 [#allocation14], 4
      %s128 = int_to_ptr.vmem [resolvable:$true] %s127
      %133 = dma.hbm_to_vmem [thread:$0]  %s8, 32, %s128, [#allocation15], 16, 16, 1
    $region37: #{tpu_custom_call.1} parent=1 // pred_fallthru
      _
    // Predicated region
    $region38: #{tpu_custom_call.1} parent=1 // pred_check
      _
    $region39: #{tpu_custom_call.1} parent=1 // pred_check_branch
      %135 = sbr.rel (0) target = $region41
    $region40: #{tpu_custom_call.1} parent=1 // pred_region
      %s137 = ssub.s32 256, 256
      %138 = vsyncadd [#allocation15], %s137
      %s139 = sshll.u32 [#allocation16], 4
      %s140 = int_to_ptr.vmem [resolvable:$true] %s139
      %145 = dma.hbm_to_vmem [thread:$0]  %s9, 256, %s140, [#allocation15], 128, 128, 8
    $region41: #{tpu_custom_call.1} parent=1 // pred_fallthru
      _
    // Predicated region
    $region42: #{tpu_custom_call.1} parent=1 // pred_check
      _
    $region43: #{tpu_custom_call.1} parent=1 // pred_check_branch
      %147 = sbr.rel (0) target = $region45
    $region44: #{tpu_custom_call.1} parent=1 // pred_region
      %s149 = ssub.s32 1024, 1024
      %150 = vsyncadd [#allocation18], %s149
      %s151 = sshll.u32 [#allocation17], 4
      %s152 = int_to_ptr.vmem [resolvable:$true] %s151
      %157 = dma.hbm_to_vmem [thread:$0]  %s10, 1024, %s152, [#allocation18], 128, 128, 8
    $region45: #{tpu_custom_call.1} parent=1 // pred_fallthru
      _
    // Predicated region
    $region46: #{tpu_custom_call.1} parent=1 // pred_check
      _
    $region47: #{tpu_custom_call.1} parent=1 // pred_check_branch
      %159 = sbr.rel (0) target = $region49
    $region48: #{tpu_custom_call.1} parent=1 // pred_region
      %s161 = ssub.s32 32, 32
      %162 = vsyncadd [#allocation18], %s161
      %s163 = sshll.u32 [#allocation19], 4
      %s164 = int_to_ptr.vmem [resolvable:$true] %s163
      %169 = dma.hbm_to_vmem [thread:$0]  %s11, 32, %s164, [#allocation18], 16, 16, 1
    $region49: #{tpu_custom_call.1} parent=1 // pred_fallthru
      _
    // Predicated region
    $region50: #{tpu_custom_call.1} parent=1 // pred_check
      _
    $region51: #{tpu_custom_call.1} parent=1 // pred_check_branch
      %171 = sbr.rel (0) target = $region53
    $region52: #{tpu_custom_call.1} parent=1 // pred_region
      %s173 = ssub.s32 1024, 1024
      %174 = vsyncadd [#allocation21], %s173
      %s175 = sshll.u32 [#allocation20], 4
      %s176 = int_to_ptr.vmem [resolvable:$true] %s175
      %181 = dma.hbm_to_vmem [thread:$0]  %s12, 1024, %s176, [#allocation21], 128, 128, 8
    $region53: #{tpu_custom_call.1} parent=1 // pred_fallthru
      _
    // Predicated region
    $region54: #{tpu_custom_call.1} parent=1 // pred_check
      _
    $region55: #{tpu_custom_call.1} parent=1 // pred_check_branch
      %183 = sbr.rel (0) target = $region57
    $region56: #{tpu_custom_call.1} parent=1 // pred_region
      %s185 = ssub.s32 32, 32
      %186 = vsyncadd [#allocation21], %s185
      %s187 = sshll.u32 [#allocation22], 4
      %s188 = int_to_ptr.vmem [resolvable:$true] %s187
      %193 = dma.hbm_to_vmem [thread:$0]  %s13, 32, %s188, [#allocation21], 16, 16, 1
    $region57: #{tpu_custom_call.1} parent=1 // pred_fallthru
      _
    // Predicated region
    $region58: #{tpu_custom_call.1} parent=1 // pred_check
      _
    $region59: #{tpu_custom_call.1} parent=1 // pred_check_branch
      %195 = sbr.rel (0) target = $region61
    $region60: #{tpu_custom_call.1} parent=1 // pred_region
      %s197 = ssub.s32 1024, 1024
      %198 = vsyncadd [#allocation24], %s197
      %s199 = sshll.u32 [#allocation23], 4
      %s200 = int_to_ptr.vmem [resolvable:$true] %s199
      %205 = dma.hbm_to_vmem [thread:$0]  %s14, 1024, %s200, [#allocation24], 128, 128, 8
    $region61: #{tpu_custom_call.1} parent=1 // pred_fallthru
      _
    // Predicated region
    $region62: #{tpu_custom_call.1} parent=1 // pred_check
      _
    $region63: #{tpu_custom_call.1} parent=1 // pred_check_branch
      %207 = sbr.rel (0) target = $region65
    $region64: #{tpu_custom_call.1} parent=1 // pred_region
      _
    $region65: #{tpu_custom_call.1} parent=1 // pred_fallthru
      _
    // Predicated region
    $region66: #{tpu_custom_call.1} parent=1 // pred_check
      _
    $region67: #{tpu_custom_call.1} parent=1 // pred_check_branch
      %209 = sbr.rel (0) target = $region69
    $region68: #{tpu_custom_call.1} parent=1 // pred_region
      %s211 = ssub.s32 1024, 1024
      %212 = vsyncadd [#allocation24], %s211
      %s213 = sshll.u32 [#allocation25], 4
      %s214 = int_to_ptr.vmem [resolvable:$true] %s213
      %219 = dma.hbm_to_vmem [thread:$0]  %s16, 1024, %s214, [#allocation24], 128, 128, 8
    $region69: #{tpu_custom_call.1} parent=1 // pred_fallthru
      _
    // Predicated region
    $region70: #{tpu_custom_call.1} parent=1 // pred_check
      _
    $region71: #{tpu_custom_call.1} parent=1 // pred_check_branch
      %221 = sbr.rel (0) target = $region73
    $region72: #{tpu_custom_call.1} parent=1 // pred_region
      _
    $region73: #{tpu_custom_call.1} parent=1 // pred_fallthru
      _
    // Predicated region
    $region74: #{tpu_custom_call.1} parent=1 // pred_check
      _
    $region75: #{tpu_custom_call.1} parent=1 // pred_check_branch
      %223 = sbr.rel (0) target = $region77
    $region76: #{tpu_custom_call.1} parent=1 // pred_region
      _
    $region77: #{tpu_custom_call.1} parent=1 // pred_fallthru
      _
    // Predicated region
    $region78: #{tpu_custom_call.1} parent=1 // pred_check
      _
    $region79: #{tpu_custom_call.1} parent=1 // pred_check_branch
      %225 = sbr.rel (0) target = $region81
    $region80: #{tpu_custom_call.1} parent=1 // pred_region
      _
    $region81: #{tpu_custom_call.1} parent=1 // pred_fallthru
      _
    // Predicated region
    $region82: #{tpu_custom_call.1} parent=1 // pred_check
      _
    $region83: #{tpu_custom_call.1} parent=1 // pred_check_branch
      %227 = sbr.rel (0) target = $region85
    $region84: #{tpu_custom_call.1} parent=1 // pred_region
      _
    $region85: #{tpu_custom_call.1} parent=1 // pred_fallthru
      _
    // Predicated region
    $region86: #{tpu_custom_call.1} parent=1 // pred_check
      _
    $region87: #{tpu_custom_call.1} parent=1 // pred_check_branch
      %229 = sbr.rel (0) target = $region89
    $region88: #{tpu_custom_call.1} parent=1 // pred_region
      _
    $region89: #{tpu_custom_call.1} parent=1 // pred_fallthru
      _
    // Predicated region
    $region90: #{tpu_custom_call.1} parent=1 // pred_check
      _
    $region91: #{tpu_custom_call.1} parent=1 // pred_check_branch
      %231 = sbr.rel (0) target = $region93
    $region92: #{tpu_custom_call.1} parent=1 // pred_region
      %232 = dma.done [#allocation3], 512
    $region93: #{tpu_custom_call.1} parent=1 // pred_fallthru
      _
    // Predicated region
    $region94: #{tpu_custom_call.1} parent=1 // pred_check
      _
    $region95: #{tpu_custom_call.1} parent=1 // pred_check_branch
      %234 = sbr.rel (0) target = $region97
    $region96: #{tpu_custom_call.1} parent=1 // pred_region
      %235 = dma.done [#allocation6], 1024
    $region97: #{tpu_custom_call.1} parent=1 // pred_fallthru
      _
    // Predicated region
    $region98: #{tpu_custom_call.1} parent=1 // pred_check
      _
    $region99: #{tpu_custom_call.1} parent=1 // pred_check_branch
      %237 = sbr.rel (0) target = $region101
    $region100: #{tpu_custom_call.1} parent=1 // pred_region
      %238 = dma.done [#allocation6], 32
    $region101: #{tpu_custom_call.1} parent=1 // pred_fallthru
      _
    // Predicated region
    $region102: #{tpu_custom_call.1} parent=1 // pred_check
      _
    $region103: #{tpu_custom_call.1} parent=1 // pred_check_branch
      %240 = sbr.rel (0) target = $region105
    $region104: #{tpu_custom_call.1} parent=1 // pred_region
      %241 = dma.done [#allocation9], 1024
    $region105: #{tpu_custom_call.1} parent=1 // pred_fallthru
      _
    // Predicated region
    $region106: #{tpu_custom_call.1} parent=1 // pred_check
      _
    $region107: #{tpu_custom_call.1} parent=1 // pred_check_branch
      %243 = sbr.rel (0) target = $region109
    $region108: #{tpu_custom_call.1} parent=1 // pred_region
      %244 = dma.done [#allocation9], 32
    $region109: #{tpu_custom_call.1} parent=1 // pred_fallthru
      _
    // Predicated region
    $region110: #{tpu_custom_call.1} parent=1 // pred_check
      _
    $region111: #{tpu_custom_call.1} parent=1 // pred_check_branch
      %246 = sbr.rel (0) target = $region113
    $region112: #{tpu_custom_call.1} parent=1 // pred_region
      %247 = dma.done [#allocation12], 32
    $region113: #{tpu_custom_call.1} parent=1 // pred_fallthru
      _
    // Predicated region
    $region114: #{tpu_custom_call.1} parent=1 // pred_check
      _
    $region115: #{tpu_custom_call.1} parent=1 // pred_check_branch
      %249 = sbr.rel (0) target = $region117
    $region116: #{tpu_custom_call.1} parent=1 // pred_region
      %250 = dma.done [#allocation12], 1024
    $region117: #{tpu_custom_call.1} parent=1 // pred_fallthru
      _
    // Predicated region
    $region118: #{tpu_custom_call.1} parent=1 // pred_check
      _
    $region119: #{tpu_custom_call.1} parent=1 // pred_check_branch
      %252 = sbr.rel (0) target = $region121
    $region120: #{tpu_custom_call.1} parent=1 // pred_region
      %253 = dma.done [#allocation15], 32
    $region121: #{tpu_custom_call.1} parent=1 // pred_fallthru
      _
    // Predicated region
    $region122: #{tpu_custom_call.1} parent=1 // pred_check
      _
    $region123: #{tpu_custom_call.1} parent=1 // pred_check_branch
      %255 = sbr.rel (0) target = $region125
    $region124: #{tpu_custom_call.1} parent=1 // pred_region
      %256 = dma.done [#allocation15], 256
    $region125: #{tpu_custom_call.1} parent=1 // pred_fallthru
      _
    // Predicated region
    $region126: #{tpu_custom_call.1} parent=1 // pred_check
      _
    $region127: #{tpu_custom_call.1} parent=1 // pred_check_branch
      %258 = sbr.rel (0) target = $region129
    $region128: #{tpu_custom_call.1} parent=1 // pred_region
      %259 = dma.done [#allocation18], 1024
    $region129: #{tpu_custom_call.1} parent=1 // pred_fallthru
      _
    // Predicated region
    $region130: #{tpu_custom_call.1} parent=1 // pred_check
      _
    $region131: #{tpu_custom_call.1} parent=1 // pred_check_branch
      %261 = sbr.rel (0) target = $region133
    $region132: #{tpu_custom_call.1} parent=1 // pred_region
      %262 = dma.done [#allocation18], 32
    $region133: #{tpu_custom_call.1} parent=1 // pred_fallthru
      _
    // Predicated region
    $region134: #{tpu_custom_call.1} parent=1 // pred_check
      _
    $region135: #{tpu_custom_call.1} parent=1 // pred_check_branch
      %264 = sbr.rel (0) target = $region137
    $region136: #{tpu_custom_call.1} parent=1 // pred_region
      %265 = dma.done [#allocation21], 1024
    $region137: #{tpu_custom_call.1} parent=1 // pred_fallthru
      _
    // Predicated region
    $region138: #{tpu_custom_call.1} parent=1 // pred_check
      _
    $region139: #{tpu_custom_call.1} parent=1 // pred_check_branch
      %267 = sbr.rel (0) target = $region141
    $region140: #{tpu_custom_call.1} parent=1 // pred_region
      %268 = dma.done [#allocation21], 32
    $region141: #{tpu_custom_call.1} parent=1 // pred_fallthru
      _
    // Predicated region
    $region142: #{tpu_custom_call.1} parent=1 // pred_check
      _
    $region143: #{tpu_custom_call.1} parent=1 // pred_check_branch
      %270 = sbr.rel (0) target = $region145
    $region144: #{tpu_custom_call.1} parent=1 // pred_region
      %271 = dma.done [#allocation24], 1024
    $region145: #{tpu_custom_call.1} parent=1 // pred_fallthru
      _
    // Predicated region
    $region146: #{tpu_custom_call.1} parent=1 // pred_check
      _
    $region147: #{tpu_custom_call.1} parent=1 // pred_check_branch
      %273 = sbr.rel (0) target = $region149
    $region148: #{tpu_custom_call.1} parent=1 // pred_region
      %274 = dma.done [#allocation24], 1024
    $region149: #{tpu_custom_call.1} parent=1 // pred_fallthru
      _
    %v275 = vld [vmem:[%s18] sm:$0xff]
    %v276 = vld [vmem:[%s19] sm:$0xff]
    %v277 = vld [vmem:[#allocation2] sm:$0xff]
    %v278 = vld [vmem:[#allocation2 + $0x8] sm:$0xff]
    %v279 = vld [vmem:[#allocation2 + $0x10] sm:$0xff]
    %v280 = vld [vmem:[#allocation2 + $0x18] sm:$0xff]
    %v281 = vld [vmem:[#allocation5] sm:$0xff]
    %v282 = vld [vmem:[#allocation5 + $0x8] sm:$0xff]
    %v283 = vld [vmem:[#allocation5 + $0x10] sm:$0xff]
    %v284 = vld [vmem:[#allocation5 + $0x18] sm:$0xff]
    %v285 = vld [vmem:[#allocation7] sm:$0x1]
    %v287 = vlaneseq
    %v288 = vshrl.u32 %v287, 7
    %v289 = vsub.s32 0, %v288
    %v290 = vrot.slane %v285, %v289
    %vm292 = vcmask 261120
    %v294 = vsel %vm292, %v277, 0
    %v297 = vsel %vm292, %v278, 0
    %v300 = vsel %vm292, %v279, 0
    %v303 = vsel %vm292, %v280, 0
    %305 = vmatprep.subr.mxu0 0.0
    %306 = vmatpush1.msra.mxu0 %v281
    %307 = vmatprep.subr.mxu0 0.0
    %308 = vmatpush1.msra.mxu0 %v282
    %309 = vmatprep.subr.mxu0 0.0
    %310 = vmatpush1.msra.mxu0 %v283
    %311 = vmatprep.subr.mxu0 0.0
    %312 = vmatpush1.msra.mxu0 %v284
    %313 = vmatprep.subr.mxu0 0.0
    %314 = vmatpush1.msra.mxu0 0.0
    %315 = vmatprep.subr.mxu0 0.0
    %316 = vmatpush1.msra.mxu0 0.0
    %317 = vmatprep.subr.mxu0 0.0
    %318 = vmatpush1.msra.mxu0 0.0
    %319 = vmatprep.subr.mxu0 0.0
    %320 = vmatpush1.msra.mxu0 0.0
    %321 = vmatprep.subr.mxu0 0.0
    %322 = vmatpush1.msra.mxu0 0.0
    %323 = vmatprep.subr.mxu0 0.0
    %324 = vmatpush1.msra.mxu0 0.0
    %325 = vmatprep.subr.mxu0 0.0
    %326 = vmatpush1.msra.mxu0 0.0
    %327 = vmatprep.subr.mxu0 0.0
    %328 = vmatpush1.msra.mxu0 0.0
    %329 = vmatprep.subr.mxu0 0.0
    %330 = vmatpush1.msra.mxu0 0.0
    %331 = vmatprep.subr.mxu0 0.0
    %332 = vmatpush1.msra.mxu0 0.0
    %333 = vmatprep.subr.mxu0 0.0
    %334 = vmatpush1.msra.mxu0 0.0
    %335 = vmatprep.subr.mxu0 0.0
    %336 = vmatpush1.msra.mxu0 0.0
    %337 = vmatprep.subr.mxu0 0.0
    %338 = vmatpush1.msra.mxu0 0.0
    %339 = vmatprep.subr.mxu0 0.0
    %340 = vmatpush1.msra.mxu0 0.0
    %341 = vmatprep.subr.mxu0 0.0
    %342 = vmatpush1.msra.mxu0 0.0
    %343 = vmatprep.subr.mxu0 0.0
    %344 = vmatpush1.msra.mxu0 0.0
    %345 = vmatprep.subr.mxu0 0.0
    %346 = vmatpush1.msra.mxu0 0.0
    %347 = vmatprep.subr.mxu0 0.0
    %348 = vmatpush1.msra.mxu0 0.0
    %349 = vmatprep.subr.mxu0 0.0
    %350 = vmatpush1.msra.mxu0 0.0
    %351 = vmatprep.subr.mxu0 0.0
    %352 = vmatpush1.msra.mxu0 0.0
    %353 = vmatprep.subr.mxu0 0.0
    %354 = vmatpush1.msra.mxu0 0.0
    %355 = vmatprep.subr.mxu0 0.0
    %356 = vmatpush1.msra.mxu0 0.0
    %357 = vmatprep.subr.mxu0 0.0
    %358 = vmatpush1.msra.mxu0 0.0
    %359 = vmatprep.subr.mxu0 0.0
    %360 = vmatpush1.msra.mxu0 0.0
    %361 = vmatprep.subr.mxu0 0.0
    %362 = vmatpush1.msra.mxu0 0.0
    %363 = vmatprep.subr.mxu0 0.0
    %364 = vmatpush1.msra.mxu0 0.0
    %365 = vmatprep.subr.mxu0 0.0
    %366 = vmatpush1.msra.mxu0 0.0
    %367 = vmatprep.subr.mxu0 0.0
    %368 = vmatpush1.msra.mxu0 0.0
    %369 = vmatprep.mubr.f32.mxu0 0.0
    %370 = vmatmul.mubr.f32.gmra.mrb[0].mxu0 %v294
    %v371 = vpop.f32.mrb[0].mxu0
    %v372 = vadd.f32 %v290, %v371
    %v373 = vpop.f32.mrb[0].mxu0
    %374 = vmatprep.mubr.f32.mxu0 0.0
    %375 = vmatmul.mubr.f32.gmra.mrb[0].mxu0 %v297
    %v376 = vpop.f32.mrb[0].mxu0
    %v377 = vadd.f32 %v290, %v376
    %v378 = vpop.f32.mrb[0].mxu0
    %379 = vmatprep.mubr.f32.mxu0 0.0
    %380 = vmatmul.mubr.f32.gmra.mrb[0].mxu0 %v300
    %v381 = vpop.f32.mrb[0].mxu0
    %v382 = vadd.f32 %v290, %v381
    %v383 = vpop.f32.mrb[0].mxu0
    %384 = vmatprep.mubr.f32.mxu0 0.0
    %385 = vmatmul.mubr.f32.gmra.mrb[0].mxu0 %v303
    %v386 = vpop.f32.mrb[0].mxu0
    %v387 = vadd.f32 %v290, %v386
    %v388 = vpop.f32.mrb[0].mxu0
    %389 = vdwg.mxu0
    %391 = vrot.lane.b32.xlu0 %v372, 96
    %v392 = vpop.permute.xlu0 %391
    %vm393 = vcmask 64512
    %v394 = vsel %vm393, %v372, 0
    %v396 = vsel %vm393, %v392, 0
    %398 = vmatprep.subr.mxu0 0.0
    %399 = vmatpush1.xpose.msra.mxu0 %v396
    %400 = vmatprep.subr.mxu0 0.0
    %401 = vmatpush1.xpose.msra.mxu0 0.0
    %402 = vmatprep.subr.mxu0 0.0
    %403 = vmatpush1.xpose.msra.mxu0 0.0
    %404 = vmatprep.subr.mxu0 0.0
    %405 = vmatpush1.xpose.msra.mxu0 0.0
    %406 = vmatprep.subr.mxu0 0.0
    %407 = vmatpush1.xpose.msra.mxu0 0.0
    %408 = vmatprep.subr.mxu0 0.0
    %409 = vmatpush1.xpose.msra.mxu0 0.0
    %410 = vmatprep.subr.mxu0 0.0
    %411 = vmatpush1.xpose.msra.mxu0 0.0
    %412 = vmatprep.subr.mxu0 0.0
    %413 = vmatpush1.xpose.msra.mxu0 0.0
    %414 = vmatprep.subr.mxu0 0.0
    %415 = vmatpush1.xpose.msra.mxu0 0.0
    %416 = vmatprep.subr.mxu0 0.0
    %417 = vmatpush1.xpose.msra.mxu0 0.0
    %418 = vmatprep.subr.mxu0 0.0
    %419 = vmatpush1.xpose.msra.mxu0 0.0
    %420 = vmatprep.subr.mxu0 0.0
    %421 = vmatpush1.xpose.msra.mxu0 0.0
    %422 = vmatprep.subr.mxu0 0.0
    %423 = vmatpush1.xpose.msra.mxu0 0.0
    %424 = vmatprep.subr.mxu0 0.0
    %425 = vmatpush1.xpose.msra.mxu0 0.0
    %426 = vmatprep.subr.mxu0 0.0
    %427 = vmatpush1.xpose.msra.mxu0 0.0
    %428 = vmatprep.subr.mxu0 0.0
    %429 = vmatpush1.xpose.msra.mxu0 0.0
    %430 = vmatprep.subr.mxu0 0.0
    %431 = vmatpush1.xpose.msra.mxu0 0.0
    %432 = vmatprep.subr.mxu0 0.0
    %433 = vmatpush1.xpose.msra.mxu0 0.0
    %434 = vmatprep.subr.mxu0 0.0
    %435 = vmatpush1.xpose.msra.mxu0 0.0
    %436 = vmatprep.subr.mxu0 0.0
    %437 = vmatpush1.xpose.msra.mxu0 0.0
    %438 = vmatprep.subr.mxu0 0.0
    %439 = vmatpush1.xpose.msra.mxu0 0.0
    %440 = vmatprep.subr.mxu0 0.0
    %441 = vmatpush1.xpose.msra.mxu0 0.0
    %442 = vmatprep.subr.mxu0 0.0
    %443 = vmatpush1.xpose.msra.mxu0 0.0
    %444 = vmatprep.subr.mxu0 0.0
    %445 = vmatpush1.xpose.msra.mxu0 0.0
    %446 = vmatprep.subr.mxu0 0.0
    %447 = vmatpush1.xpose.msra.mxu0 0.0
    %448 = vmatprep.subr.mxu0 0.0
    %449 = vmatpush1.xpose.msra.mxu0 0.0
    %450 = vmatprep.subr.mxu0 0.0
    %451 = vmatpush1.xpose.msra.mxu0 0.0
    %452 = vmatprep.subr.mxu0 0.0
    %453 = vmatpush1.xpose.msra.mxu0 0.0
    %454 = vmatprep.subr.mxu0 0.0
    %455 = vmatpush1.xpose.msra.mxu0 0.0
    %456 = vmatprep.subr.mxu0 0.0
    %457 = vmatpush1.xpose.msra.mxu0 0.0
    %458 = vmatprep.subr.mxu0 0.0
    %459 = vmatpush1.xpose.msra.mxu0 0.0
    %460 = vmatprep.subr.mxu0 0.0
    %461 = vmatpush1.xpose.msra.mxu0 0.0
    %462 = vmatprep.mubr.f32.mxu0 0.0
    %463 = vmatmul.mubr.f32.gmra.mrb[0].mxu0 %v394
    %v464 = vpop.f32.mrb[0].mxu0
    %v465 = vadd.f32 0.0, %v464
    %v466 = vpop.f32.mrb[0].mxu0
    %467 = vdwg.mxu0
    %469 = vrot.lane.b32.xlu0 %v377, 96
    %v470 = vpop.permute.xlu0 %469
    %v471 = vsel %vm393, %v377, 0
    %v473 = vsel %vm393, %v470, 0
    %475 = vmatprep.subr.mxu0 0.0
    %476 = vmatpush1.xpose.msra.mxu0 %v473
    %477 = vmatprep.subr.mxu0 0.0
    %478 = vmatpush1.xpose.msra.mxu0 0.0
    %479 = vmatprep.subr.mxu0 0.0
    %480 = vmatpush1.xpose.msra.mxu0 0.0
    %481 = vmatprep.subr.mxu0 0.0
    %482 = vmatpush1.xpose.msra.mxu0 0.0
    %483 = vmatprep.subr.mxu0 0.0
    %484 = vmatpush1.xpose.msra.mxu0 0.0
    %485 = vmatprep.subr.mxu0 0.0
    %486 = vmatpush1.xpose.msra.mxu0 0.0
    %487 = vmatprep.subr.mxu0 0.0
    %488 = vmatpush1.xpose.msra.mxu0 0.0
    %489 = vmatprep.subr.mxu0 0.0
    %490 = vmatpush1.xpose.msra.mxu0 0.0
    %491 = vmatprep.subr.mxu0 0.0
    %492 = vmatpush1.xpose.msra.mxu0 0.0
    %493 = vmatprep.subr.mxu0 0.0
    %494 = vmatpush1.xpose.msra.mxu0 0.0
    %495 = vmatprep.subr.mxu0 0.0
    %496 = vmatpush1.xpose.msra.mxu0 0.0
    %497 = vmatprep.subr.mxu0 0.0
    %498 = vmatpush1.xpose.msra.mxu0 0.0
    %499 = vmatprep.subr.mxu0 0.0
    %500 = vmatpush1.xpose.msra.mxu0 0.0
    %501 = vmatprep.subr.mxu0 0.0
    %502 = vmatpush1.xpose.msra.mxu0 0.0
    %503 = vmatprep.subr.mxu0 0.0
    %504 = vmatpush1.xpose.msra.mxu0 0.0
    %505 = vmatprep.subr.mxu0 0.0
    %506 = vmatpush1.xpose.msra.mxu0 0.0
    %507 = vmatprep.subr.mxu0 0.0
    %508 = vmatpush1.xpose.msra.mxu0 0.0
    %509 = vmatprep.subr.mxu0 0.0
    %510 = vmatpush1.xpose.msra.mxu0 0.0
    %511 = vmatprep.subr.mxu0 0.0
    %512 = vmatpush1.xpose.msra.mxu0 0.0
    %513 = vmatprep.subr.mxu0 0.0
    %514 = vmatpush1.xpose.msra.mxu0 0.0
    %515 = vmatprep.subr.mxu0 0.0
    %516 = vmatpush1.xpose.msra.mxu0 0.0
    %517 = vmatprep.subr.mxu0 0.0
    %518 = vmatpush1.xpose.msra.mxu0 0.0
    %519 = vmatprep.subr.mxu0 0.0
    %520 = vmatpush1.xpose.msra.mxu0 0.0
    %521 = vmatprep.subr.mxu0 0.0
    %522 = vmatpush1.xpose.msra.mxu0 0.0
    %523 = vmatprep.subr.mxu0 0.0
    %524 = vmatpush1.xpose.msra.mxu0 0.0
    %525 = vmatprep.subr.mxu0 0.0
    %526 = vmatpush1.xpose.msra.mxu0 0.0
    %527 = vmatprep.subr.mxu0 0.0
    %528 = vmatpush1.xpose.msra.mxu0 0.0
    %529 = vmatprep.subr.mxu0 0.0
    %530 = vmatpush1.xpose.msra.mxu0 0.0
    %531 = vmatprep.subr.mxu0 0.0
    %532 = vmatpush1.xpose.msra.mxu0 0.0
    %533 = vmatprep.subr.mxu0 0.0
    %534 = vmatpush1.xpose.msra.mxu0 0.0
    %535 = vmatprep.subr.mxu0 0.0
    %536 = vmatpush1.xpose.msra.mxu0 0.0
    %537 = vmatprep.subr.mxu0 0.0
    %538 = vmatpush1.xpose.msra.mxu0 0.0
    %539 = vmatprep.mubr.f32.mxu0 0.0
    %540 = vmatmul.mubr.f32.gmra.mrb[0].mxu0 %v471
    %v541 = vpop.f32.mrb[0].mxu0
    %v542 = vadd.f32 0.0, %v541
    %v543 = vpop.f32.mrb[0].mxu0
    %544 = vdwg.mxu0
    %546 = vrot.lane.b32.xlu0 %v382, 96
    %v547 = vpop.permute.xlu0 %546
    %v548 = vsel %vm393, %v382, 0
    %v550 = vsel %vm393, %v547, 0
    %552 = vmatprep.subr.mxu0 0.0
    %553 = vmatpush1.xpose.msra.mxu0 %v550
    %554 = vmatprep.subr.mxu0 0.0
    %555 = vmatpush1.xpose.msra.mxu0 0.0
    %556 = vmatprep.subr.mxu0 0.0
    %557 = vmatpush1.xpose.msra.mxu0 0.0
    %558 = vmatprep.subr.mxu0 0.0
    %559 = vmatpush1.xpose.msra.mxu0 0.0
    %560 = vmatprep.subr.mxu0 0.0
    %561 = vmatpush1.xpose.msra.mxu0 0.0
    %562 = vmatprep.subr.mxu0 0.0
    %563 = vmatpush1.xpose.msra.mxu0 0.0
    %564 = vmatprep.subr.mxu0 0.0
    %565 = vmatpush1.xpose.msra.mxu0 0.0
    %566 = vmatprep.subr.mxu0 0.0
    %567 = vmatpush1.xpose.msra.mxu0 0.0
    %568 = vmatprep.subr.mxu0 0.0
    %569 = vmatpush1.xpose.msra.mxu0 0.0
    %570 = vmatprep.subr.mxu0 0.0
    %571 = vmatpush1.xpose.msra.mxu0 0.0
    %572 = vmatprep.subr.mxu0 0.0
    %573 = vmatpush1.xpose.msra.mxu0 0.0
    %574 = vmatprep.subr.mxu0 0.0
    %575 = vmatpush1.xpose.msra.mxu0 0.0
    %576 = vmatprep.subr.mxu0 0.0
    %577 = vmatpush1.xpose.msra.mxu0 0.0
    %578 = vmatprep.subr.mxu0 0.0
    %579 = vmatpush1.xpose.msra.mxu0 0.0
    %580 = vmatprep.subr.mxu0 0.0
    %581 = vmatpush1.xpose.msra.mxu0 0.0
    %582 = vmatprep.subr.mxu0 0.0
    %583 = vmatpush1.xpose.msra.mxu0 0.0
    %584 = vmatprep.subr.mxu0 0.0
    %585 = vmatpush1.xpose.msra.mxu0 0.0
    %586 = vmatprep.subr.mxu0 0.0
    %587 = vmatpush1.xpose.msra.mxu0 0.0
    %588 = vmatprep.subr.mxu0 0.0
    %589 = vmatpush1.xpose.msra.mxu0 0.0
    %590 = vmatprep.subr.mxu0 0.0
    %591 = vmatpush1.xpose.msra.mxu0 0.0
    %592 = vmatprep.subr.mxu0 0.0
    %593 = vmatpush1.xpose.msra.mxu0 0.0
    %594 = vmatprep.subr.mxu0 0.0
    %595 = vmatpush1.xpose.msra.mxu0 0.0
    %596 = vmatprep.subr.mxu0 0.0
    %597 = vmatpush1.xpose.msra.mxu0 0.0
    %598 = vmatprep.subr.mxu0 0.0
    %599 = vmatpush1.xpose.msra.mxu0 0.0
    %600 = vmatprep.subr.mxu0 0.0
    %601 = vmatpush1.xpose.msra.mxu0 0.0
    %602 = vmatprep.subr.mxu0 0.0
    %603 = vmatpush1.xpose.msra.mxu0 0.0
    %604 = vmatprep.subr.mxu0 0.0
    %605 = vmatpush1.xpose.msra.mxu0 0.0
    %606 = vmatprep.subr.mxu0 0.0
    %607 = vmatpush1.xpose.msra.mxu0 0.0
    %608 = vmatprep.subr.mxu0 0.0
    %609 = vmatpush1.xpose.msra.mxu0 0.0
    %610 = vmatprep.subr.mxu0 0.0
    %611 = vmatpush1.xpose.msra.mxu0 0.0
    %612 = vmatprep.subr.mxu0 0.0
    %613 = vmatpush1.xpose.msra.mxu0 0.0
    %614 = vmatprep.subr.mxu0 0.0
    %615 = vmatpush1.xpose.msra.mxu0 0.0
    %616 = vmatprep.mubr.f32.mxu0 0.0
    %617 = vmatmul.mubr.f32.gmra.mrb[0].mxu0 %v548
    %v618 = vpop.f32.mrb[0].mxu0
    %v619 = vadd.f32 0.0, %v618
    %v620 = vpop.f32.mrb[0].mxu0
    %621 = vdwg.mxu0
    %623 = vrot.lane.b32.xlu0 %v387, 96
    %v624 = vpop.permute.xlu0 %623
    %v625 = vsel %vm393, %v387, 0
    %v627 = vsel %vm393, %v624, 0
    %629 = vmatprep.subr.mxu0 0.0
    %630 = vmatpush1.xpose.msra.mxu0 %v627
    %631 = vmatprep.subr.mxu0 0.0
    %632 = vmatpush1.xpose.msra.mxu0 0.0
    %633 = vmatprep.subr.mxu0 0.0
    %634 = vmatpush1.xpose.msra.mxu0 0.0
    %635 = vmatprep.subr.mxu0 0.0
    %636 = vmatpush1.xpose.msra.mxu0 0.0
    %637 = vmatprep.subr.mxu0 0.0
    %638 = vmatpush1.xpose.msra.mxu0 0.0
    %639 = vmatprep.subr.mxu0 0.0
    %640 = vmatpush1.xpose.msra.mxu0 0.0
    %641 = vmatprep.subr.mxu0 0.0
    %642 = vmatpush1.xpose.msra.mxu0 0.0
    %643 = vmatprep.subr.mxu0 0.0
    %644 = vmatpush1.xpose.msra.mxu0 0.0
    %645 = vmatprep.subr.mxu0 0.0
    %646 = vmatpush1.xpose.msra.mxu0 0.0
    %647 = vmatprep.subr.mxu0 0.0
    %648 = vmatpush1.xpose.msra.mxu0 0.0
    %649 = vmatprep.subr.mxu0 0.0
    %650 = vmatpush1.xpose.msra.mxu0 0.0
    %651 = vmatprep.subr.mxu0 0.0
    %652 = vmatpush1.xpose.msra.mxu0 0.0
    %653 = vmatprep.subr.mxu0 0.0
    %654 = vmatpush1.xpose.msra.mxu0 0.0
    %655 = vmatprep.subr.mxu0 0.0
    %656 = vmatpush1.xpose.msra.mxu0 0.0
    %657 = vmatprep.subr.mxu0 0.0
    %658 = vmatpush1.xpose.msra.mxu0 0.0
    %659 = vmatprep.subr.mxu0 0.0
    %660 = vmatpush1.xpose.msra.mxu0 0.0
    %661 = vmatprep.subr.mxu0 0.0
    %662 = vmatpush1.xpose.msra.mxu0 0.0
    %663 = vmatprep.subr.mxu0 0.0
    %664 = vmatpush1.xpose.msra.mxu0 0.0
    %665 = vmatprep.subr.mxu0 0.0
    %666 = vmatpush1.xpose.msra.mxu0 0.0
    %667 = vmatprep.subr.mxu0 0.0
    %668 = vmatpush1.xpose.msra.mxu0 0.0
    %669 = vmatprep.subr.mxu0 0.0
    %670 = vmatpush1.xpose.msra.mxu0 0.0
    %671 = vmatprep.subr.mxu0 0.0
    %672 = vmatpush1.xpose.msra.mxu0 0.0
    %673 = vmatprep.subr.mxu0 0.0
    %674 = vmatpush1.xpose.msra.mxu0 0.0
    %675 = vmatprep.subr.mxu0 0.0
    %676 = vmatpush1.xpose.msra.mxu0 0.0
    %677 = vmatprep.subr.mxu0 0.0
    %678 = vmatpush1.xpose.msra.mxu0 0.0
    %679 = vmatprep.subr.mxu0 0.0
    %680 = vmatpush1.xpose.msra.mxu0 0.0
    %681 = vmatprep.subr.mxu0 0.0
    %682 = vmatpush1.xpose.msra.mxu0 0.0
    %683 = vmatprep.subr.mxu0 0.0
    %684 = vmatpush1.xpose.msra.mxu0 0.0
    %685 = vmatprep.subr.mxu0 0.0
    %686 = vmatpush1.xpose.msra.mxu0 0.0
    %687 = vmatprep.subr.mxu0 0.0
    %688 = vmatpush1.xpose.msra.mxu0 0.0
    %689 = vmatprep.subr.mxu0 0.0
    %690 = vmatpush1.xpose.msra.mxu0 0.0
    %691 = vmatprep.subr.mxu0 0.0
    %692 = vmatpush1.xpose.msra.mxu0 0.0
    %693 = vmatprep.mubr.f32.mxu0 0.0
    %694 = vmatmul.mubr.f32.gmra.mrb[0].mxu0 %v625
    %v695 = vpop.f32.mrb[0].mxu0
    %v696 = vadd.f32 0.0, %v695
    %v697 = vpop.f32.mrb[0].mxu0
    %698 = vdwg.mxu0
    %v699 = vmul.f32 %v465, 0.35355338
    %v700 = vmul.f32 %v542, 0.35355338
    %v701 = vmul.f32 %v619, 0.35355338
    %v702 = vmul.f32 %v696, 0.35355338
    %703 = vrot.lane.b32.xlu0 %v372, 64
    %v704 = vpop.permute.xlu0 %703
    %v707 = vsel %vm393, %v699, 0
    %709 = vmatprep.subr.mxu0 0.0
    %710 = vmatpush1.msra.mxu0 %v704
    %711 = vmatprep.subr.mxu0 0.0
    %712 = vmatpush1.msra.mxu0 0.0
    %713 = vmatprep.subr.mxu0 0.0
    %714 = vmatpush1.msra.mxu0 0.0
    %715 = vmatprep.subr.mxu0 0.0
    %716 = vmatpush1.msra.mxu0 0.0
    %717 = vmatprep.subr.mxu0 0.0
    %718 = vmatpush1.msra.mxu0 0.0
    %719 = vmatprep.subr.mxu0 0.0
    %720 = vmatpush1.msra.mxu0 0.0
    %721 = vmatprep.subr.mxu0 0.0
    %722 = vmatpush1.msra.mxu0 0.0
    %723 = vmatprep.subr.mxu0 0.0
    %724 = vmatpush1.msra.mxu0 0.0
    %725 = vmatprep.subr.mxu0 0.0
    %726 = vmatpush1.msra.mxu0 0.0
    %727 = vmatprep.subr.mxu0 0.0
    %728 = vmatpush1.msra.mxu0 0.0
    %729 = vmatprep.subr.mxu0 0.0
    %730 = vmatpush1.msra.mxu0 0.0
    %731 = vmatprep.subr.mxu0 0.0
    %732 = vmatpush1.msra.mxu0 0.0
    %733 = vmatprep.subr.mxu0 0.0
    %734 = vmatpush1.msra.mxu0 0.0
    %735 = vmatprep.subr.mxu0 0.0
    %736 = vmatpush1.msra.mxu0 0.0
    %737 = vmatprep.subr.mxu0 0.0
    %738 = vmatpush1.msra.mxu0 0.0
    %739 = vmatprep.subr.mxu0 0.0
    %740 = vmatpush1.msra.mxu0 0.0
    %741 = vmatprep.subr.mxu0 0.0
    %742 = vmatpush1.msra.mxu0 0.0
    %743 = vmatprep.subr.mxu0 0.0
    %744 = vmatpush1.msra.mxu0 0.0
    %745 = vmatprep.subr.mxu0 0.0
    %746 = vmatpush1.msra.mxu0 0.0
    %747 = vmatprep.subr.mxu0 0.0
    %748 = vmatpush1.msra.mxu0 0.0
    %749 = vmatprep.subr.mxu0 0.0
    %750 = vmatpush1.msra.mxu0 0.0
    %751 = vmatprep.subr.mxu0 0.0
    %752 = vmatpush1.msra.mxu0 0.0
    %753 = vmatprep.subr.mxu0 0.0
    %754 = vmatpush1.msra.mxu0 0.0
    %755 = vmatprep.subr.mxu0 0.0
    %756 = vmatpush1.msra.mxu0 0.0
    %757 = vmatprep.subr.mxu0 0.0
    %758 = vmatpush1.msra.mxu0 0.0
    %759 = vmatprep.subr.mxu0 0.0
    %760 = vmatpush1.msra.mxu0 0.0
    %761 = vmatprep.subr.mxu0 0.0
    %762 = vmatpush1.msra.mxu0 0.0
    %763 = vmatprep.subr.mxu0 0.0
    %764 = vmatpush1.msra.mxu0 0.0
    %765 = vmatprep.subr.mxu0 0.0
    %766 = vmatpush1.msra.mxu0 0.0
    %767 = vmatprep.subr.mxu0 0.0
    %768 = vmatpush1.msra.mxu0 0.0
    %769 = vmatprep.subr.mxu0 0.0
    %770 = vmatpush1.msra.mxu0 0.0
    %771 = vmatprep.subr.mxu0 0.0
    %772 = vmatpush1.msra.mxu0 0.0
    %773 = vmatprep.mubr.f32.mxu0 0.0
    %774 = vmatmul.mubr.f32.gmra.mrb[0].mxu0 %v707
    %v775 = vpop.f32.mrb[0].mxu0
    %v776 = vadd.f32 0.0, %v775
    %v777 = vpop.f32.mrb[0].mxu0
    %778 = vdwg.mxu0
    %779 = vrot.lane.b32.xlu0 %v377, 64
    %v780 = vpop.permute.xlu0 %779
    %v783 = vsel %vm393, %v700, 0
    %785 = vmatprep.subr.mxu0 0.0
    %786 = vmatpush1.msra.mxu0 %v780
    %787 = vmatprep.subr.mxu0 0.0
    %788 = vmatpush1.msra.mxu0 0.0
    %789 = vmatprep.subr.mxu0 0.0
    %790 = vmatpush1.msra.mxu0 0.0
    %791 = vmatprep.subr.mxu0 0.0
    %792 = vmatpush1.msra.mxu0 0.0
    %793 = vmatprep.subr.mxu0 0.0
    %794 = vmatpush1.msra.mxu0 0.0
    %795 = vmatprep.subr.mxu0 0.0
    %796 = vmatpush1.msra.mxu0 0.0
    %797 = vmatprep.subr.mxu0 0.0
    %798 = vmatpush1.msra.mxu0 0.0
    %799 = vmatprep.subr.mxu0 0.0
    %800 = vmatpush1.msra.mxu0 0.0
    %801 = vmatprep.subr.mxu0 0.0
    %802 = vmatpush1.msra.mxu0 0.0
    %803 = vmatprep.subr.mxu0 0.0
    %804 = vmatpush1.msra.mxu0 0.0
    %805 = vmatprep.subr.mxu0 0.0
    %806 = vmatpush1.msra.mxu0 0.0
    %807 = vmatprep.subr.mxu0 0.0
    %808 = vmatpush1.msra.mxu0 0.0
    %809 = vmatprep.subr.mxu0 0.0
    %810 = vmatpush1.msra.mxu0 0.0
    %811 = vmatprep.subr.mxu0 0.0
    %812 = vmatpush1.msra.mxu0 0.0
    %813 = vmatprep.subr.mxu0 0.0
    %814 = vmatpush1.msra.mxu0 0.0
    %815 = vmatprep.subr.mxu0 0.0
    %816 = vmatpush1.msra.mxu0 0.0
    %817 = vmatprep.subr.mxu0 0.0
    %818 = vmatpush1.msra.mxu0 0.0
    %819 = vmatprep.subr.mxu0 0.0
    %820 = vmatpush1.msra.mxu0 0.0
    %821 = vmatprep.subr.mxu0 0.0
    %822 = vmatpush1.msra.mxu0 0.0
    %823 = vmatprep.subr.mxu0 0.0
    %824 = vmatpush1.msra.mxu0 0.0
    %825 = vmatprep.subr.mxu0 0.0
    %826 = vmatpush1.msra.mxu0 0.0
    %827 = vmatprep.subr.mxu0 0.0
    %828 = vmatpush1.msra.mxu0 0.0
    %829 = vmatprep.subr.mxu0 0.0
    %830 = vmatpush1.msra.mxu0 0.0
    %831 = vmatprep.subr.mxu0 0.0
    %832 = vmatpush1.msra.mxu0 0.0
    %833 = vmatprep.subr.mxu0 0.0
    %834 = vmatpush1.msra.mxu0 0.0
    %835 = vmatprep.subr.mxu0 0.0
    %836 = vmatpush1.msra.mxu0 0.0
    %837 = vmatprep.subr.mxu0 0.0
    %838 = vmatpush1.msra.mxu0 0.0
    %839 = vmatprep.subr.mxu0 0.0
    %840 = vmatpush1.msra.mxu0 0.0
    %841 = vmatprep.subr.mxu0 0.0
    %842 = vmatpush1.msra.mxu0 0.0
    %843 = vmatprep.subr.mxu0 0.0
    %844 = vmatpush1.msra.mxu0 0.0
    %845 = vmatprep.subr.mxu0 0.0
    %846 = vmatpush1.msra.mxu0 0.0
    %847 = vmatprep.subr.mxu0 0.0
    %848 = vmatpush1.msra.mxu0 0.0
    %849 = vmatprep.mubr.f32.mxu0 0.0
    %850 = vmatmul.mubr.f32.gmra.mrb[0].mxu0 %v783
    %v851 = vpop.f32.mrb[0].mxu0
    %v852 = vadd.f32 0.0, %v851
    %v853 = vpop.f32.mrb[0].mxu0
    %854 = vdwg.mxu0
    %855 = vrot.lane.b32.xlu0 %v382, 64
    %v856 = vpop.permute.xlu0 %855
    %v859 = vsel %vm393, %v701, 0
    %861 = vmatprep.subr.mxu0 0.0
    %862 = vmatpush1.msra.mxu0 %v856
    %863 = vmatprep.subr.mxu0 0.0
    %864 = vmatpush1.msra.mxu0 0.0
    %865 = vmatprep.subr.mxu0 0.0
    %866 = vmatpush1.msra.mxu0 0.0
    %867 = vmatprep.subr.mxu0 0.0
    %868 = vmatpush1.msra.mxu0 0.0
    %869 = vmatprep.subr.mxu0 0.0
    %870 = vmatpush1.msra.mxu0 0.0
    %871 = vmatprep.subr.mxu0 0.0
    %872 = vmatpush1.msra.mxu0 0.0
    %873 = vmatprep.subr.mxu0 0.0
    %874 = vmatpush1.msra.mxu0 0.0
    %875 = vmatprep.subr.mxu0 0.0
    %876 = vmatpush1.msra.mxu0 0.0
    %877 = vmatprep.subr.mxu0 0.0
    %878 = vmatpush1.msra.mxu0 0.0
    %879 = vmatprep.subr.mxu0 0.0
    %880 = vmatpush1.msra.mxu0 0.0
    %881 = vmatprep.subr.mxu0 0.0
    %882 = vmatpush1.msra.mxu0 0.0
    %883 = vmatprep.subr.mxu0 0.0
    %884 = vmatpush1.msra.mxu0 0.0
    %885 = vmatprep.subr.mxu0 0.0
    %886 = vmatpush1.msra.mxu0 0.0
    %887 = vmatprep.subr.mxu0 0.0
    %888 = vmatpush1.msra.mxu0 0.0
    %889 = vmatprep.subr.mxu0 0.0
    %890 = vmatpush1.msra.mxu0 0.0
    %891 = vmatprep.subr.mxu0 0.0
    %892 = vmatpush1.msra.mxu0 0.0
    %893 = vmatprep.subr.mxu0 0.0
    %894 = vmatpush1.msra.mxu0 0.0
    %895 = vmatprep.subr.mxu0 0.0
    %896 = vmatpush1.msra.mxu0 0.0
    %897 = vmatprep.subr.mxu0 0.0
    %898 = vmatpush1.msra.mxu0 0.0
    %899 = vmatprep.subr.mxu0 0.0
    %900 = vmatpush1.msra.mxu0 0.0
    %901 = vmatprep.subr.mxu0 0.0
    %902 = vmatpush1.msra.mxu0 0.0
    %903 = vmatprep.subr.mxu0 0.0
    %904 = vmatpush1.msra.mxu0 0.0
    %905 = vmatprep.subr.mxu0 0.0
    %906 = vmatpush1.msra.mxu0 0.0
    %907 = vmatprep.subr.mxu0 0.0
    %908 = vmatpush1.msra.mxu0 0.0
    %909 = vmatprep.subr.mxu0 0.0
    %910 = vmatpush1.msra.mxu0 0.0
    %911 = vmatprep.subr.mxu0 0.0
    %912 = vmatpush1.msra.mxu0 0.0
    %913 = vmatprep.subr.mxu0 0.0
    %914 = vmatpush1.msra.mxu0 0.0
    %915 = vmatprep.subr.mxu0 0.0
    %916 = vmatpush1.msra.mxu0 0.0
    %917 = vmatprep.subr.mxu0 0.0
    %918 = vmatpush1.msra.mxu0 0.0
    %919 = vmatprep.subr.mxu0 0.0
    %920 = vmatpush1.msra.mxu0 0.0
    %921 = vmatprep.subr.mxu0 0.0
    %922 = vmatpush1.msra.mxu0 0.0
    %923 = vmatprep.subr.mxu0 0.0
    %924 = vmatpush1.msra.mxu0 0.0
    %925 = vmatprep.mubr.f32.mxu0 0.0
    %926 = vmatmul.mubr.f32.gmra.mrb[0].mxu0 %v859
    %v927 = vpop.f32.mrb[0].mxu0
    %v928 = vadd.f32 0.0, %v927
    %v929 = vpop.f32.mrb[0].mxu0
    %930 = vdwg.mxu0
    %931 = vrot.lane.b32.xlu0 %v387, 64
    %v932 = vpop.permute.xlu0 %931
    %v935 = vsel %vm393, %v702, 0
    %937 = vmatprep.subr.mxu0 0.0
    %938 = vmatpush1.msra.mxu0 %v932
    %939 = vmatprep.subr.mxu0 0.0
    %940 = vmatpush1.msra.mxu0 0.0
    %941 = vmatprep.subr.mxu0 0.0
    %942 = vmatpush1.msra.mxu0 0.0
    %943 = vmatprep.subr.mxu0 0.0
    %944 = vmatpush1.msra.mxu0 0.0
    %945 = vmatprep.subr.mxu0 0.0
    %946 = vmatpush1.msra.mxu0 0.0
    %947 = vmatprep.subr.mxu0 0.0
    %948 = vmatpush1.msra.mxu0 0.0
    %949 = vmatprep.subr.mxu0 0.0
    %950 = vmatpush1.msra.mxu0 0.0
    %951 = vmatprep.subr.mxu0 0.0
    %952 = vmatpush1.msra.mxu0 0.0
    %953 = vmatprep.subr.mxu0 0.0
    %954 = vmatpush1.msra.mxu0 0.0
    %955 = vmatprep.subr.mxu0 0.0
    %956 = vmatpush1.msra.mxu0 0.0
    %957 = vmatprep.subr.mxu0 0.0
    %958 = vmatpush1.msra.mxu0 0.0
    %959 = vmatprep.subr.mxu0 0.0
    %960 = vmatpush1.msra.mxu0 0.0
    %961 = vmatprep.subr.mxu0 0.0
    %962 = vmatpush1.msra.mxu0 0.0
    %963 = vmatprep.subr.mxu0 0.0
    %964 = vmatpush1.msra.mxu0 0.0
    %965 = vmatprep.subr.mxu0 0.0
    %966 = vmatpush1.msra.mxu0 0.0
    %967 = vmatprep.subr.mxu0 0.0
    %968 = vmatpush1.msra.mxu0 0.0
    %969 = vmatprep.subr.mxu0 0.0
    %970 = vmatpush1.msra.mxu0 0.0
    %971 = vmatprep.subr.mxu0 0.0
    %972 = vmatpush1.msra.mxu0 0.0
    %973 = vmatprep.subr.mxu0 0.0
    %974 = vmatpush1.msra.mxu0 0.0
    %975 = vmatprep.subr.mxu0 0.0
    %976 = vmatpush1.msra.mxu0 0.0
    %977 = vmatprep.subr.mxu0 0.0
    %978 = vmatpush1.msra.mxu0 0.0
    %979 = vmatprep.subr.mxu0 0.0
    %980 = vmatpush1.msra.mxu0 0.0
    %981 = vmatprep.subr.mxu0 0.0
    %982 = vmatpush1.msra.mxu0 0.0
    %983 = vmatprep.subr.mxu0 0.0
    %984 = vmatpush1.msra.mxu0 0.0
    %985 = vmatprep.subr.mxu0 0.0
    %986 = vmatpush1.msra.mxu0 0.0
    %987 = vmatprep.subr.mxu0 0.0
    %988 = vmatpush1.msra.mxu0 0.0
    %989 = vmatprep.subr.mxu0 0.0
    %990 = vmatpush1.msra.mxu0 0.0
    %991 = vmatprep.subr.mxu0 0.0
    %992 = vmatpush1.msra.mxu0 0.0
    %993 = vmatprep.subr.mxu0 0.0
    %994 = vmatpush1.msra.mxu0 0.0
    %995 = vmatprep.subr.mxu0 0.0
    %996 = vmatpush1.msra.mxu0 0.0
    %997 = vmatprep.subr.mxu0 0.0
    %998 = vmatpush1.msra.mxu0 0.0
    %999 = vmatprep.subr.mxu0 0.0
    %1000 = vmatpush1.msra.mxu0 0.0
    %1001 = vmatprep.mubr.f32.mxu0 0.0
    %1002 = vmatmul.mubr.f32.gmra.mrb[0].mxu0 %v935
    %v1003 = vpop.f32.mrb[0].mxu0
    %v1004 = vadd.f32 0.0, %v1003
    %v1005 = vpop.f32.mrb[0].mxu0
    %1006 = vdwg.mxu0
    %v1007 = vsel %vm393, %v776, -inf
    %v1008 = vsel %vm393, %v852, -inf
    %v1009 = vsel %vm393, %v928, -inf
    %v1010 = vsel %vm393, %v1004, -inf
    %v1011 = vmax.f32 %v1007, %v1008
    %v1012 = vmax.f32 %v1009, %v1010
    %v1013 = vmax.f32 %v1011, %v1012
    %v1014 = vsub.f32 %v776, %v1013
    %v1015 = vsub.f32 %v852, %v1013
    %v1016 = vsub.f32 %v928, %v1013
    %v1017 = vsub.f32 %v1004, %v1013
    %v1018 = vmul.f32 %v1014, 1.442695
    %v1019 = vpow.pop %v1018
    %v1020 = vmul.f32 %v1015, 1.442695
    %v1021 = vpow.pop %v1020
    %v1022 = vmul.f32 %v1016, 1.442695
    %v1023 = vpow.pop %v1022
    %v1024 = vmul.f32 %v1017, 1.442695
    %v1025 = vpow.pop %v1024
    %v1026 = vsel %vm393, %v1019, 0.0
    %v1027 = vsel %vm393, %v1021, 0.0
    %v1028 = vadd.f32 %v1026, %v1027
    %v1029 = vsel %vm393, %v1023, 0.0
    %v1030 = vadd.f32 %v1028, %v1029
    %v1031 = vsel %vm393, %v1025, 0.0
    %v1032 = vadd.f32 %v1030, %v1031
    %v1033 = vrcp.pop %v1032
    %v1034 = vmul.f32 %v1019, %v1033
    %v1035 = vmul.f32 %v1021, %v1033
    %v1036 = vmul.f32 %v1023, %v1033
    %v1037 = vmul.f32 %v1025, %v1033
    %v1038 = vld [vmem:[#allocation8] sm:$0xff]
    %1039 = vrot.lane.b32.xlu0 %v372, 120
    %v1040 = vpop.permute.xlu0 %1039
    %1041 = vrot.lane.b32.xlu0 %v372, 88
    %v1042 = vpop.permute.xlu0 %1041
    %v1043 = vsel %vm393, %v1040, 0
    %v1045 = vsel %vm393, %v1042, 0
    %1047 = vmatprep.subr.mxu0 0.0
    %1048 = vmatpush1.xpose.msra.mxu0 %v1045
    %1049 = vmatprep.subr.mxu0 0.0
    %1050 = vmatpush1.xpose.msra.mxu0 0.0
    %1051 = vmatprep.subr.mxu0 0.0
    %1052 = vmatpush1.xpose.msra.mxu0 0.0
    %1053 = vmatprep.subr.mxu0 0.0
    %1054 = vmatpush1.xpose.msra.mxu0 0.0
    %1055 = vmatprep.subr.mxu0 0.0
    %1056 = vmatpush1.xpose.msra.mxu0 0.0
    %1057 = vmatprep.subr.mxu0 0.0
    %1058 = vmatpush1.xpose.msra.mxu0 0.0
    %1059 = vmatprep.subr.mxu0 0.0
    %1060 = vmatpush1.xpose.msra.mxu0 0.0
    %1061 = vmatprep.subr.mxu0 0.0
    %1062 = vmatpush1.xpose.msra.mxu0 0.0
    %1063 = vmatprep.subr.mxu0 0.0
    %1064 = vmatpush1.xpose.msra.mxu0 0.0
    %1065 = vmatprep.subr.mxu0 0.0
    %1066 = vmatpush1.xpose.msra.mxu0 0.0
    %1067 = vmatprep.subr.mxu0 0.0
    %1068 = vmatpush1.xpose.msra.mxu0 0.0
    %1069 = vmatprep.subr.mxu0 0.0
    %1070 = vmatpush1.xpose.msra.mxu0 0.0
    %1071 = vmatprep.subr.mxu0 0.0
    %1072 = vmatpush1.xpose.msra.mxu0 0.0
    %1073 = vmatprep.subr.mxu0 0.0
    %1074 = vmatpush1.xpose.msra.mxu0 0.0
    %1075 = vmatprep.subr.mxu0 0.0
    %1076 = vmatpush1.xpose.msra.mxu0 0.0
    %1077 = vmatprep.subr.mxu0 0.0
    %1078 = vmatpush1.xpose.msra.mxu0 0.0
    %1079 = vmatprep.subr.mxu0 0.0
    %1080 = vmatpush1.xpose.msra.mxu0 0.0
    %1081 = vmatprep.subr.mxu0 0.0
    %1082 = vmatpush1.xpose.msra.mxu0 0.0
    %1083 = vmatprep.subr.mxu0 0.0
    %1084 = vmatpush1.xpose.msra.mxu0 0.0
    %1085 = vmatprep.subr.mxu0 0.0
    %1086 = vmatpush1.xpose.msra.mxu0 0.0
    %1087 = vmatprep.subr.mxu0 0.0
    %1088 = vmatpush1.xpose.msra.mxu0 0.0
    %1089 = vmatprep.subr.mxu0 0.0
    %1090 = vmatpush1.xpose.msra.mxu0 0.0
    %1091 = vmatprep.subr.mxu0 0.0
    %1092 = vmatpush1.xpose.msra.mxu0 0.0
    %1093 = vmatprep.subr.mxu0 0.0
    %1094 = vmatpush1.xpose.msra.mxu0 0.0
    %1095 = vmatprep.subr.mxu0 0.0
    %1096 = vmatpush1.xpose.msra.mxu0 0.0
    %1097 = vmatprep.subr.mxu0 0.0
    %1098 = vmatpush1.xpose.msra.mxu0 0.0
    %1099 = vmatprep.subr.mxu0 0.0
    %1100 = vmatpush1.xpose.msra.mxu0 0.0
    %1101 = vmatprep.subr.mxu0 0.0
    %1102 = vmatpush1.xpose.msra.mxu0 0.0
    %1103 = vmatprep.subr.mxu0 0.0
    %1104 = vmatpush1.xpose.msra.mxu0 0.0
    %1105 = vmatprep.subr.mxu0 0.0
    %1106 = vmatpush1.xpose.msra.mxu0 0.0
    %1107 = vmatprep.subr.mxu0 0.0
    %1108 = vmatpush1.xpose.msra.mxu0 0.0
    %1109 = vmatprep.subr.mxu0 0.0
    %1110 = vmatpush1.xpose.msra.mxu0 0.0
    %1111 = vmatprep.mubr.f32.mxu0 0.0
    %1112 = vmatmul.mubr.f32.gmra.mrb[0].mxu0 %v1043
    %v1113 = vpop.f32.mrb[0].mxu0
    %v1114 = vadd.f32 0.0, %v1113
    %v1115 = vpop.f32.mrb[0].mxu0
    %1116 = vdwg.mxu0
    %1117 = vrot.lane.b32.xlu0 %v377, 120
    %v1118 = vpop.permute.xlu0 %1117
    %1119 = vrot.lane.b32.xlu0 %v377, 88
    %v1120 = vpop.permute.xlu0 %1119
    %v1121 = vsel %vm393, %v1118, 0
    %v1123 = vsel %vm393, %v1120, 0
    %1125 = vmatprep.subr.mxu0 0.0
    %1126 = vmatpush1.xpose.msra.mxu0 %v1123
    %1127 = vmatprep.subr.mxu0 0.0
    %1128 = vmatpush1.xpose.msra.mxu0 0.0
    %1129 = vmatprep.subr.mxu0 0.0
    %1130 = vmatpush1.xpose.msra.mxu0 0.0
    %1131 = vmatprep.subr.mxu0 0.0
    %1132 = vmatpush1.xpose.msra.mxu0 0.0
    %1133 = vmatprep.subr.mxu0 0.0
    %1134 = vmatpush1.xpose.msra.mxu0 0.0
    %1135 = vmatprep.subr.mxu0 0.0
    %1136 = vmatpush1.xpose.msra.mxu0 0.0
    %1137 = vmatprep.subr.mxu0 0.0
    %1138 = vmatpush1.xpose.msra.mxu0 0.0
    %1139 = vmatprep.subr.mxu0 0.0
    %1140 = vmatpush1.xpose.msra.mxu0 0.0
    %1141 = vmatprep.subr.mxu0 0.0
    %1142 = vmatpush1.xpose.msra.mxu0 0.0
    %1143 = vmatprep.subr.mxu0 0.0
    %1144 = vmatpush1.xpose.msra.mxu0 0.0
    %1145 = vmatprep.subr.mxu0 0.0
    %1146 = vmatpush1.xpose.msra.mxu0 0.0
    %1147 = vmatprep.subr.mxu0 0.0
    %1148 = vmatpush1.xpose.msra.mxu0 0.0
    %1149 = vmatprep.subr.mxu0 0.0
    %1150 = vmatpush1.xpose.msra.mxu0 0.0
    %1151 = vmatprep.subr.mxu0 0.0
    %1152 = vmatpush1.xpose.msra.mxu0 0.0
    %1153 = vmatprep.subr.mxu0 0.0
    %1154 = vmatpush1.xpose.msra.mxu0 0.0
    %1155 = vmatprep.subr.mxu0 0.0
    %1156 = vmatpush1.xpose.msra.mxu0 0.0
    %1157 = vmatprep.subr.mxu0 0.0
    %1158 = vmatpush1.xpose.msra.mxu0 0.0
    %1159 = vmatprep.subr.mxu0 0.0
    %1160 = vmatpush1.xpose.msra.mxu0 0.0
    %1161 = vmatprep.subr.mxu0 0.0
    %1162 = vmatpush1.xpose.msra.mxu0 0.0
    %1163 = vmatprep.subr.mxu0 0.0
    %1164 = vmatpush1.xpose.msra.mxu0 0.0
    %1165 = vmatprep.subr.mxu0 0.0
    %1166 = vmatpush1.xpose.msra.mxu0 0.0
    %1167 = vmatprep.subr.mxu0 0.0
    %1168 = vmatpush1.xpose.msra.mxu0 0.0
    %1169 = vmatprep.subr.mxu0 0.0
    %1170 = vmatpush1.xpose.msra.mxu0 0.0
    %1171 = vmatprep.subr.mxu0 0.0
    %1172 = vmatpush1.xpose.msra.mxu0 0.0
    %1173 = vmatprep.subr.mxu0 0.0
    %1174 = vmatpush1.xpose.msra.mxu0 0.0
    %1175 = vmatprep.subr.mxu0 0.0
    %1176 = vmatpush1.xpose.msra.mxu0 0.0
    %1177 = vmatprep.subr.mxu0 0.0
    %1178 = vmatpush1.xpose.msra.mxu0 0.0
    %1179 = vmatprep.subr.mxu0 0.0
    %1180 = vmatpush1.xpose.msra.mxu0 0.0
    %1181 = vmatprep.subr.mxu0 0.0
    %1182 = vmatpush1.xpose.msra.mxu0 0.0
    %1183 = vmatprep.subr.mxu0 0.0
    %1184 = vmatpush1.xpose.msra.mxu0 0.0
    %1185 = vmatprep.subr.mxu0 0.0
    %1186 = vmatpush1.xpose.msra.mxu0 0.0
    %1187 = vmatprep.subr.mxu0 0.0
    %1188 = vmatpush1.xpose.msra.mxu0 0.0
    %1189 = vmatprep.mubr.f32.mxu0 0.0
    %1190 = vmatmul.mubr.f32.gmra.mrb[0].mxu0 %v1121
    %v1191 = vpop.f32.mrb[0].mxu0
    %v1192 = vadd.f32 0.0, %v1191
    %v1193 = vpop.f32.mrb[0].mxu0
    %1194 = vdwg.mxu0
    %1195 = vrot.lane.b32.xlu0 %v382, 120
    %v1196 = vpop.permute.xlu0 %1195
    %1197 = vrot.lane.b32.xlu0 %v382, 88
    %v1198 = vpop.permute.xlu0 %1197
    %v1199 = vsel %vm393, %v1196, 0
    %v1201 = vsel %vm393, %v1198, 0
    %1203 = vmatprep.subr.mxu0 0.0
    %1204 = vmatpush1.xpose.msra.mxu0 %v1201
    %1205 = vmatprep.subr.mxu0 0.0
    %1206 = vmatpush1.xpose.msra.mxu0 0.0
    %1207 = vmatprep.subr.mxu0 0.0
    %1208 = vmatpush1.xpose.msra.mxu0 0.0
    %1209 = vmatprep.subr.mxu0 0.0
    %1210 = vmatpush1.xpose.msra.mxu0 0.0
    %1211 = vmatprep.subr.mxu0 0.0
    %1212 = vmatpush1.xpose.msra.mxu0 0.0
    %1213 = vmatprep.subr.mxu0 0.0
    %1214 = vmatpush1.xpose.msra.mxu0 0.0
    %1215 = vmatprep.subr.mxu0 0.0
    %1216 = vmatpush1.xpose.msra.mxu0 0.0
    %1217 = vmatprep.subr.mxu0 0.0
    %1218 = vmatpush1.xpose.msra.mxu0 0.0
    %1219 = vmatprep.subr.mxu0 0.0
    %1220 = vmatpush1.xpose.msra.mxu0 0.0
    %1221 = vmatprep.subr.mxu0 0.0
    %1222 = vmatpush1.xpose.msra.mxu0 0.0
    %1223 = vmatprep.subr.mxu0 0.0
    %1224 = vmatpush1.xpose.msra.mxu0 0.0
    %1225 = vmatprep.subr.mxu0 0.0
    %1226 = vmatpush1.xpose.msra.mxu0 0.0
    %1227 = vmatprep.subr.mxu0 0.0
    %1228 = vmatpush1.xpose.msra.mxu0 0.0
    %1229 = vmatprep.subr.mxu0 0.0
    %1230 = vmatpush1.xpose.msra.mxu0 0.0
    %1231 = vmatprep.subr.mxu0 0.0
    %1232 = vmatpush1.xpose.msra.mxu0 0.0
    %1233 = vmatprep.subr.mxu0 0.0
    %1234 = vmatpush1.xpose.msra.mxu0 0.0
    %1235 = vmatprep.subr.mxu0 0.0
    %1236 = vmatpush1.xpose.msra.mxu0 0.0
    %1237 = vmatprep.subr.mxu0 0.0
    %1238 = vmatpush1.xpose.msra.mxu0 0.0
    %1239 = vmatprep.subr.mxu0 0.0
    %1240 = vmatpush1.xpose.msra.mxu0 0.0
    %1241 = vmatprep.subr.mxu0 0.0
    %1242 = vmatpush1.xpose.msra.mxu0 0.0
    %1243 = vmatprep.subr.mxu0 0.0
    %1244 = vmatpush1.xpose.msra.mxu0 0.0
    %1245 = vmatprep.subr.mxu0 0.0
    %1246 = vmatpush1.xpose.msra.mxu0 0.0
    %1247 = vmatprep.subr.mxu0 0.0
    %1248 = vmatpush1.xpose.msra.mxu0 0.0
    %1249 = vmatprep.subr.mxu0 0.0
    %1250 = vmatpush1.xpose.msra.mxu0 0.0
    %1251 = vmatprep.subr.mxu0 0.0
    %1252 = vmatpush1.xpose.msra.mxu0 0.0
    %1253 = vmatprep.subr.mxu0 0.0
    %1254 = vmatpush1.xpose.msra.mxu0 0.0
    %1255 = vmatprep.subr.mxu0 0.0
    %1256 = vmatpush1.xpose.msra.mxu0 0.0
    %1257 = vmatprep.subr.mxu0 0.0
    %1258 = vmatpush1.xpose.msra.mxu0 0.0
    %1259 = vmatprep.subr.mxu0 0.0
    %1260 = vmatpush1.xpose.msra.mxu0 0.0
    %1261 = vmatprep.subr.mxu0 0.0
    %1262 = vmatpush1.xpose.msra.mxu0 0.0
    %1263 = vmatprep.subr.mxu0 0.0
    %1264 = vmatpush1.xpose.msra.mxu0 0.0
    %1265 = vmatprep.subr.mxu0 0.0
    %1266 = vmatpush1.xpose.msra.mxu0 0.0
    %1267 = vmatprep.mubr.f32.mxu0 0.0
    %1268 = vmatmul.mubr.f32.gmra.mrb[0].mxu0 %v1199
    %v1269 = vpop.f32.mrb[0].mxu0
    %v1270 = vadd.f32 0.0, %v1269
    %v1271 = vpop.f32.mrb[0].mxu0
    %1272 = vdwg.mxu0
    %1273 = vrot.lane.b32.xlu0 %v387, 120
    %v1274 = vpop.permute.xlu0 %1273
    %1275 = vrot.lane.b32.xlu0 %v387, 88
    %v1276 = vpop.permute.xlu0 %1275
    %v1277 = vsel %vm393, %v1274, 0
    %v1279 = vsel %vm393, %v1276, 0
    %1281 = vmatprep.subr.mxu0 0.0
    %1282 = vmatpush1.xpose.msra.mxu0 %v1279
    %1283 = vmatprep.subr.mxu0 0.0
    %1284 = vmatpush1.xpose.msra.mxu0 0.0
    %1285 = vmatprep.subr.mxu0 0.0
    %1286 = vmatpush1.xpose.msra.mxu0 0.0
    %1287 = vmatprep.subr.mxu0 0.0
    %1288 = vmatpush1.xpose.msra.mxu0 0.0
    %1289 = vmatprep.subr.mxu0 0.0
    %1290 = vmatpush1.xpose.msra.mxu0 0.0
    %1291 = vmatprep.subr.mxu0 0.0
    %1292 = vmatpush1.xpose.msra.mxu0 0.0
    %1293 = vmatprep.subr.mxu0 0.0
    %1294 = vmatpush1.xpose.msra.mxu0 0.0
    %1295 = vmatprep.subr.mxu0 0.0
    %1296 = vmatpush1.xpose.msra.mxu0 0.0
    %1297 = vmatprep.subr.mxu0 0.0
    %1298 = vmatpush1.xpose.msra.mxu0 0.0
    %1299 = vmatprep.subr.mxu0 0.0
    %1300 = vmatpush1.xpose.msra.mxu0 0.0
    %1301 = vmatprep.subr.mxu0 0.0
    %1302 = vmatpush1.xpose.msra.mxu0 0.0
    %1303 = vmatprep.subr.mxu0 0.0
    %1304 = vmatpush1.xpose.msra.mxu0 0.0
    %1305 = vmatprep.subr.mxu0 0.0
    %1306 = vmatpush1.xpose.msra.mxu0 0.0
    %1307 = vmatprep.subr.mxu0 0.0
    %1308 = vmatpush1.xpose.msra.mxu0 0.0
    %1309 = vmatprep.subr.mxu0 0.0
    %1310 = vmatpush1.xpose.msra.mxu0 0.0
    %1311 = vmatprep.subr.mxu0 0.0
    %1312 = vmatpush1.xpose.msra.mxu0 0.0
    %1313 = vmatprep.subr.mxu0 0.0
    %1314 = vmatpush1.xpose.msra.mxu0 0.0
    %1315 = vmatprep.subr.mxu0 0.0
    %1316 = vmatpush1.xpose.msra.mxu0 0.0
    %1317 = vmatprep.subr.mxu0 0.0
    %1318 = vmatpush1.xpose.msra.mxu0 0.0
    %1319 = vmatprep.subr.mxu0 0.0
    %1320 = vmatpush1.xpose.msra.mxu0 0.0
    %1321 = vmatprep.subr.mxu0 0.0
    %1322 = vmatpush1.xpose.msra.mxu0 0.0
    %1323 = vmatprep.subr.mxu0 0.0
    %1324 = vmatpush1.xpose.msra.mxu0 0.0
    %1325 = vmatprep.subr.mxu0 0.0
    %1326 = vmatpush1.xpose.msra.mxu0 0.0
    %1327 = vmatprep.subr.mxu0 0.0
    %1328 = vmatpush1.xpose.msra.mxu0 0.0
    %1329 = vmatprep.subr.mxu0 0.0
    %1330 = vmatpush1.xpose.msra.mxu0 0.0
    %1331 = vmatprep.subr.mxu0 0.0
    %1332 = vmatpush1.xpose.msra.mxu0 0.0
    %1333 = vmatprep.subr.mxu0 0.0
    %1334 = vmatpush1.xpose.msra.mxu0 0.0
    %1335 = vmatprep.subr.mxu0 0.0
    %1336 = vmatpush1.xpose.msra.mxu0 0.0
    %1337 = vmatprep.subr.mxu0 0.0
    %1338 = vmatpush1.xpose.msra.mxu0 0.0
    %1339 = vmatprep.subr.mxu0 0.0
    %1340 = vmatpush1.xpose.msra.mxu0 0.0
    %1341 = vmatprep.subr.mxu0 0.0
    %1342 = vmatpush1.xpose.msra.mxu0 0.0
    %1343 = vmatprep.subr.mxu0 0.0
    %1344 = vmatpush1.xpose.msra.mxu0 0.0
    %1345 = vmatprep.mubr.f32.mxu0 0.0
    %1346 = vmatmul.mubr.f32.gmra.mrb[0].mxu0 %v1277
    %v1347 = vpop.f32.mrb[0].mxu0
    %v1348 = vadd.f32 0.0, %v1347
    %v1349 = vpop.f32.mrb[0].mxu0
    %1350 = vdwg.mxu0
    %v1351 = vmul.f32 %v1114, 0.35355338
    %v1352 = vmul.f32 %v1192, 0.35355338
    %v1353 = vmul.f32 %v1270, 0.35355338
    %v1354 = vmul.f32 %v1348, 0.35355338
    %1355 = vrot.lane.b32.xlu0 %v372, 56
    %v1356 = vpop.permute.xlu0 %1355
    %v1359 = vsel %vm393, %v1351, 0
    %1361 = vmatprep.subr.mxu0 0.0
    %1362 = vmatpush1.msra.mxu0 %v1356
    %1363 = vmatprep.subr.mxu0 0.0
    %1364 = vmatpush1.msra.mxu0 0.0
    %1365 = vmatprep.subr.mxu0 0.0
    %1366 = vmatpush1.msra.mxu0 0.0
    %1367 = vmatprep.subr.mxu0 0.0
    %1368 = vmatpush1.msra.mxu0 0.0
    %1369 = vmatprep.subr.mxu0 0.0
    %1370 = vmatpush1.msra.mxu0 0.0
    %1371 = vmatprep.subr.mxu0 0.0
    %1372 = vmatpush1.msra.mxu0 0.0
    %1373 = vmatprep.subr.mxu0 0.0
    %1374 = vmatpush1.msra.mxu0 0.0
    %1375 = vmatprep.subr.mxu0 0.0
    %1376 = vmatpush1.msra.mxu0 0.0
    %1377 = vmatprep.subr.mxu0 0.0
    %1378 = vmatpush1.msra.mxu0 0.0
    %1379 = vmatprep.subr.mxu0 0.0
    %1380 = vmatpush1.msra.mxu0 0.0
    %1381 = vmatprep.subr.mxu0 0.0
    %1382 = vmatpush1.msra.mxu0 0.0
    %1383 = vmatprep.subr.mxu0 0.0
    %1384 = vmatpush1.msra.mxu0 0.0
    %1385 = vmatprep.subr.mxu0 0.0
    %1386 = vmatpush1.msra.mxu0 0.0
    %1387 = vmatprep.subr.mxu0 0.0
    %1388 = vmatpush1.msra.mxu0 0.0
    %1389 = vmatprep.subr.mxu0 0.0
    %1390 = vmatpush1.msra.mxu0 0.0
    %1391 = vmatprep.subr.mxu0 0.0
    %1392 = vmatpush1.msra.mxu0 0.0
    %1393 = vmatprep.subr.mxu0 0.0
    %1394 = vmatpush1.msra.mxu0 0.0
    %1395 = vmatprep.subr.mxu0 0.0
    %1396 = vmatpush1.msra.mxu0 0.0
    %1397 = vmatprep.subr.mxu0 0.0
    %1398 = vmatpush1.msra.mxu0 0.0
    %1399 = vmatprep.subr.mxu0 0.0
    %1400 = vmatpush1.msra.mxu0 0.0
    %1401 = vmatprep.subr.mxu0 0.0
    %1402 = vmatpush1.msra.mxu0 0.0
    %1403 = vmatprep.subr.mxu0 0.0
    %1404 = vmatpush1.msra.mxu0 0.0
    %1405 = vmatprep.subr.mxu0 0.0
    %1406 = vmatpush1.msra.mxu0 0.0
    %1407 = vmatprep.subr.mxu0 0.0
    %1408 = vmatpush1.msra.mxu0 0.0
    %1409 = vmatprep.subr.mxu0 0.0
    %1410 = vmatpush1.msra.mxu0 0.0
    %1411 = vmatprep.subr.mxu0 0.0
    %1412 = vmatpush1.msra.mxu0 0.0
    %1413 = vmatprep.subr.mxu0 0.0
    %1414 = vmatpush1.msra.mxu0 0.0
    %1415 = vmatprep.subr.mxu0 0.0
    %1416 = vmatpush1.msra.mxu0 0.0
    %1417 = vmatprep.subr.mxu0 0.0
    %1418 = vmatpush1.msra.mxu0 0.0
    %1419 = vmatprep.subr.mxu0 0.0
    %1420 = vmatpush1.msra.mxu0 0.0
    %1421 = vmatprep.subr.mxu0 0.0
    %1422 = vmatpush1.msra.mxu0 0.0
    %1423 = vmatprep.subr.mxu0 0.0
    %1424 = vmatpush1.msra.mxu0 0.0
    %1425 = vmatprep.mubr.f32.mxu0 0.0
    %1426 = vmatmul.mubr.f32.gmra.mrb[0].mxu0 %v1359
    %v1427 = vpop.f32.mrb[0].mxu0
    %v1428 = vadd.f32 0.0, %v1427
    %v1429 = vpop.f32.mrb[0].mxu0
    %1430 = vdwg.mxu0
    %1431 = vrot.lane.b32.xlu0 %v377, 56
    %v1432 = vpop.permute.xlu0 %1431
    %v1435 = vsel %vm393, %v1352, 0
    %1437 = vmatprep.subr.mxu0 0.0
    %1438 = vmatpush1.msra.mxu0 %v1432
    %1439 = vmatprep.subr.mxu0 0.0
    %1440 = vmatpush1.msra.mxu0 0.0
    %1441 = vmatprep.subr.mxu0 0.0
    %1442 = vmatpush1.msra.mxu0 0.0
    %1443 = vmatprep.subr.mxu0 0.0
    %1444 = vmatpush1.msra.mxu0 0.0
    %1445 = vmatprep.subr.mxu0 0.0
    %1446 = vmatpush1.msra.mxu0 0.0
    %1447 = vmatprep.subr.mxu0 0.0
    %1448 = vmatpush1.msra.mxu0 0.0
    %1449 = vmatprep.subr.mxu0 0.0
    %1450 = vmatpush1.msra.mxu0 0.0
    %1451 = vmatprep.subr.mxu0 0.0
    %1452 = vmatpush1.msra.mxu0 0.0
    %1453 = vmatprep.subr.mxu0 0.0
    %1454 = vmatpush1.msra.mxu0 0.0
    %1455 = vmatprep.subr.mxu0 0.0
    %1456 = vmatpush1.msra.mxu0 0.0
    %1457 = vmatprep.subr.mxu0 0.0
    %1458 = vmatpush1.msra.mxu0 0.0
    %1459 = vmatprep.subr.mxu0 0.0
    %1460 = vmatpush1.msra.mxu0 0.0
    %1461 = vmatprep.subr.mxu0 0.0
    %1462 = vmatpush1.msra.mxu0 0.0
    %1463 = vmatprep.subr.mxu0 0.0
    %1464 = vmatpush1.msra.mxu0 0.0
    %1465 = vmatprep.subr.mxu0 0.0
    %1466 = vmatpush1.msra.mxu0 0.0
    %1467 = vmatprep.subr.mxu0 0.0
    %1468 = vmatpush1.msra.mxu0 0.0
    %1469 = vmatprep.subr.mxu0 0.0
    %1470 = vmatpush1.msra.mxu0 0.0
    %1471 = vmatprep.subr.mxu0 0.0
    %1472 = vmatpush1.msra.mxu0 0.0
    %1473 = vmatprep.subr.mxu0 0.0
    %1474 = vmatpush1.msra.mxu0 0.0
    %1475 = vmatprep.subr.mxu0 0.0
    %1476 = vmatpush1.msra.mxu0 0.0
    %1477 = vmatprep.subr.mxu0 0.0
    %1478 = vmatpush1.msra.mxu0 0.0
    %1479 = vmatprep.subr.mxu0 0.0
    %1480 = vmatpush1.msra.mxu0 0.0
    %1481 = vmatprep.subr.mxu0 0.0
    %1482 = vmatpush1.msra.mxu0 0.0
    %1483 = vmatprep.subr.mxu0 0.0
    %1484 = vmatpush1.msra.mxu0 0.0
    %1485 = vmatprep.subr.mxu0 0.0
    %1486 = vmatpush1.msra.mxu0 0.0
    %1487 = vmatprep.subr.mxu0 0.0
    %1488 = vmatpush1.msra.mxu0 0.0
    %1489 = vmatprep.subr.mxu0 0.0
    %1490 = vmatpush1.msra.mxu0 0.0
    %1491 = vmatprep.subr.mxu0 0.0
    %1492 = vmatpush1.msra.mxu0 0.0
    %1493 = vmatprep.subr.mxu0 0.0
    %1494 = vmatpush1.msra.mxu0 0.0
    %1495 = vmatprep.subr.mxu0 0.0
    %1496 = vmatpush1.msra.mxu0 0.0
    %1497 = vmatprep.subr.mxu0 0.0
    %1498 = vmatpush1.msra.mxu0 0.0
    %1499 = vmatprep.subr.mxu0 0.0
    %1500 = vmatpush1.msra.mxu0 0.0
    %1501 = vmatprep.mubr.f32.mxu0 0.0
    %1502 = vmatmul.mubr.f32.gmra.mrb[0].mxu0 %v1435
    %v1503 = vpop.f32.mrb[0].mxu0
    %v1504 = vadd.f32 0.0, %v1503
    %v1505 = vpop.f32.mrb[0].mxu0
    %1506 = vdwg.mxu0
    %1507 = vrot.lane.b32.xlu0 %v382, 56
    %v1508 = vpop.permute.xlu0 %1507
    %v1511 = vsel %vm393, %v1353, 0
    %1513 = vmatprep.subr.mxu0 0.0
    %1514 = vmatpush1.msra.mxu0 %v1508
    %1515 = vmatprep.subr.mxu0 0.0
    %1516 = vmatpush1.msra.mxu0 0.0
    %1517 = vmatprep.subr.mxu0 0.0
    %1518 = vmatpush1.msra.mxu0 0.0
    %1519 = vmatprep.subr.mxu0 0.0
    %1520 = vmatpush1.msra.mxu0 0.0
    %1521 = vmatprep.subr.mxu0 0.0
    %1522 = vmatpush1.msra.mxu0 0.0
    %1523 = vmatprep.subr.mxu0 0.0
    %1524 = vmatpush1.msra.mxu0 0.0
    %1525 = vmatprep.subr.mxu0 0.0
    %1526 = vmatpush1.msra.mxu0 0.0
    %1527 = vmatprep.subr.mxu0 0.0
    %1528 = vmatpush1.msra.mxu0 0.0
    %1529 = vmatprep.subr.mxu0 0.0
    %1530 = vmatpush1.msra.mxu0 0.0
    %1531 = vmatprep.subr.mxu0 0.0
    %1532 = vmatpush1.msra.mxu0 0.0
    %1533 = vmatprep.subr.mxu0 0.0
    %1534 = vmatpush1.msra.mxu0 0.0
    %1535 = vmatprep.subr.mxu0 0.0
    %1536 = vmatpush1.msra.mxu0 0.0
    %1537 = vmatprep.subr.mxu0 0.0
    %1538 = vmatpush1.msra.mxu0 0.0
    %1539 = vmatprep.subr.mxu0 0.0
    %1540 = vmatpush1.msra.mxu0 0.0
    %1541 = vmatprep.subr.mxu0 0.0
    %1542 = vmatpush1.msra.mxu0 0.0
    %1543 = vmatprep.subr.mxu0 0.0
    %1544 = vmatpush1.msra.mxu0 0.0
    %1545 = vmatprep.subr.mxu0 0.0
    %1546 = vmatpush1.msra.mxu0 0.0
    %1547 = vmatprep.subr.mxu0 0.0
    %1548 = vmatpush1.msra.mxu0 0.0
    %1549 = vmatprep.subr.mxu0 0.0
    %1550 = vmatpush1.msra.mxu0 0.0
    %1551 = vmatprep.subr.mxu0 0.0
    %1552 = vmatpush1.msra.mxu0 0.0
    %1553 = vmatprep.subr.mxu0 0.0
    %1554 = vmatpush1.msra.mxu0 0.0
    %1555 = vmatprep.subr.mxu0 0.0
    %1556 = vmatpush1.msra.mxu0 0.0
    %1557 = vmatprep.subr.mxu0 0.0
    %1558 = vmatpush1.msra.mxu0 0.0
    %1559 = vmatprep.subr.mxu0 0.0
    %1560 = vmatpush1.msra.mxu0 0.0
    %1561 = vmatprep.subr.mxu0 0.0
    %1562 = vmatpush1.msra.mxu0 0.0
    %1563 = vmatprep.subr.mxu0 0.0
    %1564 = vmatpush1.msra.mxu0 0.0
    %1565 = vmatprep.subr.mxu0 0.0
    %1566 = vmatpush1.msra.mxu0 0.0
    %1567 = vmatprep.subr.mxu0 0.0
    %1568 = vmatpush1.msra.mxu0 0.0
    %1569 = vmatprep.subr.mxu0 0.0
    %1570 = vmatpush1.msra.mxu0 0.0
    %1571 = vmatprep.subr.mxu0 0.0
    %1572 = vmatpush1.msra.mxu0 0.0
    %1573 = vmatprep.subr.mxu0 0.0
    %1574 = vmatpush1.msra.mxu0 0.0
    %1575 = vmatprep.subr.mxu0 0.0
    %1576 = vmatpush1.msra.mxu0 0.0
    %1577 = vmatprep.mubr.f32.mxu0 0.0
    %1578 = vmatmul.mubr.f32.gmra.mrb[0].mxu0 %v1511
    %v1579 = vpop.f32.mrb[0].mxu0
    %v1580 = vadd.f32 0.0, %v1579
    %v1581 = vpop.f32.mrb[0].mxu0
    %1582 = vdwg.mxu0
    %1583 = vrot.lane.b32.xlu0 %v387, 56
    %v1584 = vpop.permute.xlu0 %1583
    %v1587 = vsel %vm393, %v1354, 0
    %1589 = vmatprep.subr.mxu0 0.0
    %1590 = vmatpush1.msra.mxu0 %v1584
    %1591 = vmatprep.subr.mxu0 0.0
    %1592 = vmatpush1.msra.mxu0 0.0
    %1593 = vmatprep.subr.mxu0 0.0
    %1594 = vmatpush1.msra.mxu0 0.0
    %1595 = vmatprep.subr.mxu0 0.0
    %1596 = vmatpush1.msra.mxu0 0.0
    %1597 = vmatprep.subr.mxu0 0.0
    %1598 = vmatpush1.msra.mxu0 0.0
    %1599 = vmatprep.subr.mxu0 0.0
    %1600 = vmatpush1.msra.mxu0 0.0
    %1601 = vmatprep.subr.mxu0 0.0
    %1602 = vmatpush1.msra.mxu0 0.0
    %1603 = vmatprep.subr.mxu0 0.0
    %1604 = vmatpush1.msra.mxu0 0.0
    %1605 = vmatprep.subr.mxu0 0.0
    %1606 = vmatpush1.msra.mxu0 0.0
    %1607 = vmatprep.subr.mxu0 0.0
    %1608 = vmatpush1.msra.mxu0 0.0
    %1609 = vmatprep.subr.mxu0 0.0
    %1610 = vmatpush1.msra.mxu0 0.0
    %1611 = vmatprep.subr.mxu0 0.0
    %1612 = vmatpush1.msra.mxu0 0.0
    %1613 = vmatprep.subr.mxu0 0.0
    %1614 = vmatpush1.msra.mxu0 0.0
    %1615 = vmatprep.subr.mxu0 0.0
    %1616 = vmatpush1.msra.mxu0 0.0
    %1617 = vmatprep.subr.mxu0 0.0
    %1618 = vmatpush1.msra.mxu0 0.0
    %1619 = vmatprep.subr.mxu0 0.0
    %1620 = vmatpush1.msra.mxu0 0.0
    %1621 = vmatprep.subr.mxu0 0.0
    %1622 = vmatpush1.msra.mxu0 0.0
    %1623 = vmatprep.subr.mxu0 0.0
    %1624 = vmatpush1.msra.mxu0 0.0
    %1625 = vmatprep.subr.mxu0 0.0
    %1626 = vmatpush1.msra.mxu0 0.0
    %1627 = vmatprep.subr.mxu0 0.0
    %1628 = vmatpush1.msra.mxu0 0.0
    %1629 = vmatprep.subr.mxu0 0.0
    %1630 = vmatpush1.msra.mxu0 0.0
    %1631 = vmatprep.subr.mxu0 0.0
    %1632 = vmatpush1.msra.mxu0 0.0
    %1633 = vmatprep.subr.mxu0 0.0
    %1634 = vmatpush1.msra.mxu0 0.0
    %1635 = vmatprep.subr.mxu0 0.0
    %1636 = vmatpush1.msra.mxu0 0.0
    %1637 = vmatprep.subr.mxu0 0.0
    %1638 = vmatpush1.msra.mxu0 0.0
    %1639 = vmatprep.subr.mxu0 0.0
    %1640 = vmatpush1.msra.mxu0 0.0
    %1641 = vmatprep.subr.mxu0 0.0
    %1642 = vmatpush1.msra.mxu0 0.0
    %1643 = vmatprep.subr.mxu0 0.0
    %1644 = vmatpush1.msra.mxu0 0.0
    %1645 = vmatprep.subr.mxu0 0.0
    %1646 = vmatpush1.msra.mxu0 0.0
    %1647 = vmatprep.subr.mxu0 0.0
    %1648 = vmatpush1.msra.mxu0 0.0
    %1649 = vmatprep.subr.mxu0 0.0
    %1650 = vmatpush1.msra.mxu0 0.0
    %1651 = vmatprep.subr.mxu0 0.0
    %1652 = vmatpush1.msra.mxu0 0.0
    %1653 = vmatprep.mubr.f32.mxu0 0.0
    %1654 = vmatmul.mubr.f32.gmra.mrb[0].mxu0 %v1587
    %v1655 = vpop.f32.mrb[0].mxu0
    %v1656 = vadd.f32 0.0, %v1655
    %v1657 = vpop.f32.mrb[0].mxu0
    %1658 = vdwg.mxu0
    %v1659 = vsel %vm393, %v1428, -inf
    %v1660 = vsel %vm393, %v1504, -inf
    %v1661 = vsel %vm393, %v1580, -inf
    %v1662 = vsel %vm393, %v1656, -inf
    %v1663 = vmax.f32 %v1659, %v1660
    %v1664 = vmax.f32 %v1661, %v1662
    %v1665 = vmax.f32 %v1663, %v1664
    %v1666 = vsub.f32 %v1428, %v1665
    %v1667 = vsub.f32 %v1504, %v1665
    %v1668 = vsub.f32 %v1580, %v1665
    %v1669 = vsub.f32 %v1656, %v1665
    %v1670 = vmul.f32 %v1666, 1.442695
    %v1671 = vpow.pop %v1670
    %v1672 = vmul.f32 %v1667, 1.442695
    %v1673 = vpow.pop %v1672
    %v1674 = vmul.f32 %v1668, 1.442695
    %v1675 = vpow.pop %v1674
    %v1676 = vmul.f32 %v1669, 1.442695
    %v1677 = vpow.pop %v1676
    %v1678 = vsel %vm393, %v1671, 0.0
    %v1679 = vsel %vm393, %v1673, 0.0
    %v1680 = vadd.f32 %v1678, %v1679
    %v1681 = vsel %vm393, %v1675, 0.0
    %v1682 = vadd.f32 %v1680, %v1681
    %v1683 = vsel %vm393, %v1677, 0.0
    %v1684 = vadd.f32 %v1682, %v1683
    %v1685 = vrcp.pop %v1684
    %v1686 = vmul.f32 %v1671, %v1685
    %v1687 = vmul.f32 %v1673, %v1685
    %v1688 = vmul.f32 %v1675, %v1685
    %v1689 = vmul.f32 %v1677, %v1685
    %s1690 = scalar_lea.vmem [#allocation8], 8
    %v1691 = vld [vmem:[%s1690] sm:$0xff]
    %v1693 = vsel %vm393, %v1686, 0
    %v1696 = vsel %vm393, %v1687, 0
    %v1699 = vsel %vm393, %v1688, 0
    %v1702 = vsel %vm393, %v1689, 0
    %1704 = vmatprep.subr.mxu0 0.0
    %1705 = vmatpush1.msra.mxu0 %v1691
    %1706 = vmatprep.subr.mxu0 0.0
    %1707 = vmatpush1.msra.mxu0 0.0
    %1708 = vmatprep.subr.mxu0 0.0
    %1709 = vmatpush1.msra.mxu0 0.0
    %1710 = vmatprep.subr.mxu0 0.0
    %1711 = vmatpush1.msra.mxu0 0.0
    %1712 = vmatprep.subr.mxu0 0.0
    %1713 = vmatpush1.msra.mxu0 0.0
    %1714 = vmatprep.subr.mxu0 0.0
    %1715 = vmatpush1.msra.mxu0 0.0
    %1716 = vmatprep.subr.mxu0 0.0
    %1717 = vmatpush1.msra.mxu0 0.0
    %1718 = vmatprep.subr.mxu0 0.0
    %1719 = vmatpush1.msra.mxu0 0.0
    %1720 = vmatprep.subr.mxu0 0.0
    %1721 = vmatpush1.msra.mxu0 0.0
    %1722 = vmatprep.subr.mxu0 0.0
    %1723 = vmatpush1.msra.mxu0 0.0
    %1724 = vmatprep.subr.mxu0 0.0
    %1725 = vmatpush1.msra.mxu0 0.0
    %1726 = vmatprep.subr.mxu0 0.0
    %1727 = vmatpush1.msra.mxu0 0.0
    %1728 = vmatprep.subr.mxu0 0.0
    %1729 = vmatpush1.msra.mxu0 0.0
    %1730 = vmatprep.subr.mxu0 0.0
    %1731 = vmatpush1.msra.mxu0 0.0
    %1732 = vmatprep.subr.mxu0 0.0
    %1733 = vmatpush1.msra.mxu0 0.0
    %1734 = vmatprep.subr.mxu0 0.0
    %1735 = vmatpush1.msra.mxu0 0.0
    %1736 = vmatprep.subr.mxu0 0.0
    %1737 = vmatpush1.msra.mxu0 0.0
    %1738 = vmatprep.subr.mxu0 0.0
    %1739 = vmatpush1.msra.mxu0 0.0
    %1740 = vmatprep.subr.mxu0 0.0
    %1741 = vmatpush1.msra.mxu0 0.0
    %1742 = vmatprep.subr.mxu0 0.0
    %1743 = vmatpush1.msra.mxu0 0.0
    %1744 = vmatprep.subr.mxu0 0.0
    %1745 = vmatpush1.msra.mxu0 0.0
    %1746 = vmatprep.subr.mxu0 0.0
    %1747 = vmatpush1.msra.mxu0 0.0
    %1748 = vmatprep.subr.mxu0 0.0
    %1749 = vmatpush1.msra.mxu0 0.0
    %1750 = vmatprep.subr.mxu0 0.0
    %1751 = vmatpush1.msra.mxu0 0.0
    %1752 = vmatprep.subr.mxu0 0.0
    %1753 = vmatpush1.msra.mxu0 0.0
    %1754 = vmatprep.subr.mxu0 0.0
    %1755 = vmatpush1.msra.mxu0 0.0
    %1756 = vmatprep.subr.mxu0 0.0
    %1757 = vmatpush1.msra.mxu0 0.0
    %1758 = vmatprep.subr.mxu0 0.0
    %1759 = vmatpush1.msra.mxu0 0.0
    %1760 = vmatprep.subr.mxu0 0.0
    %1761 = vmatpush1.msra.mxu0 0.0
    %1762 = vmatprep.subr.mxu0 0.0
    %1763 = vmatpush1.msra.mxu0 0.0
    %1764 = vmatprep.subr.mxu0 0.0
    %1765 = vmatpush1.msra.mxu0 0.0
    %1766 = vmatprep.subr.mxu0 0.0
    %1767 = vmatpush1.msra.mxu0 0.0
    %1768 = vmatprep.mubr.f32.mxu0 0.0
    %1769 = vmatmul.mubr.f32.gmra.mrb[0].mxu0 %v1693
    %v1770 = vpop.f32.mrb[0].mxu0
    %v1771 = vadd.f32 0.0, %v1770
    %v1772 = vpop.f32.mrb[0].mxu0
    %1773 = vmatprep.mubr.f32.mxu0 0.0
    %1774 = vmatmul.mubr.f32.gmra.mrb[0].mxu0 %v1696
    %v1775 = vpop.f32.mrb[0].mxu0
    %v1776 = vadd.f32 0.0, %v1775
    %v1777 = vpop.f32.mrb[0].mxu0
    %1778 = vmatprep.mubr.f32.mxu0 0.0
    %1779 = vmatmul.mubr.f32.gmra.mrb[0].mxu0 %v1699
    %v1780 = vpop.f32.mrb[0].mxu0
    %v1781 = vadd.f32 0.0, %v1780
    %v1782 = vpop.f32.mrb[0].mxu0
    %1783 = vmatprep.mubr.f32.mxu0 0.0
    %1784 = vmatmul.mubr.f32.gmra.mrb[0].mxu0 %v1702
    %v1785 = vpop.f32.mrb[0].mxu0
    %v1786 = vadd.f32 0.0, %v1785
    %v1787 = vpop.f32.mrb[0].mxu0
    %1788 = vdwg.mxu0
    %v1790 = vsel %vm393, %v1034, 0
    %v1793 = vsel %vm393, %v1035, 0
    %v1796 = vsel %vm393, %v1036, 0
    %v1799 = vsel %vm393, %v1037, 0
    %1801 = vmatprep.subr.mxu0 0.0
    %1802 = vmatpush1.msra.mxu0 %v1038
    %1803 = vmatprep.subr.mxu0 0.0
    %1804 = vmatpush1.msra.mxu0 0.0
    %1805 = vmatprep.subr.mxu0 0.0
    %1806 = vmatpush1.msra.mxu0 0.0
    %1807 = vmatprep.subr.mxu0 0.0
    %1808 = vmatpush1.msra.mxu0 0.0
    %1809 = vmatprep.subr.mxu0 0.0
    %1810 = vmatpush1.msra.mxu0 0.0
    %1811 = vmatprep.subr.mxu0 0.0
    %1812 = vmatpush1.msra.mxu0 0.0
    %1813 = vmatprep.subr.mxu0 0.0
    %1814 = vmatpush1.msra.mxu0 0.0
    %1815 = vmatprep.subr.mxu0 0.0
    %1816 = vmatpush1.msra.mxu0 0.0
    %1817 = vmatprep.subr.mxu0 0.0
    %1818 = vmatpush1.msra.mxu0 0.0
    %1819 = vmatprep.subr.mxu0 0.0
    %1820 = vmatpush1.msra.mxu0 0.0
    %1821 = vmatprep.subr.mxu0 0.0
    %1822 = vmatpush1.msra.mxu0 0.0
    %1823 = vmatprep.subr.mxu0 0.0
    %1824 = vmatpush1.msra.mxu0 0.0
    %1825 = vmatprep.subr.mxu0 0.0
    %1826 = vmatpush1.msra.mxu0 0.0
    %1827 = vmatprep.subr.mxu0 0.0
    %1828 = vmatpush1.msra.mxu0 0.0
    %1829 = vmatprep.subr.mxu0 0.0
    %1830 = vmatpush1.msra.mxu0 0.0
    %1831 = vmatprep.subr.mxu0 0.0
    %1832 = vmatpush1.msra.mxu0 0.0
    %1833 = vmatprep.subr.mxu0 0.0
    %1834 = vmatpush1.msra.mxu0 0.0
    %1835 = vmatprep.subr.mxu0 0.0
    %1836 = vmatpush1.msra.mxu0 0.0
    %1837 = vmatprep.subr.mxu0 0.0
    %1838 = vmatpush1.msra.mxu0 0.0
    %1839 = vmatprep.subr.mxu0 0.0
    %1840 = vmatpush1.msra.mxu0 0.0
    %1841 = vmatprep.subr.mxu0 0.0
    %1842 = vmatpush1.msra.mxu0 0.0
    %1843 = vmatprep.subr.mxu0 0.0
    %1844 = vmatpush1.msra.mxu0 0.0
    %1845 = vmatprep.subr.mxu0 0.0
    %1846 = vmatpush1.msra.mxu0 0.0
    %1847 = vmatprep.subr.mxu0 0.0
    %1848 = vmatpush1.msra.mxu0 0.0
    %1849 = vmatprep.subr.mxu0 0.0
    %1850 = vmatpush1.msra.mxu0 0.0
    %1851 = vmatprep.subr.mxu0 0.0
    %1852 = vmatpush1.msra.mxu0 0.0
    %1853 = vmatprep.subr.mxu0 0.0
    %1854 = vmatpush1.msra.mxu0 0.0
    %1855 = vmatprep.subr.mxu0 0.0
    %1856 = vmatpush1.msra.mxu0 0.0
    %1857 = vmatprep.subr.mxu0 0.0
    %1858 = vmatpush1.msra.mxu0 0.0
    %1859 = vmatprep.subr.mxu0 0.0
    %1860 = vmatpush1.msra.mxu0 0.0
    %1861 = vmatprep.subr.mxu0 0.0
    %1862 = vmatpush1.msra.mxu0 0.0
    %1863 = vmatprep.subr.mxu0 0.0
    %1864 = vmatpush1.msra.mxu0 0.0
    %1865 = vmatprep.mubr.f32.mxu0 0.0
    %1866 = vmatmul.mubr.f32.gmra.mrb[0].mxu0 %v1790
    %v1867 = vpop.f32.mrb[0].mxu0
    %v1868 = vadd.f32 %v1771, %v1867
    %v1869 = vpop.f32.mrb[0].mxu0
    %1870 = vmatprep.mubr.f32.mxu0 0.0
    %1871 = vmatmul.mubr.f32.gmra.mrb[0].mxu0 %v1793
    %v1872 = vpop.f32.mrb[0].mxu0
    %v1873 = vadd.f32 %v1776, %v1872
    %v1874 = vpop.f32.mrb[0].mxu0
    %1875 = vmatprep.mubr.f32.mxu0 0.0
    %1876 = vmatmul.mubr.f32.gmra.mrb[0].mxu0 %v1796
    %v1877 = vpop.f32.mrb[0].mxu0
    %v1878 = vadd.f32 %v1781, %v1877
    %v1879 = vpop.f32.mrb[0].mxu0
    %1880 = vmatprep.mubr.f32.mxu0 0.0
    %1881 = vmatmul.mubr.f32.gmra.mrb[0].mxu0 %v1799
    %v1882 = vpop.f32.mrb[0].mxu0
    %v1883 = vadd.f32 %v1786, %v1882
    %v1884 = vpop.f32.mrb[0].mxu0
    %1885 = vdwg.mxu0
    %1886 = vrot.lane.b32.xlu0 %v372, 112
    %v1887 = vpop.permute.xlu0 %1886
    %1888 = vrot.lane.b32.xlu0 %v372, 80
    %v1889 = vpop.permute.xlu0 %1888
    %v1890 = vsel %vm393, %v1887, 0
    %v1892 = vsel %vm393, %v1889, 0
    %1894 = vmatprep.subr.mxu0 0.0
    %1895 = vmatpush1.xpose.msra.mxu0 %v1892
    %1896 = vmatprep.subr.mxu0 0.0
    %1897 = vmatpush1.xpose.msra.mxu0 0.0
    %1898 = vmatprep.subr.mxu0 0.0
    %1899 = vmatpush1.xpose.msra.mxu0 0.0
    %1900 = vmatprep.subr.mxu0 0.0
    %1901 = vmatpush1.xpose.msra.mxu0 0.0
    %1902 = vmatprep.subr.mxu0 0.0
    %1903 = vmatpush1.xpose.msra.mxu0 0.0
    %1904 = vmatprep.subr.mxu0 0.0
    %1905 = vmatpush1.xpose.msra.mxu0 0.0
    %1906 = vmatprep.subr.mxu0 0.0
    %1907 = vmatpush1.xpose.msra.mxu0 0.0
    %1908 = vmatprep.subr.mxu0 0.0
    %1909 = vmatpush1.xpose.msra.mxu0 0.0
    %1910 = vmatprep.subr.mxu0 0.0
    %1911 = vmatpush1.xpose.msra.mxu0 0.0
    %1912 = vmatprep.subr.mxu0 0.0
    %1913 = vmatpush1.xpose.msra.mxu0 0.0
    %1914 = vmatprep.subr.mxu0 0.0
    %1915 = vmatpush1.xpose.msra.mxu0 0.0
    %1916 = vmatprep.subr.mxu0 0.0
    %1917 = vmatpush1.xpose.msra.mxu0 0.0
    %1918 = vmatprep.subr.mxu0 0.0
    %1919 = vmatpush1.xpose.msra.mxu0 0.0
    %1920 = vmatprep.subr.mxu0 0.0
    %1921 = vmatpush1.xpose.msra.mxu0 0.0
    %1922 = vmatprep.subr.mxu0 0.0
    %1923 = vmatpush1.xpose.msra.mxu0 0.0
    %1924 = vmatprep.subr.mxu0 0.0
    %1925 = vmatpush1.xpose.msra.mxu0 0.0
    %1926 = vmatprep.subr.mxu0 0.0
    %1927 = vmatpush1.xpose.msra.mxu0 0.0
    %1928 = vmatprep.subr.mxu0 0.0
    %1929 = vmatpush1.xpose.msra.mxu0 0.0
    %1930 = vmatprep.subr.mxu0 0.0
    %1931 = vmatpush1.xpose.msra.mxu0 0.0
    %1932 = vmatprep.subr.mxu0 0.0
    %1933 = vmatpush1.xpose.msra.mxu0 0.0
    %1934 = vmatprep.subr.mxu0 0.0
    %1935 = vmatpush1.xpose.msra.mxu0 0.0
    %1936 = vmatprep.subr.mxu0 0.0
    %1937 = vmatpush1.xpose.msra.mxu0 0.0
    %1938 = vmatprep.subr.mxu0 0.0
    %1939 = vmatpush1.xpose.msra.mxu0 0.0
    %1940 = vmatprep.subr.mxu0 0.0
    %1941 = vmatpush1.xpose.msra.mxu0 0.0
    %1942 = vmatprep.subr.mxu0 0.0
    %1943 = vmatpush1.xpose.msra.mxu0 0.0
    %1944 = vmatprep.subr.mxu0 0.0
    %1945 = vmatpush1.xpose.msra.mxu0 0.0
    %1946 = vmatprep.subr.mxu0 0.0
    %1947 = vmatpush1.xpose.msra.mxu0 0.0
    %1948 = vmatprep.subr.mxu0 0.0
    %1949 = vmatpush1.xpose.msra.mxu0 0.0
    %1950 = vmatprep.subr.mxu0 0.0
    %1951 = vmatpush1.xpose.msra.mxu0 0.0
    %1952 = vmatprep.subr.mxu0 0.0
    %1953 = vmatpush1.xpose.msra.mxu0 0.0
    %1954 = vmatprep.subr.mxu0 0.0
    %1955 = vmatpush1.xpose.msra.mxu0 0.0
    %1956 = vmatprep.subr.mxu0 0.0
    %1957 = vmatpush1.xpose.msra.mxu0 0.0
    %1958 = vmatprep.mubr.f32.mxu0 0.0
    %1959 = vmatmul.mubr.f32.gmra.mrb[0].mxu0 %v1890
    %v1960 = vpop.f32.mrb[0].mxu0
    %v1961 = vadd.f32 0.0, %v1960
    %v1962 = vpop.f32.mrb[0].mxu0
    %1963 = vdwg.mxu0
    %1964 = vrot.lane.b32.xlu0 %v377, 112
    %v1965 = vpop.permute.xlu0 %1964
    %1966 = vrot.lane.b32.xlu0 %v377, 80
    %v1967 = vpop.permute.xlu0 %1966
    %v1968 = vsel %vm393, %v1965, 0
    %v1970 = vsel %vm393, %v1967, 0
    %1972 = vmatprep.subr.mxu0 0.0
    %1973 = vmatpush1.xpose.msra.mxu0 %v1970
    %1974 = vmatprep.subr.mxu0 0.0
    %1975 = vmatpush1.xpose.msra.mxu0 0.0
    %1976 = vmatprep.subr.mxu0 0.0
    %1977 = vmatpush1.xpose.msra.mxu0 0.0
    %1978 = vmatprep.subr.mxu0 0.0
    %1979 = vmatpush1.xpose.msra.mxu0 0.0
    %1980 = vmatprep.subr.mxu0 0.0
    %1981 = vmatpush1.xpose.msra.mxu0 0.0
    %1982 = vmatprep.subr.mxu0 0.0
    %1983 = vmatpush1.xpose.msra.mxu0 0.0
    %1984 = vmatprep.subr.mxu0 0.0
    %1985 = vmatpush1.xpose.msra.mxu0 0.0
    %1986 = vmatprep.subr.mxu0 0.0
    %1987 = vmatpush1.xpose.msra.mxu0 0.0
    %1988 = vmatprep.subr.mxu0 0.0
    %1989 = vmatpush1.xpose.msra.mxu0 0.0
    %1990 = vmatprep.subr.mxu0 0.0
    %1991 = vmatpush1.xpose.msra.mxu0 0.0
    %1992 = vmatprep.subr.mxu0 0.0
    %1993 = vmatpush1.xpose.msra.mxu0 0.0
    %1994 = vmatprep.subr.mxu0 0.0
    %1995 = vmatpush1.xpose.msra.mxu0 0.0
    %1996 = vmatprep.subr.mxu0 0.0
    %1997 = vmatpush1.xpose.msra.mxu0 0.0
    %1998 = vmatprep.subr.mxu0 0.0
    %1999 = vmatpush1.xpose.msra.mxu0 0.0
    %2000 = vmatprep.subr.mxu0 0.0
    %2001 = vmatpush1.xpose.msra.mxu0 0.0
    %2002 = vmatprep.subr.mxu0 0.0
    %2003 = vmatpush1.xpose.msra.mxu0 0.0
    %2004 = vmatprep.subr.mxu0 0.0
    %2005 = vmatpush1.xpose.msra.mxu0 0.0
    %2006 = vmatprep.subr.mxu0 0.0
    %2007 = vmatpush1.xpose.msra.mxu0 0.0
    %2008 = vmatprep.subr.mxu0 0.0
    %2009 = vmatpush1.xpose.msra.mxu0 0.0
    %2010 = vmatprep.subr.mxu0 0.0
    %2011 = vmatpush1.xpose.msra.mxu0 0.0
    %2012 = vmatprep.subr.mxu0 0.0
    %2013 = vmatpush1.xpose.msra.mxu0 0.0
    %2014 = vmatprep.subr.mxu0 0.0
    %2015 = vmatpush1.xpose.msra.mxu0 0.0
    %2016 = vmatprep.subr.mxu0 0.0
    %2017 = vmatpush1.xpose.msra.mxu0 0.0
    %2018 = vmatprep.subr.mxu0 0.0
    %2019 = vmatpush1.xpose.msra.mxu0 0.0
    %2020 = vmatprep.subr.mxu0 0.0
    %2021 = vmatpush1.xpose.msra.mxu0 0.0
    %2022 = vmatprep.subr.mxu0 0.0
    %2023 = vmatpush1.xpose.msra.mxu0 0.0
    %2024 = vmatprep.subr.mxu0 0.0
    %2025 = vmatpush1.xpose.msra.mxu0 0.0
    %2026 = vmatprep.subr.mxu0 0.0
    %2027 = vmatpush1.xpose.msra.mxu0 0.0
    %2028 = vmatprep.subr.mxu0 0.0
    %2029 = vmatpush1.xpose.msra.mxu0 0.0
    %2030 = vmatprep.subr.mxu0 0.0
    %2031 = vmatpush1.xpose.msra.mxu0 0.0
    %2032 = vmatprep.subr.mxu0 0.0
    %2033 = vmatpush1.xpose.msra.mxu0 0.0
    %2034 = vmatprep.subr.mxu0 0.0
    %2035 = vmatpush1.xpose.msra.mxu0 0.0
    %2036 = vmatprep.mubr.f32.mxu0 0.0
    %2037 = vmatmul.mubr.f32.gmra.mrb[0].mxu0 %v1968
    %v2038 = vpop.f32.mrb[0].mxu0
    %v2039 = vadd.f32 0.0, %v2038
    %v2040 = vpop.f32.mrb[0].mxu0
    %2041 = vdwg.mxu0
    %2042 = vrot.lane.b32.xlu0 %v382, 112
    %v2043 = vpop.permute.xlu0 %2042
    %2044 = vrot.lane.b32.xlu0 %v382, 80
    %v2045 = vpop.permute.xlu0 %2044
    %v2046 = vsel %vm393, %v2043, 0
    %v2048 = vsel %vm393, %v2045, 0
    %2050 = vmatprep.subr.mxu0 0.0
    %2051 = vmatpush1.xpose.msra.mxu0 %v2048
    %2052 = vmatprep.subr.mxu0 0.0
    %2053 = vmatpush1.xpose.msra.mxu0 0.0
    %2054 = vmatprep.subr.mxu0 0.0
    %2055 = vmatpush1.xpose.msra.mxu0 0.0
    %2056 = vmatprep.subr.mxu0 0.0
    %2057 = vmatpush1.xpose.msra.mxu0 0.0
    %2058 = vmatprep.subr.mxu0 0.0
    %2059 = vmatpush1.xpose.msra.mxu0 0.0
    %2060 = vmatprep.subr.mxu0 0.0
    %2061 = vmatpush1.xpose.msra.mxu0 0.0
    %2062 = vmatprep.subr.mxu0 0.0
    %2063 = vmatpush1.xpose.msra.mxu0 0.0
    %2064 = vmatprep.subr.mxu0 0.0
    %2065 = vmatpush1.xpose.msra.mxu0 0.0
    %2066 = vmatprep.subr.mxu0 0.0
    %2067 = vmatpush1.xpose.msra.mxu0 0.0
    %2068 = vmatprep.subr.mxu0 0.0
    %2069 = vmatpush1.xpose.msra.mxu0 0.0
    %2070 = vmatprep.subr.mxu0 0.0
    %2071 = vmatpush1.xpose.msra.mxu0 0.0
    %2072 = vmatprep.subr.mxu0 0.0
    %2073 = vmatpush1.xpose.msra.mxu0 0.0
    %2074 = vmatprep.subr.mxu0 0.0
    %2075 = vmatpush1.xpose.msra.mxu0 0.0
    %2076 = vmatprep.subr.mxu0 0.0
    %2077 = vmatpush1.xpose.msra.mxu0 0.0
    %2078 = vmatprep.subr.mxu0 0.0
    %2079 = vmatpush1.xpose.msra.mxu0 0.0
    %2080 = vmatprep.subr.mxu0 0.0
    %2081 = vmatpush1.xpose.msra.mxu0 0.0
    %2082 = vmatprep.subr.mxu0 0.0
    %2083 = vmatpush1.xpose.msra.mxu0 0.0
    %2084 = vmatprep.subr.mxu0 0.0
    %2085 = vmatpush1.xpose.msra.mxu0 0.0
    %2086 = vmatprep.subr.mxu0 0.0
    %2087 = vmatpush1.xpose.msra.mxu0 0.0
    %2088 = vmatprep.subr.mxu0 0.0
    %2089 = vmatpush1.xpose.msra.mxu0 0.0
    %2090 = vmatprep.subr.mxu0 0.0
    %2091 = vmatpush1.xpose.msra.mxu0 0.0
    %2092 = vmatprep.subr.mxu0 0.0
    %2093 = vmatpush1.xpose.msra.mxu0 0.0
    %2094 = vmatprep.subr.mxu0 0.0
    %2095 = vmatpush1.xpose.msra.mxu0 0.0
    %2096 = vmatprep.subr.mxu0 0.0
    %2097 = vmatpush1.xpose.msra.mxu0 0.0
    %2098 = vmatprep.subr.mxu0 0.0
    %2099 = vmatpush1.xpose.msra.mxu0 0.0
    %2100 = vmatprep.subr.mxu0 0.0
    %2101 = vmatpush1.xpose.msra.mxu0 0.0
    %2102 = vmatprep.subr.mxu0 0.0
    %2103 = vmatpush1.xpose.msra.mxu0 0.0
    %2104 = vmatprep.subr.mxu0 0.0
    %2105 = vmatpush1.xpose.msra.mxu0 0.0
    %2106 = vmatprep.subr.mxu0 0.0
    %2107 = vmatpush1.xpose.msra.mxu0 0.0
    %2108 = vmatprep.subr.mxu0 0.0
    %2109 = vmatpush1.xpose.msra.mxu0 0.0
    %2110 = vmatprep.subr.mxu0 0.0
    %2111 = vmatpush1.xpose.msra.mxu0 0.0
    %2112 = vmatprep.subr.mxu0 0.0
    %2113 = vmatpush1.xpose.msra.mxu0 0.0
    %2114 = vmatprep.mubr.f32.mxu0 0.0
    %2115 = vmatmul.mubr.f32.gmra.mrb[0].mxu0 %v2046
    %v2116 = vpop.f32.mrb[0].mxu0
    %v2117 = vadd.f32 0.0, %v2116
    %v2118 = vpop.f32.mrb[0].mxu0
    %2119 = vdwg.mxu0
    %2120 = vrot.lane.b32.xlu0 %v387, 112
    %v2121 = vpop.permute.xlu0 %2120
    %2122 = vrot.lane.b32.xlu0 %v387, 80
    %v2123 = vpop.permute.xlu0 %2122
    %v2124 = vsel %vm393, %v2121, 0
    %v2126 = vsel %vm393, %v2123, 0
    %2128 = vmatprep.subr.mxu0 0.0
    %2129 = vmatpush1.xpose.msra.mxu0 %v2126
    %2130 = vmatprep.subr.mxu0 0.0
    %2131 = vmatpush1.xpose.msra.mxu0 0.0
    %2132 = vmatprep.subr.mxu0 0.0
    %2133 = vmatpush1.xpose.msra.mxu0 0.0
    %2134 = vmatprep.subr.mxu0 0.0
    %2135 = vmatpush1.xpose.msra.mxu0 0.0
    %2136 = vmatprep.subr.mxu0 0.0
    %2137 = vmatpush1.xpose.msra.mxu0 0.0
    %2138 = vmatprep.subr.mxu0 0.0
    %2139 = vmatpush1.xpose.msra.mxu0 0.0
    %2140 = vmatprep.subr.mxu0 0.0
    %2141 = vmatpush1.xpose.msra.mxu0 0.0
    %2142 = vmatprep.subr.mxu0 0.0
    %2143 = vmatpush1.xpose.msra.mxu0 0.0
    %2144 = vmatprep.subr.mxu0 0.0
    %2145 = vmatpush1.xpose.msra.mxu0 0.0
    %2146 = vmatprep.subr.mxu0 0.0
    %2147 = vmatpush1.xpose.msra.mxu0 0.0
    %2148 = vmatprep.subr.mxu0 0.0
    %2149 = vmatpush1.xpose.msra.mxu0 0.0
    %2150 = vmatprep.subr.mxu0 0.0
    %2151 = vmatpush1.xpose.msra.mxu0 0.0
    %2152 = vmatprep.subr.mxu0 0.0
    %2153 = vmatpush1.xpose.msra.mxu0 0.0
    %2154 = vmatprep.subr.mxu0 0.0
    %2155 = vmatpush1.xpose.msra.mxu0 0.0
    %2156 = vmatprep.subr.mxu0 0.0
    %2157 = vmatpush1.xpose.msra.mxu0 0.0
    %2158 = vmatprep.subr.mxu0 0.0
    %2159 = vmatpush1.xpose.msra.mxu0 0.0
    %2160 = vmatprep.subr.mxu0 0.0
    %2161 = vmatpush1.xpose.msra.mxu0 0.0
    %2162 = vmatprep.subr.mxu0 0.0
    %2163 = vmatpush1.xpose.msra.mxu0 0.0
    %2164 = vmatprep.subr.mxu0 0.0
    %2165 = vmatpush1.xpose.msra.mxu0 0.0
    %2166 = vmatprep.subr.mxu0 0.0
    %2167 = vmatpush1.xpose.msra.mxu0 0.0
    %2168 = vmatprep.subr.mxu0 0.0
    %2169 = vmatpush1.xpose.msra.mxu0 0.0
    %2170 = vmatprep.subr.mxu0 0.0
    %2171 = vmatpush1.xpose.msra.mxu0 0.0
    %2172 = vmatprep.subr.mxu0 0.0
    %2173 = vmatpush1.xpose.msra.mxu0 0.0
    %2174 = vmatprep.subr.mxu0 0.0
    %2175 = vmatpush1.xpose.msra.mxu0 0.0
    %2176 = vmatprep.subr.mxu0 0.0
    %2177 = vmatpush1.xpose.msra.mxu0 0.0
    %2178 = vmatprep.subr.mxu0 0.0
    %2179 = vmatpush1.xpose.msra.mxu0 0.0
    %2180 = vmatprep.subr.mxu0 0.0
    %2181 = vmatpush1.xpose.msra.mxu0 0.0
    %2182 = vmatprep.subr.mxu0 0.0
    %2183 = vmatpush1.xpose.msra.mxu0 0.0
    %2184 = vmatprep.subr.mxu0 0.0
    %2185 = vmatpush1.xpose.msra.mxu0 0.0
    %2186 = vmatprep.subr.mxu0 0.0
    %2187 = vmatpush1.xpose.msra.mxu0 0.0
    %2188 = vmatprep.subr.mxu0 0.0
    %2189 = vmatpush1.xpose.msra.mxu0 0.0
    %2190 = vmatprep.subr.mxu0 0.0
    %2191 = vmatpush1.xpose.msra.mxu0 0.0
    %2192 = vmatprep.mubr.f32.mxu0 0.0
    %2193 = vmatmul.mubr.f32.gmra.mrb[0].mxu0 %v2124
    %v2194 = vpop.f32.mrb[0].mxu0
    %v2195 = vadd.f32 0.0, %v2194
    %v2196 = vpop.f32.mrb[0].mxu0
    %2197 = vdwg.mxu0
    %v2198 = vmul.f32 %v1961, 0.35355338
    %v2199 = vmul.f32 %v2039, 0.35355338
    %v2200 = vmul.f32 %v2117, 0.35355338
    %v2201 = vmul.f32 %v2195, 0.35355338
    %2202 = vrot.lane.b32.xlu0 %v372, 48
    %v2203 = vpop.permute.xlu0 %2202
    %v2206 = vsel %vm393, %v2198, 0
    %2208 = vmatprep.subr.mxu0 0.0
    %2209 = vmatpush1.msra.mxu0 %v2203
    %2210 = vmatprep.subr.mxu0 0.0
    %2211 = vmatpush1.msra.mxu0 0.0
    %2212 = vmatprep.subr.mxu0 0.0
    %2213 = vmatpush1.msra.mxu0 0.0
    %2214 = vmatprep.subr.mxu0 0.0
    %2215 = vmatpush1.msra.mxu0 0.0
    %2216 = vmatprep.subr.mxu0 0.0
    %2217 = vmatpush1.msra.mxu0 0.0
    %2218 = vmatprep.subr.mxu0 0.0
    %2219 = vmatpush1.msra.mxu0 0.0
    %2220 = vmatprep.subr.mxu0 0.0
    %2221 = vmatpush1.msra.mxu0 0.0
    %2222 = vmatprep.subr.mxu0 0.0
    %2223 = vmatpush1.msra.mxu0 0.0
    %2224 = vmatprep.subr.mxu0 0.0
    %2225 = vmatpush1.msra.mxu0 0.0
    %2226 = vmatprep.subr.mxu0 0.0
    %2227 = vmatpush1.msra.mxu0 0.0
    %2228 = vmatprep.subr.mxu0 0.0
    %2229 = vmatpush1.msra.mxu0 0.0
    %2230 = vmatprep.subr.mxu0 0.0
    %2231 = vmatpush1.msra.mxu0 0.0
    %2232 = vmatprep.subr.mxu0 0.0
    %2233 = vmatpush1.msra.mxu0 0.0
    %2234 = vmatprep.subr.mxu0 0.0
    %2235 = vmatpush1.msra.mxu0 0.0
    %2236 = vmatprep.subr.mxu0 0.0
    %2237 = vmatpush1.msra.mxu0 0.0
    %2238 = vmatprep.subr.mxu0 0.0
    %2239 = vmatpush1.msra.mxu0 0.0
    %2240 = vmatprep.subr.mxu0 0.0
    %2241 = vmatpush1.msra.mxu0 0.0
    %2242 = vmatprep.subr.mxu0 0.0
    %2243 = vmatpush1.msra.mxu0 0.0
    %2244 = vmatprep.subr.mxu0 0.0
    %2245 = vmatpush1.msra.mxu0 0.0
    %2246 = vmatprep.subr.mxu0 0.0
    %2247 = vmatpush1.msra.mxu0 0.0
    %2248 = vmatprep.subr.mxu0 0.0
    %2249 = vmatpush1.msra.mxu0 0.0
    %2250 = vmatprep.subr.mxu0 0.0
    %2251 = vmatpush1.msra.mxu0 0.0
    %2252 = vmatprep.subr.mxu0 0.0
    %2253 = vmatpush1.msra.mxu0 0.0
    %2254 = vmatprep.subr.mxu0 0.0
    %2255 = vmatpush1.msra.mxu0 0.0
    %2256 = vmatprep.subr.mxu0 0.0
    %2257 = vmatpush1.msra.mxu0 0.0
    %2258 = vmatprep.subr.mxu0 0.0
    %2259 = vmatpush1.msra.mxu0 0.0
    %2260 = vmatprep.subr.mxu0 0.0
    %2261 = vmatpush1.msra.mxu0 0.0
    %2262 = vmatprep.subr.mxu0 0.0
    %2263 = vmatpush1.msra.mxu0 0.0
    %2264 = vmatprep.subr.mxu0 0.0
    %2265 = vmatpush1.msra.mxu0 0.0
    %2266 = vmatprep.subr.mxu0 0.0
    %2267 = vmatpush1.msra.mxu0 0.0
    %2268 = vmatprep.subr.mxu0 0.0
    %2269 = vmatpush1.msra.mxu0 0.0
    %2270 = vmatprep.subr.mxu0 0.0
    %2271 = vmatpush1.msra.mxu0 0.0
    %2272 = vmatprep.mubr.f32.mxu0 0.0
    %2273 = vmatmul.mubr.f32.gmra.mrb[0].mxu0 %v2206
    %v2274 = vpop.f32.mrb[0].mxu0
    %v2275 = vadd.f32 0.0, %v2274
    %v2276 = vpop.f32.mrb[0].mxu0
    %2277 = vdwg.mxu0
    %2278 = vrot.lane.b32.xlu0 %v377, 48
    %v2279 = vpop.permute.xlu0 %2278
    %v2282 = vsel %vm393, %v2199, 0
    %2284 = vmatprep.subr.mxu0 0.0
    %2285 = vmatpush1.msra.mxu0 %v2279
    %2286 = vmatprep.subr.mxu0 0.0
    %2287 = vmatpush1.msra.mxu0 0.0
    %2288 = vmatprep.subr.mxu0 0.0
    %2289 = vmatpush1.msra.mxu0 0.0
    %2290 = vmatprep.subr.mxu0 0.0
    %2291 = vmatpush1.msra.mxu0 0.0
    %2292 = vmatprep.subr.mxu0 0.0
    %2293 = vmatpush1.msra.mxu0 0.0
    %2294 = vmatprep.subr.mxu0 0.0
    %2295 = vmatpush1.msra.mxu0 0.0
    %2296 = vmatprep.subr.mxu0 0.0
    %2297 = vmatpush1.msra.mxu0 0.0
    %2298 = vmatprep.subr.mxu0 0.0
    %2299 = vmatpush1.msra.mxu0 0.0
    %2300 = vmatprep.subr.mxu0 0.0
    %2301 = vmatpush1.msra.mxu0 0.0
    %2302 = vmatprep.subr.mxu0 0.0
    %2303 = vmatpush1.msra.mxu0 0.0
    %2304 = vmatprep.subr.mxu0 0.0
    %2305 = vmatpush1.msra.mxu0 0.0
    %2306 = vmatprep.subr.mxu0 0.0
    %2307 = vmatpush1.msra.mxu0 0.0
    %2308 = vmatprep.subr.mxu0 0.0
    %2309 = vmatpush1.msra.mxu0 0.0
    %2310 = vmatprep.subr.mxu0 0.0
    %2311 = vmatpush1.msra.mxu0 0.0
    %2312 = vmatprep.subr.mxu0 0.0
    %2313 = vmatpush1.msra.mxu0 0.0
    %2314 = vmatprep.subr.mxu0 0.0
    %2315 = vmatpush1.msra.mxu0 0.0
    %2316 = vmatprep.subr.mxu0 0.0
    %2317 = vmatpush1.msra.mxu0 0.0
    %2318 = vmatprep.subr.mxu0 0.0
    %2319 = vmatpush1.msra.mxu0 0.0
    %2320 = vmatprep.subr.mxu0 0.0
    %2321 = vmatpush1.msra.mxu0 0.0
    %2322 = vmatprep.subr.mxu0 0.0
    %2323 = vmatpush1.msra.mxu0 0.0
    %2324 = vmatprep.subr.mxu0 0.0
    %2325 = vmatpush1.msra.mxu0 0.0
    %2326 = vmatprep.subr.mxu0 0.0
    %2327 = vmatpush1.msra.mxu0 0.0
    %2328 = vmatprep.subr.mxu0 0.0
    %2329 = vmatpush1.msra.mxu0 0.0
    %2330 = vmatprep.subr.mxu0 0.0
    %2331 = vmatpush1.msra.mxu0 0.0
    %2332 = vmatprep.subr.mxu0 0.0
    %2333 = vmatpush1.msra.mxu0 0.0
    %2334 = vmatprep.subr.mxu0 0.0
    %2335 = vmatpush1.msra.mxu0 0.0
    %2336 = vmatprep.subr.mxu0 0.0
    %2337 = vmatpush1.msra.mxu0 0.0
    %2338 = vmatprep.subr.mxu0 0.0
    %2339 = vmatpush1.msra.mxu0 0.0
    %2340 = vmatprep.subr.mxu0 0.0
    %2341 = vmatpush1.msra.mxu0 0.0
    %2342 = vmatprep.subr.mxu0 0.0
    %2343 = vmatpush1.msra.mxu0 0.0
    %2344 = vmatprep.subr.mxu0 0.0
    %2345 = vmatpush1.msra.mxu0 0.0
    %2346 = vmatprep.subr.mxu0 0.0
    %2347 = vmatpush1.msra.mxu0 0.0
    %2348 = vmatprep.mubr.f32.mxu0 0.0
    %2349 = vmatmul.mubr.f32.gmra.mrb[0].mxu0 %v2282
    %v2350 = vpop.f32.mrb[0].mxu0
    %v2351 = vadd.f32 0.0, %v2350
    %v2352 = vpop.f32.mrb[0].mxu0
    %2353 = vdwg.mxu0
    %2354 = vrot.lane.b32.xlu0 %v382, 48
    %v2355 = vpop.permute.xlu0 %2354
    %v2358 = vsel %vm393, %v2200, 0
    %2360 = vmatprep.subr.mxu0 0.0
    %2361 = vmatpush1.msra.mxu0 %v2355
    %2362 = vmatprep.subr.mxu0 0.0
    %2363 = vmatpush1.msra.mxu0 0.0
    %2364 = vmatprep.subr.mxu0 0.0
    %2365 = vmatpush1.msra.mxu0 0.0
    %2366 = vmatprep.subr.mxu0 0.0
    %2367 = vmatpush1.msra.mxu0 0.0
    %2368 = vmatprep.subr.mxu0 0.0
    %2369 = vmatpush1.msra.mxu0 0.0
    %2370 = vmatprep.subr.mxu0 0.0
    %2371 = vmatpush1.msra.mxu0 0.0
    %2372 = vmatprep.subr.mxu0 0.0
    %2373 = vmatpush1.msra.mxu0 0.0
    %2374 = vmatprep.subr.mxu0 0.0
    %2375 = vmatpush1.msra.mxu0 0.0
    %2376 = vmatprep.subr.mxu0 0.0
    %2377 = vmatpush1.msra.mxu0 0.0
    %2378 = vmatprep.subr.mxu0 0.0
    %2379 = vmatpush1.msra.mxu0 0.0
    %2380 = vmatprep.subr.mxu0 0.0
    %2381 = vmatpush1.msra.mxu0 0.0
    %2382 = vmatprep.subr.mxu0 0.0
    %2383 = vmatpush1.msra.mxu0 0.0
    %2384 = vmatprep.subr.mxu0 0.0
    %2385 = vmatpush1.msra.mxu0 0.0
    %2386 = vmatprep.subr.mxu0 0.0
    %2387 = vmatpush1.msra.mxu0 0.0
    %2388 = vmatprep.subr.mxu0 0.0
    %2389 = vmatpush1.msra.mxu0 0.0
    %2390 = vmatprep.subr.mxu0 0.0
    %2391 = vmatpush1.msra.mxu0 0.0
    %2392 = vmatprep.subr.mxu0 0.0
    %2393 = vmatpush1.msra.mxu0 0.0
    %2394 = vmatprep.subr.mxu0 0.0
    %2395 = vmatpush1.msra.mxu0 0.0
    %2396 = vmatprep.subr.mxu0 0.0
    %2397 = vmatpush1.msra.mxu0 0.0
    %2398 = vmatprep.subr.mxu0 0.0
    %2399 = vmatpush1.msra.mxu0 0.0
    %2400 = vmatprep.subr.mxu0 0.0
    %2401 = vmatpush1.msra.mxu0 0.0
    %2402 = vmatprep.subr.mxu0 0.0
    %2403 = vmatpush1.msra.mxu0 0.0
    %2404 = vmatprep.subr.mxu0 0.0
    %2405 = vmatpush1.msra.mxu0 0.0
    %2406 = vmatprep.subr.mxu0 0.0
    %2407 = vmatpush1.msra.mxu0 0.0
    %2408 = vmatprep.subr.mxu0 0.0
    %2409 = vmatpush1.msra.mxu0 0.0
    %2410 = vmatprep.subr.mxu0 0.0
    %2411 = vmatpush1.msra.mxu0 0.0
    %2412 = vmatprep.subr.mxu0 0.0
    %2413 = vmatpush1.msra.mxu0 0.0
    %2414 = vmatprep.subr.mxu0 0.0
    %2415 = vmatpush1.msra.mxu0 0.0
    %2416 = vmatprep.subr.mxu0 0.0
    %2417 = vmatpush1.msra.mxu0 0.0
    %2418 = vmatprep.subr.mxu0 0.0
    %2419 = vmatpush1.msra.mxu0 0.0
    %2420 = vmatprep.subr.mxu0 0.0
    %2421 = vmatpush1.msra.mxu0 0.0
    %2422 = vmatprep.subr.mxu0 0.0
    %2423 = vmatpush1.msra.mxu0 0.0
    %2424 = vmatprep.mubr.f32.mxu0 0.0
    %2425 = vmatmul.mubr.f32.gmra.mrb[0].mxu0 %v2358
    %v2426 = vpop.f32.mrb[0].mxu0
    %v2427 = vadd.f32 0.0, %v2426
    %v2428 = vpop.f32.mrb[0].mxu0
    %2429 = vdwg.mxu0
    %2430 = vrot.lane.b32.xlu0 %v387, 48
    %v2431 = vpop.permute.xlu0 %2430
    %v2434 = vsel %vm393, %v2201, 0
    %2436 = vmatprep.subr.mxu0 0.0
    %2437 = vmatpush1.msra.mxu0 %v2431
    %2438 = vmatprep.subr.mxu0 0.0
    %2439 = vmatpush1.msra.mxu0 0.0
    %2440 = vmatprep.subr.mxu0 0.0
    %2441 = vmatpush1.msra.mxu0 0.0
    %2442 = vmatprep.subr.mxu0 0.0
    %2443 = vmatpush1.msra.mxu0 0.0
    %2444 = vmatprep.subr.mxu0 0.0
    %2445 = vmatpush1.msra.mxu0 0.0
    %2446 = vmatprep.subr.mxu0 0.0
    %2447 = vmatpush1.msra.mxu0 0.0
    %2448 = vmatprep.subr.mxu0 0.0
    %2449 = vmatpush1.msra.mxu0 0.0
    %2450 = vmatprep.subr.mxu0 0.0
    %2451 = vmatpush1.msra.mxu0 0.0
    %2452 = vmatprep.subr.mxu0 0.0
    %2453 = vmatpush1.msra.mxu0 0.0
    %2454 = vmatprep.subr.mxu0 0.0
    %2455 = vmatpush1.msra.mxu0 0.0
    %2456 = vmatprep.subr.mxu0 0.0
    %2457 = vmatpush1.msra.mxu0 0.0
    %2458 = vmatprep.subr.mxu0 0.0
    %2459 = vmatpush1.msra.mxu0 0.0
    %2460 = vmatprep.subr.mxu0 0.0
    %2461 = vmatpush1.msra.mxu0 0.0
    %2462 = vmatprep.subr.mxu0 0.0
    %2463 = vmatpush1.msra.mxu0 0.0
    %2464 = vmatprep.subr.mxu0 0.0
    %2465 = vmatpush1.msra.mxu0 0.0
    %2466 = vmatprep.subr.mxu0 0.0
    %2467 = vmatpush1.msra.mxu0 0.0
    %2468 = vmatprep.subr.mxu0 0.0
    %2469 = vmatpush1.msra.mxu0 0.0
    %2470 = vmatprep.subr.mxu0 0.0
    %2471 = vmatpush1.msra.mxu0 0.0
    %2472 = vmatprep.subr.mxu0 0.0
    %2473 = vmatpush1.msra.mxu0 0.0
    %2474 = vmatprep.subr.mxu0 0.0
    %2475 = vmatpush1.msra.mxu0 0.0
    %2476 = vmatprep.subr.mxu0 0.0
    %2477 = vmatpush1.msra.mxu0 0.0
    %2478 = vmatprep.subr.mxu0 0.0
    %2479 = vmatpush1.msra.mxu0 0.0
    %2480 = vmatprep.subr.mxu0 0.0
    %2481 = vmatpush1.msra.mxu0 0.0
    %2482 = vmatprep.subr.mxu0 0.0
    %2483 = vmatpush1.msra.mxu0 0.0
    %2484 = vmatprep.subr.mxu0 0.0
    %2485 = vmatpush1.msra.mxu0 0.0
    %2486 = vmatprep.subr.mxu0 0.0
    %2487 = vmatpush1.msra.mxu0 0.0
    %2488 = vmatprep.subr.mxu0 0.0
    %2489 = vmatpush1.msra.mxu0 0.0
    %2490 = vmatprep.subr.mxu0 0.0
    %2491 = vmatpush1.msra.mxu0 0.0
    %2492 = vmatprep.subr.mxu0 0.0
    %2493 = vmatpush1.msra.mxu0 0.0
    %2494 = vmatprep.subr.mxu0 0.0
    %2495 = vmatpush1.msra.mxu0 0.0
    %2496 = vmatprep.subr.mxu0 0.0
    %2497 = vmatpush1.msra.mxu0 0.0
    %2498 = vmatprep.subr.mxu0 0.0
    %2499 = vmatpush1.msra.mxu0 0.0
    %2500 = vmatprep.mubr.f32.mxu0 0.0
    %2501 = vmatmul.mubr.f32.gmra.mrb[0].mxu0 %v2434
    %v2502 = vpop.f32.mrb[0].mxu0
    %v2503 = vadd.f32 0.0, %v2502
    %v2504 = vpop.f32.mrb[0].mxu0
    %2505 = vdwg.mxu0
    %v2506 = vsel %vm393, %v2275, -inf
    %v2507 = vsel %vm393, %v2351, -inf
    %v2508 = vsel %vm393, %v2427, -inf
    %v2509 = vsel %vm393, %v2503, -inf
    %v2510 = vmax.f32 %v2506, %v2507
    %v2511 = vmax.f32 %v2508, %v2509
    %v2512 = vmax.f32 %v2510, %v2511
    %v2513 = vsub.f32 %v2275, %v2512
    %v2514 = vsub.f32 %v2351, %v2512
    %v2515 = vsub.f32 %v2427, %v2512
    %v2516 = vsub.f32 %v2503, %v2512
    %v2517 = vmul.f32 %v2513, 1.442695
    %v2518 = vpow.pop %v2517
    %v2519 = vmul.f32 %v2514, 1.442695
    %v2520 = vpow.pop %v2519
    %v2521 = vmul.f32 %v2515, 1.442695
    %v2522 = vpow.pop %v2521
    %v2523 = vmul.f32 %v2516, 1.442695
    %v2524 = vpow.pop %v2523
    %v2525 = vsel %vm393, %v2518, 0.0
    %v2526 = vsel %vm393, %v2520, 0.0
    %v2527 = vadd.f32 %v2525, %v2526
    %v2528 = vsel %vm393, %v2522, 0.0
    %v2529 = vadd.f32 %v2527, %v2528
    %v2530 = vsel %vm393, %v2524, 0.0
    %v2531 = vadd.f32 %v2529, %v2530
    %v2532 = vrcp.pop %v2531
    %v2533 = vmul.f32 %v2518, %v2532
    %v2534 = vmul.f32 %v2520, %v2532
    %v2535 = vmul.f32 %v2522, %v2532
    %v2536 = vmul.f32 %v2524, %v2532
    %s2537 = scalar_lea.vmem [#allocation8], 16
    %v2538 = vld [vmem:[%s2537] sm:$0xff]
    %v2540 = vsel %vm393, %v2533, 0
    %v2543 = vsel %vm393, %v2534, 0
    %v2546 = vsel %vm393, %v2535, 0
    %v2549 = vsel %vm393, %v2536, 0
    %2551 = vmatprep.subr.mxu0 0.0
    %2552 = vmatpush1.msra.mxu0 %v2538
    %2553 = vmatprep.subr.mxu0 0.0
    %2554 = vmatpush1.msra.mxu0 0.0
    %2555 = vmatprep.subr.mxu0 0.0
    %2556 = vmatpush1.msra.mxu0 0.0
    %2557 = vmatprep.subr.mxu0 0.0
    %2558 = vmatpush1.msra.mxu0 0.0
    %2559 = vmatprep.subr.mxu0 0.0
    %2560 = vmatpush1.msra.mxu0 0.0
    %2561 = vmatprep.subr.mxu0 0.0
    %2562 = vmatpush1.msra.mxu0 0.0
    %2563 = vmatprep.subr.mxu0 0.0
    %2564 = vmatpush1.msra.mxu0 0.0
    %2565 = vmatprep.subr.mxu0 0.0
    %2566 = vmatpush1.msra.mxu0 0.0
    %2567 = vmatprep.subr.mxu0 0.0
    %2568 = vmatpush1.msra.mxu0 0.0
    %2569 = vmatprep.subr.mxu0 0.0
    %2570 = vmatpush1.msra.mxu0 0.0
    %2571 = vmatprep.subr.mxu0 0.0
    %2572 = vmatpush1.msra.mxu0 0.0
    %2573 = vmatprep.subr.mxu0 0.0
    %2574 = vmatpush1.msra.mxu0 0.0
    %2575 = vmatprep.subr.mxu0 0.0
    %2576 = vmatpush1.msra.mxu0 0.0
    %2577 = vmatprep.subr.mxu0 0.0
    %2578 = vmatpush1.msra.mxu0 0.0
    %2579 = vmatprep.subr.mxu0 0.0
    %2580 = vmatpush1.msra.mxu0 0.0
    %2581 = vmatprep.subr.mxu0 0.0
    %2582 = vmatpush1.msra.mxu0 0.0
    %2583 = vmatprep.subr.mxu0 0.0
    %2584 = vmatpush1.msra.mxu0 0.0
    %2585 = vmatprep.subr.mxu0 0.0
    %2586 = vmatpush1.msra.mxu0 0.0
    %2587 = vmatprep.subr.mxu0 0.0
    %2588 = vmatpush1.msra.mxu0 0.0
    %2589 = vmatprep.subr.mxu0 0.0
    %2590 = vmatpush1.msra.mxu0 0.0
    %2591 = vmatprep.subr.mxu0 0.0
    %2592 = vmatpush1.msra.mxu0 0.0
    %2593 = vmatprep.subr.mxu0 0.0
    %2594 = vmatpush1.msra.mxu0 0.0
    %2595 = vmatprep.subr.mxu0 0.0
    %2596 = vmatpush1.msra.mxu0 0.0
    %2597 = vmatprep.subr.mxu0 0.0
    %2598 = vmatpush1.msra.mxu0 0.0
    %2599 = vmatprep.subr.mxu0 0.0
    %2600 = vmatpush1.msra.mxu0 0.0
    %2601 = vmatprep.subr.mxu0 0.0
    %2602 = vmatpush1.msra.mxu0 0.0
    %2603 = vmatprep.subr.mxu0 0.0
    %2604 = vmatpush1.msra.mxu0 0.0
    %2605 = vmatprep.subr.mxu0 0.0
    %2606 = vmatpush1.msra.mxu0 0.0
    %2607 = vmatprep.subr.mxu0 0.0
    %2608 = vmatpush1.msra.mxu0 0.0
    %2609 = vmatprep.subr.mxu0 0.0
    %2610 = vmatpush1.msra.mxu0 0.0
    %2611 = vmatprep.subr.mxu0 0.0
    %2612 = vmatpush1.msra.mxu0 0.0
    %2613 = vmatprep.subr.mxu0 0.0
    %2614 = vmatpush1.msra.mxu0 0.0
    %2615 = vmatprep.mubr.f32.mxu0 0.0
    %2616 = vmatmul.mubr.f32.gmra.mrb[0].mxu0 %v2540
    %v2617 = vpop.f32.mrb[0].mxu0
    %v2618 = vadd.f32 0.0, %v2617
    %v2619 = vpop.f32.mrb[0].mxu0
    %2620 = vmatprep.mubr.f32.mxu0 0.0
    %2621 = vmatmul.mubr.f32.gmra.mrb[0].mxu0 %v2543
    %v2622 = vpop.f32.mrb[0].mxu0
    %v2623 = vadd.f32 0.0, %v2622
    %v2624 = vpop.f32.mrb[0].mxu0
    %2625 = vmatprep.mubr.f32.mxu0 0.0
    %2626 = vmatmul.mubr.f32.gmra.mrb[0].mxu0 %v2546
    %v2627 = vpop.f32.mrb[0].mxu0
    %v2628 = vadd.f32 0.0, %v2627
    %v2629 = vpop.f32.mrb[0].mxu0
    %2630 = vmatprep.mubr.f32.mxu0 0.0
    %2631 = vmatmul.mubr.f32.gmra.mrb[0].mxu0 %v2549
    %v2632 = vpop.f32.mrb[0].mxu0
    %v2633 = vadd.f32 0.0, %v2632
    %v2634 = vpop.f32.mrb[0].mxu0
    %2635 = vdwg.mxu0
    %v2636 = vadd.f32 %v1868, %v2618
    %v2637 = vadd.f32 %v1873, %v2623
    %v2638 = vadd.f32 %v1878, %v2628
    %v2639 = vadd.f32 %v1883, %v2633
    %2640 = vrot.lane.b32.xlu0 %v372, 104
    %v2641 = vpop.permute.xlu0 %2640
    %2642 = vrot.lane.b32.xlu0 %v372, 72
    %v2643 = vpop.permute.xlu0 %2642
    %v2644 = vsel %vm393, %v2641, 0
    %v2646 = vsel %vm393, %v2643, 0
    %2648 = vmatprep.subr.mxu0 0.0
    %2649 = vmatpush1.xpose.msra.mxu0 %v2646
    %2650 = vmatprep.subr.mxu0 0.0
    %2651 = vmatpush1.xpose.msra.mxu0 0.0
    %2652 = vmatprep.subr.mxu0 0.0
    %2653 = vmatpush1.xpose.msra.mxu0 0.0
    %2654 = vmatprep.subr.mxu0 0.0
    %2655 = vmatpush1.xpose.msra.mxu0 0.0
    %2656 = vmatprep.subr.mxu0 0.0
    %2657 = vmatpush1.xpose.msra.mxu0 0.0
    %2658 = vmatprep.subr.mxu0 0.0
    %2659 = vmatpush1.xpose.msra.mxu0 0.0
    %2660 = vmatprep.subr.mxu0 0.0
    %2661 = vmatpush1.xpose.msra.mxu0 0.0
    %2662 = vmatprep.subr.mxu0 0.0
    %2663 = vmatpush1.xpose.msra.mxu0 0.0
    %2664 = vmatprep.subr.mxu0 0.0
    %2665 = vmatpush1.xpose.msra.mxu0 0.0
    %2666 = vmatprep.subr.mxu0 0.0
    %2667 = vmatpush1.xpose.msra.mxu0 0.0
    %2668 = vmatprep.subr.mxu0 0.0
    %2669 = vmatpush1.xpose.msra.mxu0 0.0
    %2670 = vmatprep.subr.mxu0 0.0
    %2671 = vmatpush1.xpose.msra.mxu0 0.0
    %2672 = vmatprep.subr.mxu0 0.0
    %2673 = vmatpush1.xpose.msra.mxu0 0.0
    %2674 = vmatprep.subr.mxu0 0.0
    %2675 = vmatpush1.xpose.msra.mxu0 0.0
    %2676 = vmatprep.subr.mxu0 0.0
    %2677 = vmatpush1.xpose.msra.mxu0 0.0
    %2678 = vmatprep.subr.mxu0 0.0
    %2679 = vmatpush1.xpose.msra.mxu0 0.0
    %2680 = vmatprep.subr.mxu0 0.0
    %2681 = vmatpush1.xpose.msra.mxu0 0.0
    %2682 = vmatprep.subr.mxu0 0.0
    %2683 = vmatpush1.xpose.msra.mxu0 0.0
    %2684 = vmatprep.subr.mxu0 0.0
    %2685 = vmatpush1.xpose.msra.mxu0 0.0
    %2686 = vmatprep.subr.mxu0 0.0
    %2687 = vmatpush1.xpose.msra.mxu0 0.0
    %2688 = vmatprep.subr.mxu0 0.0
    %2689 = vmatpush1.xpose.msra.mxu0 0.0
    %2690 = vmatprep.subr.mxu0 0.0
    %2691 = vmatpush1.xpose.msra.mxu0 0.0
    %2692 = vmatprep.subr.mxu0 0.0
    %2693 = vmatpush1.xpose.msra.mxu0 0.0
    %2694 = vmatprep.subr.mxu0 0.0
    %2695 = vmatpush1.xpose.msra.mxu0 0.0
    %2696 = vmatprep.subr.mxu0 0.0
    %2697 = vmatpush1.xpose.msra.mxu0 0.0
    %2698 = vmatprep.subr.mxu0 0.0
    %2699 = vmatpush1.xpose.msra.mxu0 0.0
    %2700 = vmatprep.subr.mxu0 0.0
    %2701 = vmatpush1.xpose.msra.mxu0 0.0
    %2702 = vmatprep.subr.mxu0 0.0
    %2703 = vmatpush1.xpose.msra.mxu0 0.0
    %2704 = vmatprep.subr.mxu0 0.0
    %2705 = vmatpush1.xpose.msra.mxu0 0.0
    %2706 = vmatprep.subr.mxu0 0.0
    %2707 = vmatpush1.xpose.msra.mxu0 0.0
    %2708 = vmatprep.subr.mxu0 0.0
    %2709 = vmatpush1.xpose.msra.mxu0 0.0
    %2710 = vmatprep.subr.mxu0 0.0
    %2711 = vmatpush1.xpose.msra.mxu0 0.0
    %2712 = vmatprep.mubr.f32.mxu0 0.0
    %2713 = vmatmul.mubr.f32.gmra.mrb[0].mxu0 %v2644
    %v2714 = vpop.f32.mrb[0].mxu0
    %v2715 = vadd.f32 0.0, %v2714
    %v2716 = vpop.f32.mrb[0].mxu0
    %2717 = vdwg.mxu0
    %2718 = vrot.lane.b32.xlu0 %v377, 104
    %v2719 = vpop.permute.xlu0 %2718
    %2720 = vrot.lane.b32.xlu0 %v377, 72
    %v2721 = vpop.permute.xlu0 %2720
    %v2722 = vsel %vm393, %v2719, 0
    %v2724 = vsel %vm393, %v2721, 0
    %2726 = vmatprep.subr.mxu0 0.0
    %2727 = vmatpush1.xpose.msra.mxu0 %v2724
    %2728 = vmatprep.subr.mxu0 0.0
    %2729 = vmatpush1.xpose.msra.mxu0 0.0
    %2730 = vmatprep.subr.mxu0 0.0
    %2731 = vmatpush1.xpose.msra.mxu0 0.0
    %2732 = vmatprep.subr.mxu0 0.0
    %2733 = vmatpush1.xpose.msra.mxu0 0.0
    %2734 = vmatprep.subr.mxu0 0.0
    %2735 = vmatpush1.xpose.msra.mxu0 0.0
    %2736 = vmatprep.subr.mxu0 0.0
    %2737 = vmatpush1.xpose.msra.mxu0 0.0
    %2738 = vmatprep.subr.mxu0 0.0
    %2739 = vmatpush1.xpose.msra.mxu0 0.0
    %2740 = vmatprep.subr.mxu0 0.0
    %2741 = vmatpush1.xpose.msra.mxu0 0.0
    %2742 = vmatprep.subr.mxu0 0.0
    %2743 = vmatpush1.xpose.msra.mxu0 0.0
    %2744 = vmatprep.subr.mxu0 0.0
    %2745 = vmatpush1.xpose.msra.mxu0 0.0
    %2746 = vmatprep.subr.mxu0 0.0
    %2747 = vmatpush1.xpose.msra.mxu0 0.0
    %2748 = vmatprep.subr.mxu0 0.0
    %2749 = vmatpush1.xpose.msra.mxu0 0.0
    %2750 = vmatprep.subr.mxu0 0.0
    %2751 = vmatpush1.xpose.msra.mxu0 0.0
    %2752 = vmatprep.subr.mxu0 0.0
    %2753 = vmatpush1.xpose.msra.mxu0 0.0
    %2754 = vmatprep.subr.mxu0 0.0
    %2755 = vmatpush1.xpose.msra.mxu0 0.0
    %2756 = vmatprep.subr.mxu0 0.0
    %2757 = vmatpush1.xpose.msra.mxu0 0.0
    %2758 = vmatprep.subr.mxu0 0.0
    %2759 = vmatpush1.xpose.msra.mxu0 0.0
    %2760 = vmatprep.subr.mxu0 0.0
    %2761 = vmatpush1.xpose.msra.mxu0 0.0
    %2762 = vmatprep.subr.mxu0 0.0
    %2763 = vmatpush1.xpose.msra.mxu0 0.0
    %2764 = vmatprep.subr.mxu0 0.0
    %2765 = vmatpush1.xpose.msra.mxu0 0.0
    %2766 = vmatprep.subr.mxu0 0.0
    %2767 = vmatpush1.xpose.msra.mxu0 0.0
    %2768 = vmatprep.subr.mxu0 0.0
    %2769 = vmatpush1.xpose.msra.mxu0 0.0
    %2770 = vmatprep.subr.mxu0 0.0
    %2771 = vmatpush1.xpose.msra.mxu0 0.0
    %2772 = vmatprep.subr.mxu0 0.0
    %2773 = vmatpush1.xpose.msra.mxu0 0.0
    %2774 = vmatprep.subr.mxu0 0.0
    %2775 = vmatpush1.xpose.msra.mxu0 0.0
    %2776 = vmatprep.subr.mxu0 0.0
    %2777 = vmatpush1.xpose.msra.mxu0 0.0
    %2778 = vmatprep.subr.mxu0 0.0
    %2779 = vmatpush1.xpose.msra.mxu0 0.0
    %2780 = vmatprep.subr.mxu0 0.0
    %2781 = vmatpush1.xpose.msra.mxu0 0.0
    %2782 = vmatprep.subr.mxu0 0.0
    %2783 = vmatpush1.xpose.msra.mxu0 0.0
    %2784 = vmatprep.subr.mxu0 0.0
    %2785 = vmatpush1.xpose.msra.mxu0 0.0
    %2786 = vmatprep.subr.mxu0 0.0
    %2787 = vmatpush1.xpose.msra.mxu0 0.0
    %2788 = vmatprep.subr.mxu0 0.0
    %2789 = vmatpush1.xpose.msra.mxu0 0.0
    %2790 = vmatprep.mubr.f32.mxu0 0.0
    %2791 = vmatmul.mubr.f32.gmra.mrb[0].mxu0 %v2722
    %v2792 = vpop.f32.mrb[0].mxu0
    %v2793 = vadd.f32 0.0, %v2792
    %v2794 = vpop.f32.mrb[0].mxu0
    %2795 = vdwg.mxu0
    %2796 = vrot.lane.b32.xlu0 %v382, 104
    %v2797 = vpop.permute.xlu0 %2796
    %2798 = vrot.lane.b32.xlu0 %v382, 72
    %v2799 = vpop.permute.xlu0 %2798
    %v2800 = vsel %vm393, %v2797, 0
    %v2802 = vsel %vm393, %v2799, 0
    %2804 = vmatprep.subr.mxu0 0.0
    %2805 = vmatpush1.xpose.msra.mxu0 %v2802
    %2806 = vmatprep.subr.mxu0 0.0
    %2807 = vmatpush1.xpose.msra.mxu0 0.0
    %2808 = vmatprep.subr.mxu0 0.0
    %2809 = vmatpush1.xpose.msra.mxu0 0.0
    %2810 = vmatprep.subr.mxu0 0.0
    %2811 = vmatpush1.xpose.msra.mxu0 0.0
    %2812 = vmatprep.subr.mxu0 0.0
    %2813 = vmatpush1.xpose.msra.mxu0 0.0
    %2814 = vmatprep.subr.mxu0 0.0
    %2815 = vmatpush1.xpose.msra.mxu0 0.0
    %2816 = vmatprep.subr.mxu0 0.0
    %2817 = vmatpush1.xpose.msra.mxu0 0.0
    %2818 = vmatprep.subr.mxu0 0.0
    %2819 = vmatpush1.xpose.msra.mxu0 0.0
    %2820 = vmatprep.subr.mxu0 0.0
    %2821 = vmatpush1.xpose.msra.mxu0 0.0
    %2822 = vmatprep.subr.mxu0 0.0
    %2823 = vmatpush1.xpose.msra.mxu0 0.0
    %2824 = vmatprep.subr.mxu0 0.0
    %2825 = vmatpush1.xpose.msra.mxu0 0.0
    %2826 = vmatprep.subr.mxu0 0.0
    %2827 = vmatpush1.xpose.msra.mxu0 0.0
    %2828 = vmatprep.subr.mxu0 0.0
    %2829 = vmatpush1.xpose.msra.mxu0 0.0
    %2830 = vmatprep.subr.mxu0 0.0
    %2831 = vmatpush1.xpose.msra.mxu0 0.0
    %2832 = vmatprep.subr.mxu0 0.0
    %2833 = vmatpush1.xpose.msra.mxu0 0.0
    %2834 = vmatprep.subr.mxu0 0.0
    %2835 = vmatpush1.xpose.msra.mxu0 0.0
    %2836 = vmatprep.subr.mxu0 0.0
    %2837 = vmatpush1.xpose.msra.mxu0 0.0
    %2838 = vmatprep.subr.mxu0 0.0
    %2839 = vmatpush1.xpose.msra.mxu0 0.0
    %2840 = vmatprep.subr.mxu0 0.0
    %2841 = vmatpush1.xpose.msra.mxu0 0.0
    %2842 = vmatprep.subr.mxu0 0.0
    %2843 = vmatpush1.xpose.msra.mxu0 0.0
    %2844 = vmatprep.subr.mxu0 0.0
    %2845 = vmatpush1.xpose.msra.mxu0 0.0
    %2846 = vmatprep.subr.mxu0 0.0
    %2847 = vmatpush1.xpose.msra.mxu0 0.0
    %2848 = vmatprep.subr.mxu0 0.0
    %2849 = vmatpush1.xpose.msra.mxu0 0.0
    %2850 = vmatprep.subr.mxu0 0.0
    %2851 = vmatpush1.xpose.msra.mxu0 0.0
    %2852 = vmatprep.subr.mxu0 0.0
    %2853 = vmatpush1.xpose.msra.mxu0 0.0
    %2854 = vmatprep.subr.mxu0 0.0
    %2855 = vmatpush1.xpose.msra.mxu0 0.0
    %2856 = vmatprep.subr.mxu0 0.0
    %2857 = vmatpush1.xpose.msra.mxu0 0.0
    %2858 = vmatprep.subr.mxu0 0.0
    %2859 = vmatpush1.xpose.msra.mxu0 0.0
    %2860 = vmatprep.subr.mxu0 0.0
    %2861 = vmatpush1.xpose.msra.mxu0 0.0
    %2862 = vmatprep.subr.mxu0 0.0
    %2863 = vmatpush1.xpose.msra.mxu0 0.0
    %2864 = vmatprep.subr.mxu0 0.0
    %2865 = vmatpush1.xpose.msra.mxu0 0.0
    %2866 = vmatprep.subr.mxu0 0.0
    %2867 = vmatpush1.xpose.msra.mxu0 0.0
    %2868 = vmatprep.mubr.f32.mxu0 0.0
    %2869 = vmatmul.mubr.f32.gmra.mrb[0].mxu0 %v2800
    %v2870 = vpop.f32.mrb[0].mxu0
    %v2871 = vadd.f32 0.0, %v2870
    %v2872 = vpop.f32.mrb[0].mxu0
    %2873 = vdwg.mxu0
    %2874 = vrot.lane.b32.xlu0 %v387, 104
    %v2875 = vpop.permute.xlu0 %2874
    %2876 = vrot.lane.b32.xlu0 %v387, 72
    %v2877 = vpop.permute.xlu0 %2876
    %v2878 = vsel %vm393, %v2875, 0
    %v2880 = vsel %vm393, %v2877, 0
    %2882 = vmatprep.subr.mxu0 0.0
    %2883 = vmatpush1.xpose.msra.mxu0 %v2880
    %2884 = vmatprep.subr.mxu0 0.0
    %2885 = vmatpush1.xpose.msra.mxu0 0.0
    %2886 = vmatprep.subr.mxu0 0.0
    %2887 = vmatpush1.xpose.msra.mxu0 0.0
    %2888 = vmatprep.subr.mxu0 0.0
    %2889 = vmatpush1.xpose.msra.mxu0 0.0
    %2890 = vmatprep.subr.mxu0 0.0
    %2891 = vmatpush1.xpose.msra.mxu0 0.0
    %2892 = vmatprep.subr.mxu0 0.0
    %2893 = vmatpush1.xpose.msra.mxu0 0.0
    %2894 = vmatprep.subr.mxu0 0.0
    %2895 = vmatpush1.xpose.msra.mxu0 0.0
    %2896 = vmatprep.subr.mxu0 0.0
    %2897 = vmatpush1.xpose.msra.mxu0 0.0
    %2898 = vmatprep.subr.mxu0 0.0
    %2899 = vmatpush1.xpose.msra.mxu0 0.0
    %2900 = vmatprep.subr.mxu0 0.0
    %2901 = vmatpush1.xpose.msra.mxu0 0.0
    %2902 = vmatprep.subr.mxu0 0.0
    %2903 = vmatpush1.xpose.msra.mxu0 0.0
    %2904 = vmatprep.subr.mxu0 0.0
    %2905 = vmatpush1.xpose.msra.mxu0 0.0
    %2906 = vmatprep.subr.mxu0 0.0
    %2907 = vmatpush1.xpose.msra.mxu0 0.0
    %2908 = vmatprep.subr.mxu0 0.0
    %2909 = vmatpush1.xpose.msra.mxu0 0.0
    %2910 = vmatprep.subr.mxu0 0.0
    %2911 = vmatpush1.xpose.msra.mxu0 0.0
    %2912 = vmatprep.subr.mxu0 0.0
    %2913 = vmatpush1.xpose.msra.mxu0 0.0
    %2914 = vmatprep.subr.mxu0 0.0
    %2915 = vmatpush1.xpose.msra.mxu0 0.0
    %2916 = vmatprep.subr.mxu0 0.0
    %2917 = vmatpush1.xpose.msra.mxu0 0.0
    %2918 = vmatprep.subr.mxu0 0.0
    %2919 = vmatpush1.xpose.msra.mxu0 0.0
    %2920 = vmatprep.subr.mxu0 0.0
    %2921 = vmatpush1.xpose.msra.mxu0 0.0
    %2922 = vmatprep.subr.mxu0 0.0
    %2923 = vmatpush1.xpose.msra.mxu0 0.0
    %2924 = vmatprep.subr.mxu0 0.0
    %2925 = vmatpush1.xpose.msra.mxu0 0.0
    %2926 = vmatprep.subr.mxu0 0.0
    %2927 = vmatpush1.xpose.msra.mxu0 0.0
    %2928 = vmatprep.subr.mxu0 0.0
    %2929 = vmatpush1.xpose.msra.mxu0 0.0
    %2930 = vmatprep.subr.mxu0 0.0
    %2931 = vmatpush1.xpose.msra.mxu0 0.0
    %2932 = vmatprep.subr.mxu0 0.0
    %2933 = vmatpush1.xpose.msra.mxu0 0.0
    %2934 = vmatprep.subr.mxu0 0.0
    %2935 = vmatpush1.xpose.msra.mxu0 0.0
    %2936 = vmatprep.subr.mxu0 0.0
    %2937 = vmatpush1.xpose.msra.mxu0 0.0
    %2938 = vmatprep.subr.mxu0 0.0
    %2939 = vmatpush1.xpose.msra.mxu0 0.0
    %2940 = vmatprep.subr.mxu0 0.0
    %2941 = vmatpush1.xpose.msra.mxu0 0.0
    %2942 = vmatprep.subr.mxu0 0.0
    %2943 = vmatpush1.xpose.msra.mxu0 0.0
    %2944 = vmatprep.subr.mxu0 0.0
    %2945 = vmatpush1.xpose.msra.mxu0 0.0
    %2946 = vmatprep.mubr.f32.mxu0 0.0
    %2947 = vmatmul.mubr.f32.gmra.mrb[0].mxu0 %v2878
    %v2948 = vpop.f32.mrb[0].mxu0
    %v2949 = vadd.f32 0.0, %v2948
    %v2950 = vpop.f32.mrb[0].mxu0
    %2951 = vdwg.mxu0
    %v2952 = vmul.f32 %v2715, 0.35355338
    %v2953 = vmul.f32 %v2793, 0.35355338
    %v2954 = vmul.f32 %v2871, 0.35355338
    %v2955 = vmul.f32 %v2949, 0.35355338
    %2956 = vrot.lane.b32.xlu0 %v372, 40
    %v2957 = vpop.permute.xlu0 %2956
    %v2960 = vsel %vm393, %v2952, 0
    %2962 = vmatprep.subr.mxu0 0.0
    %2963 = vmatpush1.msra.mxu0 %v2957
    %2964 = vmatprep.subr.mxu0 0.0
    %2965 = vmatpush1.msra.mxu0 0.0
    %2966 = vmatprep.subr.mxu0 0.0
    %2967 = vmatpush1.msra.mxu0 0.0
    %2968 = vmatprep.subr.mxu0 0.0
    %2969 = vmatpush1.msra.mxu0 0.0
    %2970 = vmatprep.subr.mxu0 0.0
    %2971 = vmatpush1.msra.mxu0 0.0
    %2972 = vmatprep.subr.mxu0 0.0
    %2973 = vmatpush1.msra.mxu0 0.0
    %2974 = vmatprep.subr.mxu0 0.0
    %2975 = vmatpush1.msra.mxu0 0.0
    %2976 = vmatprep.subr.mxu0 0.0
    %2977 = vmatpush1.msra.mxu0 0.0
    %2978 = vmatprep.subr.mxu0 0.0
    %2979 = vmatpush1.msra.mxu0 0.0
    %2980 = vmatprep.subr.mxu0 0.0
    %2981 = vmatpush1.msra.mxu0 0.0
    %2982 = vmatprep.subr.mxu0 0.0
    %2983 = vmatpush1.msra.mxu0 0.0
    %2984 = vmatprep.subr.mxu0 0.0
    %2985 = vmatpush1.msra.mxu0 0.0
    %2986 = vmatprep.subr.mxu0 0.0
    %2987 = vmatpush1.msra.mxu0 0.0
    %2988 = vmatprep.subr.mxu0 0.0
    %2989 = vmatpush1.msra.mxu0 0.0
    %2990 = vmatprep.subr.mxu0 0.0
    %2991 = vmatpush1.msra.mxu0 0.0
    %2992 = vmatprep.subr.mxu0 0.0
    %2993 = vmatpush1.msra.mxu0 0.0
    %2994 = vmatprep.subr.mxu0 0.0
    %2995 = vmatpush1.msra.mxu0 0.0
    %2996 = vmatprep.subr.mxu0 0.0
    %2997 = vmatpush1.msra.mxu0 0.0
    %2998 = vmatprep.subr.mxu0 0.0
    %2999 = vmatpush1.msra.mxu0 0.0
    %3000 = vmatprep.subr.mxu0 0.0
    %3001 = vmatpush1.msra.mxu0 0.0
    %3002 = vmatprep.subr.mxu0 0.0
    %3003 = vmatpush1.msra.mxu0 0.0
    %3004 = vmatprep.subr.mxu0 0.0
    %3005 = vmatpush1.msra.mxu0 0.0
    %3006 = vmatprep.subr.mxu0 0.0
    %3007 = vmatpush1.msra.mxu0 0.0
    %3008 = vmatprep.subr.mxu0 0.0
    %3009 = vmatpush1.msra.mxu0 0.0
    %3010 = vmatprep.subr.mxu0 0.0
    %3011 = vmatpush1.msra.mxu0 0.0
    %3012 = vmatprep.subr.mxu0 0.0
    %3013 = vmatpush1.msra.mxu0 0.0
    %3014 = vmatprep.subr.mxu0 0.0
    %3015 = vmatpush1.msra.mxu0 0.0
    %3016 = vmatprep.subr.mxu0 0.0
    %3017 = vmatpush1.msra.mxu0 0.0
    %3018 = vmatprep.subr.mxu0 0.0
    %3019 = vmatpush1.msra.mxu0 0.0
    %3020 = vmatprep.subr.mxu0 0.0
    %3021 = vmatpush1.msra.mxu0 0.0
    %3022 = vmatprep.subr.mxu0 0.0
    %3023 = vmatpush1.msra.mxu0 0.0
    %3024 = vmatprep.subr.mxu0 0.0
    %3025 = vmatpush1.msra.mxu0 0.0
    %3026 = vmatprep.mubr.f32.mxu0 0.0
    %3027 = vmatmul.mubr.f32.gmra.mrb[0].mxu0 %v2960
    %v3028 = vpop.f32.mrb[0].mxu0
    %v3029 = vadd.f32 0.0, %v3028
    %v3030 = vpop.f32.mrb[0].mxu0
    %3031 = vdwg.mxu0
    %3032 = vrot.lane.b32.xlu0 %v377, 40
    %v3033 = vpop.permute.xlu0 %3032
    %v3036 = vsel %vm393, %v2953, 0
    %3038 = vmatprep.subr.mxu0 0.0
    %3039 = vmatpush1.msra.mxu0 %v3033
    %3040 = vmatprep.subr.mxu0 0.0
    %3041 = vmatpush1.msra.mxu0 0.0
    %3042 = vmatprep.subr.mxu0 0.0
    %3043 = vmatpush1.msra.mxu0 0.0
    %3044 = vmatprep.subr.mxu0 0.0
    %3045 = vmatpush1.msra.mxu0 0.0
    %3046 = vmatprep.subr.mxu0 0.0
    %3047 = vmatpush1.msra.mxu0 0.0
    %3048 = vmatprep.subr.mxu0 0.0
    %3049 = vmatpush1.msra.mxu0 0.0
    %3050 = vmatprep.subr.mxu0 0.0
    %3051 = vmatpush1.msra.mxu0 0.0
    %3052 = vmatprep.subr.mxu0 0.0
    %3053 = vmatpush1.msra.mxu0 0.0
    %3054 = vmatprep.subr.mxu0 0.0
    %3055 = vmatpush1.msra.mxu0 0.0
    %3056 = vmatprep.subr.mxu0 0.0
    %3057 = vmatpush1.msra.mxu0 0.0
    %3058 = vmatprep.subr.mxu0 0.0
    %3059 = vmatpush1.msra.mxu0 0.0
    %3060 = vmatprep.subr.mxu0 0.0
    %3061 = vmatpush1.msra.mxu0 0.0
    %3062 = vmatprep.subr.mxu0 0.0
    %3063 = vmatpush1.msra.mxu0 0.0
    %3064 = vmatprep.subr.mxu0 0.0
    %3065 = vmatpush1.msra.mxu0 0.0
    %3066 = vmatprep.subr.mxu0 0.0
    %3067 = vmatpush1.msra.mxu0 0.0
    %3068 = vmatprep.subr.mxu0 0.0
    %3069 = vmatpush1.msra.mxu0 0.0
    %3070 = vmatprep.subr.mxu0 0.0
    %3071 = vmatpush1.msra.mxu0 0.0
    %3072 = vmatprep.subr.mxu0 0.0
    %3073 = vmatpush1.msra.mxu0 0.0
    %3074 = vmatprep.subr.mxu0 0.0
    %3075 = vmatpush1.msra.mxu0 0.0
    %3076 = vmatprep.subr.mxu0 0.0
    %3077 = vmatpush1.msra.mxu0 0.0
    %3078 = vmatprep.subr.mxu0 0.0
    %3079 = vmatpush1.msra.mxu0 0.0
    %3080 = vmatprep.subr.mxu0 0.0
    %3081 = vmatpush1.msra.mxu0 0.0
    %3082 = vmatprep.subr.mxu0 0.0
    %3083 = vmatpush1.msra.mxu0 0.0
    %3084 = vmatprep.subr.mxu0 0.0
    %3085 = vmatpush1.msra.mxu0 0.0
    %3086 = vmatprep.subr.mxu0 0.0
    %3087 = vmatpush1.msra.mxu0 0.0
    %3088 = vmatprep.subr.mxu0 0.0
    %3089 = vmatpush1.msra.mxu0 0.0
    %3090 = vmatprep.subr.mxu0 0.0
    %3091 = vmatpush1.msra.mxu0 0.0
    %3092 = vmatprep.subr.mxu0 0.0
    %3093 = vmatpush1.msra.mxu0 0.0
    %3094 = vmatprep.subr.mxu0 0.0
    %3095 = vmatpush1.msra.mxu0 0.0
    %3096 = vmatprep.subr.mxu0 0.0
    %3097 = vmatpush1.msra.mxu0 0.0
    %3098 = vmatprep.subr.mxu0 0.0
    %3099 = vmatpush1.msra.mxu0 0.0
    %3100 = vmatprep.subr.mxu0 0.0
    %3101 = vmatpush1.msra.mxu0 0.0
    %3102 = vmatprep.mubr.f32.mxu0 0.0
    %3103 = vmatmul.mubr.f32.gmra.mrb[0].mxu0 %v3036
    %v3104 = vpop.f32.mrb[0].mxu0
    %v3105 = vadd.f32 0.0, %v3104
    %v3106 = vpop.f32.mrb[0].mxu0
    %3107 = vdwg.mxu0
    %3108 = vrot.lane.b32.xlu0 %v382, 40
    %v3109 = vpop.permute.xlu0 %3108
    %v3112 = vsel %vm393, %v2954, 0
    %3114 = vmatprep.subr.mxu0 0.0
    %3115 = vmatpush1.msra.mxu0 %v3109
    %3116 = vmatprep.subr.mxu0 0.0
    %3117 = vmatpush1.msra.mxu0 0.0
    %3118 = vmatprep.subr.mxu0 0.0
    %3119 = vmatpush1.msra.mxu0 0.0
    %3120 = vmatprep.subr.mxu0 0.0
    %3121 = vmatpush1.msra.mxu0 0.0
    %3122 = vmatprep.subr.mxu0 0.0
    %3123 = vmatpush1.msra.mxu0 0.0
    %3124 = vmatprep.subr.mxu0 0.0
    %3125 = vmatpush1.msra.mxu0 0.0
    %3126 = vmatprep.subr.mxu0 0.0
    %3127 = vmatpush1.msra.mxu0 0.0
    %3128 = vmatprep.subr.mxu0 0.0
    %3129 = vmatpush1.msra.mxu0 0.0
    %3130 = vmatprep.subr.mxu0 0.0
    %3131 = vmatpush1.msra.mxu0 0.0
    %3132 = vmatprep.subr.mxu0 0.0
    %3133 = vmatpush1.msra.mxu0 0.0
    %3134 = vmatprep.subr.mxu0 0.0
    %3135 = vmatpush1.msra.mxu0 0.0
    %3136 = vmatprep.subr.mxu0 0.0
    %3137 = vmatpush1.msra.mxu0 0.0
    %3138 = vmatprep.subr.mxu0 0.0
    %3139 = vmatpush1.msra.mxu0 0.0
    %3140 = vmatprep.subr.mxu0 0.0
    %3141 = vmatpush1.msra.mxu0 0.0
    %3142 = vmatprep.subr.mxu0 0.0
    %3143 = vmatpush1.msra.mxu0 0.0
    %3144 = vmatprep.subr.mxu0 0.0
    %3145 = vmatpush1.msra.mxu0 0.0
    %3146 = vmatprep.subr.mxu0 0.0
    %3147 = vmatpush1.msra.mxu0 0.0
    %3148 = vmatprep.subr.mxu0 0.0
    %3149 = vmatpush1.msra.mxu0 0.0
    %3150 = vmatprep.subr.mxu0 0.0
    %3151 = vmatpush1.msra.mxu0 0.0
    %3152 = vmatprep.subr.mxu0 0.0
    %3153 = vmatpush1.msra.mxu0 0.0
    %3154 = vmatprep.subr.mxu0 0.0
    %3155 = vmatpush1.msra.mxu0 0.0
    %3156 = vmatprep.subr.mxu0 0.0
    %3157 = vmatpush1.msra.mxu0 0.0
    %3158 = vmatprep.subr.mxu0 0.0
    %3159 = vmatpush1.msra.mxu0 0.0
    %3160 = vmatprep.subr.mxu0 0.0
    %3161 = vmatpush1.msra.mxu0 0.0
    %3162 = vmatprep.subr.mxu0 0.0
    %3163 = vmatpush1.msra.mxu0 0.0
    %3164 = vmatprep.subr.mxu0 0.0
    %3165 = vmatpush1.msra.mxu0 0.0
    %3166 = vmatprep.subr.mxu0 0.0
    %3167 = vmatpush1.msra.mxu0 0.0
    %3168 = vmatprep.subr.mxu0 0.0
    %3169 = vmatpush1.msra.mxu0 0.0
    %3170 = vmatprep.subr.mxu0 0.0
    %3171 = vmatpush1.msra.mxu0 0.0
    %3172 = vmatprep.subr.mxu0 0.0
    %3173 = vmatpush1.msra.mxu0 0.0
    %3174 = vmatprep.subr.mxu0 0.0
    %3175 = vmatpush1.msra.mxu0 0.0
    %3176 = vmatprep.subr.mxu0 0.0
    %3177 = vmatpush1.msra.mxu0 0.0
    %3178 = vmatprep.mubr.f32.mxu0 0.0
    %3179 = vmatmul.mubr.f32.gmra.mrb[0].mxu0 %v3112
    %v3180 = vpop.f32.mrb[0].mxu0
    %v3181 = vadd.f32 0.0, %v3180
    %v3182 = vpop.f32.mrb[0].mxu0
    %3183 = vdwg.mxu0
    %3184 = vrot.lane.b32.xlu0 %v387, 40
    %v3185 = vpop.permute.xlu0 %3184
    %v3188 = vsel %vm393, %v2955, 0
    %3190 = vmatprep.subr.mxu0 0.0
    %3191 = vmatpush1.msra.mxu0 %v3185
    %3192 = vmatprep.subr.mxu0 0.0
    %3193 = vmatpush1.msra.mxu0 0.0
    %3194 = vmatprep.subr.mxu0 0.0
    %3195 = vmatpush1.msra.mxu0 0.0
    %3196 = vmatprep.subr.mxu0 0.0
    %3197 = vmatpush1.msra.mxu0 0.0
    %3198 = vmatprep.subr.mxu0 0.0
    %3199 = vmatpush1.msra.mxu0 0.0
    %3200 = vmatprep.subr.mxu0 0.0
    %3201 = vmatpush1.msra.mxu0 0.0
    %3202 = vmatprep.subr.mxu0 0.0
    %3203 = vmatpush1.msra.mxu0 0.0
    %3204 = vmatprep.subr.mxu0 0.0
    %3205 = vmatpush1.msra.mxu0 0.0
    %3206 = vmatprep.subr.mxu0 0.0
    %3207 = vmatpush1.msra.mxu0 0.0
    %3208 = vmatprep.subr.mxu0 0.0
    %3209 = vmatpush1.msra.mxu0 0.0
    %3210 = vmatprep.subr.mxu0 0.0
    %3211 = vmatpush1.msra.mxu0 0.0
    %3212 = vmatprep.subr.mxu0 0.0
    %3213 = vmatpush1.msra.mxu0 0.0
    %3214 = vmatprep.subr.mxu0 0.0
    %3215 = vmatpush1.msra.mxu0 0.0
    %3216 = vmatprep.subr.mxu0 0.0
    %3217 = vmatpush1.msra.mxu0 0.0
    %3218 = vmatprep.subr.mxu0 0.0
    %3219 = vmatpush1.msra.mxu0 0.0
    %3220 = vmatprep.subr.mxu0 0.0
    %3221 = vmatpush1.msra.mxu0 0.0
    %3222 = vmatprep.subr.mxu0 0.0
    %3223 = vmatpush1.msra.mxu0 0.0
    %3224 = vmatprep.subr.mxu0 0.0
    %3225 = vmatpush1.msra.mxu0 0.0
    %3226 = vmatprep.subr.mxu0 0.0
    %3227 = vmatpush1.msra.mxu0 0.0
    %3228 = vmatprep.subr.mxu0 0.0
    %3229 = vmatpush1.msra.mxu0 0.0
    %3230 = vmatprep.subr.mxu0 0.0
    %3231 = vmatpush1.msra.mxu0 0.0
    %3232 = vmatprep.subr.mxu0 0.0
    %3233 = vmatpush1.msra.mxu0 0.0
    %3234 = vmatprep.subr.mxu0 0.0
    %3235 = vmatpush1.msra.mxu0 0.0
    %3236 = vmatprep.subr.mxu0 0.0
    %3237 = vmatpush1.msra.mxu0 0.0
    %3238 = vmatprep.subr.mxu0 0.0
    %3239 = vmatpush1.msra.mxu0 0.0
    %3240 = vmatprep.subr.mxu0 0.0
    %3241 = vmatpush1.msra.mxu0 0.0
    %3242 = vmatprep.subr.mxu0 0.0
    %3243 = vmatpush1.msra.mxu0 0.0
    %3244 = vmatprep.subr.mxu0 0.0
    %3245 = vmatpush1.msra.mxu0 0.0
    %3246 = vmatprep.subr.mxu0 0.0
    %3247 = vmatpush1.msra.mxu0 0.0
    %3248 = vmatprep.subr.mxu0 0.0
    %3249 = vmatpush1.msra.mxu0 0.0
    %3250 = vmatprep.subr.mxu0 0.0
    %3251 = vmatpush1.msra.mxu0 0.0
    %3252 = vmatprep.subr.mxu0 0.0
    %3253 = vmatpush1.msra.mxu0 0.0
    %3254 = vmatprep.mubr.f32.mxu0 0.0
    %3255 = vmatmul.mubr.f32.gmra.mrb[0].mxu0 %v3188
    %v3256 = vpop.f32.mrb[0].mxu0
    %v3257 = vadd.f32 0.0, %v3256
    %v3258 = vpop.f32.mrb[0].mxu0
    %3259 = vdwg.mxu0
    %v3260 = vsel %vm393, %v3029, -inf
    %v3261 = vsel %vm393, %v3105, -inf
    %v3262 = vsel %vm393, %v3181, -inf
    %v3263 = vsel %vm393, %v3257, -inf
    %v3264 = vmax.f32 %v3260, %v3261
    %v3265 = vmax.f32 %v3262, %v3263
    %v3266 = vmax.f32 %v3264, %v3265
    %v3267 = vsub.f32 %v3029, %v3266
    %v3268 = vsub.f32 %v3105, %v3266
    %v3269 = vsub.f32 %v3181, %v3266
    %v3270 = vsub.f32 %v3257, %v3266
    %v3271 = vmul.f32 %v3267, 1.442695
    %v3272 = vpow.pop %v3271
    %v3273 = vmul.f32 %v3268, 1.442695
    %v3274 = vpow.pop %v3273
    %v3275 = vmul.f32 %v3269, 1.442695
    %v3276 = vpow.pop %v3275
    %v3277 = vmul.f32 %v3270, 1.442695
    %v3278 = vpow.pop %v3277
    %v3279 = vsel %vm393, %v3272, 0.0
    %v3280 = vsel %vm393, %v3274, 0.0
    %v3281 = vadd.f32 %v3279, %v3280
    %v3282 = vsel %vm393, %v3276, 0.0
    %v3283 = vadd.f32 %v3281, %v3282
    %v3284 = vsel %vm393, %v3278, 0.0
    %v3285 = vadd.f32 %v3283, %v3284
    %v3286 = vrcp.pop %v3285
    %v3287 = vmul.f32 %v3272, %v3286
    %v3288 = vmul.f32 %v3274, %v3286
    %v3289 = vmul.f32 %v3276, %v3286
    %v3290 = vmul.f32 %v3278, %v3286
    %s3291 = scalar_lea.vmem [#allocation8], 24
    %v3292 = vld [vmem:[%s3291] sm:$0xff]
    %v3294 = vsel %vm393, %v3287, 0
    %v3297 = vsel %vm393, %v3288, 0
    %v3300 = vsel %vm393, %v3289, 0
    %v3303 = vsel %vm393, %v3290, 0
    %3305 = vmatprep.subr.mxu0 0.0
    %3306 = vmatpush1.msra.mxu0 %v3292
    %3307 = vmatprep.subr.mxu0 0.0
    %3308 = vmatpush1.msra.mxu0 0.0
    %3309 = vmatprep.subr.mxu0 0.0
    %3310 = vmatpush1.msra.mxu0 0.0
    %3311 = vmatprep.subr.mxu0 0.0
    %3312 = vmatpush1.msra.mxu0 0.0
    %3313 = vmatprep.subr.mxu0 0.0
    %3314 = vmatpush1.msra.mxu0 0.0
    %3315 = vmatprep.subr.mxu0 0.0
    %3316 = vmatpush1.msra.mxu0 0.0
    %3317 = vmatprep.subr.mxu0 0.0
    %3318 = vmatpush1.msra.mxu0 0.0
    %3319 = vmatprep.subr.mxu0 0.0
    %3320 = vmatpush1.msra.mxu0 0.0
    %3321 = vmatprep.subr.mxu0 0.0
    %3322 = vmatpush1.msra.mxu0 0.0
    %3323 = vmatprep.subr.mxu0 0.0
    %3324 = vmatpush1.msra.mxu0 0.0
    %3325 = vmatprep.subr.mxu0 0.0
    %3326 = vmatpush1.msra.mxu0 0.0
    %3327 = vmatprep.subr.mxu0 0.0
    %3328 = vmatpush1.msra.mxu0 0.0
    %3329 = vmatprep.subr.mxu0 0.0
    %3330 = vmatpush1.msra.mxu0 0.0
    %3331 = vmatprep.subr.mxu0 0.0
    %3332 = vmatpush1.msra.mxu0 0.0
    %3333 = vmatprep.subr.mxu0 0.0
    %3334 = vmatpush1.msra.mxu0 0.0
    %3335 = vmatprep.subr.mxu0 0.0
    %3336 = vmatpush1.msra.mxu0 0.0
    %3337 = vmatprep.subr.mxu0 0.0
    %3338 = vmatpush1.msra.mxu0 0.0
    %3339 = vmatprep.subr.mxu0 0.0
    %3340 = vmatpush1.msra.mxu0 0.0
    %3341 = vmatprep.subr.mxu0 0.0
    %3342 = vmatpush1.msra.mxu0 0.0
    %3343 = vmatprep.subr.mxu0 0.0
    %3344 = vmatpush1.msra.mxu0 0.0
    %3345 = vmatprep.subr.mxu0 0.0
    %3346 = vmatpush1.msra.mxu0 0.0
    %3347 = vmatprep.subr.mxu0 0.0
    %3348 = vmatpush1.msra.mxu0 0.0
    %3349 = vmatprep.subr.mxu0 0.0
    %3350 = vmatpush1.msra.mxu0 0.0
    %3351 = vmatprep.subr.mxu0 0.0
    %3352 = vmatpush1.msra.mxu0 0.0
    %3353 = vmatprep.subr.mxu0 0.0
    %3354 = vmatpush1.msra.mxu0 0.0
    %3355 = vmatprep.subr.mxu0 0.0
    %3356 = vmatpush1.msra.mxu0 0.0
    %3357 = vmatprep.subr.mxu0 0.0
    %3358 = vmatpush1.msra.mxu0 0.0
    %3359 = vmatprep.subr.mxu0 0.0
    %3360 = vmatpush1.msra.mxu0 0.0
    %3361 = vmatprep.subr.mxu0 0.0
    %3362 = vmatpush1.msra.mxu0 0.0
    %3363 = vmatprep.subr.mxu0 0.0
    %3364 = vmatpush1.msra.mxu0 0.0
    %3365 = vmatprep.subr.mxu0 0.0
    %3366 = vmatpush1.msra.mxu0 0.0
    %3367 = vmatprep.subr.mxu0 0.0
    %3368 = vmatpush1.msra.mxu0 0.0
    %3369 = vmatprep.mubr.f32.mxu0 0.0
    %3370 = vmatmul.mubr.f32.gmra.mrb[0].mxu0 %v3294
    %v3371 = vpop.f32.mrb[0].mxu0
    %v3372 = vadd.f32 0.0, %v3371
    %v3373 = vpop.f32.mrb[0].mxu0
    %3374 = vmatprep.mubr.f32.mxu0 0.0
    %3375 = vmatmul.mubr.f32.gmra.mrb[0].mxu0 %v3297
    %v3376 = vpop.f32.mrb[0].mxu0
    %v3377 = vadd.f32 0.0, %v3376
    %v3378 = vpop.f32.mrb[0].mxu0
    %3379 = vmatprep.mubr.f32.mxu0 0.0
    %3380 = vmatmul.mubr.f32.gmra.mrb[0].mxu0 %v3300
    %v3381 = vpop.f32.mrb[0].mxu0
    %v3382 = vadd.f32 0.0, %v3381
    %v3383 = vpop.f32.mrb[0].mxu0
    %3384 = vmatprep.mubr.f32.mxu0 0.0
    %3385 = vmatmul.mubr.f32.gmra.mrb[0].mxu0 %v3303
    %v3386 = vpop.f32.mrb[0].mxu0
    %v3387 = vadd.f32 0.0, %v3386
    %v3388 = vpop.f32.mrb[0].mxu0
    %3389 = vdwg.mxu0
    %v3390 = vadd.f32 %v2636, %v3372
    %v3391 = vadd.f32 %v2637, %v3377
    %v3392 = vadd.f32 %v2638, %v3382
    %v3393 = vadd.f32 %v2639, %v3387
    %v3394 = vld [vmem:[#allocation10] sm:$0x1]
    %v3396 = vlaneseq
    %v3397 = vshrl.u32 %v3396, 7
    %v3398 = vsub.s32 0, %v3397
    %v3399 = vrot.slane %v3394, %v3398
    %v3401 = vadd.f32 %v3390, %v3399
    %v3402 = vadd.f32 %v3391, %v3399
    %v3403 = vadd.f32 %v3392, %v3399
    %v3404 = vadd.f32 %v3393, %v3399
    %v3405 = vadd.f32 %v3401, %v277
    %v3406 = vadd.f32 %v3402, %v278
    %v3407 = vadd.f32 %v3403, %v279
    %v3408 = vadd.f32 %v3404, %v280
    %v3409 = vsel %vm292, %v3405, 0.0
    %3410 = vadd.xlane.f32.xlu0 %v3409
    %v3411 = vpop.xlane.xlu0 %3410
    %v3412 = vsel %vm292, %v3406, 0.0
    %3413 = vadd.xlane.f32.xlu0 %v3412
    %v3414 = vpop.xlane.xlu0 %3413
    %v3415 = vsel %vm292, %v3407, 0.0
    %3416 = vadd.xlane.f32.xlu0 %v3415
    %v3417 = vpop.xlane.xlu0 %3416
    %v3418 = vsel %vm292, %v3408, 0.0
    %3419 = vadd.xlane.f32.xlu0 %v3418
    %v3420 = vpop.xlane.xlu0 %3419
    %v3421 = vrot.slane %v3411, 4
    %v3422 = vadd.f32 %v3411, %v3421
    %v3423 = vrot.slane %v3422, 2
    %v3424 = vadd.f32 %v3422, %v3423
    %v3425 = vrot.slane %v3424, 1
    %v3426 = vadd.f32 %v3424, %v3425
    %v3427 = vrot.slane %v3414, 4
    %v3428 = vadd.f32 %v3414, %v3427
    %v3429 = vrot.slane %v3428, 2
    %v3430 = vadd.f32 %v3428, %v3429
    %v3431 = vrot.slane %v3430, 1
    %v3432 = vadd.f32 %v3430, %v3431
    %v3433 = vrot.slane %v3417, 4
    %v3434 = vadd.f32 %v3417, %v3433
    %v3435 = vrot.slane %v3434, 2
    %v3436 = vadd.f32 %v3434, %v3435
    %v3437 = vrot.slane %v3436, 1
    %v3438 = vadd.f32 %v3436, %v3437
    %v3439 = vrot.slane %v3420, 4
    %v3440 = vadd.f32 %v3420, %v3439
    %v3441 = vrot.slane %v3440, 2
    %v3442 = vadd.f32 %v3440, %v3441
    %v3443 = vrot.slane %v3442, 1
    %v3444 = vadd.f32 %v3442, %v3443
    %v3445 = vmul.f32 %v3405, %v3405
    %v3446 = vmul.f32 %v3406, %v3406
    %v3447 = vmul.f32 %v3407, %v3407
    %v3448 = vmul.f32 %v3408, %v3408
    %v3449 = vsel %vm292, %v3445, 0.0
    %3450 = vadd.xlane.f32.xlu0 %v3449
    %v3451 = vpop.xlane.xlu0 %3450
    %v3452 = vsel %vm292, %v3446, 0.0
    %3453 = vadd.xlane.f32.xlu0 %v3452
    %v3454 = vpop.xlane.xlu0 %3453
    %v3455 = vsel %vm292, %v3447, 0.0
    %3456 = vadd.xlane.f32.xlu0 %v3455
    %v3457 = vpop.xlane.xlu0 %3456
    %v3458 = vsel %vm292, %v3448, 0.0
    %3459 = vadd.xlane.f32.xlu0 %v3458
    %v3460 = vpop.xlane.xlu0 %3459
    %v3461 = vrot.slane %v3451, 4
    %v3462 = vadd.f32 %v3451, %v3461
    %v3463 = vrot.slane %v3462, 2
    %v3464 = vadd.f32 %v3462, %v3463
    %v3465 = vrot.slane %v3464, 1
    %v3466 = vadd.f32 %v3464, %v3465
    %v3467 = vrot.slane %v3454, 4
    %v3468 = vadd.f32 %v3454, %v3467
    %v3469 = vrot.slane %v3468, 2
    %v3470 = vadd.f32 %v3468, %v3469
    %v3471 = vrot.slane %v3470, 1
    %v3472 = vadd.f32 %v3470, %v3471
    %v3473 = vrot.slane %v3457, 4
    %v3474 = vadd.f32 %v3457, %v3473
    %v3475 = vrot.slane %v3474, 2
    %v3476 = vadd.f32 %v3474, %v3475
    %v3477 = vrot.slane %v3476, 1
    %v3478 = vadd.f32 %v3476, %v3477
    %v3479 = vrot.slane %v3460, 4
    %v3480 = vadd.f32 %v3460, %v3479
    %v3481 = vrot.slane %v3480, 2
    %v3482 = vadd.f32 %v3480, %v3481
    %v3483 = vrot.slane %v3482, 1
    %v3484 = vadd.f32 %v3482, %v3483
    %v3485 = vmul.f32 %v3426, 0.00390625
    %v3486 = vmul.f32 %v3432, 0.00390625
    %v3487 = vmul.f32 %v3438, 0.00390625
    %v3488 = vmul.f32 %v3444, 0.00390625
    %v3489 = vmul.f32 %v3466, 0.00390625
    %v3490 = vmul.f32 %v3472, 0.00390625
    %v3491 = vmul.f32 %v3478, 0.00390625
    %v3492 = vmul.f32 %v3484, 0.00390625
    %v3493 = vmul.f32 %v3485, %v3485
    %v3494 = vmul.f32 %v3486, %v3486
    %v3495 = vmul.f32 %v3487, %v3487
    %v3496 = vmul.f32 %v3488, %v3488
    %v3497 = vsub.f32 %v3489, %v3493
    %v3498 = vsub.f32 %v3490, %v3494
    %v3499 = vsub.f32 %v3491, %v3495
    %v3500 = vsub.f32 %v3492, %v3496
    %v3501 = vsub.f32 %v3405, %v3485
    %v3502 = vsub.f32 %v3406, %v3486
    %v3503 = vsub.f32 %v3407, %v3487
    %v3504 = vsub.f32 %v3408, %v3488
    %v3505 = vadd.f32 %v3497, 1e-05
    %v3506 = vadd.f32 %v3498, 1e-05
    %v3507 = vadd.f32 %v3499, 1e-05
    %v3508 = vadd.f32 %v3500, 1e-05
    %v3509 = vrsqrt.pop %v3505
    %v3510 = vrsqrt.pop %v3506
    %v3511 = vrsqrt.pop %v3507
    %v3512 = vrsqrt.pop %v3508
    %v3513 = vmul.f32 %v3501, %v3509
    %v3514 = vmul.f32 %v3502, %v3510
    %v3515 = vmul.f32 %v3503, %v3511
    %v3516 = vmul.f32 %v3504, %v3512
    %v3517 = vmul.f32 %v3513, %v275
    %v3518 = vmul.f32 %v3514, %v275
    %v3519 = vmul.f32 %v3515, %v275
    %v3520 = vmul.f32 %v3516, %v275
    %v3521 = vadd.f32 %v3517, %v276
    %v3522 = vadd.f32 %v3518, %v276
    %v3523 = vadd.f32 %v3519, %v276
    %v3524 = vadd.f32 %v3520, %v276
    %v3525 = vld [vmem:[%s5] sm:$0xff]
    %v3526 = vld [vmem:[%s5 + $0x8] sm:$0xff]
    %v3527 = vld [vmem:[%s5 + $0x10] sm:$0xff]
    %v3528 = vld [vmem:[%s5 + $0x18] sm:$0xff]
    %v3529 = vld [vmem:[#allocation11] sm:$0x1]
    %v3530 = vld [vmem:[#allocation13] sm:$0xff]
    %v3531 = vld [vmem:[#allocation13 + $0x8] sm:$0xff]
    %v3532 = vld [vmem:[#allocation13 + $0x10] sm:$0xff]
    %v3533 = vld [vmem:[#allocation13 + $0x18] sm:$0xff]
    %v3534 = vld [vmem:[#allocation14] sm:$0x1]
    %v3536 = vlaneseq
    %v3537 = vshrl.u32 %v3536, 7
    %v3538 = vsub.s32 0, %v3537
    %v3539 = vrot.slane %v3529, %v3538
    %v3542 = vsel %vm292, %v3521, 0
    %v3545 = vsel %vm292, %v3522, 0
    %v3548 = vsel %vm292, %v3523, 0
    %v3551 = vsel %vm292, %v3524, 0
    %3553 = vmatprep.subr.mxu0 0.0
    %3554 = vmatpush1.msra.mxu0 %v3525
    %3555 = vmatprep.subr.mxu0 0.0
    %3556 = vmatpush1.msra.mxu0 %v3526
    %3557 = vmatprep.subr.mxu0 0.0
    %3558 = vmatpush1.msra.mxu0 %v3527
    %3559 = vmatprep.subr.mxu0 0.0
    %3560 = vmatpush1.msra.mxu0 %v3528
    %3561 = vmatprep.subr.mxu0 0.0
    %3562 = vmatpush1.msra.mxu0 0.0
    %3563 = vmatprep.subr.mxu0 0.0
    %3564 = vmatpush1.msra.mxu0 0.0
    %3565 = vmatprep.subr.mxu0 0.0
    %3566 = vmatpush1.msra.mxu0 0.0
    %3567 = vmatprep.subr.mxu0 0.0
    %3568 = vmatpush1.msra.mxu0 0.0
    %3569 = vmatprep.subr.mxu0 0.0
    %3570 = vmatpush1.msra.mxu0 0.0
    %3571 = vmatprep.subr.mxu0 0.0
    %3572 = vmatpush1.msra.mxu0 0.0
    %3573 = vmatprep.subr.mxu0 0.0
    %3574 = vmatpush1.msra.mxu0 0.0
    %3575 = vmatprep.subr.mxu0 0.0
    %3576 = vmatpush1.msra.mxu0 0.0
    %3577 = vmatprep.subr.mxu0 0.0
    %3578 = vmatpush1.msra.mxu0 0.0
    %3579 = vmatprep.subr.mxu0 0.0
    %3580 = vmatpush1.msra.mxu0 0.0
    %3581 = vmatprep.subr.mxu0 0.0
    %3582 = vmatpush1.msra.mxu0 0.0
    %3583 = vmatprep.subr.mxu0 0.0
    %3584 = vmatpush1.msra.mxu0 0.0
    %3585 = vmatprep.subr.mxu0 0.0
    %3586 = vmatpush1.msra.mxu0 0.0
    %3587 = vmatprep.subr.mxu0 0.0
    %3588 = vmatpush1.msra.mxu0 0.0
    %3589 = vmatprep.subr.mxu0 0.0
    %3590 = vmatpush1.msra.mxu0 0.0
    %3591 = vmatprep.subr.mxu0 0.0
    %3592 = vmatpush1.msra.mxu0 0.0
    %3593 = vmatprep.subr.mxu0 0.0
    %3594 = vmatpush1.msra.mxu0 0.0
    %3595 = vmatprep.subr.mxu0 0.0
    %3596 = vmatpush1.msra.mxu0 0.0
    %3597 = vmatprep.subr.mxu0 0.0
    %3598 = vmatpush1.msra.mxu0 0.0
    %3599 = vmatprep.subr.mxu0 0.0
    %3600 = vmatpush1.msra.mxu0 0.0
    %3601 = vmatprep.subr.mxu0 0.0
    %3602 = vmatpush1.msra.mxu0 0.0
    %3603 = vmatprep.subr.mxu0 0.0
    %3604 = vmatpush1.msra.mxu0 0.0
    %3605 = vmatprep.subr.mxu0 0.0
    %3606 = vmatpush1.msra.mxu0 0.0
    %3607 = vmatprep.subr.mxu0 0.0
    %3608 = vmatpush1.msra.mxu0 0.0
    %3609 = vmatprep.subr.mxu0 0.0
    %3610 = vmatpush1.msra.mxu0 0.0
    %3611 = vmatprep.subr.mxu0 0.0
    %3612 = vmatpush1.msra.mxu0 0.0
    %3613 = vmatprep.subr.mxu0 0.0
    %3614 = vmatpush1.msra.mxu0 0.0
    %3615 = vmatprep.subr.mxu0 0.0
    %3616 = vmatpush1.msra.mxu0 0.0
    %3617 = vmatprep.mubr.f32.mxu0 0.0
    %3618 = vmatmul.mubr.f32.gmra.mrb[0].mxu0 %v3542
    %v3619 = vpop.f32.mrb[0].mxu0
    %v3620 = vadd.f32 %v3539, %v3619
    %v3621 = vpop.f32.mrb[0].mxu0
    %3622 = vmatprep.mubr.f32.mxu0 0.0
    %3623 = vmatmul.mubr.f32.gmra.mrb[0].mxu0 %v3545
    %v3624 = vpop.f32.mrb[0].mxu0
    %v3625 = vadd.f32 %v3539, %v3624
    %v3626 = vpop.f32.mrb[0].mxu0
    %3627 = vmatprep.mubr.f32.mxu0 0.0
    %3628 = vmatmul.mubr.f32.gmra.mrb[0].mxu0 %v3548
    %v3629 = vpop.f32.mrb[0].mxu0
    %v3630 = vadd.f32 %v3539, %v3629
    %v3631 = vpop.f32.mrb[0].mxu0
    %3632 = vmatprep.mubr.f32.mxu0 0.0
    %3633 = vmatmul.mubr.f32.gmra.mrb[0].mxu0 %v3551
    %v3634 = vpop.f32.mrb[0].mxu0
    %v3635 = vadd.f32 %v3539, %v3634
    %v3636 = vpop.f32.mrb[0].mxu0
    %3637 = vdwg.mxu0
    %v3638 = vmax.f32 %v3620, 0.0
    %v3639 = vmax.f32 %v3625, 0.0
    %v3640 = vmax.f32 %v3630, 0.0
    %v3641 = vmax.f32 %v3635, 0.0
    %v3643 = vlaneseq
    %v3644 = vshrl.u32 %v3643, 7
    %v3645 = vsub.s32 0, %v3644
    %v3646 = vrot.slane %v3534, %v3645
    %v3649 = vsel %vm292, %v3638, 0
    %v3652 = vsel %vm292, %v3639, 0
    %v3655 = vsel %vm292, %v3640, 0
    %v3658 = vsel %vm292, %v3641, 0
    %3660 = vmatprep.subr.mxu0 0.0
    %3661 = vmatpush1.msra.mxu0 %v3530
    %3662 = vmatprep.subr.mxu0 0.0
    %3663 = vmatpush1.msra.mxu0 %v3531
    %3664 = vmatprep.subr.mxu0 0.0
    %3665 = vmatpush1.msra.mxu0 %v3532
    %3666 = vmatprep.subr.mxu0 0.0
    %3667 = vmatpush1.msra.mxu0 %v3533
    %3668 = vmatprep.subr.mxu0 0.0
    %3669 = vmatpush1.msra.mxu0 0.0
    %3670 = vmatprep.subr.mxu0 0.0
    %3671 = vmatpush1.msra.mxu0 0.0
    %3672 = vmatprep.subr.mxu0 0.0
    %3673 = vmatpush1.msra.mxu0 0.0
    %3674 = vmatprep.subr.mxu0 0.0
    %3675 = vmatpush1.msra.mxu0 0.0
    %3676 = vmatprep.subr.mxu0 0.0
    %3677 = vmatpush1.msra.mxu0 0.0
    %3678 = vmatprep.subr.mxu0 0.0
    %3679 = vmatpush1.msra.mxu0 0.0
    %3680 = vmatprep.subr.mxu0 0.0
    %3681 = vmatpush1.msra.mxu0 0.0
    %3682 = vmatprep.subr.mxu0 0.0
    %3683 = vmatpush1.msra.mxu0 0.0
    %3684 = vmatprep.subr.mxu0 0.0
    %3685 = vmatpush1.msra.mxu0 0.0
    %3686 = vmatprep.subr.mxu0 0.0
    %3687 = vmatpush1.msra.mxu0 0.0
    %3688 = vmatprep.subr.mxu0 0.0
    %3689 = vmatpush1.msra.mxu0 0.0
    %3690 = vmatprep.subr.mxu0 0.0
    %3691 = vmatpush1.msra.mxu0 0.0
    %3692 = vmatprep.subr.mxu0 0.0
    %3693 = vmatpush1.msra.mxu0 0.0
    %3694 = vmatprep.subr.mxu0 0.0
    %3695 = vmatpush1.msra.mxu0 0.0
    %3696 = vmatprep.subr.mxu0 0.0
    %3697 = vmatpush1.msra.mxu0 0.0
    %3698 = vmatprep.subr.mxu0 0.0
    %3699 = vmatpush1.msra.mxu0 0.0
    %3700 = vmatprep.subr.mxu0 0.0
    %3701 = vmatpush1.msra.mxu0 0.0
    %3702 = vmatprep.subr.mxu0 0.0
    %3703 = vmatpush1.msra.mxu0 0.0
    %3704 = vmatprep.subr.mxu0 0.0
    %3705 = vmatpush1.msra.mxu0 0.0
    %3706 = vmatprep.subr.mxu0 0.0
    %3707 = vmatpush1.msra.mxu0 0.0
    %3708 = vmatprep.subr.mxu0 0.0
    %3709 = vmatpush1.msra.mxu0 0.0
    %3710 = vmatprep.subr.mxu0 0.0
    %3711 = vmatpush1.msra.mxu0 0.0
    %3712 = vmatprep.subr.mxu0 0.0
    %3713 = vmatpush1.msra.mxu0 0.0
    %3714 = vmatprep.subr.mxu0 0.0
    %3715 = vmatpush1.msra.mxu0 0.0
    %3716 = vmatprep.subr.mxu0 0.0
    %3717 = vmatpush1.msra.mxu0 0.0
    %3718 = vmatprep.subr.mxu0 0.0
    %3719 = vmatpush1.msra.mxu0 0.0
    %3720 = vmatprep.subr.mxu0 0.0
    %3721 = vmatpush1.msra.mxu0 0.0
    %3722 = vmatprep.subr.mxu0 0.0
    %3723 = vmatpush1.msra.mxu0 0.0
    %3724 = vmatprep.mubr.f32.mxu0 0.0
    %3725 = vmatmul.mubr.f32.gmra.mrb[0].mxu0 %v3649
    %v3726 = vpop.f32.mrb[0].mxu0
    %v3727 = vadd.f32 %v3646, %v3726
    %v3728 = vpop.f32.mrb[0].mxu0
    %3729 = vmatprep.mubr.f32.mxu0 0.0
    %3730 = vmatmul.mubr.f32.gmra.mrb[0].mxu0 %v3652
    %v3731 = vpop.f32.mrb[0].mxu0
    %v3732 = vadd.f32 %v3646, %v3731
    %v3733 = vpop.f32.mrb[0].mxu0
    %3734 = vmatprep.mubr.f32.mxu0 0.0
    %3735 = vmatmul.mubr.f32.gmra.mrb[0].mxu0 %v3655
    %v3736 = vpop.f32.mrb[0].mxu0
    %v3737 = vadd.f32 %v3646, %v3736
    %v3738 = vpop.f32.mrb[0].mxu0
    %3739 = vmatprep.mubr.f32.mxu0 0.0
    %3740 = vmatmul.mubr.f32.gmra.mrb[0].mxu0 %v3658
    %v3741 = vpop.f32.mrb[0].mxu0
    %v3742 = vadd.f32 %v3646, %v3741
    %v3743 = vpop.f32.mrb[0].mxu0
    %3744 = vdwg.mxu0
    %v3745 = vmax.f32 %v3727, 0.0
    %v3746 = vmax.f32 %v3732, 0.0
    %v3747 = vmax.f32 %v3737, 0.0
    %v3748 = vmax.f32 %v3742, 0.0
    %v3749 = vadd.f32 %v3745, %v3521
    %v3750 = vadd.f32 %v3746, %v3522
    %v3751 = vadd.f32 %v3747, %v3523
    %v3752 = vadd.f32 %v3748, %v3524
    %v3753 = vsel %vm292, %v3749, 0.0
    %3754 = vadd.xlane.f32.xlu0 %v3753
    %v3755 = vpop.xlane.xlu0 %3754
    %v3756 = vsel %vm292, %v3750, 0.0
    %3757 = vadd.xlane.f32.xlu0 %v3756
    %v3758 = vpop.xlane.xlu0 %3757
    %v3759 = vsel %vm292, %v3751, 0.0
    %3760 = vadd.xlane.f32.xlu0 %v3759
    %v3761 = vpop.xlane.xlu0 %3760
    %v3762 = vsel %vm292, %v3752, 0.0
    %3763 = vadd.xlane.f32.xlu0 %v3762
    %v3764 = vpop.xlane.xlu0 %3763
    %v3765 = vrot.slane %v3755, 4
    %v3766 = vadd.f32 %v3755, %v3765
    %v3767 = vrot.slane %v3766, 2
    %v3768 = vadd.f32 %v3766, %v3767
    %v3769 = vrot.slane %v3768, 1
    %v3770 = vadd.f32 %v3768, %v3769
    %v3771 = vrot.slane %v3758, 4
    %v3772 = vadd.f32 %v3758, %v3771
    %v3773 = vrot.slane %v3772, 2
    %v3774 = vadd.f32 %v3772, %v3773
    %v3775 = vrot.slane %v3774, 1
    %v3776 = vadd.f32 %v3774, %v3775
    %v3777 = vrot.slane %v3761, 4
    %v3778 = vadd.f32 %v3761, %v3777
    %v3779 = vrot.slane %v3778, 2
    %v3780 = vadd.f32 %v3778, %v3779
    %v3781 = vrot.slane %v3780, 1
    %v3782 = vadd.f32 %v3780, %v3781
    %v3783 = vrot.slane %v3764, 4
    %v3784 = vadd.f32 %v3764, %v3783
    %v3785 = vrot.slane %v3784, 2
    %v3786 = vadd.f32 %v3784, %v3785
    %v3787 = vrot.slane %v3786, 1
    %v3788 = vadd.f32 %v3786, %v3787
    %v3789 = vmul.f32 %v3749, %v3749
    %v3790 = vmul.f32 %v3750, %v3750
    %v3791 = vmul.f32 %v3751, %v3751
    %v3792 = vmul.f32 %v3752, %v3752
    %v3793 = vsel %vm292, %v3789, 0.0
    %3794 = vadd.xlane.f32.xlu0 %v3793
    %v3795 = vpop.xlane.xlu0 %3794
    %v3796 = vsel %vm292, %v3790, 0.0
    %3797 = vadd.xlane.f32.xlu0 %v3796
    %v3798 = vpop.xlane.xlu0 %3797
    %v3799 = vsel %vm292, %v3791, 0.0
    %3800 = vadd.xlane.f32.xlu0 %v3799
    %v3801 = vpop.xlane.xlu0 %3800
    %v3802 = vsel %vm292, %v3792, 0.0
    %3803 = vadd.xlane.f32.xlu0 %v3802
    %v3804 = vpop.xlane.xlu0 %3803
    %v3805 = vrot.slane %v3795, 4
    %v3806 = vadd.f32 %v3795, %v3805
    %v3807 = vrot.slane %v3806, 2
    %v3808 = vadd.f32 %v3806, %v3807
    %v3809 = vrot.slane %v3808, 1
    %v3810 = vadd.f32 %v3808, %v3809
    %v3811 = vrot.slane %v3798, 4
    %v3812 = vadd.f32 %v3798, %v3811
    %v3813 = vrot.slane %v3812, 2
    %v3814 = vadd.f32 %v3812, %v3813
    %v3815 = vrot.slane %v3814, 1
    %v3816 = vadd.f32 %v3814, %v3815
    %v3817 = vrot.slane %v3801, 4
    %v3818 = vadd.f32 %v3801, %v3817
    %v3819 = vrot.slane %v3818, 2
    %v3820 = vadd.f32 %v3818, %v3819
    %v3821 = vrot.slane %v3820, 1
    %v3822 = vadd.f32 %v3820, %v3821
    %v3823 = vrot.slane %v3804, 4
    %v3824 = vadd.f32 %v3804, %v3823
    %v3825 = vrot.slane %v3824, 2
    %v3826 = vadd.f32 %v3824, %v3825
    %v3827 = vrot.slane %v3826, 1
    %v3828 = vadd.f32 %v3826, %v3827
    %v3829 = vmul.f32 %v3770, 0.00390625
    %v3830 = vmul.f32 %v3776, 0.00390625
    %v3831 = vmul.f32 %v3782, 0.00390625
    %v3832 = vmul.f32 %v3788, 0.00390625
    %v3833 = vmul.f32 %v3810, 0.00390625
    %v3834 = vmul.f32 %v3816, 0.00390625
    %v3835 = vmul.f32 %v3822, 0.00390625
    %v3836 = vmul.f32 %v3828, 0.00390625
    %v3837 = vmul.f32 %v3829, %v3829
    %v3838 = vmul.f32 %v3830, %v3830
    %v3839 = vmul.f32 %v3831, %v3831
    %v3840 = vmul.f32 %v3832, %v3832
    %v3841 = vsub.f32 %v3833, %v3837
    %v3842 = vsub.f32 %v3834, %v3838
    %v3843 = vsub.f32 %v3835, %v3839
    %v3844 = vsub.f32 %v3836, %v3840
    %v3845 = vsub.f32 %v3749, %v3829
    %v3846 = vsub.f32 %v3750, %v3830
    %v3847 = vsub.f32 %v3751, %v3831
    %v3848 = vsub.f32 %v3752, %v3832
    %v3849 = vadd.f32 %v3841, 1e-05
    %v3850 = vadd.f32 %v3842, 1e-05
    %v3851 = vadd.f32 %v3843, 1e-05
    %v3852 = vadd.f32 %v3844, 1e-05
    %v3853 = vrsqrt.pop %v3849
    %v3854 = vrsqrt.pop %v3850
    %v3855 = vrsqrt.pop %v3851
    %v3856 = vrsqrt.pop %v3852
    %v3857 = vmul.f32 %v3845, %v3853
    %v3858 = vmul.f32 %v3846, %v3854
    %v3859 = vmul.f32 %v3847, %v3855
    %v3860 = vmul.f32 %v3848, %v3856
    %v3861 = vmul.f32 %v3857, %v275
    %v3862 = vmul.f32 %v3858, %v275
    %v3863 = vmul.f32 %v3859, %v275
    %v3864 = vmul.f32 %v3860, %v275
    %v3865 = vadd.f32 %v3861, %v276
    %v3866 = vadd.f32 %v3862, %v276
    %v3867 = vadd.f32 %v3863, %v276
    %v3868 = vadd.f32 %v3864, %v276
    %s3869 = scalar_lea.vmem [#allocation5], 32
    %v3870 = vld [vmem:[%s3869] sm:$0xff]
    %v3871 = vld [vmem:[%s3869 + $0x8] sm:$0xff]
    %v3872 = vld [vmem:[%s3869 + $0x10] sm:$0xff]
    %v3873 = vld [vmem:[%s3869 + $0x18] sm:$0xff]
    %s3874 = scalar_lea.vmem [#allocation7], 1
    %v3875 = vld [vmem:[%s3874] sm:$0x1]
    %v3877 = vlaneseq
    %v3878 = vshrl.u32 %v3877, 7
    %v3879 = vsub.s32 0, %v3878
    %v3880 = vrot.slane %v3875, %v3879
    %v3883 = vsel %vm292, %v3865, 0
    %v3886 = vsel %vm292, %v3866, 0
    %v3889 = vsel %vm292, %v3867, 0
    %v3892 = vsel %vm292, %v3868, 0
    %3894 = vmatprep.subr.mxu0 0.0
    %3895 = vmatpush1.msra.mxu0 %v3870
    %3896 = vmatprep.subr.mxu0 0.0
    %3897 = vmatpush1.msra.mxu0 %v3871
    %3898 = vmatprep.subr.mxu0 0.0
    %3899 = vmatpush1.msra.mxu0 %v3872
    %3900 = vmatprep.subr.mxu0 0.0
    %3901 = vmatpush1.msra.mxu0 %v3873
    %3902 = vmatprep.subr.mxu0 0.0
    %3903 = vmatpush1.msra.mxu0 0.0
    %3904 = vmatprep.subr.mxu0 0.0
    %3905 = vmatpush1.msra.mxu0 0.0
    %3906 = vmatprep.subr.mxu0 0.0
    %3907 = vmatpush1.msra.mxu0 0.0
    %3908 = vmatprep.subr.mxu0 0.0
    %3909 = vmatpush1.msra.mxu0 0.0
    %3910 = vmatprep.subr.mxu0 0.0
    %3911 = vmatpush1.msra.mxu0 0.0
    %3912 = vmatprep.subr.mxu0 0.0
    %3913 = vmatpush1.msra.mxu0 0.0
    %3914 = vmatprep.subr.mxu0 0.0
    %3915 = vmatpush1.msra.mxu0 0.0
    %3916 = vmatprep.subr.mxu0 0.0
    %3917 = vmatpush1.msra.mxu0 0.0
    %3918 = vmatprep.subr.mxu0 0.0
    %3919 = vmatpush1.msra.mxu0 0.0
    %3920 = vmatprep.subr.mxu0 0.0
    %3921 = vmatpush1.msra.mxu0 0.0
    %3922 = vmatprep.subr.mxu0 0.0
    %3923 = vmatpush1.msra.mxu0 0.0
    %3924 = vmatprep.subr.mxu0 0.0
    %3925 = vmatpush1.msra.mxu0 0.0
    %3926 = vmatprep.subr.mxu0 0.0
    %3927 = vmatpush1.msra.mxu0 0.0
    %3928 = vmatprep.subr.mxu0 0.0
    %3929 = vmatpush1.msra.mxu0 0.0
    %3930 = vmatprep.subr.mxu0 0.0
    %3931 = vmatpush1.msra.mxu0 0.0
    %3932 = vmatprep.subr.mxu0 0.0
    %3933 = vmatpush1.msra.mxu0 0.0
    %3934 = vmatprep.subr.mxu0 0.0
    %3935 = vmatpush1.msra.mxu0 0.0
    %3936 = vmatprep.subr.mxu0 0.0
    %3937 = vmatpush1.msra.mxu0 0.0
    %3938 = vmatprep.subr.mxu0 0.0
    %3939 = vmatpush1.msra.mxu0 0.0
    %3940 = vmatprep.subr.mxu0 0.0
    %3941 = vmatpush1.msra.mxu0 0.0
    %3942 = vmatprep.subr.mxu0 0.0
    %3943 = vmatpush1.msra.mxu0 0.0
    %3944 = vmatprep.subr.mxu0 0.0
    %3945 = vmatpush1.msra.mxu0 0.0
    %3946 = vmatprep.subr.mxu0 0.0
    %3947 = vmatpush1.msra.mxu0 0.0
    %3948 = vmatprep.subr.mxu0 0.0
    %3949 = vmatpush1.msra.mxu0 0.0
    %3950 = vmatprep.subr.mxu0 0.0
    %3951 = vmatpush1.msra.mxu0 0.0
    %3952 = vmatprep.subr.mxu0 0.0
    %3953 = vmatpush1.msra.mxu0 0.0
    %3954 = vmatprep.subr.mxu0 0.0
    %3955 = vmatpush1.msra.mxu0 0.0
    %3956 = vmatprep.subr.mxu0 0.0
    %3957 = vmatpush1.msra.mxu0 0.0
    %3958 = vmatprep.mubr.f32.mxu0 0.0
    %3959 = vmatmul.mubr.f32.gmra.mrb[0].mxu0 %v3883
    %v3960 = vpop.f32.mrb[0].mxu0
    %v3961 = vadd.f32 %v3880, %v3960
    %v3962 = vpop.f32.mrb[0].mxu0
    %3963 = vmatprep.mubr.f32.mxu0 0.0
    %3964 = vmatmul.mubr.f32.gmra.mrb[0].mxu0 %v3886
    %v3965 = vpop.f32.mrb[0].mxu0
    %v3966 = vadd.f32 %v3880, %v3965
    %v3967 = vpop.f32.mrb[0].mxu0
    %3968 = vmatprep.mubr.f32.mxu0 0.0
    %3969 = vmatmul.mubr.f32.gmra.mrb[0].mxu0 %v3889
    %v3970 = vpop.f32.mrb[0].mxu0
    %v3971 = vadd.f32 %v3880, %v3970
    %v3972 = vpop.f32.mrb[0].mxu0
    %3973 = vmatprep.mubr.f32.mxu0 0.0
    %3974 = vmatmul.mubr.f32.gmra.mrb[0].mxu0 %v3892
    %v3975 = vpop.f32.mrb[0].mxu0
    %v3976 = vadd.f32 %v3880, %v3975
    %v3977 = vpop.f32.mrb[0].mxu0
    %3978 = vdwg.mxu0
    %3980 = vrot.lane.b32.xlu0 %v3961, 96
    %v3981 = vpop.permute.xlu0 %3980
    %v3982 = vsel %vm393, %v3961, 0
    %v3984 = vsel %vm393, %v3981, 0
    %3986 = vmatprep.subr.mxu0 0.0
    %3987 = vmatpush1.xpose.msra.mxu0 %v3984
    %3988 = vmatprep.subr.mxu0 0.0
    %3989 = vmatpush1.xpose.msra.mxu0 0.0
    %3990 = vmatprep.subr.mxu0 0.0
    %3991 = vmatpush1.xpose.msra.mxu0 0.0
    %3992 = vmatprep.subr.mxu0 0.0
    %3993 = vmatpush1.xpose.msra.mxu0 0.0
    %3994 = vmatprep.subr.mxu0 0.0
    %3995 = vmatpush1.xpose.msra.mxu0 0.0
    %3996 = vmatprep.subr.mxu0 0.0
    %3997 = vmatpush1.xpose.msra.mxu0 0.0
    %3998 = vmatprep.subr.mxu0 0.0
    %3999 = vmatpush1.xpose.msra.mxu0 0.0
    %4000 = vmatprep.subr.mxu0 0.0
    %4001 = vmatpush1.xpose.msra.mxu0 0.0
    %4002 = vmatprep.subr.mxu0 0.0
    %4003 = vmatpush1.xpose.msra.mxu0 0.0
    %4004 = vmatprep.subr.mxu0 0.0
    %4005 = vmatpush1.xpose.msra.mxu0 0.0
    %4006 = vmatprep.subr.mxu0 0.0
    %4007 = vmatpush1.xpose.msra.mxu0 0.0
    %4008 = vmatprep.subr.mxu0 0.0
    %4009 = vmatpush1.xpose.msra.mxu0 0.0
    %4010 = vmatprep.subr.mxu0 0.0
    %4011 = vmatpush1.xpose.msra.mxu0 0.0
    %4012 = vmatprep.subr.mxu0 0.0
    %4013 = vmatpush1.xpose.msra.mxu0 0.0
    %4014 = vmatprep.subr.mxu0 0.0
    %4015 = vmatpush1.xpose.msra.mxu0 0.0
    %4016 = vmatprep.subr.mxu0 0.0
    %4017 = vmatpush1.xpose.msra.mxu0 0.0
    %4018 = vmatprep.subr.mxu0 0.0
    %4019 = vmatpush1.xpose.msra.mxu0 0.0
    %4020 = vmatprep.subr.mxu0 0.0
    %4021 = vmatpush1.xpose.msra.mxu0 0.0
    %4022 = vmatprep.subr.mxu0 0.0
    %4023 = vmatpush1.xpose.msra.mxu0 0.0
    %4024 = vmatprep.subr.mxu0 0.0
    %4025 = vmatpush1.xpose.msra.mxu0 0.0
    %4026 = vmatprep.subr.mxu0 0.0
    %4027 = vmatpush1.xpose.msra.mxu0 0.0
    %4028 = vmatprep.subr.mxu0 0.0
    %4029 = vmatpush1.xpose.msra.mxu0 0.0
    %4030 = vmatprep.subr.mxu0 0.0
    %4031 = vmatpush1.xpose.msra.mxu0 0.0
    %4032 = vmatprep.subr.mxu0 0.0
    %4033 = vmatpush1.xpose.msra.mxu0 0.0
    %4034 = vmatprep.subr.mxu0 0.0
    %4035 = vmatpush1.xpose.msra.mxu0 0.0
    %4036 = vmatprep.subr.mxu0 0.0
    %4037 = vmatpush1.xpose.msra.mxu0 0.0
    %4038 = vmatprep.subr.mxu0 0.0
    %4039 = vmatpush1.xpose.msra.mxu0 0.0
    %4040 = vmatprep.subr.mxu0 0.0
    %4041 = vmatpush1.xpose.msra.mxu0 0.0
    %4042 = vmatprep.subr.mxu0 0.0
    %4043 = vmatpush1.xpose.msra.mxu0 0.0
    %4044 = vmatprep.subr.mxu0 0.0
    %4045 = vmatpush1.xpose.msra.mxu0 0.0
    %4046 = vmatprep.subr.mxu0 0.0
    %4047 = vmatpush1.xpose.msra.mxu0 0.0
    %4048 = vmatprep.subr.mxu0 0.0
    %4049 = vmatpush1.xpose.msra.mxu0 0.0
    %4050 = vmatprep.mubr.f32.mxu0 0.0
    %4051 = vmatmul.mubr.f32.gmra.mrb[0].mxu0 %v3982
    %v4052 = vpop.f32.mrb[0].mxu0
    %v4053 = vadd.f32 0.0, %v4052
    %v4054 = vpop.f32.mrb[0].mxu0
    %4055 = vdwg.mxu0
    %4057 = vrot.lane.b32.xlu0 %v3966, 96
    %v4058 = vpop.permute.xlu0 %4057
    %v4059 = vsel %vm393, %v3966, 0
    %v4061 = vsel %vm393, %v4058, 0
    %4063 = vmatprep.subr.mxu0 0.0
    %4064 = vmatpush1.xpose.msra.mxu0 %v4061
    %4065 = vmatprep.subr.mxu0 0.0
    %4066 = vmatpush1.xpose.msra.mxu0 0.0
    %4067 = vmatprep.subr.mxu0 0.0
    %4068 = vmatpush1.xpose.msra.mxu0 0.0
    %4069 = vmatprep.subr.mxu0 0.0
    %4070 = vmatpush1.xpose.msra.mxu0 0.0
    %4071 = vmatprep.subr.mxu0 0.0
    %4072 = vmatpush1.xpose.msra.mxu0 0.0
    %4073 = vmatprep.subr.mxu0 0.0
    %4074 = vmatpush1.xpose.msra.mxu0 0.0
    %4075 = vmatprep.subr.mxu0 0.0
    %4076 = vmatpush1.xpose.msra.mxu0 0.0
    %4077 = vmatprep.subr.mxu0 0.0
    %4078 = vmatpush1.xpose.msra.mxu0 0.0
    %4079 = vmatprep.subr.mxu0 0.0
    %4080 = vmatpush1.xpose.msra.mxu0 0.0
    %4081 = vmatprep.subr.mxu0 0.0
    %4082 = vmatpush1.xpose.msra.mxu0 0.0
    %4083 = vmatprep.subr.mxu0 0.0
    %4084 = vmatpush1.xpose.msra.mxu0 0.0
    %4085 = vmatprep.subr.mxu0 0.0
    %4086 = vmatpush1.xpose.msra.mxu0 0.0
    %4087 = vmatprep.subr.mxu0 0.0
    %4088 = vmatpush1.xpose.msra.mxu0 0.0
    %4089 = vmatprep.subr.mxu0 0.0
    %4090 = vmatpush1.xpose.msra.mxu0 0.0
    %4091 = vmatprep.subr.mxu0 0.0
    %4092 = vmatpush1.xpose.msra.mxu0 0.0
    %4093 = vmatprep.subr.mxu0 0.0
    %4094 = vmatpush1.xpose.msra.mxu0 0.0
    %4095 = vmatprep.subr.mxu0 0.0
    %4096 = vmatpush1.xpose.msra.mxu0 0.0
    %4097 = vmatprep.subr.mxu0 0.0
    %4098 = vmatpush1.xpose.msra.mxu0 0.0
    %4099 = vmatprep.subr.mxu0 0.0
    %4100 = vmatpush1.xpose.msra.mxu0 0.0
    %4101 = vmatprep.subr.mxu0 0.0
    %4102 = vmatpush1.xpose.msra.mxu0 0.0
    %4103 = vmatprep.subr.mxu0 0.0
    %4104 = vmatpush1.xpose.msra.mxu0 0.0
    %4105 = vmatprep.subr.mxu0 0.0
    %4106 = vmatpush1.xpose.msra.mxu0 0.0
    %4107 = vmatprep.subr.mxu0 0.0
    %4108 = vmatpush1.xpose.msra.mxu0 0.0
    %4109 = vmatprep.subr.mxu0 0.0
    %4110 = vmatpush1.xpose.msra.mxu0 0.0
    %4111 = vmatprep.subr.mxu0 0.0
    %4112 = vmatpush1.xpose.msra.mxu0 0.0
    %4113 = vmatprep.subr.mxu0 0.0
    %4114 = vmatpush1.xpose.msra.mxu0 0.0
    %4115 = vmatprep.subr.mxu0 0.0
    %4116 = vmatpush1.xpose.msra.mxu0 0.0
    %4117 = vmatprep.subr.mxu0 0.0
    %4118 = vmatpush1.xpose.msra.mxu0 0.0
    %4119 = vmatprep.subr.mxu0 0.0
    %4120 = vmatpush1.xpose.msra.mxu0 0.0
    %4121 = vmatprep.subr.mxu0 0.0
    %4122 = vmatpush1.xpose.msra.mxu0 0.0
    %4123 = vmatprep.subr.mxu0 0.0
    %4124 = vmatpush1.xpose.msra.mxu0 0.0
    %4125 = vmatprep.subr.mxu0 0.0
    %4126 = vmatpush1.xpose.msra.mxu0 0.0
    %4127 = vmatprep.mubr.f32.mxu0 0.0
    %4128 = vmatmul.mubr.f32.gmra.mrb[0].mxu0 %v4059
    %v4129 = vpop.f32.mrb[0].mxu0
    %v4130 = vadd.f32 0.0, %v4129
    %v4131 = vpop.f32.mrb[0].mxu0
    %4132 = vdwg.mxu0
    %4134 = vrot.lane.b32.xlu0 %v3971, 96
    %v4135 = vpop.permute.xlu0 %4134
    %v4136 = vsel %vm393, %v3971, 0
    %v4138 = vsel %vm393, %v4135, 0
    %4140 = vmatprep.subr.mxu0 0.0
    %4141 = vmatpush1.xpose.msra.mxu0 %v4138
    %4142 = vmatprep.subr.mxu0 0.0
    %4143 = vmatpush1.xpose.msra.mxu0 0.0
    %4144 = vmatprep.subr.mxu0 0.0
    %4145 = vmatpush1.xpose.msra.mxu0 0.0
    %4146 = vmatprep.subr.mxu0 0.0
    %4147 = vmatpush1.xpose.msra.mxu0 0.0
    %4148 = vmatprep.subr.mxu0 0.0
    %4149 = vmatpush1.xpose.msra.mxu0 0.0
    %4150 = vmatprep.subr.mxu0 0.0
    %4151 = vmatpush1.xpose.msra.mxu0 0.0
    %4152 = vmatprep.subr.mxu0 0.0
    %4153 = vmatpush1.xpose.msra.mxu0 0.0
    %4154 = vmatprep.subr.mxu0 0.0
    %4155 = vmatpush1.xpose.msra.mxu0 0.0
    %4156 = vmatprep.subr.mxu0 0.0
    %4157 = vmatpush1.xpose.msra.mxu0 0.0
    %4158 = vmatprep.subr.mxu0 0.0
    %4159 = vmatpush1.xpose.msra.mxu0 0.0
    %4160 = vmatprep.subr.mxu0 0.0
    %4161 = vmatpush1.xpose.msra.mxu0 0.0
    %4162 = vmatprep.subr.mxu0 0.0
    %4163 = vmatpush1.xpose.msra.mxu0 0.0
    %4164 = vmatprep.subr.mxu0 0.0
    %4165 = vmatpush1.xpose.msra.mxu0 0.0
    %4166 = vmatprep.subr.mxu0 0.0
    %4167 = vmatpush1.xpose.msra.mxu0 0.0
    %4168 = vmatprep.subr.mxu0 0.0
    %4169 = vmatpush1.xpose.msra.mxu0 0.0
    %4170 = vmatprep.subr.mxu0 0.0
    %4171 = vmatpush1.xpose.msra.mxu0 0.0
    %4172 = vmatprep.subr.mxu0 0.0
    %4173 = vmatpush1.xpose.msra.mxu0 0.0
    %4174 = vmatprep.subr.mxu0 0.0
    %4175 = vmatpush1.xpose.msra.mxu0 0.0
    %4176 = vmatprep.subr.mxu0 0.0
    %4177 = vmatpush1.xpose.msra.mxu0 0.0
    %4178 = vmatprep.subr.mxu0 0.0
    %4179 = vmatpush1.xpose.msra.mxu0 0.0
    %4180 = vmatprep.subr.mxu0 0.0
    %4181 = vmatpush1.xpose.msra.mxu0 0.0
    %4182 = vmatprep.subr.mxu0 0.0
    %4183 = vmatpush1.xpose.msra.mxu0 0.0
    %4184 = vmatprep.subr.mxu0 0.0
    %4185 = vmatpush1.xpose.msra.mxu0 0.0
    %4186 = vmatprep.subr.mxu0 0.0
    %4187 = vmatpush1.xpose.msra.mxu0 0.0
    %4188 = vmatprep.subr.mxu0 0.0
    %4189 = vmatpush1.xpose.msra.mxu0 0.0
    %4190 = vmatprep.subr.mxu0 0.0
    %4191 = vmatpush1.xpose.msra.mxu0 0.0
    %4192 = vmatprep.subr.mxu0 0.0
    %4193 = vmatpush1.xpose.msra.mxu0 0.0
    %4194 = vmatprep.subr.mxu0 0.0
    %4195 = vmatpush1.xpose.msra.mxu0 0.0
    %4196 = vmatprep.subr.mxu0 0.0
    %4197 = vmatpush1.xpose.msra.mxu0 0.0
    %4198 = vmatprep.subr.mxu0 0.0
    %4199 = vmatpush1.xpose.msra.mxu0 0.0
    %4200 = vmatprep.subr.mxu0 0.0
    %4201 = vmatpush1.xpose.msra.mxu0 0.0
    %4202 = vmatprep.subr.mxu0 0.0
    %4203 = vmatpush1.xpose.msra.mxu0 0.0
    %4204 = vmatprep.mubr.f32.mxu0 0.0
    %4205 = vmatmul.mubr.f32.gmra.mrb[0].mxu0 %v4136
    %v4206 = vpop.f32.mrb[0].mxu0
    %v4207 = vadd.f32 0.0, %v4206
    %v4208 = vpop.f32.mrb[0].mxu0
    %4209 = vdwg.mxu0
    %4211 = vrot.lane.b32.xlu0 %v3976, 96
    %v4212 = vpop.permute.xlu0 %4211
    %v4213 = vsel %vm393, %v3976, 0
    %v4215 = vsel %vm393, %v4212, 0
    %4217 = vmatprep.subr.mxu0 0.0
    %4218 = vmatpush1.xpose.msra.mxu0 %v4215
    %4219 = vmatprep.subr.mxu0 0.0
    %4220 = vmatpush1.xpose.msra.mxu0 0.0
    %4221 = vmatprep.subr.mxu0 0.0
    %4222 = vmatpush1.xpose.msra.mxu0 0.0
    %4223 = vmatprep.subr.mxu0 0.0
    %4224 = vmatpush1.xpose.msra.mxu0 0.0
    %4225 = vmatprep.subr.mxu0 0.0
    %4226 = vmatpush1.xpose.msra.mxu0 0.0
    %4227 = vmatprep.subr.mxu0 0.0
    %4228 = vmatpush1.xpose.msra.mxu0 0.0
    %4229 = vmatprep.subr.mxu0 0.0
    %4230 = vmatpush1.xpose.msra.mxu0 0.0
    %4231 = vmatprep.subr.mxu0 0.0
    %4232 = vmatpush1.xpose.msra.mxu0 0.0
    %4233 = vmatprep.subr.mxu0 0.0
    %4234 = vmatpush1.xpose.msra.mxu0 0.0
    %4235 = vmatprep.subr.mxu0 0.0
    %4236 = vmatpush1.xpose.msra.mxu0 0.0
    %4237 = vmatprep.subr.mxu0 0.0
    %4238 = vmatpush1.xpose.msra.mxu0 0.0
    %4239 = vmatprep.subr.mxu0 0.0
    %4240 = vmatpush1.xpose.msra.mxu0 0.0
    %4241 = vmatprep.subr.mxu0 0.0
    %4242 = vmatpush1.xpose.msra.mxu0 0.0
    %4243 = vmatprep.subr.mxu0 0.0
    %4244 = vmatpush1.xpose.msra.mxu0 0.0
    %4245 = vmatprep.subr.mxu0 0.0
    %4246 = vmatpush1.xpose.msra.mxu0 0.0
    %4247 = vmatprep.subr.mxu0 0.0
    %4248 = vmatpush1.xpose.msra.mxu0 0.0
    %4249 = vmatprep.subr.mxu0 0.0
    %4250 = vmatpush1.xpose.msra.mxu0 0.0
    %4251 = vmatprep.subr.mxu0 0.0
    %4252 = vmatpush1.xpose.msra.mxu0 0.0
    %4253 = vmatprep.subr.mxu0 0.0
    %4254 = vmatpush1.xpose.msra.mxu0 0.0
    %4255 = vmatprep.subr.mxu0 0.0
    %4256 = vmatpush1.xpose.msra.mxu0 0.0
    %4257 = vmatprep.subr.mxu0 0.0
    %4258 = vmatpush1.xpose.msra.mxu0 0.0
    %4259 = vmatprep.subr.mxu0 0.0
    %4260 = vmatpush1.xpose.msra.mxu0 0.0
    %4261 = vmatprep.subr.mxu0 0.0
    %4262 = vmatpush1.xpose.msra.mxu0 0.0
    %4263 = vmatprep.subr.mxu0 0.0
    %4264 = vmatpush1.xpose.msra.mxu0 0.0
    %4265 = vmatprep.subr.mxu0 0.0
    %4266 = vmatpush1.xpose.msra.mxu0 0.0
    %4267 = vmatprep.subr.mxu0 0.0
    %4268 = vmatpush1.xpose.msra.mxu0 0.0
    %4269 = vmatprep.subr.mxu0 0.0
    %4270 = vmatpush1.xpose.msra.mxu0 0.0
    %4271 = vmatprep.subr.mxu0 0.0
    %4272 = vmatpush1.xpose.msra.mxu0 0.0
    %4273 = vmatprep.subr.mxu0 0.0
    %4274 = vmatpush1.xpose.msra.mxu0 0.0
    %4275 = vmatprep.subr.mxu0 0.0
    %4276 = vmatpush1.xpose.msra.mxu0 0.0
    %4277 = vmatprep.subr.mxu0 0.0
    %4278 = vmatpush1.xpose.msra.mxu0 0.0
    %4279 = vmatprep.subr.mxu0 0.0
    %4280 = vmatpush1.xpose.msra.mxu0 0.0
    %4281 = vmatprep.mubr.f32.mxu0 0.0
    %4282 = vmatmul.mubr.f32.gmra.mrb[0].mxu0 %v4213
    %v4283 = vpop.f32.mrb[0].mxu0
    %v4284 = vadd.f32 0.0, %v4283
    %v4285 = vpop.f32.mrb[0].mxu0
    %4286 = vdwg.mxu0
    %v4287 = vmul.f32 %v4053, 0.35355338
    %v4288 = vmul.f32 %v4130, 0.35355338
    %v4289 = vmul.f32 %v4207, 0.35355338
    %v4290 = vmul.f32 %v4284, 0.35355338
    %4291 = vrot.lane.b32.xlu0 %v3961, 64
    %v4292 = vpop.permute.xlu0 %4291
    %v4295 = vsel %vm393, %v4287, 0
    %4297 = vmatprep.subr.mxu0 0.0
    %4298 = vmatpush1.msra.mxu0 %v4292
    %4299 = vmatprep.subr.mxu0 0.0
    %4300 = vmatpush1.msra.mxu0 0.0
    %4301 = vmatprep.subr.mxu0 0.0
    %4302 = vmatpush1.msra.mxu0 0.0
    %4303 = vmatprep.subr.mxu0 0.0
    %4304 = vmatpush1.msra.mxu0 0.0
    %4305 = vmatprep.subr.mxu0 0.0
    %4306 = vmatpush1.msra.mxu0 0.0
    %4307 = vmatprep.subr.mxu0 0.0
    %4308 = vmatpush1.msra.mxu0 0.0
    %4309 = vmatprep.subr.mxu0 0.0
    %4310 = vmatpush1.msra.mxu0 0.0
    %4311 = vmatprep.subr.mxu0 0.0
    %4312 = vmatpush1.msra.mxu0 0.0
    %4313 = vmatprep.subr.mxu0 0.0
    %4314 = vmatpush1.msra.mxu0 0.0
    %4315 = vmatprep.subr.mxu0 0.0
    %4316 = vmatpush1.msra.mxu0 0.0
    %4317 = vmatprep.subr.mxu0 0.0
    %4318 = vmatpush1.msra.mxu0 0.0
    %4319 = vmatprep.subr.mxu0 0.0
    %4320 = vmatpush1.msra.mxu0 0.0
    %4321 = vmatprep.subr.mxu0 0.0
    %4322 = vmatpush1.msra.mxu0 0.0
    %4323 = vmatprep.subr.mxu0 0.0
    %4324 = vmatpush1.msra.mxu0 0.0
    %4325 = vmatprep.subr.mxu0 0.0
    %4326 = vmatpush1.msra.mxu0 0.0
    %4327 = vmatprep.subr.mxu0 0.0
    %4328 = vmatpush1.msra.mxu0 0.0
    %4329 = vmatprep.subr.mxu0 0.0
    %4330 = vmatpush1.msra.mxu0 0.0
    %4331 = vmatprep.subr.mxu0 0.0
    %4332 = vmatpush1.msra.mxu0 0.0
    %4333 = vmatprep.subr.mxu0 0.0
    %4334 = vmatpush1.msra.mxu0 0.0
    %4335 = vmatprep.subr.mxu0 0.0
    %4336 = vmatpush1.msra.mxu0 0.0
    %4337 = vmatprep.subr.mxu0 0.0
    %4338 = vmatpush1.msra.mxu0 0.0
    %4339 = vmatprep.subr.mxu0 0.0
    %4340 = vmatpush1.msra.mxu0 0.0
    %4341 = vmatprep.subr.mxu0 0.0
    %4342 = vmatpush1.msra.mxu0 0.0
    %4343 = vmatprep.subr.mxu0 0.0
    %4344 = vmatpush1.msra.mxu0 0.0
    %4345 = vmatprep.subr.mxu0 0.0
    %4346 = vmatpush1.msra.mxu0 0.0
    %4347 = vmatprep.subr.mxu0 0.0
    %4348 = vmatpush1.msra.mxu0 0.0
    %4349 = vmatprep.subr.mxu0 0.0
    %4350 = vmatpush1.msra.mxu0 0.0
    %4351 = vmatprep.subr.mxu0 0.0
    %4352 = vmatpush1.msra.mxu0 0.0
    %4353 = vmatprep.subr.mxu0 0.0
    %4354 = vmatpush1.msra.mxu0 0.0
    %4355 = vmatprep.subr.mxu0 0.0
    %4356 = vmatpush1.msra.mxu0 0.0
    %4357 = vmatprep.subr.mxu0 0.0
    %4358 = vmatpush1.msra.mxu0 0.0
    %4359 = vmatprep.subr.mxu0 0.0
    %4360 = vmatpush1.msra.mxu0 0.0
    %4361 = vmatprep.mubr.f32.mxu0 0.0
    %4362 = vmatmul.mubr.f32.gmra.mrb[0].mxu0 %v4295
    %v4363 = vpop.f32.mrb[0].mxu0
    %v4364 = vadd.f32 0.0, %v4363
    %v4365 = vpop.f32.mrb[0].mxu0
    %4366 = vdwg.mxu0
    %4367 = vrot.lane.b32.xlu0 %v3966, 64
    %v4368 = vpop.permute.xlu0 %4367
    %v4371 = vsel %vm393, %v4288, 0
    %4373 = vmatprep.subr.mxu0 0.0
    %4374 = vmatpush1.msra.mxu0 %v4368
    %4375 = vmatprep.subr.mxu0 0.0
    %4376 = vmatpush1.msra.mxu0 0.0
    %4377 = vmatprep.subr.mxu0 0.0
    %4378 = vmatpush1.msra.mxu0 0.0
    %4379 = vmatprep.subr.mxu0 0.0
    %4380 = vmatpush1.msra.mxu0 0.0
    %4381 = vmatprep.subr.mxu0 0.0
    %4382 = vmatpush1.msra.mxu0 0.0
    %4383 = vmatprep.subr.mxu0 0.0
    %4384 = vmatpush1.msra.mxu0 0.0
    %4385 = vmatprep.subr.mxu0 0.0
    %4386 = vmatpush1.msra.mxu0 0.0
    %4387 = vmatprep.subr.mxu0 0.0
    %4388 = vmatpush1.msra.mxu0 0.0
    %4389 = vmatprep.subr.mxu0 0.0
    %4390 = vmatpush1.msra.mxu0 0.0
    %4391 = vmatprep.subr.mxu0 0.0
    %4392 = vmatpush1.msra.mxu0 0.0
    %4393 = vmatprep.subr.mxu0 0.0
    %4394 = vmatpush1.msra.mxu0 0.0
    %4395 = vmatprep.subr.mxu0 0.0
    %4396 = vmatpush1.msra.mxu0 0.0
    %4397 = vmatprep.subr.mxu0 0.0
    %4398 = vmatpush1.msra.mxu0 0.0
    %4399 = vmatprep.subr.mxu0 0.0
    %4400 = vmatpush1.msra.mxu0 0.0
    %4401 = vmatprep.subr.mxu0 0.0
    %4402 = vmatpush1.msra.mxu0 0.0
    %4403 = vmatprep.subr.mxu0 0.0
    %4404 = vmatpush1.msra.mxu0 0.0
    %4405 = vmatprep.subr.mxu0 0.0
    %4406 = vmatpush1.msra.mxu0 0.0
    %4407 = vmatprep.subr.mxu0 0.0
    %4408 = vmatpush1.msra.mxu0 0.0
    %4409 = vmatprep.subr.mxu0 0.0
    %4410 = vmatpush1.msra.mxu0 0.0
    %4411 = vmatprep.subr.mxu0 0.0
    %4412 = vmatpush1.msra.mxu0 0.0
    %4413 = vmatprep.subr.mxu0 0.0
    %4414 = vmatpush1.msra.mxu0 0.0
    %4415 = vmatprep.subr.mxu0 0.0
    %4416 = vmatpush1.msra.mxu0 0.0
    %4417 = vmatprep.subr.mxu0 0.0
    %4418 = vmatpush1.msra.mxu0 0.0
    %4419 = vmatprep.subr.mxu0 0.0
    %4420 = vmatpush1.msra.mxu0 0.0
    %4421 = vmatprep.subr.mxu0 0.0
    %4422 = vmatpush1.msra.mxu0 0.0
    %4423 = vmatprep.subr.mxu0 0.0
    %4424 = vmatpush1.msra.mxu0 0.0
    %4425 = vmatprep.subr.mxu0 0.0
    %4426 = vmatpush1.msra.mxu0 0.0
    %4427 = vmatprep.subr.mxu0 0.0
    %4428 = vmatpush1.msra.mxu0 0.0
    %4429 = vmatprep.subr.mxu0 0.0
    %4430 = vmatpush1.msra.mxu0 0.0
    %4431 = vmatprep.subr.mxu0 0.0
    %4432 = vmatpush1.msra.mxu0 0.0
    %4433 = vmatprep.subr.mxu0 0.0
    %4434 = vmatpush1.msra.mxu0 0.0
    %4435 = vmatprep.subr.mxu0 0.0
    %4436 = vmatpush1.msra.mxu0 0.0
    %4437 = vmatprep.mubr.f32.mxu0 0.0
    %4438 = vmatmul.mubr.f32.gmra.mrb[0].mxu0 %v4371
    %v4439 = vpop.f32.mrb[0].mxu0
    %v4440 = vadd.f32 0.0, %v4439
    %v4441 = vpop.f32.mrb[0].mxu0
    %4442 = vdwg.mxu0
    %4443 = vrot.lane.b32.xlu0 %v3971, 64
    %v4444 = vpop.permute.xlu0 %4443
    %v4447 = vsel %vm393, %v4289, 0
    %4449 = vmatprep.subr.mxu0 0.0
    %4450 = vmatpush1.msra.mxu0 %v4444
    %4451 = vmatprep.subr.mxu0 0.0
    %4452 = vmatpush1.msra.mxu0 0.0
    %4453 = vmatprep.subr.mxu0 0.0
    %4454 = vmatpush1.msra.mxu0 0.0
    %4455 = vmatprep.subr.mxu0 0.0
    %4456 = vmatpush1.msra.mxu0 0.0
    %4457 = vmatprep.subr.mxu0 0.0
    %4458 = vmatpush1.msra.mxu0 0.0
    %4459 = vmatprep.subr.mxu0 0.0
    %4460 = vmatpush1.msra.mxu0 0.0
    %4461 = vmatprep.subr.mxu0 0.0
    %4462 = vmatpush1.msra.mxu0 0.0
    %4463 = vmatprep.subr.mxu0 0.0
    %4464 = vmatpush1.msra.mxu0 0.0
    %4465 = vmatprep.subr.mxu0 0.0
    %4466 = vmatpush1.msra.mxu0 0.0
    %4467 = vmatprep.subr.mxu0 0.0
    %4468 = vmatpush1.msra.mxu0 0.0
    %4469 = vmatprep.subr.mxu0 0.0
    %4470 = vmatpush1.msra.mxu0 0.0
    %4471 = vmatprep.subr.mxu0 0.0
    %4472 = vmatpush1.msra.mxu0 0.0
    %4473 = vmatprep.subr.mxu0 0.0
    %4474 = vmatpush1.msra.mxu0 0.0
    %4475 = vmatprep.subr.mxu0 0.0
    %4476 = vmatpush1.msra.mxu0 0.0
    %4477 = vmatprep.subr.mxu0 0.0
    %4478 = vmatpush1.msra.mxu0 0.0
    %4479 = vmatprep.subr.mxu0 0.0
    %4480 = vmatpush1.msra.mxu0 0.0
    %4481 = vmatprep.subr.mxu0 0.0
    %4482 = vmatpush1.msra.mxu0 0.0
    %4483 = vmatprep.subr.mxu0 0.0
    %4484 = vmatpush1.msra.mxu0 0.0
    %4485 = vmatprep.subr.mxu0 0.0
    %4486 = vmatpush1.msra.mxu0 0.0
    %4487 = vmatprep.subr.mxu0 0.0
    %4488 = vmatpush1.msra.mxu0 0.0
    %4489 = vmatprep.subr.mxu0 0.0
    %4490 = vmatpush1.msra.mxu0 0.0
    %4491 = vmatprep.subr.mxu0 0.0
    %4492 = vmatpush1.msra.mxu0 0.0
    %4493 = vmatprep.subr.mxu0 0.0
    %4494 = vmatpush1.msra.mxu0 0.0
    %4495 = vmatprep.subr.mxu0 0.0
    %4496 = vmatpush1.msra.mxu0 0.0
    %4497 = vmatprep.subr.mxu0 0.0
    %4498 = vmatpush1.msra.mxu0 0.0
    %4499 = vmatprep.subr.mxu0 0.0
    %4500 = vmatpush1.msra.mxu0 0.0
    %4501 = vmatprep.subr.mxu0 0.0
    %4502 = vmatpush1.msra.mxu0 0.0
    %4503 = vmatprep.subr.mxu0 0.0
    %4504 = vmatpush1.msra.mxu0 0.0
    %4505 = vmatprep.subr.mxu0 0.0
    %4506 = vmatpush1.msra.mxu0 0.0
    %4507 = vmatprep.subr.mxu0 0.0
    %4508 = vmatpush1.msra.mxu0 0.0
    %4509 = vmatprep.subr.mxu0 0.0
    %4510 = vmatpush1.msra.mxu0 0.0
    %4511 = vmatprep.subr.mxu0 0.0
    %4512 = vmatpush1.msra.mxu0 0.0
    %4513 = vmatprep.mubr.f32.mxu0 0.0
    %4514 = vmatmul.mubr.f32.gmra.mrb[0].mxu0 %v4447
    %v4515 = vpop.f32.mrb[0].mxu0
    %v4516 = vadd.f32 0.0, %v4515
    %v4517 = vpop.f32.mrb[0].mxu0
    %4518 = vdwg.mxu0
    %4519 = vrot.lane.b32.xlu0 %v3976, 64
    %v4520 = vpop.permute.xlu0 %4519
    %v4523 = vsel %vm393, %v4290, 0
    %4525 = vmatprep.subr.mxu0 0.0
    %4526 = vmatpush1.msra.mxu0 %v4520
    %4527 = vmatprep.subr.mxu0 0.0
    %4528 = vmatpush1.msra.mxu0 0.0
    %4529 = vmatprep.subr.mxu0 0.0
    %4530 = vmatpush1.msra.mxu0 0.0
    %4531 = vmatprep.subr.mxu0 0.0
    %4532 = vmatpush1.msra.mxu0 0.0
    %4533 = vmatprep.subr.mxu0 0.0
    %4534 = vmatpush1.msra.mxu0 0.0
    %4535 = vmatprep.subr.mxu0 0.0
    %4536 = vmatpush1.msra.mxu0 0.0
    %4537 = vmatprep.subr.mxu0 0.0
    %4538 = vmatpush1.msra.mxu0 0.0
    %4539 = vmatprep.subr.mxu0 0.0
    %4540 = vmatpush1.msra.mxu0 0.0
    %4541 = vmatprep.subr.mxu0 0.0
    %4542 = vmatpush1.msra.mxu0 0.0
    %4543 = vmatprep.subr.mxu0 0.0
    %4544 = vmatpush1.msra.mxu0 0.0
    %4545 = vmatprep.subr.mxu0 0.0
    %4546 = vmatpush1.msra.mxu0 0.0
    %4547 = vmatprep.subr.mxu0 0.0
    %4548 = vmatpush1.msra.mxu0 0.0
    %4549 = vmatprep.subr.mxu0 0.0
    %4550 = vmatpush1.msra.mxu0 0.0
    %4551 = vmatprep.subr.mxu0 0.0
    %4552 = vmatpush1.msra.mxu0 0.0
    %4553 = vmatprep.subr.mxu0 0.0
    %4554 = vmatpush1.msra.mxu0 0.0
    %4555 = vmatprep.subr.mxu0 0.0
    %4556 = vmatpush1.msra.mxu0 0.0
    %4557 = vmatprep.subr.mxu0 0.0
    %4558 = vmatpush1.msra.mxu0 0.0
    %4559 = vmatprep.subr.mxu0 0.0
    %4560 = vmatpush1.msra.mxu0 0.0
    %4561 = vmatprep.subr.mxu0 0.0
    %4562 = vmatpush1.msra.mxu0 0.0
    %4563 = vmatprep.subr.mxu0 0.0
    %4564 = vmatpush1.msra.mxu0 0.0
    %4565 = vmatprep.subr.mxu0 0.0
    %4566 = vmatpush1.msra.mxu0 0.0
    %4567 = vmatprep.subr.mxu0 0.0
    %4568 = vmatpush1.msra.mxu0 0.0
    %4569 = vmatprep.subr.mxu0 0.0
    %4570 = vmatpush1.msra.mxu0 0.0
    %4571 = vmatprep.subr.mxu0 0.0
    %4572 = vmatpush1.msra.mxu0 0.0
    %4573 = vmatprep.subr.mxu0 0.0
    %4574 = vmatpush1.msra.mxu0 0.0
    %4575 = vmatprep.subr.mxu0 0.0
    %4576 = vmatpush1.msra.mxu0 0.0
    %4577 = vmatprep.subr.mxu0 0.0
    %4578 = vmatpush1.msra.mxu0 0.0
    %4579 = vmatprep.subr.mxu0 0.0
    %4580 = vmatpush1.msra.mxu0 0.0
    %4581 = vmatprep.subr.mxu0 0.0
    %4582 = vmatpush1.msra.mxu0 0.0
    %4583 = vmatprep.subr.mxu0 0.0
    %4584 = vmatpush1.msra.mxu0 0.0
    %4585 = vmatprep.subr.mxu0 0.0
    %4586 = vmatpush1.msra.mxu0 0.0
    %4587 = vmatprep.subr.mxu0 0.0
    %4588 = vmatpush1.msra.mxu0 0.0
    %4589 = vmatprep.mubr.f32.mxu0 0.0
    %4590 = vmatmul.mubr.f32.gmra.mrb[0].mxu0 %v4523
    %v4591 = vpop.f32.mrb[0].mxu0
    %v4592 = vadd.f32 0.0, %v4591
    %v4593 = vpop.f32.mrb[0].mxu0
    %4594 = vdwg.mxu0
    %v4595 = vsel %vm393, %v4364, -inf
    %v4596 = vsel %vm393, %v4440, -inf
    %v4597 = vsel %vm393, %v4516, -inf
    %v4598 = vsel %vm393, %v4592, -inf
    %v4599 = vmax.f32 %v4595, %v4596
    %v4600 = vmax.f32 %v4597, %v4598
    %v4601 = vmax.f32 %v4599, %v4600
    %v4602 = vsub.f32 %v4364, %v4601
    %v4603 = vsub.f32 %v4440, %v4601
    %v4604 = vsub.f32 %v4516, %v4601
    %v4605 = vsub.f32 %v4592, %v4601
    %v4606 = vmul.f32 %v4602, 1.442695
    %v4607 = vpow.pop %v4606
    %v4608 = vmul.f32 %v4603, 1.442695
    %v4609 = vpow.pop %v4608
    %v4610 = vmul.f32 %v4604, 1.442695
    %v4611 = vpow.pop %v4610
    %v4612 = vmul.f32 %v4605, 1.442695
    %v4613 = vpow.pop %v4612
    %v4614 = vsel %vm393, %v4607, 0.0
    %v4615 = vsel %vm393, %v4609, 0.0
    %v4616 = vadd.f32 %v4614, %v4615
    %v4617 = vsel %vm393, %v4611, 0.0
    %v4618 = vadd.f32 %v4616, %v4617
    %v4619 = vsel %vm393, %v4613, 0.0
    %v4620 = vadd.f32 %v4618, %v4619
    %v4621 = vrcp.pop %v4620
    %v4622 = vmul.f32 %v4607, %v4621
    %v4623 = vmul.f32 %v4609, %v4621
    %v4624 = vmul.f32 %v4611, %v4621
    %v4625 = vmul.f32 %v4613, %v4621
    %s4626 = scalar_lea.vmem [#allocation8], 32
    %v4627 = vld [vmem:[%s4626] sm:$0xff]
    %4628 = vrot.lane.b32.xlu0 %v3961, 120
    %v4629 = vpop.permute.xlu0 %4628
    %4630 = vrot.lane.b32.xlu0 %v3961, 88
    %v4631 = vpop.permute.xlu0 %4630
    %v4632 = vsel %vm393, %v4629, 0
    %v4634 = vsel %vm393, %v4631, 0
    %4636 = vmatprep.subr.mxu0 0.0
    %4637 = vmatpush1.xpose.msra.mxu0 %v4634
    %4638 = vmatprep.subr.mxu0 0.0
    %4639 = vmatpush1.xpose.msra.mxu0 0.0
    %4640 = vmatprep.subr.mxu0 0.0
    %4641 = vmatpush1.xpose.msra.mxu0 0.0
    %4642 = vmatprep.subr.mxu0 0.0
    %4643 = vmatpush1.xpose.msra.mxu0 0.0
    %4644 = vmatprep.subr.mxu0 0.0
    %4645 = vmatpush1.xpose.msra.mxu0 0.0
    %4646 = vmatprep.subr.mxu0 0.0
    %4647 = vmatpush1.xpose.msra.mxu0 0.0
    %4648 = vmatprep.subr.mxu0 0.0
    %4649 = vmatpush1.xpose.msra.mxu0 0.0
    %4650 = vmatprep.subr.mxu0 0.0
    %4651 = vmatpush1.xpose.msra.mxu0 0.0
    %4652 = vmatprep.subr.mxu0 0.0
    %4653 = vmatpush1.xpose.msra.mxu0 0.0
    %4654 = vmatprep.subr.mxu0 0.0
    %4655 = vmatpush1.xpose.msra.mxu0 0.0
    %4656 = vmatprep.subr.mxu0 0.0
    %4657 = vmatpush1.xpose.msra.mxu0 0.0
    %4658 = vmatprep.subr.mxu0 0.0
    %4659 = vmatpush1.xpose.msra.mxu0 0.0
    %4660 = vmatprep.subr.mxu0 0.0
    %4661 = vmatpush1.xpose.msra.mxu0 0.0
    %4662 = vmatprep.subr.mxu0 0.0
    %4663 = vmatpush1.xpose.msra.mxu0 0.0
    %4664 = vmatprep.subr.mxu0 0.0
    %4665 = vmatpush1.xpose.msra.mxu0 0.0
    %4666 = vmatprep.subr.mxu0 0.0
    %4667 = vmatpush1.xpose.msra.mxu0 0.0
    %4668 = vmatprep.subr.mxu0 0.0
    %4669 = vmatpush1.xpose.msra.mxu0 0.0
    %4670 = vmatprep.subr.mxu0 0.0
    %4671 = vmatpush1.xpose.msra.mxu0 0.0
    %4672 = vmatprep.subr.mxu0 0.0
    %4673 = vmatpush1.xpose.msra.mxu0 0.0
    %4674 = vmatprep.subr.mxu0 0.0
    %4675 = vmatpush1.xpose.msra.mxu0 0.0
    %4676 = vmatprep.subr.mxu0 0.0
    %4677 = vmatpush1.xpose.msra.mxu0 0.0
    %4678 = vmatprep.subr.mxu0 0.0
    %4679 = vmatpush1.xpose.msra.mxu0 0.0
    %4680 = vmatprep.subr.mxu0 0.0
    %4681 = vmatpush1.xpose.msra.mxu0 0.0
    %4682 = vmatprep.subr.mxu0 0.0
    %4683 = vmatpush1.xpose.msra.mxu0 0.0
    %4684 = vmatprep.subr.mxu0 0.0
    %4685 = vmatpush1.xpose.msra.mxu0 0.0
    %4686 = vmatprep.subr.mxu0 0.0
    %4687 = vmatpush1.xpose.msra.mxu0 0.0
    %4688 = vmatprep.subr.mxu0 0.0
    %4689 = vmatpush1.xpose.msra.mxu0 0.0
    %4690 = vmatprep.subr.mxu0 0.0
    %4691 = vmatpush1.xpose.msra.mxu0 0.0
    %4692 = vmatprep.subr.mxu0 0.0
    %4693 = vmatpush1.xpose.msra.mxu0 0.0
    %4694 = vmatprep.subr.mxu0 0.0
    %4695 = vmatpush1.xpose.msra.mxu0 0.0
    %4696 = vmatprep.subr.mxu0 0.0
    %4697 = vmatpush1.xpose.msra.mxu0 0.0
    %4698 = vmatprep.subr.mxu0 0.0
    %4699 = vmatpush1.xpose.msra.mxu0 0.0
    %4700 = vmatprep.mubr.f32.mxu0 0.0
    %4701 = vmatmul.mubr.f32.gmra.mrb[0].mxu0 %v4632
    %v4702 = vpop.f32.mrb[0].mxu0
    %v4703 = vadd.f32 0.0, %v4702
    %v4704 = vpop.f32.mrb[0].mxu0
    %4705 = vdwg.mxu0
    %4706 = vrot.lane.b32.xlu0 %v3966, 120
    %v4707 = vpop.permute.xlu0 %4706
    %4708 = vrot.lane.b32.xlu0 %v3966, 88
    %v4709 = vpop.permute.xlu0 %4708
    %v4710 = vsel %vm393, %v4707, 0
    %v4712 = vsel %vm393, %v4709, 0
    %4714 = vmatprep.subr.mxu0 0.0
    %4715 = vmatpush1.xpose.msra.mxu0 %v4712
    %4716 = vmatprep.subr.mxu0 0.0
    %4717 = vmatpush1.xpose.msra.mxu0 0.0
    %4718 = vmatprep.subr.mxu0 0.0
    %4719 = vmatpush1.xpose.msra.mxu0 0.0
    %4720 = vmatprep.subr.mxu0 0.0
    %4721 = vmatpush1.xpose.msra.mxu0 0.0
    %4722 = vmatprep.subr.mxu0 0.0
    %4723 = vmatpush1.xpose.msra.mxu0 0.0
    %4724 = vmatprep.subr.mxu0 0.0
    %4725 = vmatpush1.xpose.msra.mxu0 0.0
    %4726 = vmatprep.subr.mxu0 0.0
    %4727 = vmatpush1.xpose.msra.mxu0 0.0
    %4728 = vmatprep.subr.mxu0 0.0
    %4729 = vmatpush1.xpose.msra.mxu0 0.0
    %4730 = vmatprep.subr.mxu0 0.0
    %4731 = vmatpush1.xpose.msra.mxu0 0.0
    %4732 = vmatprep.subr.mxu0 0.0
    %4733 = vmatpush1.xpose.msra.mxu0 0.0
    %4734 = vmatprep.subr.mxu0 0.0
    %4735 = vmatpush1.xpose.msra.mxu0 0.0
    %4736 = vmatprep.subr.mxu0 0.0
    %4737 = vmatpush1.xpose.msra.mxu0 0.0
    %4738 = vmatprep.subr.mxu0 0.0
    %4739 = vmatpush1.xpose.msra.mxu0 0.0
    %4740 = vmatprep.subr.mxu0 0.0
    %4741 = vmatpush1.xpose.msra.mxu0 0.0
    %4742 = vmatprep.subr.mxu0 0.0
    %4743 = vmatpush1.xpose.msra.mxu0 0.0
    %4744 = vmatprep.subr.mxu0 0.0
    %4745 = vmatpush1.xpose.msra.mxu0 0.0
    %4746 = vmatprep.subr.mxu0 0.0
    %4747 = vmatpush1.xpose.msra.mxu0 0.0
    %4748 = vmatprep.subr.mxu0 0.0
    %4749 = vmatpush1.xpose.msra.mxu0 0.0
    %4750 = vmatprep.subr.mxu0 0.0
    %4751 = vmatpush1.xpose.msra.mxu0 0.0
    %4752 = vmatprep.subr.mxu0 0.0
    %4753 = vmatpush1.xpose.msra.mxu0 0.0
    %4754 = vmatprep.subr.mxu0 0.0
    %4755 = vmatpush1.xpose.msra.mxu0 0.0
    %4756 = vmatprep.subr.mxu0 0.0
    %4757 = vmatpush1.xpose.msra.mxu0 0.0
    %4758 = vmatprep.subr.mxu0 0.0
    %4759 = vmatpush1.xpose.msra.mxu0 0.0
    %4760 = vmatprep.subr.mxu0 0.0
    %4761 = vmatpush1.xpose.msra.mxu0 0.0
    %4762 = vmatprep.subr.mxu0 0.0
    %4763 = vmatpush1.xpose.msra.mxu0 0.0
    %4764 = vmatprep.subr.mxu0 0.0
    %4765 = vmatpush1.xpose.msra.mxu0 0.0
    %4766 = vmatprep.subr.mxu0 0.0
    %4767 = vmatpush1.xpose.msra.mxu0 0.0
    %4768 = vmatprep.subr.mxu0 0.0
    %4769 = vmatpush1.xpose.msra.mxu0 0.0
    %4770 = vmatprep.subr.mxu0 0.0
    %4771 = vmatpush1.xpose.msra.mxu0 0.0
    %4772 = vmatprep.subr.mxu0 0.0
    %4773 = vmatpush1.xpose.msra.mxu0 0.0
    %4774 = vmatprep.subr.mxu0 0.0
    %4775 = vmatpush1.xpose.msra.mxu0 0.0
    %4776 = vmatprep.subr.mxu0 0.0
    %4777 = vmatpush1.xpose.msra.mxu0 0.0
    %4778 = vmatprep.mubr.f32.mxu0 0.0
    %4779 = vmatmul.mubr.f32.gmra.mrb[0].mxu0 %v4710
    %v4780 = vpop.f32.mrb[0].mxu0
    %v4781 = vadd.f32 0.0, %v4780
    %v4782 = vpop.f32.mrb[0].mxu0
    %4783 = vdwg.mxu0
    %4784 = vrot.lane.b32.xlu0 %v3971, 120
    %v4785 = vpop.permute.xlu0 %4784
    %4786 = vrot.lane.b32.xlu0 %v3971, 88
    %v4787 = vpop.permute.xlu0 %4786
    %v4788 = vsel %vm393, %v4785, 0
    %v4790 = vsel %vm393, %v4787, 0
    %4792 = vmatprep.subr.mxu0 0.0
    %4793 = vmatpush1.xpose.msra.mxu0 %v4790
    %4794 = vmatprep.subr.mxu0 0.0
    %4795 = vmatpush1.xpose.msra.mxu0 0.0
    %4796 = vmatprep.subr.mxu0 0.0
    %4797 = vmatpush1.xpose.msra.mxu0 0.0
    %4798 = vmatprep.subr.mxu0 0.0
    %4799 = vmatpush1.xpose.msra.mxu0 0.0
    %4800 = vmatprep.subr.mxu0 0.0
    %4801 = vmatpush1.xpose.msra.mxu0 0.0
    %4802 = vmatprep.subr.mxu0 0.0
    %4803 = vmatpush1.xpose.msra.mxu0 0.0
    %4804 = vmatprep.subr.mxu0 0.0
    %4805 = vmatpush1.xpose.msra.mxu0 0.0
    %4806 = vmatprep.subr.mxu0 0.0
    %4807 = vmatpush1.xpose.msra.mxu0 0.0
    %4808 = vmatprep.subr.mxu0 0.0
    %4809 = vmatpush1.xpose.msra.mxu0 0.0
    %4810 = vmatprep.subr.mxu0 0.0
    %4811 = vmatpush1.xpose.msra.mxu0 0.0
    %4812 = vmatprep.subr.mxu0 0.0
    %4813 = vmatpush1.xpose.msra.mxu0 0.0
    %4814 = vmatprep.subr.mxu0 0.0
    %4815 = vmatpush1.xpose.msra.mxu0 0.0
    %4816 = vmatprep.subr.mxu0 0.0
    %4817 = vmatpush1.xpose.msra.mxu0 0.0
    %4818 = vmatprep.subr.mxu0 0.0
    %4819 = vmatpush1.xpose.msra.mxu0 0.0
    %4820 = vmatprep.subr.mxu0 0.0
    %4821 = vmatpush1.xpose.msra.mxu0 0.0
    %4822 = vmatprep.subr.mxu0 0.0
    %4823 = vmatpush1.xpose.msra.mxu0 0.0
    %4824 = vmatprep.subr.mxu0 0.0
    %4825 = vmatpush1.xpose.msra.mxu0 0.0
    %4826 = vmatprep.subr.mxu0 0.0
    %4827 = vmatpush1.xpose.msra.mxu0 0.0
    %4828 = vmatprep.subr.mxu0 0.0
    %4829 = vmatpush1.xpose.msra.mxu0 0.0
    %4830 = vmatprep.subr.mxu0 0.0
    %4831 = vmatpush1.xpose.msra.mxu0 0.0
    %4832 = vmatprep.subr.mxu0 0.0
    %4833 = vmatpush1.xpose.msra.mxu0 0.0
    %4834 = vmatprep.subr.mxu0 0.0
    %4835 = vmatpush1.xpose.msra.mxu0 0.0
    %4836 = vmatprep.subr.mxu0 0.0
    %4837 = vmatpush1.xpose.msra.mxu0 0.0
    %4838 = vmatprep.subr.mxu0 0.0
    %4839 = vmatpush1.xpose.msra.mxu0 0.0
    %4840 = vmatprep.subr.mxu0 0.0
    %4841 = vmatpush1.xpose.msra.mxu0 0.0
    %4842 = vmatprep.subr.mxu0 0.0
    %4843 = vmatpush1.xpose.msra.mxu0 0.0
    %4844 = vmatprep.subr.mxu0 0.0
    %4845 = vmatpush1.xpose.msra.mxu0 0.0
    %4846 = vmatprep.subr.mxu0 0.0
    %4847 = vmatpush1.xpose.msra.mxu0 0.0
    %4848 = vmatprep.subr.mxu0 0.0
    %4849 = vmatpush1.xpose.msra.mxu0 0.0
    %4850 = vmatprep.subr.mxu0 0.0
    %4851 = vmatpush1.xpose.msra.mxu0 0.0
    %4852 = vmatprep.subr.mxu0 0.0
    %4853 = vmatpush1.xpose.msra.mxu0 0.0
    %4854 = vmatprep.subr.mxu0 0.0
    %4855 = vmatpush1.xpose.msra.mxu0 0.0
    %4856 = vmatprep.mubr.f32.mxu0 0.0
    %4857 = vmatmul.mubr.f32.gmra.mrb[0].mxu0 %v4788
    %v4858 = vpop.f32.mrb[0].mxu0
    %v4859 = vadd.f32 0.0, %v4858
    %v4860 = vpop.f32.mrb[0].mxu0
    %4861 = vdwg.mxu0
    %4862 = vrot.lane.b32.xlu0 %v3976, 120
    %v4863 = vpop.permute.xlu0 %4862
    %4864 = vrot.lane.b32.xlu0 %v3976, 88
    %v4865 = vpop.permute.xlu0 %4864
    %v4866 = vsel %vm393, %v4863, 0
    %v4868 = vsel %vm393, %v4865, 0
    %4870 = vmatprep.subr.mxu0 0.0
    %4871 = vmatpush1.xpose.msra.mxu0 %v4868
    %4872 = vmatprep.subr.mxu0 0.0
    %4873 = vmatpush1.xpose.msra.mxu0 0.0
    %4874 = vmatprep.subr.mxu0 0.0
    %4875 = vmatpush1.xpose.msra.mxu0 0.0
    %4876 = vmatprep.subr.mxu0 0.0
    %4877 = vmatpush1.xpose.msra.mxu0 0.0
    %4878 = vmatprep.subr.mxu0 0.0
    %4879 = vmatpush1.xpose.msra.mxu0 0.0
    %4880 = vmatprep.subr.mxu0 0.0
    %4881 = vmatpush1.xpose.msra.mxu0 0.0
    %4882 = vmatprep.subr.mxu0 0.0
    %4883 = vmatpush1.xpose.msra.mxu0 0.0
    %4884 = vmatprep.subr.mxu0 0.0
    %4885 = vmatpush1.xpose.msra.mxu0 0.0
    %4886 = vmatprep.subr.mxu0 0.0
    %4887 = vmatpush1.xpose.msra.mxu0 0.0
    %4888 = vmatprep.subr.mxu0 0.0
    %4889 = vmatpush1.xpose.msra.mxu0 0.0
    %4890 = vmatprep.subr.mxu0 0.0
    %4891 = vmatpush1.xpose.msra.mxu0 0.0
    %4892 = vmatprep.subr.mxu0 0.0
    %4893 = vmatpush1.xpose.msra.mxu0 0.0
    %4894 = vmatprep.subr.mxu0 0.0
    %4895 = vmatpush1.xpose.msra.mxu0 0.0
    %4896 = vmatprep.subr.mxu0 0.0
    %4897 = vmatpush1.xpose.msra.mxu0 0.0
    %4898 = vmatprep.subr.mxu0 0.0
    %4899 = vmatpush1.xpose.msra.mxu0 0.0
    %4900 = vmatprep.subr.mxu0 0.0
    %4901 = vmatpush1.xpose.msra.mxu0 0.0
    %4902 = vmatprep.subr.mxu0 0.0
    %4903 = vmatpush1.xpose.msra.mxu0 0.0
    %4904 = vmatprep.subr.mxu0 0.0
    %4905 = vmatpush1.xpose.msra.mxu0 0.0
    %4906 = vmatprep.subr.mxu0 0.0
    %4907 = vmatpush1.xpose.msra.mxu0 0.0
    %4908 = vmatprep.subr.mxu0 0.0
    %4909 = vmatpush1.xpose.msra.mxu0 0.0
    %4910 = vmatprep.subr.mxu0 0.0
    %4911 = vmatpush1.xpose.msra.mxu0 0.0
    %4912 = vmatprep.subr.mxu0 0.0
    %4913 = vmatpush1.xpose.msra.mxu0 0.0
    %4914 = vmatprep.subr.mxu0 0.0
    %4915 = vmatpush1.xpose.msra.mxu0 0.0
    %4916 = vmatprep.subr.mxu0 0.0
    %4917 = vmatpush1.xpose.msra.mxu0 0.0
    %4918 = vmatprep.subr.mxu0 0.0
    %4919 = vmatpush1.xpose.msra.mxu0 0.0
    %4920 = vmatprep.subr.mxu0 0.0
    %4921 = vmatpush1.xpose.msra.mxu0 0.0
    %4922 = vmatprep.subr.mxu0 0.0
    %4923 = vmatpush1.xpose.msra.mxu0 0.0
    %4924 = vmatprep.subr.mxu0 0.0
    %4925 = vmatpush1.xpose.msra.mxu0 0.0
    %4926 = vmatprep.subr.mxu0 0.0
    %4927 = vmatpush1.xpose.msra.mxu0 0.0
    %4928 = vmatprep.subr.mxu0 0.0
    %4929 = vmatpush1.xpose.msra.mxu0 0.0
    %4930 = vmatprep.subr.mxu0 0.0
    %4931 = vmatpush1.xpose.msra.mxu0 0.0
    %4932 = vmatprep.subr.mxu0 0.0
    %4933 = vmatpush1.xpose.msra.mxu0 0.0
    %4934 = vmatprep.mubr.f32.mxu0 0.0
    %4935 = vmatmul.mubr.f32.gmra.mrb[0].mxu0 %v4866
    %v4936 = vpop.f32.mrb[0].mxu0
    %v4937 = vadd.f32 0.0, %v4936
    %v4938 = vpop.f32.mrb[0].mxu0
    %4939 = vdwg.mxu0
    %v4940 = vmul.f32 %v4703, 0.35355338
    %v4941 = vmul.f32 %v4781, 0.35355338
    %v4942 = vmul.f32 %v4859, 0.35355338
    %v4943 = vmul.f32 %v4937, 0.35355338
    %4944 = vrot.lane.b32.xlu0 %v3961, 56
    %v4945 = vpop.permute.xlu0 %4944
    %v4948 = vsel %vm393, %v4940, 0
    %4950 = vmatprep.subr.mxu0 0.0
    %4951 = vmatpush1.msra.mxu0 %v4945
    %4952 = vmatprep.subr.mxu0 0.0
    %4953 = vmatpush1.msra.mxu0 0.0
    %4954 = vmatprep.subr.mxu0 0.0
    %4955 = vmatpush1.msra.mxu0 0.0
    %4956 = vmatprep.subr.mxu0 0.0
    %4957 = vmatpush1.msra.mxu0 0.0
    %4958 = vmatprep.subr.mxu0 0.0
    %4959 = vmatpush1.msra.mxu0 0.0
    %4960 = vmatprep.subr.mxu0 0.0
    %4961 = vmatpush1.msra.mxu0 0.0
    %4962 = vmatprep.subr.mxu0 0.0
    %4963 = vmatpush1.msra.mxu0 0.0
    %4964 = vmatprep.subr.mxu0 0.0
    %4965 = vmatpush1.msra.mxu0 0.0
    %4966 = vmatprep.subr.mxu0 0.0
    %4967 = vmatpush1.msra.mxu0 0.0
    %4968 = vmatprep.subr.mxu0 0.0
    %4969 = vmatpush1.msra.mxu0 0.0
    %4970 = vmatprep.subr.mxu0 0.0
    %4971 = vmatpush1.msra.mxu0 0.0
    %4972 = vmatprep.subr.mxu0 0.0
    %4973 = vmatpush1.msra.mxu0 0.0
    %4974 = vmatprep.subr.mxu0 0.0
    %4975 = vmatpush1.msra.mxu0 0.0
    %4976 = vmatprep.subr.mxu0 0.0
    %4977 = vmatpush1.msra.mxu0 0.0
    %4978 = vmatprep.subr.mxu0 0.0
    %4979 = vmatpush1.msra.mxu0 0.0
    %4980 = vmatprep.subr.mxu0 0.0
    %4981 = vmatpush1.msra.mxu0 0.0
    %4982 = vmatprep.subr.mxu0 0.0
    %4983 = vmatpush1.msra.mxu0 0.0
    %4984 = vmatprep.subr.mxu0 0.0
    %4985 = vmatpush1.msra.mxu0 0.0
    %4986 = vmatprep.subr.mxu0 0.0
    %4987 = vmatpush1.msra.mxu0 0.0
    %4988 = vmatprep.subr.mxu0 0.0
    %4989 = vmatpush1.msra.mxu0 0.0
    %4990 = vmatprep.subr.mxu0 0.0
    %4991 = vmatpush1.msra.mxu0 0.0
    %4992 = vmatprep.subr.mxu0 0.0
    %4993 = vmatpush1.msra.mxu0 0.0
    %4994 = vmatprep.subr.mxu0 0.0
    %4995 = vmatpush1.msra.mxu0 0.0
    %4996 = vmatprep.subr.mxu0 0.0
    %4997 = vmatpush1.msra.mxu0 0.0
    %4998 = vmatprep.subr.mxu0 0.0
    %4999 = vmatpush1.msra.mxu0 0.0
    %5000 = vmatprep.subr.mxu0 0.0
    %5001 = vmatpush1.msra.mxu0 0.0
    %5002 = vmatprep.subr.mxu0 0.0
    %5003 = vmatpush1.msra.mxu0 0.0
    %5004 = vmatprep.subr.mxu0 0.0
    %5005 = vmatpush1.msra.mxu0 0.0
    %5006 = vmatprep.subr.mxu0 0.0
    %5007 = vmatpush1.msra.mxu0 0.0
    %5008 = vmatprep.subr.mxu0 0.0
    %5009 = vmatpush1.msra.mxu0 0.0
    %5010 = vmatprep.subr.mxu0 0.0
    %5011 = vmatpush1.msra.mxu0 0.0
    %5012 = vmatprep.subr.mxu0 0.0
    %5013 = vmatpush1.msra.mxu0 0.0
    %5014 = vmatprep.mubr.f32.mxu0 0.0
    %5015 = vmatmul.mubr.f32.gmra.mrb[0].mxu0 %v4948
    %v5016 = vpop.f32.mrb[0].mxu0
    %v5017 = vadd.f32 0.0, %v5016
    %v5018 = vpop.f32.mrb[0].mxu0
    %5019 = vdwg.mxu0
    %5020 = vrot.lane.b32.xlu0 %v3966, 56
    %v5021 = vpop.permute.xlu0 %5020
    %v5024 = vsel %vm393, %v4941, 0
    %5026 = vmatprep.subr.mxu0 0.0
    %5027 = vmatpush1.msra.mxu0 %v5021
    %5028 = vmatprep.subr.mxu0 0.0
    %5029 = vmatpush1.msra.mxu0 0.0
    %5030 = vmatprep.subr.mxu0 0.0
    %5031 = vmatpush1.msra.mxu0 0.0
    %5032 = vmatprep.subr.mxu0 0.0
    %5033 = vmatpush1.msra.mxu0 0.0
    %5034 = vmatprep.subr.mxu0 0.0
    %5035 = vmatpush1.msra.mxu0 0.0
    %5036 = vmatprep.subr.mxu0 0.0
    %5037 = vmatpush1.msra.mxu0 0.0
    %5038 = vmatprep.subr.mxu0 0.0
    %5039 = vmatpush1.msra.mxu0 0.0
    %5040 = vmatprep.subr.mxu0 0.0
    %5041 = vmatpush1.msra.mxu0 0.0
    %5042 = vmatprep.subr.mxu0 0.0
    %5043 = vmatpush1.msra.mxu0 0.0
    %5044 = vmatprep.subr.mxu0 0.0
    %5045 = vmatpush1.msra.mxu0 0.0
    %5046 = vmatprep.subr.mxu0 0.0
    %5047 = vmatpush1.msra.mxu0 0.0
    %5048 = vmatprep.subr.mxu0 0.0
    %5049 = vmatpush1.msra.mxu0 0.0
    %5050 = vmatprep.subr.mxu0 0.0
    %5051 = vmatpush1.msra.mxu0 0.0
    %5052 = vmatprep.subr.mxu0 0.0
    %5053 = vmatpush1.msra.mxu0 0.0
    %5054 = vmatprep.subr.mxu0 0.0
    %5055 = vmatpush1.msra.mxu0 0.0
    %5056 = vmatprep.subr.mxu0 0.0
    %5057 = vmatpush1.msra.mxu0 0.0
    %5058 = vmatprep.subr.mxu0 0.0
    %5059 = vmatpush1.msra.mxu0 0.0
    %5060 = vmatprep.subr.mxu0 0.0
    %5061 = vmatpush1.msra.mxu0 0.0
    %5062 = vmatprep.subr.mxu0 0.0
    %5063 = vmatpush1.msra.mxu0 0.0
    %5064 = vmatprep.subr.mxu0 0.0
    %5065 = vmatpush1.msra.mxu0 0.0
    %5066 = vmatprep.subr.mxu0 0.0
    %5067 = vmatpush1.msra.mxu0 0.0
    %5068 = vmatprep.subr.mxu0 0.0
    %5069 = vmatpush1.msra.mxu0 0.0
    %5070 = vmatprep.subr.mxu0 0.0
    %5071 = vmatpush1.msra.mxu0 0.0
    %5072 = vmatprep.subr.mxu0 0.0
    %5073 = vmatpush1.msra.mxu0 0.0
    %5074 = vmatprep.subr.mxu0 0.0
    %5075 = vmatpush1.msra.mxu0 0.0
    %5076 = vmatprep.subr.mxu0 0.0
    %5077 = vmatpush1.msra.mxu0 0.0
    %5078 = vmatprep.subr.mxu0 0.0
    %5079 = vmatpush1.msra.mxu0 0.0
    %5080 = vmatprep.subr.mxu0 0.0
    %5081 = vmatpush1.msra.mxu0 0.0
    %5082 = vmatprep.subr.mxu0 0.0
    %5083 = vmatpush1.msra.mxu0 0.0
    %5084 = vmatprep.subr.mxu0 0.0
    %5085 = vmatpush1.msra.mxu0 0.0
    %5086 = vmatprep.subr.mxu0 0.0
    %5087 = vmatpush1.msra.mxu0 0.0
    %5088 = vmatprep.subr.mxu0 0.0
    %5089 = vmatpush1.msra.mxu0 0.0
    %5090 = vmatprep.mubr.f32.mxu0 0.0
    %5091 = vmatmul.mubr.f32.gmra.mrb[0].mxu0 %v5024
    %v5092 = vpop.f32.mrb[0].mxu0
    %v5093 = vadd.f32 0.0, %v5092
    %v5094 = vpop.f32.mrb[0].mxu0
    %5095 = vdwg.mxu0
    %5096 = vrot.lane.b32.xlu0 %v3971, 56
    %v5097 = vpop.permute.xlu0 %5096
    %v5100 = vsel %vm393, %v4942, 0
    %5102 = vmatprep.subr.mxu0 0.0
    %5103 = vmatpush1.msra.mxu0 %v5097
    %5104 = vmatprep.subr.mxu0 0.0
    %5105 = vmatpush1.msra.mxu0 0.0
    %5106 = vmatprep.subr.mxu0 0.0
    %5107 = vmatpush1.msra.mxu0 0.0
    %5108 = vmatprep.subr.mxu0 0.0
    %5109 = vmatpush1.msra.mxu0 0.0
    %5110 = vmatprep.subr.mxu0 0.0
    %5111 = vmatpush1.msra.mxu0 0.0
    %5112 = vmatprep.subr.mxu0 0.0
    %5113 = vmatpush1.msra.mxu0 0.0
    %5114 = vmatprep.subr.mxu0 0.0
    %5115 = vmatpush1.msra.mxu0 0.0
    %5116 = vmatprep.subr.mxu0 0.0
    %5117 = vmatpush1.msra.mxu0 0.0
    %5118 = vmatprep.subr.mxu0 0.0
    %5119 = vmatpush1.msra.mxu0 0.0
    %5120 = vmatprep.subr.mxu0 0.0
    %5121 = vmatpush1.msra.mxu0 0.0
    %5122 = vmatprep.subr.mxu0 0.0
    %5123 = vmatpush1.msra.mxu0 0.0
    %5124 = vmatprep.subr.mxu0 0.0
    %5125 = vmatpush1.msra.mxu0 0.0
    %5126 = vmatprep.subr.mxu0 0.0
    %5127 = vmatpush1.msra.mxu0 0.0
    %5128 = vmatprep.subr.mxu0 0.0
    %5129 = vmatpush1.msra.mxu0 0.0
    %5130 = vmatprep.subr.mxu0 0.0
    %5131 = vmatpush1.msra.mxu0 0.0
    %5132 = vmatprep.subr.mxu0 0.0
    %5133 = vmatpush1.msra.mxu0 0.0
    %5134 = vmatprep.subr.mxu0 0.0
    %5135 = vmatpush1.msra.mxu0 0.0
    %5136 = vmatprep.subr.mxu0 0.0
    %5137 = vmatpush1.msra.mxu0 0.0
    %5138 = vmatprep.subr.mxu0 0.0
    %5139 = vmatpush1.msra.mxu0 0.0
    %5140 = vmatprep.subr.mxu0 0.0
    %5141 = vmatpush1.msra.mxu0 0.0
    %5142 = vmatprep.subr.mxu0 0.0
    %5143 = vmatpush1.msra.mxu0 0.0
    %5144 = vmatprep.subr.mxu0 0.0
    %5145 = vmatpush1.msra.mxu0 0.0
    %5146 = vmatprep.subr.mxu0 0.0
    %5147 = vmatpush1.msra.mxu0 0.0
    %5148 = vmatprep.subr.mxu0 0.0
    %5149 = vmatpush1.msra.mxu0 0.0
    %5150 = vmatprep.subr.mxu0 0.0
    %5151 = vmatpush1.msra.mxu0 0.0
    %5152 = vmatprep.subr.mxu0 0.0
    %5153 = vmatpush1.msra.mxu0 0.0
    %5154 = vmatprep.subr.mxu0 0.0
    %5155 = vmatpush1.msra.mxu0 0.0
    %5156 = vmatprep.subr.mxu0 0.0
    %5157 = vmatpush1.msra.mxu0 0.0
    %5158 = vmatprep.subr.mxu0 0.0
    %5159 = vmatpush1.msra.mxu0 0.0
    %5160 = vmatprep.subr.mxu0 0.0
    %5161 = vmatpush1.msra.mxu0 0.0
    %5162 = vmatprep.subr.mxu0 0.0
    %5163 = vmatpush1.msra.mxu0 0.0
    %5164 = vmatprep.subr.mxu0 0.0
    %5165 = vmatpush1.msra.mxu0 0.0
    %5166 = vmatprep.mubr.f32.mxu0 0.0
    %5167 = vmatmul.mubr.f32.gmra.mrb[0].mxu0 %v5100
    %v5168 = vpop.f32.mrb[0].mxu0
    %v5169 = vadd.f32 0.0, %v5168
    %v5170 = vpop.f32.mrb[0].mxu0
    %5171 = vdwg.mxu0
    %5172 = vrot.lane.b32.xlu0 %v3976, 56
    %v5173 = vpop.permute.xlu0 %5172
    %v5176 = vsel %vm393, %v4943, 0
    %5178 = vmatprep.subr.mxu0 0.0
    %5179 = vmatpush1.msra.mxu0 %v5173
    %5180 = vmatprep.subr.mxu0 0.0
    %5181 = vmatpush1.msra.mxu0 0.0
    %5182 = vmatprep.subr.mxu0 0.0
    %5183 = vmatpush1.msra.mxu0 0.0
    %5184 = vmatprep.subr.mxu0 0.0
    %5185 = vmatpush1.msra.mxu0 0.0
    %5186 = vmatprep.subr.mxu0 0.0
    %5187 = vmatpush1.msra.mxu0 0.0
    %5188 = vmatprep.subr.mxu0 0.0
    %5189 = vmatpush1.msra.mxu0 0.0
    %5190 = vmatprep.subr.mxu0 0.0
    %5191 = vmatpush1.msra.mxu0 0.0
    %5192 = vmatprep.subr.mxu0 0.0
    %5193 = vmatpush1.msra.mxu0 0.0
    %5194 = vmatprep.subr.mxu0 0.0
    %5195 = vmatpush1.msra.mxu0 0.0
    %5196 = vmatprep.subr.mxu0 0.0
    %5197 = vmatpush1.msra.mxu0 0.0
    %5198 = vmatprep.subr.mxu0 0.0
    %5199 = vmatpush1.msra.mxu0 0.0
    %5200 = vmatprep.subr.mxu0 0.0
    %5201 = vmatpush1.msra.mxu0 0.0
    %5202 = vmatprep.subr.mxu0 0.0
    %5203 = vmatpush1.msra.mxu0 0.0
    %5204 = vmatprep.subr.mxu0 0.0
    %5205 = vmatpush1.msra.mxu0 0.0
    %5206 = vmatprep.subr.mxu0 0.0
    %5207 = vmatpush1.msra.mxu0 0.0
    %5208 = vmatprep.subr.mxu0 0.0
    %5209 = vmatpush1.msra.mxu0 0.0
    %5210 = vmatprep.subr.mxu0 0.0
    %5211 = vmatpush1.msra.mxu0 0.0
    %5212 = vmatprep.subr.mxu0 0.0
    %5213 = vmatpush1.msra.mxu0 0.0
    %5214 = vmatprep.subr.mxu0 0.0
    %5215 = vmatpush1.msra.mxu0 0.0
    %5216 = vmatprep.subr.mxu0 0.0
    %5217 = vmatpush1.msra.mxu0 0.0
    %5218 = vmatprep.subr.mxu0 0.0
    %5219 = vmatpush1.msra.mxu0 0.0
    %5220 = vmatprep.subr.mxu0 0.0
    %5221 = vmatpush1.msra.mxu0 0.0
    %5222 = vmatprep.subr.mxu0 0.0
    %5223 = vmatpush1.msra.mxu0 0.0
    %5224 = vmatprep.subr.mxu0 0.0
    %5225 = vmatpush1.msra.mxu0 0.0
    %5226 = vmatprep.subr.mxu0 0.0
    %5227 = vmatpush1.msra.mxu0 0.0
    %5228 = vmatprep.subr.mxu0 0.0
    %5229 = vmatpush1.msra.mxu0 0.0
    %5230 = vmatprep.subr.mxu0 0.0
    %5231 = vmatpush1.msra.mxu0 0.0
    %5232 = vmatprep.subr.mxu0 0.0
    %5233 = vmatpush1.msra.mxu0 0.0
    %5234 = vmatprep.subr.mxu0 0.0
    %5235 = vmatpush1.msra.mxu0 0.0
    %5236 = vmatprep.subr.mxu0 0.0
    %5237 = vmatpush1.msra.mxu0 0.0
    %5238 = vmatprep.subr.mxu0 0.0
    %5239 = vmatpush1.msra.mxu0 0.0
    %5240 = vmatprep.subr.mxu0 0.0
    %5241 = vmatpush1.msra.mxu0 0.0
    %5242 = vmatprep.mubr.f32.mxu0 0.0
    %5243 = vmatmul.mubr.f32.gmra.mrb[0].mxu0 %v5176
    %v5244 = vpop.f32.mrb[0].mxu0
    %v5245 = vadd.f32 0.0, %v5244
    %v5246 = vpop.f32.mrb[0].mxu0
    %5247 = vdwg.mxu0
    %v5248 = vsel %vm393, %v5017, -inf
    %v5249 = vsel %vm393, %v5093, -inf
    %v5250 = vsel %vm393, %v5169, -inf
    %v5251 = vsel %vm393, %v5245, -inf
    %v5252 = vmax.f32 %v5248, %v5249
    %v5253 = vmax.f32 %v5250, %v5251
    %v5254 = vmax.f32 %v5252, %v5253
    %v5255 = vsub.f32 %v5017, %v5254
    %v5256 = vsub.f32 %v5093, %v5254
    %v5257 = vsub.f32 %v5169, %v5254
    %v5258 = vsub.f32 %v5245, %v5254
    %v5259 = vmul.f32 %v5255, 1.442695
    %v5260 = vpow.pop %v5259
    %v5261 = vmul.f32 %v5256, 1.442695
    %v5262 = vpow.pop %v5261
    %v5263 = vmul.f32 %v5257, 1.442695
    %v5264 = vpow.pop %v5263
    %v5265 = vmul.f32 %v5258, 1.442695
    %v5266 = vpow.pop %v5265
    %v5267 = vsel %vm393, %v5260, 0.0
    %v5268 = vsel %vm393, %v5262, 0.0
    %v5269 = vadd.f32 %v5267, %v5268
    %v5270 = vsel %vm393, %v5264, 0.0
    %v5271 = vadd.f32 %v5269, %v5270
    %v5272 = vsel %vm393, %v5266, 0.0
    %v5273 = vadd.f32 %v5271, %v5272
    %v5274 = vrcp.pop %v5273
    %v5275 = vmul.f32 %v5260, %v5274
    %v5276 = vmul.f32 %v5262, %v5274
    %v5277 = vmul.f32 %v5264, %v5274
    %v5278 = vmul.f32 %v5266, %v5274
    %s5279 = scalar_lea.vmem [#allocation8], 40
    %v5280 = vld [vmem:[%s5279] sm:$0xff]
    %v5282 = vsel %vm393, %v5275, 0
    %v5285 = vsel %vm393, %v5276, 0
    %v5288 = vsel %vm393, %v5277, 0
    %v5291 = vsel %vm393, %v5278, 0
    %5293 = vmatprep.subr.mxu0 0.0
    %5294 = vmatpush1.msra.mxu0 %v5280
    %5295 = vmatprep.subr.mxu0 0.0
    %5296 = vmatpush1.msra.mxu0 0.0
    %5297 = vmatprep.subr.mxu0 0.0
    %5298 = vmatpush1.msra.mxu0 0.0
    %5299 = vmatprep.subr.mxu0 0.0
    %5300 = vmatpush1.msra.mxu0 0.0
    %5301 = vmatprep.subr.mxu0 0.0
    %5302 = vmatpush1.msra.mxu0 0.0
    %5303 = vmatprep.subr.mxu0 0.0
    %5304 = vmatpush1.msra.mxu0 0.0
    %5305 = vmatprep.subr.mxu0 0.0
    %5306 = vmatpush1.msra.mxu0 0.0
    %5307 = vmatprep.subr.mxu0 0.0
    %5308 = vmatpush1.msra.mxu0 0.0
    %5309 = vmatprep.subr.mxu0 0.0
    %5310 = vmatpush1.msra.mxu0 0.0
    %5311 = vmatprep.subr.mxu0 0.0
    %5312 = vmatpush1.msra.mxu0 0.0
    %5313 = vmatprep.subr.mxu0 0.0
    %5314 = vmatpush1.msra.mxu0 0.0
    %5315 = vmatprep.subr.mxu0 0.0
    %5316 = vmatpush1.msra.mxu0 0.0
    %5317 = vmatprep.subr.mxu0 0.0
    %5318 = vmatpush1.msra.mxu0 0.0
    %5319 = vmatprep.subr.mxu0 0.0
    %5320 = vmatpush1.msra.mxu0 0.0
    %5321 = vmatprep.subr.mxu0 0.0
    %5322 = vmatpush1.msra.mxu0 0.0
    %5323 = vmatprep.subr.mxu0 0.0
    %5324 = vmatpush1.msra.mxu0 0.0
    %5325 = vmatprep.subr.mxu0 0.0
    %5326 = vmatpush1.msra.mxu0 0.0
    %5327 = vmatprep.subr.mxu0 0.0
    %5328 = vmatpush1.msra.mxu0 0.0
    %5329 = vmatprep.subr.mxu0 0.0
    %5330 = vmatpush1.msra.mxu0 0.0
    %5331 = vmatprep.subr.mxu0 0.0
    %5332 = vmatpush1.msra.mxu0 0.0
    %5333 = vmatprep.subr.mxu0 0.0
    %5334 = vmatpush1.msra.mxu0 0.0
    %5335 = vmatprep.subr.mxu0 0.0
    %5336 = vmatpush1.msra.mxu0 0.0
    %5337 = vmatprep.subr.mxu0 0.0
    %5338 = vmatpush1.msra.mxu0 0.0
    %5339 = vmatprep.subr.mxu0 0.0
    %5340 = vmatpush1.msra.mxu0 0.0
    %5341 = vmatprep.subr.mxu0 0.0
    %5342 = vmatpush1.msra.mxu0 0.0
    %5343 = vmatprep.subr.mxu0 0.0
    %5344 = vmatpush1.msra.mxu0 0.0
    %5345 = vmatprep.subr.mxu0 0.0
    %5346 = vmatpush1.msra.mxu0 0.0
    %5347 = vmatprep.subr.mxu0 0.0
    %5348 = vmatpush1.msra.mxu0 0.0
    %5349 = vmatprep.subr.mxu0 0.0
    %5350 = vmatpush1.msra.mxu0 0.0
    %5351 = vmatprep.subr.mxu0 0.0
    %5352 = vmatpush1.msra.mxu0 0.0
    %5353 = vmatprep.subr.mxu0 0.0
    %5354 = vmatpush1.msra.mxu0 0.0
    %5355 = vmatprep.subr.mxu0 0.0
    %5356 = vmatpush1.msra.mxu0 0.0
    %5357 = vmatprep.mubr.f32.mxu0 0.0
    %5358 = vmatmul.mubr.f32.gmra.mrb[0].mxu0 %v5282
    %v5359 = vpop.f32.mrb[0].mxu0
    %v5360 = vadd.f32 0.0, %v5359
    %v5361 = vpop.f32.mrb[0].mxu0
    %5362 = vmatprep.mubr.f32.mxu0 0.0
    %5363 = vmatmul.mubr.f32.gmra.mrb[0].mxu0 %v5285
    %v5364 = vpop.f32.mrb[0].mxu0
    %v5365 = vadd.f32 0.0, %v5364
    %v5366 = vpop.f32.mrb[0].mxu0
    %5367 = vmatprep.mubr.f32.mxu0 0.0
    %5368 = vmatmul.mubr.f32.gmra.mrb[0].mxu0 %v5288
    %v5369 = vpop.f32.mrb[0].mxu0
    %v5370 = vadd.f32 0.0, %v5369
    %v5371 = vpop.f32.mrb[0].mxu0
    %5372 = vmatprep.mubr.f32.mxu0 0.0
    %5373 = vmatmul.mubr.f32.gmra.mrb[0].mxu0 %v5291
    %v5374 = vpop.f32.mrb[0].mxu0
    %v5375 = vadd.f32 0.0, %v5374
    %v5376 = vpop.f32.mrb[0].mxu0
    %5377 = vdwg.mxu0
    %v5379 = vsel %vm393, %v4622, 0
    %v5382 = vsel %vm393, %v4623, 0
    %v5385 = vsel %vm393, %v4624, 0
    %v5388 = vsel %vm393, %v4625, 0
    %5390 = vmatprep.subr.mxu0 0.0
    %5391 = vmatpush1.msra.mxu0 %v4627
    %5392 = vmatprep.subr.mxu0 0.0
    %5393 = vmatpush1.msra.mxu0 0.0
    %5394 = vmatprep.subr.mxu0 0.0
    %5395 = vmatpush1.msra.mxu0 0.0
    %5396 = vmatprep.subr.mxu0 0.0
    %5397 = vmatpush1.msra.mxu0 0.0
    %5398 = vmatprep.subr.mxu0 0.0
    %5399 = vmatpush1.msra.mxu0 0.0
    %5400 = vmatprep.subr.mxu0 0.0
    %5401 = vmatpush1.msra.mxu0 0.0
    %5402 = vmatprep.subr.mxu0 0.0
    %5403 = vmatpush1.msra.mxu0 0.0
    %5404 = vmatprep.subr.mxu0 0.0
    %5405 = vmatpush1.msra.mxu0 0.0
    %5406 = vmatprep.subr.mxu0 0.0
    %5407 = vmatpush1.msra.mxu0 0.0
    %5408 = vmatprep.subr.mxu0 0.0
    %5409 = vmatpush1.msra.mxu0 0.0
    %5410 = vmatprep.subr.mxu0 0.0
    %5411 = vmatpush1.msra.mxu0 0.0
    %5412 = vmatprep.subr.mxu0 0.0
    %5413 = vmatpush1.msra.mxu0 0.0
    %5414 = vmatprep.subr.mxu0 0.0
    %5415 = vmatpush1.msra.mxu0 0.0
    %5416 = vmatprep.subr.mxu0 0.0
    %5417 = vmatpush1.msra.mxu0 0.0
    %5418 = vmatprep.subr.mxu0 0.0
    %5419 = vmatpush1.msra.mxu0 0.0
    %5420 = vmatprep.subr.mxu0 0.0
    %5421 = vmatpush1.msra.mxu0 0.0
    %5422 = vmatprep.subr.mxu0 0.0
    %5423 = vmatpush1.msra.mxu0 0.0
    %5424 = vmatprep.subr.mxu0 0.0
    %5425 = vmatpush1.msra.mxu0 0.0
    %5426 = vmatprep.subr.mxu0 0.0
    %5427 = vmatpush1.msra.mxu0 0.0
    %5428 = vmatprep.subr.mxu0 0.0
    %5429 = vmatpush1.msra.mxu0 0.0
    %5430 = vmatprep.subr.mxu0 0.0
    %5431 = vmatpush1.msra.mxu0 0.0
    %5432 = vmatprep.subr.mxu0 0.0
    %5433 = vmatpush1.msra.mxu0 0.0
    %5434 = vmatprep.subr.mxu0 0.0
    %5435 = vmatpush1.msra.mxu0 0.0
    %5436 = vmatprep.subr.mxu0 0.0
    %5437 = vmatpush1.msra.mxu0 0.0
    %5438 = vmatprep.subr.mxu0 0.0
    %5439 = vmatpush1.msra.mxu0 0.0
    %5440 = vmatprep.subr.mxu0 0.0
    %5441 = vmatpush1.msra.mxu0 0.0
    %5442 = vmatprep.subr.mxu0 0.0
    %5443 = vmatpush1.msra.mxu0 0.0
    %5444 = vmatprep.subr.mxu0 0.0
    %5445 = vmatpush1.msra.mxu0 0.0
    %5446 = vmatprep.subr.mxu0 0.0
    %5447 = vmatpush1.msra.mxu0 0.0
    %5448 = vmatprep.subr.mxu0 0.0
    %5449 = vmatpush1.msra.mxu0 0.0
    %5450 = vmatprep.subr.mxu0 0.0
    %5451 = vmatpush1.msra.mxu0 0.0
    %5452 = vmatprep.subr.mxu0 0.0
    %5453 = vmatpush1.msra.mxu0 0.0
    %5454 = vmatprep.mubr.f32.mxu0 0.0
    %5455 = vmatmul.mubr.f32.gmra.mrb[0].mxu0 %v5379
    %v5456 = vpop.f32.mrb[0].mxu0
    %v5457 = vadd.f32 %v5360, %v5456
    %v5458 = vpop.f32.mrb[0].mxu0
    %5459 = vmatprep.mubr.f32.mxu0 0.0
    %5460 = vmatmul.mubr.f32.gmra.mrb[0].mxu0 %v5382
    %v5461 = vpop.f32.mrb[0].mxu0
    %v5462 = vadd.f32 %v5365, %v5461
    %v5463 = vpop.f32.mrb[0].mxu0
    %5464 = vmatprep.mubr.f32.mxu0 0.0
    %5465 = vmatmul.mubr.f32.gmra.mrb[0].mxu0 %v5385
    %v5466 = vpop.f32.mrb[0].mxu0
    %v5467 = vadd.f32 %v5370, %v5466
    %v5468 = vpop.f32.mrb[0].mxu0
    %5469 = vmatprep.mubr.f32.mxu0 0.0
    %5470 = vmatmul.mubr.f32.gmra.mrb[0].mxu0 %v5388
    %v5471 = vpop.f32.mrb[0].mxu0
    %v5472 = vadd.f32 %v5375, %v5471
    %v5473 = vpop.f32.mrb[0].mxu0
    %5474 = vdwg.mxu0
    %5475 = vrot.lane.b32.xlu0 %v3961, 112
    %v5476 = vpop.permute.xlu0 %5475
    %5477 = vrot.lane.b32.xlu0 %v3961, 80
    %v5478 = vpop.permute.xlu0 %5477
    %v5479 = vsel %vm393, %v5476, 0
    %v5481 = vsel %vm393, %v5478, 0
    %5483 = vmatprep.subr.mxu0 0.0
    %5484 = vmatpush1.xpose.msra.mxu0 %v5481
    %5485 = vmatprep.subr.mxu0 0.0
    %5486 = vmatpush1.xpose.msra.mxu0 0.0
    %5487 = vmatprep.subr.mxu0 0.0
    %5488 = vmatpush1.xpose.msra.mxu0 0.0
    %5489 = vmatprep.subr.mxu0 0.0
    %5490 = vmatpush1.xpose.msra.mxu0 0.0
    %5491 = vmatprep.subr.mxu0 0.0
    %5492 = vmatpush1.xpose.msra.mxu0 0.0
    %5493 = vmatprep.subr.mxu0 0.0
    %5494 = vmatpush1.xpose.msra.mxu0 0.0
    %5495 = vmatprep.subr.mxu0 0.0
    %5496 = vmatpush1.xpose.msra.mxu0 0.0
    %5497 = vmatprep.subr.mxu0 0.0
    %5498 = vmatpush1.xpose.msra.mxu0 0.0
    %5499 = vmatprep.subr.mxu0 0.0
    %5500 = vmatpush1.xpose.msra.mxu0 0.0
    %5501 = vmatprep.subr.mxu0 0.0
    %5502 = vmatpush1.xpose.msra.mxu0 0.0
    %5503 = vmatprep.subr.mxu0 0.0
    %5504 = vmatpush1.xpose.msra.mxu0 0.0
    %5505 = vmatprep.subr.mxu0 0.0
    %5506 = vmatpush1.xpose.msra.mxu0 0.0
    %5507 = vmatprep.subr.mxu0 0.0
    %5508 = vmatpush1.xpose.msra.mxu0 0.0
    %5509 = vmatprep.subr.mxu0 0.0
    %5510 = vmatpush1.xpose.msra.mxu0 0.0
    %5511 = vmatprep.subr.mxu0 0.0
    %5512 = vmatpush1.xpose.msra.mxu0 0.0
    %5513 = vmatprep.subr.mxu0 0.0
    %5514 = vmatpush1.xpose.msra.mxu0 0.0
    %5515 = vmatprep.subr.mxu0 0.0
    %5516 = vmatpush1.xpose.msra.mxu0 0.0
    %5517 = vmatprep.subr.mxu0 0.0
    %5518 = vmatpush1.xpose.msra.mxu0 0.0
    %5519 = vmatprep.subr.mxu0 0.0
    %5520 = vmatpush1.xpose.msra.mxu0 0.0
    %5521 = vmatprep.subr.mxu0 0.0
    %5522 = vmatpush1.xpose.msra.mxu0 0.0
    %5523 = vmatprep.subr.mxu0 0.0
    %5524 = vmatpush1.xpose.msra.mxu0 0.0
    %5525 = vmatprep.subr.mxu0 0.0
    %5526 = vmatpush1.xpose.msra.mxu0 0.0
    %5527 = vmatprep.subr.mxu0 0.0
    %5528 = vmatpush1.xpose.msra.mxu0 0.0
    %5529 = vmatprep.subr.mxu0 0.0
    %5530 = vmatpush1.xpose.msra.mxu0 0.0
    %5531 = vmatprep.subr.mxu0 0.0
    %5532 = vmatpush1.xpose.msra.mxu0 0.0
    %5533 = vmatprep.subr.mxu0 0.0
    %5534 = vmatpush1.xpose.msra.mxu0 0.0
    %5535 = vmatprep.subr.mxu0 0.0
    %5536 = vmatpush1.xpose.msra.mxu0 0.0
    %5537 = vmatprep.subr.mxu0 0.0
    %5538 = vmatpush1.xpose.msra.mxu0 0.0
    %5539 = vmatprep.subr.mxu0 0.0
    %5540 = vmatpush1.xpose.msra.mxu0 0.0
    %5541 = vmatprep.subr.mxu0 0.0
    %5542 = vmatpush1.xpose.msra.mxu0 0.0
    %5543 = vmatprep.subr.mxu0 0.0
    %5544 = vmatpush1.xpose.msra.mxu0 0.0
    %5545 = vmatprep.subr.mxu0 0.0
    %5546 = vmatpush1.xpose.msra.mxu0 0.0
    %5547 = vmatprep.mubr.f32.mxu0 0.0
    %5548 = vmatmul.mubr.f32.gmra.mrb[0].mxu0 %v5479
    %v5549 = vpop.f32.mrb[0].mxu0
    %v5550 = vadd.f32 0.0, %v5549
    %v5551 = vpop.f32.mrb[0].mxu0
    %5552 = vdwg.mxu0
    %5553 = vrot.lane.b32.xlu0 %v3966, 112
    %v5554 = vpop.permute.xlu0 %5553
    %5555 = vrot.lane.b32.xlu0 %v3966, 80
    %v5556 = vpop.permute.xlu0 %5555
    %v5557 = vsel %vm393, %v5554, 0
    %v5559 = vsel %vm393, %v5556, 0
    %5561 = vmatprep.subr.mxu0 0.0
    %5562 = vmatpush1.xpose.msra.mxu0 %v5559
    %5563 = vmatprep.subr.mxu0 0.0
    %5564 = vmatpush1.xpose.msra.mxu0 0.0
    %5565 = vmatprep.subr.mxu0 0.0
    %5566 = vmatpush1.xpose.msra.mxu0 0.0
    %5567 = vmatprep.subr.mxu0 0.0
    %5568 = vmatpush1.xpose.msra.mxu0 0.0
    %5569 = vmatprep.subr.mxu0 0.0
    %5570 = vmatpush1.xpose.msra.mxu0 0.0
    %5571 = vmatprep.subr.mxu0 0.0
    %5572 = vmatpush1.xpose.msra.mxu0 0.0
    %5573 = vmatprep.subr.mxu0 0.0
    %5574 = vmatpush1.xpose.msra.mxu0 0.0
    %5575 = vmatprep.subr.mxu0 0.0
    %5576 = vmatpush1.xpose.msra.mxu0 0.0
    %5577 = vmatprep.subr.mxu0 0.0
    %5578 = vmatpush1.xpose.msra.mxu0 0.0
    %5579 = vmatprep.subr.mxu0 0.0
    %5580 = vmatpush1.xpose.msra.mxu0 0.0
    %5581 = vmatprep.subr.mxu0 0.0
    %5582 = vmatpush1.xpose.msra.mxu0 0.0
    %5583 = vmatprep.subr.mxu0 0.0
    %5584 = vmatpush1.xpose.msra.mxu0 0.0
    %5585 = vmatprep.subr.mxu0 0.0
    %5586 = vmatpush1.xpose.msra.mxu0 0.0
    %5587 = vmatprep.subr.mxu0 0.0
    %5588 = vmatpush1.xpose.msra.mxu0 0.0
    %5589 = vmatprep.subr.mxu0 0.0
    %5590 = vmatpush1.xpose.msra.mxu0 0.0
    %5591 = vmatprep.subr.mxu0 0.0
    %5592 = vmatpush1.xpose.msra.mxu0 0.0
    %5593 = vmatprep.subr.mxu0 0.0
    %5594 = vmatpush1.xpose.msra.mxu0 0.0
    %5595 = vmatprep.subr.mxu0 0.0
    %5596 = vmatpush1.xpose.msra.mxu0 0.0
    %5597 = vmatprep.subr.mxu0 0.0
    %5598 = vmatpush1.xpose.msra.mxu0 0.0
    %5599 = vmatprep.subr.mxu0 0.0
    %5600 = vmatpush1.xpose.msra.mxu0 0.0
    %5601 = vmatprep.subr.mxu0 0.0
    %5602 = vmatpush1.xpose.msra.mxu0 0.0
    %5603 = vmatprep.subr.mxu0 0.0
    %5604 = vmatpush1.xpose.msra.mxu0 0.0
    %5605 = vmatprep.subr.mxu0 0.0
    %5606 = vmatpush1.xpose.msra.mxu0 0.0
    %5607 = vmatprep.subr.mxu0 0.0
    %5608 = vmatpush1.xpose.msra.mxu0 0.0
    %5609 = vmatprep.subr.mxu0 0.0
    %5610 = vmatpush1.xpose.msra.mxu0 0.0
    %5611 = vmatprep.subr.mxu0 0.0
    %5612 = vmatpush1.xpose.msra.mxu0 0.0
    %5613 = vmatprep.subr.mxu0 0.0
    %5614 = vmatpush1.xpose.msra.mxu0 0.0
    %5615 = vmatprep.subr.mxu0 0.0
    %5616 = vmatpush1.xpose.msra.mxu0 0.0
    %5617 = vmatprep.subr.mxu0 0.0
    %5618 = vmatpush1.xpose.msra.mxu0 0.0
    %5619 = vmatprep.subr.mxu0 0.0
    %5620 = vmatpush1.xpose.msra.mxu0 0.0
    %5621 = vmatprep.subr.mxu0 0.0
    %5622 = vmatpush1.xpose.msra.mxu0 0.0
    %5623 = vmatprep.subr.mxu0 0.0
    %5624 = vmatpush1.xpose.msra.mxu0 0.0
    %5625 = vmatprep.mubr.f32.mxu0 0.0
    %5626 = vmatmul.mubr.f32.gmra.mrb[0].mxu0 %v5557
    %v5627 = vpop.f32.mrb[0].mxu0
    %v5628 = vadd.f32 0.0, %v5627
    %v5629 = vpop.f32.mrb[0].mxu0
    %5630 = vdwg.mxu0
    %5631 = vrot.lane.b32.xlu0 %v3971, 112
    %v5632 = vpop.permute.xlu0 %5631
    %5633 = vrot.lane.b32.xlu0 %v3971, 80
    %v5634 = vpop.permute.xlu0 %5633
    %v5635 = vsel %vm393, %v5632, 0
    %v5637 = vsel %vm393, %v5634, 0
    %5639 = vmatprep.subr.mxu0 0.0
    %5640 = vmatpush1.xpose.msra.mxu0 %v5637
    %5641 = vmatprep.subr.mxu0 0.0
    %5642 = vmatpush1.xpose.msra.mxu0 0.0
    %5643 = vmatprep.subr.mxu0 0.0
    %5644 = vmatpush1.xpose.msra.mxu0 0.0
    %5645 = vmatprep.subr.mxu0 0.0
    %5646 = vmatpush1.xpose.msra.mxu0 0.0
    %5647 = vmatprep.subr.mxu0 0.0
    %5648 = vmatpush1.xpose.msra.mxu0 0.0
    %5649 = vmatprep.subr.mxu0 0.0
    %5650 = vmatpush1.xpose.msra.mxu0 0.0
    %5651 = vmatprep.subr.mxu0 0.0
    %5652 = vmatpush1.xpose.msra.mxu0 0.0
    %5653 = vmatprep.subr.mxu0 0.0
    %5654 = vmatpush1.xpose.msra.mxu0 0.0
    %5655 = vmatprep.subr.mxu0 0.0
    %5656 = vmatpush1.xpose.msra.mxu0 0.0
    %5657 = vmatprep.subr.mxu0 0.0
    %5658 = vmatpush1.xpose.msra.mxu0 0.0
    %5659 = vmatprep.subr.mxu0 0.0
    %5660 = vmatpush1.xpose.msra.mxu0 0.0
    %5661 = vmatprep.subr.mxu0 0.0
    %5662 = vmatpush1.xpose.msra.mxu0 0.0
    %5663 = vmatprep.subr.mxu0 0.0
    %5664 = vmatpush1.xpose.msra.mxu0 0.0
    %5665 = vmatprep.subr.mxu0 0.0
    %5666 = vmatpush1.xpose.msra.mxu0 0.0
    %5667 = vmatprep.subr.mxu0 0.0
    %5668 = vmatpush1.xpose.msra.mxu0 0.0
    %5669 = vmatprep.subr.mxu0 0.0
    %5670 = vmatpush1.xpose.msra.mxu0 0.0
    %5671 = vmatprep.subr.mxu0 0.0
    %5672 = vmatpush1.xpose.msra.mxu0 0.0
    %5673 = vmatprep.subr.mxu0 0.0
    %5674 = vmatpush1.xpose.msra.mxu0 0.0
    %5675 = vmatprep.subr.mxu0 0.0
    %5676 = vmatpush1.xpose.msra.mxu0 0.0
    %5677 = vmatprep.subr.mxu0 0.0
    %5678 = vmatpush1.xpose.msra.mxu0 0.0
    %5679 = vmatprep.subr.mxu0 0.0
    %5680 = vmatpush1.xpose.msra.mxu0 0.0
    %5681 = vmatprep.subr.mxu0 0.0
    %5682 = vmatpush1.xpose.msra.mxu0 0.0
    %5683 = vmatprep.subr.mxu0 0.0
    %5684 = vmatpush1.xpose.msra.mxu0 0.0
    %5685 = vmatprep.subr.mxu0 0.0
    %5686 = vmatpush1.xpose.msra.mxu0 0.0
    %5687 = vmatprep.subr.mxu0 0.0
    %5688 = vmatpush1.xpose.msra.mxu0 0.0
    %5689 = vmatprep.subr.mxu0 0.0
    %5690 = vmatpush1.xpose.msra.mxu0 0.0
    %5691 = vmatprep.subr.mxu0 0.0
    %5692 = vmatpush1.xpose.msra.mxu0 0.0
    %5693 = vmatprep.subr.mxu0 0.0
    %5694 = vmatpush1.xpose.msra.mxu0 0.0
    %5695 = vmatprep.subr.mxu0 0.0
    %5696 = vmatpush1.xpose.msra.mxu0 0.0
    %5697 = vmatprep.subr.mxu0 0.0
    %5698 = vmatpush1.xpose.msra.mxu0 0.0
    %5699 = vmatprep.subr.mxu0 0.0
    %5700 = vmatpush1.xpose.msra.mxu0 0.0
    %5701 = vmatprep.subr.mxu0 0.0
    %5702 = vmatpush1.xpose.msra.mxu0 0.0
    %5703 = vmatprep.mubr.f32.mxu0 0.0
    %5704 = vmatmul.mubr.f32.gmra.mrb[0].mxu0 %v5635
    %v5705 = vpop.f32.mrb[0].mxu0
    %v5706 = vadd.f32 0.0, %v5705
    %v5707 = vpop.f32.mrb[0].mxu0
    %5708 = vdwg.mxu0
    %5709 = vrot.lane.b32.xlu0 %v3976, 112
    %v5710 = vpop.permute.xlu0 %5709
    %5711 = vrot.lane.b32.xlu0 %v3976, 80
    %v5712 = vpop.permute.xlu0 %5711
    %v5713 = vsel %vm393, %v5710, 0
    %v5715 = vsel %vm393, %v5712, 0
    %5717 = vmatprep.subr.mxu0 0.0
    %5718 = vmatpush1.xpose.msra.mxu0 %v5715
    %5719 = vmatprep.subr.mxu0 0.0
    %5720 = vmatpush1.xpose.msra.mxu0 0.0
    %5721 = vmatprep.subr.mxu0 0.0
    %5722 = vmatpush1.xpose.msra.mxu0 0.0
    %5723 = vmatprep.subr.mxu0 0.0
    %5724 = vmatpush1.xpose.msra.mxu0 0.0
    %5725 = vmatprep.subr.mxu0 0.0
    %5726 = vmatpush1.xpose.msra.mxu0 0.0
    %5727 = vmatprep.subr.mxu0 0.0
    %5728 = vmatpush1.xpose.msra.mxu0 0.0
    %5729 = vmatprep.subr.mxu0 0.0
    %5730 = vmatpush1.xpose.msra.mxu0 0.0
    %5731 = vmatprep.subr.mxu0 0.0
    %5732 = vmatpush1.xpose.msra.mxu0 0.0
    %5733 = vmatprep.subr.mxu0 0.0
    %5734 = vmatpush1.xpose.msra.mxu0 0.0
    %5735 = vmatprep.subr.mxu0 0.0
    %5736 = vmatpush1.xpose.msra.mxu0 0.0
    %5737 = vmatprep.subr.mxu0 0.0
    %5738 = vmatpush1.xpose.msra.mxu0 0.0
    %5739 = vmatprep.subr.mxu0 0.0
    %5740 = vmatpush1.xpose.msra.mxu0 0.0
    %5741 = vmatprep.subr.mxu0 0.0
    %5742 = vmatpush1.xpose.msra.mxu0 0.0
    %5743 = vmatprep.subr.mxu0 0.0
    %5744 = vmatpush1.xpose.msra.mxu0 0.0
    %5745 = vmatprep.subr.mxu0 0.0
    %5746 = vmatpush1.xpose.msra.mxu0 0.0
    %5747 = vmatprep.subr.mxu0 0.0
    %5748 = vmatpush1.xpose.msra.mxu0 0.0
    %5749 = vmatprep.subr.mxu0 0.0
    %5750 = vmatpush1.xpose.msra.mxu0 0.0
    %5751 = vmatprep.subr.mxu0 0.0
    %5752 = vmatpush1.xpose.msra.mxu0 0.0
    %5753 = vmatprep.subr.mxu0 0.0
    %5754 = vmatpush1.xpose.msra.mxu0 0.0
    %5755 = vmatprep.subr.mxu0 0.0
    %5756 = vmatpush1.xpose.msra.mxu0 0.0
    %5757 = vmatprep.subr.mxu0 0.0
    %5758 = vmatpush1.xpose.msra.mxu0 0.0
    %5759 = vmatprep.subr.mxu0 0.0
    %5760 = vmatpush1.xpose.msra.mxu0 0.0
    %5761 = vmatprep.subr.mxu0 0.0
    %5762 = vmatpush1.xpose.msra.mxu0 0.0
    %5763 = vmatprep.subr.mxu0 0.0
    %5764 = vmatpush1.xpose.msra.mxu0 0.0
    %5765 = vmatprep.subr.mxu0 0.0
    %5766 = vmatpush1.xpose.msra.mxu0 0.0
    %5767 = vmatprep.subr.mxu0 0.0
    %5768 = vmatpush1.xpose.msra.mxu0 0.0
    %5769 = vmatprep.subr.mxu0 0.0
    %5770 = vmatpush1.xpose.msra.mxu0 0.0
    %5771 = vmatprep.subr.mxu0 0.0
    %5772 = vmatpush1.xpose.msra.mxu0 0.0
    %5773 = vmatprep.subr.mxu0 0.0
    %5774 = vmatpush1.xpose.msra.mxu0 0.0
    %5775 = vmatprep.subr.mxu0 0.0
    %5776 = vmatpush1.xpose.msra.mxu0 0.0
    %5777 = vmatprep.subr.mxu0 0.0
    %5778 = vmatpush1.xpose.msra.mxu0 0.0
    %5779 = vmatprep.subr.mxu0 0.0
    %5780 = vmatpush1.xpose.msra.mxu0 0.0
    %5781 = vmatprep.mubr.f32.mxu0 0.0
    %5782 = vmatmul.mubr.f32.gmra.mrb[0].mxu0 %v5713
    %v5783 = vpop.f32.mrb[0].mxu0
    %v5784 = vadd.f32 0.0, %v5783
    %v5785 = vpop.f32.mrb[0].mxu0
    %5786 = vdwg.mxu0
    %v5787 = vmul.f32 %v5550, 0.35355338
    %v5788 = vmul.f32 %v5628, 0.35355338
    %v5789 = vmul.f32 %v5706, 0.35355338
    %v5790 = vmul.f32 %v5784, 0.35355338
    %5791 = vrot.lane.b32.xlu0 %v3961, 48
    %v5792 = vpop.permute.xlu0 %5791
    %v5795 = vsel %vm393, %v5787, 0
    %5797 = vmatprep.subr.mxu0 0.0
    %5798 = vmatpush1.msra.mxu0 %v5792
    %5799 = vmatprep.subr.mxu0 0.0
    %5800 = vmatpush1.msra.mxu0 0.0
    %5801 = vmatprep.subr.mxu0 0.0
    %5802 = vmatpush1.msra.mxu0 0.0
    %5803 = vmatprep.subr.mxu0 0.0
    %5804 = vmatpush1.msra.mxu0 0.0
    %5805 = vmatprep.subr.mxu0 0.0
    %5806 = vmatpush1.msra.mxu0 0.0
    %5807 = vmatprep.subr.mxu0 0.0
    %5808 = vmatpush1.msra.mxu0 0.0
    %5809 = vmatprep.subr.mxu0 0.0
    %5810 = vmatpush1.msra.mxu0 0.0
    %5811 = vmatprep.subr.mxu0 0.0
    %5812 = vmatpush1.msra.mxu0 0.0
    %5813 = vmatprep.subr.mxu0 0.0
    %5814 = vmatpush1.msra.mxu0 0.0
    %5815 = vmatprep.subr.mxu0 0.0
    %5816 = vmatpush1.msra.mxu0 0.0
    %5817 = vmatprep.subr.mxu0 0.0
    %5818 = vmatpush1.msra.mxu0 0.0
    %5819 = vmatprep.subr.mxu0 0.0
    %5820 = vmatpush1.msra.mxu0 0.0
    %5821 = vmatprep.subr.mxu0 0.0
    %5822 = vmatpush1.msra.mxu0 0.0
    %5823 = vmatprep.subr.mxu0 0.0
    %5824 = vmatpush1.msra.mxu0 0.0
    %5825 = vmatprep.subr.mxu0 0.0
    %5826 = vmatpush1.msra.mxu0 0.0
    %5827 = vmatprep.subr.mxu0 0.0
    %5828 = vmatpush1.msra.mxu0 0.0
    %5829 = vmatprep.subr.mxu0 0.0
    %5830 = vmatpush1.msra.mxu0 0.0
    %5831 = vmatprep.subr.mxu0 0.0
    %5832 = vmatpush1.msra.mxu0 0.0
    %5833 = vmatprep.subr.mxu0 0.0
    %5834 = vmatpush1.msra.mxu0 0.0
    %5835 = vmatprep.subr.mxu0 0.0
    %5836 = vmatpush1.msra.mxu0 0.0
    %5837 = vmatprep.subr.mxu0 0.0
    %5838 = vmatpush1.msra.mxu0 0.0
    %5839 = vmatprep.subr.mxu0 0.0
    %5840 = vmatpush1.msra.mxu0 0.0
    %5841 = vmatprep.subr.mxu0 0.0
    %5842 = vmatpush1.msra.mxu0 0.0
    %5843 = vmatprep.subr.mxu0 0.0
    %5844 = vmatpush1.msra.mxu0 0.0
    %5845 = vmatprep.subr.mxu0 0.0
    %5846 = vmatpush1.msra.mxu0 0.0
    %5847 = vmatprep.subr.mxu0 0.0
    %5848 = vmatpush1.msra.mxu0 0.0
    %5849 = vmatprep.subr.mxu0 0.0
    %5850 = vmatpush1.msra.mxu0 0.0
    %5851 = vmatprep.subr.mxu0 0.0
    %5852 = vmatpush1.msra.mxu0 0.0
    %5853 = vmatprep.subr.mxu0 0.0
    %5854 = vmatpush1.msra.mxu0 0.0
    %5855 = vmatprep.subr.mxu0 0.0
    %5856 = vmatpush1.msra.mxu0 0.0
    %5857 = vmatprep.subr.mxu0 0.0
    %5858 = vmatpush1.msra.mxu0 0.0
    %5859 = vmatprep.subr.mxu0 0.0
    %5860 = vmatpush1.msra.mxu0 0.0
    %5861 = vmatprep.mubr.f32.mxu0 0.0
    %5862 = vmatmul.mubr.f32.gmra.mrb[0].mxu0 %v5795
    %v5863 = vpop.f32.mrb[0].mxu0
    %v5864 = vadd.f32 0.0, %v5863
    %v5865 = vpop.f32.mrb[0].mxu0
    %5866 = vdwg.mxu0
    %5867 = vrot.lane.b32.xlu0 %v3966, 48
    %v5868 = vpop.permute.xlu0 %5867
    %v5871 = vsel %vm393, %v5788, 0
    %5873 = vmatprep.subr.mxu0 0.0
    %5874 = vmatpush1.msra.mxu0 %v5868
    %5875 = vmatprep.subr.mxu0 0.0
    %5876 = vmatpush1.msra.mxu0 0.0
    %5877 = vmatprep.subr.mxu0 0.0
    %5878 = vmatpush1.msra.mxu0 0.0
    %5879 = vmatprep.subr.mxu0 0.0
    %5880 = vmatpush1.msra.mxu0 0.0
    %5881 = vmatprep.subr.mxu0 0.0
    %5882 = vmatpush1.msra.mxu0 0.0
    %5883 = vmatprep.subr.mxu0 0.0
    %5884 = vmatpush1.msra.mxu0 0.0
    %5885 = vmatprep.subr.mxu0 0.0
    %5886 = vmatpush1.msra.mxu0 0.0
    %5887 = vmatprep.subr.mxu0 0.0
    %5888 = vmatpush1.msra.mxu0 0.0
    %5889 = vmatprep.subr.mxu0 0.0
    %5890 = vmatpush1.msra.mxu0 0.0
    %5891 = vmatprep.subr.mxu0 0.0
    %5892 = vmatpush1.msra.mxu0 0.0
    %5893 = vmatprep.subr.mxu0 0.0
    %5894 = vmatpush1.msra.mxu0 0.0
    %5895 = vmatprep.subr.mxu0 0.0
    %5896 = vmatpush1.msra.mxu0 0.0
    %5897 = vmatprep.subr.mxu0 0.0
    %5898 = vmatpush1.msra.mxu0 0.0
    %5899 = vmatprep.subr.mxu0 0.0
    %5900 = vmatpush1.msra.mxu0 0.0
    %5901 = vmatprep.subr.mxu0 0.0
    %5902 = vmatpush1.msra.mxu0 0.0
    %5903 = vmatprep.subr.mxu0 0.0
    %5904 = vmatpush1.msra.mxu0 0.0
    %5905 = vmatprep.subr.mxu0 0.0
    %5906 = vmatpush1.msra.mxu0 0.0
    %5907 = vmatprep.subr.mxu0 0.0
    %5908 = vmatpush1.msra.mxu0 0.0
    %5909 = vmatprep.subr.mxu0 0.0
    %5910 = vmatpush1.msra.mxu0 0.0
    %5911 = vmatprep.subr.mxu0 0.0
    %5912 = vmatpush1.msra.mxu0 0.0
    %5913 = vmatprep.subr.mxu0 0.0
    %5914 = vmatpush1.msra.mxu0 0.0
    %5915 = vmatprep.subr.mxu0 0.0
    %5916 = vmatpush1.msra.mxu0 0.0
    %5917 = vmatprep.subr.mxu0 0.0
    %5918 = vmatpush1.msra.mxu0 0.0
    %5919 = vmatprep.subr.mxu0 0.0
    %5920 = vmatpush1.msra.mxu0 0.0
    %5921 = vmatprep.subr.mxu0 0.0
    %5922 = vmatpush1.msra.mxu0 0.0
    %5923 = vmatprep.subr.mxu0 0.0
    %5924 = vmatpush1.msra.mxu0 0.0
    %5925 = vmatprep.subr.mxu0 0.0
    %5926 = vmatpush1.msra.mxu0 0.0
    %5927 = vmatprep.subr.mxu0 0.0
    %5928 = vmatpush1.msra.mxu0 0.0
    %5929 = vmatprep.subr.mxu0 0.0
    %5930 = vmatpush1.msra.mxu0 0.0
    %5931 = vmatprep.subr.mxu0 0.0
    %5932 = vmatpush1.msra.mxu0 0.0
    %5933 = vmatprep.subr.mxu0 0.0
    %5934 = vmatpush1.msra.mxu0 0.0
    %5935 = vmatprep.subr.mxu0 0.0
    %5936 = vmatpush1.msra.mxu0 0.0
    %5937 = vmatprep.mubr.f32.mxu0 0.0
    %5938 = vmatmul.mubr.f32.gmra.mrb[0].mxu0 %v5871
    %v5939 = vpop.f32.mrb[0].mxu0
    %v5940 = vadd.f32 0.0, %v5939
    %v5941 = vpop.f32.mrb[0].mxu0
    %5942 = vdwg.mxu0
    %5943 = vrot.lane.b32.xlu0 %v3971, 48
    %v5944 = vpop.permute.xlu0 %5943
    %v5947 = vsel %vm393, %v5789, 0
    %5949 = vmatprep.subr.mxu0 0.0
    %5950 = vmatpush1.msra.mxu0 %v5944
    %5951 = vmatprep.subr.mxu0 0.0
    %5952 = vmatpush1.msra.mxu0 0.0
    %5953 = vmatprep.subr.mxu0 0.0
    %5954 = vmatpush1.msra.mxu0 0.0
    %5955 = vmatprep.subr.mxu0 0.0
    %5956 = vmatpush1.msra.mxu0 0.0
    %5957 = vmatprep.subr.mxu0 0.0
    %5958 = vmatpush1.msra.mxu0 0.0
    %5959 = vmatprep.subr.mxu0 0.0
    %5960 = vmatpush1.msra.mxu0 0.0
    %5961 = vmatprep.subr.mxu0 0.0
    %5962 = vmatpush1.msra.mxu0 0.0
    %5963 = vmatprep.subr.mxu0 0.0
    %5964 = vmatpush1.msra.mxu0 0.0
    %5965 = vmatprep.subr.mxu0 0.0
    %5966 = vmatpush1.msra.mxu0 0.0
    %5967 = vmatprep.subr.mxu0 0.0
    %5968 = vmatpush1.msra.mxu0 0.0
    %5969 = vmatprep.subr.mxu0 0.0
    %5970 = vmatpush1.msra.mxu0 0.0
    %5971 = vmatprep.subr.mxu0 0.0
    %5972 = vmatpush1.msra.mxu0 0.0
    %5973 = vmatprep.subr.mxu0 0.0
    %5974 = vmatpush1.msra.mxu0 0.0
    %5975 = vmatprep.subr.mxu0 0.0
    %5976 = vmatpush1.msra.mxu0 0.0
    %5977 = vmatprep.subr.mxu0 0.0
    %5978 = vmatpush1.msra.mxu0 0.0
    %5979 = vmatprep.subr.mxu0 0.0
    %5980 = vmatpush1.msra.mxu0 0.0
    %5981 = vmatprep.subr.mxu0 0.0
    %5982 = vmatpush1.msra.mxu0 0.0
    %5983 = vmatprep.subr.mxu0 0.0
    %5984 = vmatpush1.msra.mxu0 0.0
    %5985 = vmatprep.subr.mxu0 0.0
    %5986 = vmatpush1.msra.mxu0 0.0
    %5987 = vmatprep.subr.mxu0 0.0
    %5988 = vmatpush1.msra.mxu0 0.0
    %5989 = vmatprep.subr.mxu0 0.0
    %5990 = vmatpush1.msra.mxu0 0.0
    %5991 = vmatprep.subr.mxu0 0.0
    %5992 = vmatpush1.msra.mxu0 0.0
    %5993 = vmatprep.subr.mxu0 0.0
    %5994 = vmatpush1.msra.mxu0 0.0
    %5995 = vmatprep.subr.mxu0 0.0
    %5996 = vmatpush1.msra.mxu0 0.0
    %5997 = vmatprep.subr.mxu0 0.0
    %5998 = vmatpush1.msra.mxu0 0.0
    %5999 = vmatprep.subr.mxu0 0.0
    %6000 = vmatpush1.msra.mxu0 0.0
    %6001 = vmatprep.subr.mxu0 0.0
    %6002 = vmatpush1.msra.mxu0 0.0
    %6003 = vmatprep.subr.mxu0 0.0
    %6004 = vmatpush1.msra.mxu0 0.0
    %6005 = vmatprep.subr.mxu0 0.0
    %6006 = vmatpush1.msra.mxu0 0.0
    %6007 = vmatprep.subr.mxu0 0.0
    %6008 = vmatpush1.msra.mxu0 0.0
    %6009 = vmatprep.subr.mxu0 0.0
    %6010 = vmatpush1.msra.mxu0 0.0
    %6011 = vmatprep.subr.mxu0 0.0
    %6012 = vmatpush1.msra.mxu0 0.0
    %6013 = vmatprep.mubr.f32.mxu0 0.0
    %6014 = vmatmul.mubr.f32.gmra.mrb[0].mxu0 %v5947
    %v6015 = vpop.f32.mrb[0].mxu0
    %v6016 = vadd.f32 0.0, %v6015
    %v6017 = vpop.f32.mrb[0].mxu0
    %6018 = vdwg.mxu0
    %6019 = vrot.lane.b32.xlu0 %v3976, 48
    %v6020 = vpop.permute.xlu0 %6019
    %v6023 = vsel %vm393, %v5790, 0
    %6025 = vmatprep.subr.mxu0 0.0
    %6026 = vmatpush1.msra.mxu0 %v6020
    %6027 = vmatprep.subr.mxu0 0.0
    %6028 = vmatpush1.msra.mxu0 0.0
    %6029 = vmatprep.subr.mxu0 0.0
    %6030 = vmatpush1.msra.mxu0 0.0
    %6031 = vmatprep.subr.mxu0 0.0
    %6032 = vmatpush1.msra.mxu0 0.0
    %6033 = vmatprep.subr.mxu0 0.0
    %6034 = vmatpush1.msra.mxu0 0.0
    %6035 = vmatprep.subr.mxu0 0.0
    %6036 = vmatpush1.msra.mxu0 0.0
    %6037 = vmatprep.subr.mxu0 0.0
    %6038 = vmatpush1.msra.mxu0 0.0
    %6039 = vmatprep.subr.mxu0 0.0
    %6040 = vmatpush1.msra.mxu0 0.0
    %6041 = vmatprep.subr.mxu0 0.0
    %6042 = vmatpush1.msra.mxu0 0.0
    %6043 = vmatprep.subr.mxu0 0.0
    %6044 = vmatpush1.msra.mxu0 0.0
    %6045 = vmatprep.subr.mxu0 0.0
    %6046 = vmatpush1.msra.mxu0 0.0
    %6047 = vmatprep.subr.mxu0 0.0
    %6048 = vmatpush1.msra.mxu0 0.0
    %6049 = vmatprep.subr.mxu0 0.0
    %6050 = vmatpush1.msra.mxu0 0.0
    %6051 = vmatprep.subr.mxu0 0.0
    %6052 = vmatpush1.msra.mxu0 0.0
    %6053 = vmatprep.subr.mxu0 0.0
    %6054 = vmatpush1.msra.mxu0 0.0
    %6055 = vmatprep.subr.mxu0 0.0
    %6056 = vmatpush1.msra.mxu0 0.0
    %6057 = vmatprep.subr.mxu0 0.0
    %6058 = vmatpush1.msra.mxu0 0.0
    %6059 = vmatprep.subr.mxu0 0.0
    %6060 = vmatpush1.msra.mxu0 0.0
    %6061 = vmatprep.subr.mxu0 0.0
    %6062 = vmatpush1.msra.mxu0 0.0
    %6063 = vmatprep.subr.mxu0 0.0
    %6064 = vmatpush1.msra.mxu0 0.0
    %6065 = vmatprep.subr.mxu0 0.0
    %6066 = vmatpush1.msra.mxu0 0.0
    %6067 = vmatprep.subr.mxu0 0.0
    %6068 = vmatpush1.msra.mxu0 0.0
    %6069 = vmatprep.subr.mxu0 0.0
    %6070 = vmatpush1.msra.mxu0 0.0
    %6071 = vmatprep.subr.mxu0 0.0
    %6072 = vmatpush1.msra.mxu0 0.0
    %6073 = vmatprep.subr.mxu0 0.0
    %6074 = vmatpush1.msra.mxu0 0.0
    %6075 = vmatprep.subr.mxu0 0.0
    %6076 = vmatpush1.msra.mxu0 0.0
    %6077 = vmatprep.subr.mxu0 0.0
    %6078 = vmatpush1.msra.mxu0 0.0
    %6079 = vmatprep.subr.mxu0 0.0
    %6080 = vmatpush1.msra.mxu0 0.0
    %6081 = vmatprep.subr.mxu0 0.0
    %6082 = vmatpush1.msra.mxu0 0.0
    %6083 = vmatprep.subr.mxu0 0.0
    %6084 = vmatpush1.msra.mxu0 0.0
    %6085 = vmatprep.subr.mxu0 0.0
    %6086 = vmatpush1.msra.mxu0 0.0
    %6087 = vmatprep.subr.mxu0 0.0
    %6088 = vmatpush1.msra.mxu0 0.0
    %6089 = vmatprep.mubr.f32.mxu0 0.0
    %6090 = vmatmul.mubr.f32.gmra.mrb[0].mxu0 %v6023
    %v6091 = vpop.f32.mrb[0].mxu0
    %v6092 = vadd.f32 0.0, %v6091
    %v6093 = vpop.f32.mrb[0].mxu0
    %6094 = vdwg.mxu0
    %v6095 = vsel %vm393, %v5864, -inf
    %v6096 = vsel %vm393, %v5940, -inf
    %v6097 = vsel %vm393, %v6016, -inf
    %v6098 = vsel %vm393, %v6092, -inf
    %v6099 = vmax.f32 %v6095, %v6096
    %v6100 = vmax.f32 %v6097, %v6098
    %v6101 = vmax.f32 %v6099, %v6100
    %v6102 = vsub.f32 %v5864, %v6101
    %v6103 = vsub.f32 %v5940, %v6101
    %v6104 = vsub.f32 %v6016, %v6101
    %v6105 = vsub.f32 %v6092, %v6101
    %v6106 = vmul.f32 %v6102, 1.442695
    %v6107 = vpow.pop %v6106
    %v6108 = vmul.f32 %v6103, 1.442695
    %v6109 = vpow.pop %v6108
    %v6110 = vmul.f32 %v6104, 1.442695
    %v6111 = vpow.pop %v6110
    %v6112 = vmul.f32 %v6105, 1.442695
    %v6113 = vpow.pop %v6112
    %v6114 = vsel %vm393, %v6107, 0.0
    %v6115 = vsel %vm393, %v6109, 0.0
    %v6116 = vadd.f32 %v6114, %v6115
    %v6117 = vsel %vm393, %v6111, 0.0
    %v6118 = vadd.f32 %v6116, %v6117
    %v6119 = vsel %vm393, %v6113, 0.0
    %v6120 = vadd.f32 %v6118, %v6119
    %v6121 = vrcp.pop %v6120
    %v6122 = vmul.f32 %v6107, %v6121
    %v6123 = vmul.f32 %v6109, %v6121
    %v6124 = vmul.f32 %v6111, %v6121
    %v6125 = vmul.f32 %v6113, %v6121
    %s6126 = scalar_lea.vmem [#allocation8], 48
    %v6127 = vld [vmem:[%s6126] sm:$0xff]
    %v6129 = vsel %vm393, %v6122, 0
    %v6132 = vsel %vm393, %v6123, 0
    %v6135 = vsel %vm393, %v6124, 0
    %v6138 = vsel %vm393, %v6125, 0
    %6140 = vmatprep.subr.mxu0 0.0
    %6141 = vmatpush1.msra.mxu0 %v6127
    %6142 = vmatprep.subr.mxu0 0.0
    %6143 = vmatpush1.msra.mxu0 0.0
    %6144 = vmatprep.subr.mxu0 0.0
    %6145 = vmatpush1.msra.mxu0 0.0
    %6146 = vmatprep.subr.mxu0 0.0
    %6147 = vmatpush1.msra.mxu0 0.0
    %6148 = vmatprep.subr.mxu0 0.0
    %6149 = vmatpush1.msra.mxu0 0.0
    %6150 = vmatprep.subr.mxu0 0.0
    %6151 = vmatpush1.msra.mxu0 0.0
    %6152 = vmatprep.subr.mxu0 0.0
    %6153 = vmatpush1.msra.mxu0 0.0
    %6154 = vmatprep.subr.mxu0 0.0
    %6155 = vmatpush1.msra.mxu0 0.0
    %6156 = vmatprep.subr.mxu0 0.0
    %6157 = vmatpush1.msra.mxu0 0.0
    %6158 = vmatprep.subr.mxu0 0.0
    %6159 = vmatpush1.msra.mxu0 0.0
    %6160 = vmatprep.subr.mxu0 0.0
    %6161 = vmatpush1.msra.mxu0 0.0
    %6162 = vmatprep.subr.mxu0 0.0
    %6163 = vmatpush1.msra.mxu0 0.0
    %6164 = vmatprep.subr.mxu0 0.0
    %6165 = vmatpush1.msra.mxu0 0.0
    %6166 = vmatprep.subr.mxu0 0.0
    %6167 = vmatpush1.msra.mxu0 0.0
    %6168 = vmatprep.subr.mxu0 0.0
    %6169 = vmatpush1.msra.mxu0 0.0
    %6170 = vmatprep.subr.mxu0 0.0
    %6171 = vmatpush1.msra.mxu0 0.0
    %6172 = vmatprep.subr.mxu0 0.0
    %6173 = vmatpush1.msra.mxu0 0.0
    %6174 = vmatprep.subr.mxu0 0.0
    %6175 = vmatpush1.msra.mxu0 0.0
    %6176 = vmatprep.subr.mxu0 0.0
    %6177 = vmatpush1.msra.mxu0 0.0
    %6178 = vmatprep.subr.mxu0 0.0
    %6179 = vmatpush1.msra.mxu0 0.0
    %6180 = vmatprep.subr.mxu0 0.0
    %6181 = vmatpush1.msra.mxu0 0.0
    %6182 = vmatprep.subr.mxu0 0.0
    %6183 = vmatpush1.msra.mxu0 0.0
    %6184 = vmatprep.subr.mxu0 0.0
    %6185 = vmatpush1.msra.mxu0 0.0
    %6186 = vmatprep.subr.mxu0 0.0
    %6187 = vmatpush1.msra.mxu0 0.0
    %6188 = vmatprep.subr.mxu0 0.0
    %6189 = vmatpush1.msra.mxu0 0.0
    %6190 = vmatprep.subr.mxu0 0.0
    %6191 = vmatpush1.msra.mxu0 0.0
    %6192 = vmatprep.subr.mxu0 0.0
    %6193 = vmatpush1.msra.mxu0 0.0
    %6194 = vmatprep.subr.mxu0 0.0
    %6195 = vmatpush1.msra.mxu0 0.0
    %6196 = vmatprep.subr.mxu0 0.0
    %6197 = vmatpush1.msra.mxu0 0.0
    %6198 = vmatprep.subr.mxu0 0.0
    %6199 = vmatpush1.msra.mxu0 0.0
    %6200 = vmatprep.subr.mxu0 0.0
    %6201 = vmatpush1.msra.mxu0 0.0
    %6202 = vmatprep.subr.mxu0 0.0
    %6203 = vmatpush1.msra.mxu0 0.0
    %6204 = vmatprep.mubr.f32.mxu0 0.0
    %6205 = vmatmul.mubr.f32.gmra.mrb[0].mxu0 %v6129
    %v6206 = vpop.f32.mrb[0].mxu0
    %v6207 = vadd.f32 0.0, %v6206
    %v6208 = vpop.f32.mrb[0].mxu0
    %6209 = vmatprep.mubr.f32.mxu0 0.0
    %6210 = vmatmul.mubr.f32.gmra.mrb[0].mxu0 %v6132
    %v6211 = vpop.f32.mrb[0].mxu0
    %v6212 = vadd.f32 0.0, %v6211
    %v6213 = vpop.f32.mrb[0].mxu0
    %6214 = vmatprep.mubr.f32.mxu0 0.0
    %6215 = vmatmul.mubr.f32.gmra.mrb[0].mxu0 %v6135
    %v6216 = vpop.f32.mrb[0].mxu0
    %v6217 = vadd.f32 0.0, %v6216
    %v6218 = vpop.f32.mrb[0].mxu0
    %6219 = vmatprep.mubr.f32.mxu0 0.0
    %6220 = vmatmul.mubr.f32.gmra.mrb[0].mxu0 %v6138
    %v6221 = vpop.f32.mrb[0].mxu0
    %v6222 = vadd.f32 0.0, %v6221
    %v6223 = vpop.f32.mrb[0].mxu0
    %6224 = vdwg.mxu0
    %v6225 = vadd.f32 %v5457, %v6207
    %v6226 = vadd.f32 %v5462, %v6212
    %v6227 = vadd.f32 %v5467, %v6217
    %v6228 = vadd.f32 %v5472, %v6222
    %6229 = vrot.lane.b32.xlu0 %v3961, 104
    %v6230 = vpop.permute.xlu0 %6229
    %6231 = vrot.lane.b32.xlu0 %v3961, 72
    %v6232 = vpop.permute.xlu0 %6231
    %v6233 = vsel %vm393, %v6230, 0
    %v6235 = vsel %vm393, %v6232, 0
    %6237 = vmatprep.subr.mxu0 0.0
    %6238 = vmatpush1.xpose.msra.mxu0 %v6235
    %6239 = vmatprep.subr.mxu0 0.0
    %6240 = vmatpush1.xpose.msra.mxu0 0.0
    %6241 = vmatprep.subr.mxu0 0.0
    %6242 = vmatpush1.xpose.msra.mxu0 0.0
    %6243 = vmatprep.subr.mxu0 0.0
    %6244 = vmatpush1.xpose.msra.mxu0 0.0
    %6245 = vmatprep.subr.mxu0 0.0
    %6246 = vmatpush1.xpose.msra.mxu0 0.0
    %6247 = vmatprep.subr.mxu0 0.0
    %6248 = vmatpush1.xpose.msra.mxu0 0.0
    %6249 = vmatprep.subr.mxu0 0.0
    %6250 = vmatpush1.xpose.msra.mxu0 0.0
    %6251 = vmatprep.subr.mxu0 0.0
    %6252 = vmatpush1.xpose.msra.mxu0 0.0
    %6253 = vmatprep.subr.mxu0 0.0
    %6254 = vmatpush1.xpose.msra.mxu0 0.0
    %6255 = vmatprep.subr.mxu0 0.0
    %6256 = vmatpush1.xpose.msra.mxu0 0.0
    %6257 = vmatprep.subr.mxu0 0.0
    %6258 = vmatpush1.xpose.msra.mxu0 0.0
    %6259 = vmatprep.subr.mxu0 0.0
    %6260 = vmatpush1.xpose.msra.mxu0 0.0
    %6261 = vmatprep.subr.mxu0 0.0
    %6262 = vmatpush1.xpose.msra.mxu0 0.0
    %6263 = vmatprep.subr.mxu0 0.0
    %6264 = vmatpush1.xpose.msra.mxu0 0.0
    %6265 = vmatprep.subr.mxu0 0.0
    %6266 = vmatpush1.xpose.msra.mxu0 0.0
    %6267 = vmatprep.subr.mxu0 0.0
    %6268 = vmatpush1.xpose.msra.mxu0 0.0
    %6269 = vmatprep.subr.mxu0 0.0
    %6270 = vmatpush1.xpose.msra.mxu0 0.0
    %6271 = vmatprep.subr.mxu0 0.0
    %6272 = vmatpush1.xpose.msra.mxu0 0.0
    %6273 = vmatprep.subr.mxu0 0.0
    %6274 = vmatpush1.xpose.msra.mxu0 0.0
    %6275 = vmatprep.subr.mxu0 0.0
    %6276 = vmatpush1.xpose.msra.mxu0 0.0
    %6277 = vmatprep.subr.mxu0 0.0
    %6278 = vmatpush1.xpose.msra.mxu0 0.0
    %6279 = vmatprep.subr.mxu0 0.0
    %6280 = vmatpush1.xpose.msra.mxu0 0.0
    %6281 = vmatprep.subr.mxu0 0.0
    %6282 = vmatpush1.xpose.msra.mxu0 0.0
    %6283 = vmatprep.subr.mxu0 0.0
    %6284 = vmatpush1.xpose.msra.mxu0 0.0
    %6285 = vmatprep.subr.mxu0 0.0
    %6286 = vmatpush1.xpose.msra.mxu0 0.0
    %6287 = vmatprep.subr.mxu0 0.0
    %6288 = vmatpush1.xpose.msra.mxu0 0.0
    %6289 = vmatprep.subr.mxu0 0.0
    %6290 = vmatpush1.xpose.msra.mxu0 0.0
    %6291 = vmatprep.subr.mxu0 0.0
    %6292 = vmatpush1.xpose.msra.mxu0 0.0
    %6293 = vmatprep.subr.mxu0 0.0
    %6294 = vmatpush1.xpose.msra.mxu0 0.0
    %6295 = vmatprep.subr.mxu0 0.0
    %6296 = vmatpush1.xpose.msra.mxu0 0.0
    %6297 = vmatprep.subr.mxu0 0.0
    %6298 = vmatpush1.xpose.msra.mxu0 0.0
    %6299 = vmatprep.subr.mxu0 0.0
    %6300 = vmatpush1.xpose.msra.mxu0 0.0
    %6301 = vmatprep.mubr.f32.mxu0 0.0
    %6302 = vmatmul.mubr.f32.gmra.mrb[0].mxu0 %v6233
    %v6303 = vpop.f32.mrb[0].mxu0
    %v6304 = vadd.f32 0.0, %v6303
    %v6305 = vpop.f32.mrb[0].mxu0
    %6306 = vdwg.mxu0
    %6307 = vrot.lane.b32.xlu0 %v3966, 104
    %v6308 = vpop.permute.xlu0 %6307
    %6309 = vrot.lane.b32.xlu0 %v3966, 72
    %v6310 = vpop.permute.xlu0 %6309
    %v6311 = vsel %vm393, %v6308, 0
    %v6313 = vsel %vm393, %v6310, 0
    %6315 = vmatprep.subr.mxu0 0.0
    %6316 = vmatpush1.xpose.msra.mxu0 %v6313
    %6317 = vmatprep.subr.mxu0 0.0
    %6318 = vmatpush1.xpose.msra.mxu0 0.0
    %6319 = vmatprep.subr.mxu0 0.0
    %6320 = vmatpush1.xpose.msra.mxu0 0.0
    %6321 = vmatprep.subr.mxu0 0.0
    %6322 = vmatpush1.xpose.msra.mxu0 0.0
    %6323 = vmatprep.subr.mxu0 0.0
    %6324 = vmatpush1.xpose.msra.mxu0 0.0
    %6325 = vmatprep.subr.mxu0 0.0
    %6326 = vmatpush1.xpose.msra.mxu0 0.0
    %6327 = vmatprep.subr.mxu0 0.0
    %6328 = vmatpush1.xpose.msra.mxu0 0.0
    %6329 = vmatprep.subr.mxu0 0.0
    %6330 = vmatpush1.xpose.msra.mxu0 0.0
    %6331 = vmatprep.subr.mxu0 0.0
    %6332 = vmatpush1.xpose.msra.mxu0 0.0
    %6333 = vmatprep.subr.mxu0 0.0
    %6334 = vmatpush1.xpose.msra.mxu0 0.0
    %6335 = vmatprep.subr.mxu0 0.0
    %6336 = vmatpush1.xpose.msra.mxu0 0.0
    %6337 = vmatprep.subr.mxu0 0.0
    %6338 = vmatpush1.xpose.msra.mxu0 0.0
    %6339 = vmatprep.subr.mxu0 0.0
    %6340 = vmatpush1.xpose.msra.mxu0 0.0
    %6341 = vmatprep.subr.mxu0 0.0
    %6342 = vmatpush1.xpose.msra.mxu0 0.0
    %6343 = vmatprep.subr.mxu0 0.0
    %6344 = vmatpush1.xpose.msra.mxu0 0.0
    %6345 = vmatprep.subr.mxu0 0.0
    %6346 = vmatpush1.xpose.msra.mxu0 0.0
    %6347 = vmatprep.subr.mxu0 0.0
    %6348 = vmatpush1.xpose.msra.mxu0 0.0
    %6349 = vmatprep.subr.mxu0 0.0
    %6350 = vmatpush1.xpose.msra.mxu0 0.0
    %6351 = vmatprep.subr.mxu0 0.0
    %6352 = vmatpush1.xpose.msra.mxu0 0.0
    %6353 = vmatprep.subr.mxu0 0.0
    %6354 = vmatpush1.xpose.msra.mxu0 0.0
    %6355 = vmatprep.subr.mxu0 0.0
    %6356 = vmatpush1.xpose.msra.mxu0 0.0
    %6357 = vmatprep.subr.mxu0 0.0
    %6358 = vmatpush1.xpose.msra.mxu0 0.0
    %6359 = vmatprep.subr.mxu0 0.0
    %6360 = vmatpush1.xpose.msra.mxu0 0.0
    %6361 = vmatprep.subr.mxu0 0.0
    %6362 = vmatpush1.xpose.msra.mxu0 0.0
    %6363 = vmatprep.subr.mxu0 0.0
    %6364 = vmatpush1.xpose.msra.mxu0 0.0
    %6365 = vmatprep.subr.mxu0 0.0
    %6366 = vmatpush1.xpose.msra.mxu0 0.0
    %6367 = vmatprep.subr.mxu0 0.0
    %6368 = vmatpush1.xpose.msra.mxu0 0.0
    %6369 = vmatprep.subr.mxu0 0.0
    %6370 = vmatpush1.xpose.msra.mxu0 0.0
    %6371 = vmatprep.subr.mxu0 0.0
    %6372 = vmatpush1.xpose.msra.mxu0 0.0
    %6373 = vmatprep.subr.mxu0 0.0
    %6374 = vmatpush1.xpose.msra.mxu0 0.0
    %6375 = vmatprep.subr.mxu0 0.0
    %6376 = vmatpush1.xpose.msra.mxu0 0.0
    %6377 = vmatprep.subr.mxu0 0.0
    %6378 = vmatpush1.xpose.msra.mxu0 0.0
    %6379 = vmatprep.mubr.f32.mxu0 0.0
    %6380 = vmatmul.mubr.f32.gmra.mrb[0].mxu0 %v6311
    %v6381 = vpop.f32.mrb[0].mxu0
    %v6382 = vadd.f32 0.0, %v6381
    %v6383 = vpop.f32.mrb[0].mxu0
    %6384 = vdwg.mxu0
    %6385 = vrot.lane.b32.xlu0 %v3971, 104
    %v6386 = vpop.permute.xlu0 %6385
    %6387 = vrot.lane.b32.xlu0 %v3971, 72
    %v6388 = vpop.permute.xlu0 %6387
    %v6389 = vsel %vm393, %v6386, 0
    %v6391 = vsel %vm393, %v6388, 0
    %6393 = vmatprep.subr.mxu0 0.0
    %6394 = vmatpush1.xpose.msra.mxu0 %v6391
    %6395 = vmatprep.subr.mxu0 0.0
    %6396 = vmatpush1.xpose.msra.mxu0 0.0
    %6397 = vmatprep.subr.mxu0 0.0
    %6398 = vmatpush1.xpose.msra.mxu0 0.0
    %6399 = vmatprep.subr.mxu0 0.0
    %6400 = vmatpush1.xpose.msra.mxu0 0.0
    %6401 = vmatprep.subr.mxu0 0.0
    %6402 = vmatpush1.xpose.msra.mxu0 0.0
    %6403 = vmatprep.subr.mxu0 0.0
    %6404 = vmatpush1.xpose.msra.mxu0 0.0
    %6405 = vmatprep.subr.mxu0 0.0
    %6406 = vmatpush1.xpose.msra.mxu0 0.0
    %6407 = vmatprep.subr.mxu0 0.0
    %6408 = vmatpush1.xpose.msra.mxu0 0.0
    %6409 = vmatprep.subr.mxu0 0.0
    %6410 = vmatpush1.xpose.msra.mxu0 0.0
    %6411 = vmatprep.subr.mxu0 0.0
    %6412 = vmatpush1.xpose.msra.mxu0 0.0
    %6413 = vmatprep.subr.mxu0 0.0
    %6414 = vmatpush1.xpose.msra.mxu0 0.0
    %6415 = vmatprep.subr.mxu0 0.0
    %6416 = vmatpush1.xpose.msra.mxu0 0.0
    %6417 = vmatprep.subr.mxu0 0.0
    %6418 = vmatpush1.xpose.msra.mxu0 0.0
    %6419 = vmatprep.subr.mxu0 0.0
    %6420 = vmatpush1.xpose.msra.mxu0 0.0
    %6421 = vmatprep.subr.mxu0 0.0
    %6422 = vmatpush1.xpose.msra.mxu0 0.0
    %6423 = vmatprep.subr.mxu0 0.0
    %6424 = vmatpush1.xpose.msra.mxu0 0.0
    %6425 = vmatprep.subr.mxu0 0.0
    %6426 = vmatpush1.xpose.msra.mxu0 0.0
    %6427 = vmatprep.subr.mxu0 0.0
    %6428 = vmatpush1.xpose.msra.mxu0 0.0
    %6429 = vmatprep.subr.mxu0 0.0
    %6430 = vmatpush1.xpose.msra.mxu0 0.0
    %6431 = vmatprep.subr.mxu0 0.0
    %6432 = vmatpush1.xpose.msra.mxu0 0.0
    %6433 = vmatprep.subr.mxu0 0.0
    %6434 = vmatpush1.xpose.msra.mxu0 0.0
    %6435 = vmatprep.subr.mxu0 0.0
    %6436 = vmatpush1.xpose.msra.mxu0 0.0
    %6437 = vmatprep.subr.mxu0 0.0
    %6438 = vmatpush1.xpose.msra.mxu0 0.0
    %6439 = vmatprep.subr.mxu0 0.0
    %6440 = vmatpush1.xpose.msra.mxu0 0.0
    %6441 = vmatprep.subr.mxu0 0.0
    %6442 = vmatpush1.xpose.msra.mxu0 0.0
    %6443 = vmatprep.subr.mxu0 0.0
    %6444 = vmatpush1.xpose.msra.mxu0 0.0
    %6445 = vmatprep.subr.mxu0 0.0
    %6446 = vmatpush1.xpose.msra.mxu0 0.0
    %6447 = vmatprep.subr.mxu0 0.0
    %6448 = vmatpush1.xpose.msra.mxu0 0.0
    %6449 = vmatprep.subr.mxu0 0.0
    %6450 = vmatpush1.xpose.msra.mxu0 0.0
    %6451 = vmatprep.subr.mxu0 0.0
    %6452 = vmatpush1.xpose.msra.mxu0 0.0
    %6453 = vmatprep.subr.mxu0 0.0
    %6454 = vmatpush1.xpose.msra.mxu0 0.0
    %6455 = vmatprep.subr.mxu0 0.0
    %6456 = vmatpush1.xpose.msra.mxu0 0.0
    %6457 = vmatprep.mubr.f32.mxu0 0.0
    %6458 = vmatmul.mubr.f32.gmra.mrb[0].mxu0 %v6389
    %v6459 = vpop.f32.mrb[0].mxu0
    %v6460 = vadd.f32 0.0, %v6459
    %v6461 = vpop.f32.mrb[0].mxu0
    %6462 = vdwg.mxu0
    %6463 = vrot.lane.b32.xlu0 %v3976, 104
    %v6464 = vpop.permute.xlu0 %6463
    %6465 = vrot.lane.b32.xlu0 %v3976, 72
    %v6466 = vpop.permute.xlu0 %6465
    %v6467 = vsel %vm393, %v6464, 0
    %v6469 = vsel %vm393, %v6466, 0
    %6471 = vmatprep.subr.mxu0 0.0
    %6472 = vmatpush1.xpose.msra.mxu0 %v6469
    %6473 = vmatprep.subr.mxu0 0.0
    %6474 = vmatpush1.xpose.msra.mxu0 0.0
    %6475 = vmatprep.subr.mxu0 0.0
    %6476 = vmatpush1.xpose.msra.mxu0 0.0
    %6477 = vmatprep.subr.mxu0 0.0
    %6478 = vmatpush1.xpose.msra.mxu0 0.0
    %6479 = vmatprep.subr.mxu0 0.0
    %6480 = vmatpush1.xpose.msra.mxu0 0.0
    %6481 = vmatprep.subr.mxu0 0.0
    %6482 = vmatpush1.xpose.msra.mxu0 0.0
    %6483 = vmatprep.subr.mxu0 0.0
    %6484 = vmatpush1.xpose.msra.mxu0 0.0
    %6485 = vmatprep.subr.mxu0 0.0
    %6486 = vmatpush1.xpose.msra.mxu0 0.0
    %6487 = vmatprep.subr.mxu0 0.0
    %6488 = vmatpush1.xpose.msra.mxu0 0.0
    %6489 = vmatprep.subr.mxu0 0.0
    %6490 = vmatpush1.xpose.msra.mxu0 0.0
    %6491 = vmatprep.subr.mxu0 0.0
    %6492 = vmatpush1.xpose.msra.mxu0 0.0
    %6493 = vmatprep.subr.mxu0 0.0
    %6494 = vmatpush1.xpose.msra.mxu0 0.0
    %6495 = vmatprep.subr.mxu0 0.0
    %6496 = vmatpush1.xpose.msra.mxu0 0.0
    %6497 = vmatprep.subr.mxu0 0.0
    %6498 = vmatpush1.xpose.msra.mxu0 0.0
    %6499 = vmatprep.subr.mxu0 0.0
    %6500 = vmatpush1.xpose.msra.mxu0 0.0
    %6501 = vmatprep.subr.mxu0 0.0
    %6502 = vmatpush1.xpose.msra.mxu0 0.0
    %6503 = vmatprep.subr.mxu0 0.0
    %6504 = vmatpush1.xpose.msra.mxu0 0.0
    %6505 = vmatprep.subr.mxu0 0.0
    %6506 = vmatpush1.xpose.msra.mxu0 0.0
    %6507 = vmatprep.subr.mxu0 0.0
    %6508 = vmatpush1.xpose.msra.mxu0 0.0
    %6509 = vmatprep.subr.mxu0 0.0
    %6510 = vmatpush1.xpose.msra.mxu0 0.0
    %6511 = vmatprep.subr.mxu0 0.0
    %6512 = vmatpush1.xpose.msra.mxu0 0.0
    %6513 = vmatprep.subr.mxu0 0.0
    %6514 = vmatpush1.xpose.msra.mxu0 0.0
    %6515 = vmatprep.subr.mxu0 0.0
    %6516 = vmatpush1.xpose.msra.mxu0 0.0
    %6517 = vmatprep.subr.mxu0 0.0
    %6518 = vmatpush1.xpose.msra.mxu0 0.0
    %6519 = vmatprep.subr.mxu0 0.0
    %6520 = vmatpush1.xpose.msra.mxu0 0.0
    %6521 = vmatprep.subr.mxu0 0.0
    %6522 = vmatpush1.xpose.msra.mxu0 0.0
    %6523 = vmatprep.subr.mxu0 0.0
    %6524 = vmatpush1.xpose.msra.mxu0 0.0
    %6525 = vmatprep.subr.mxu0 0.0
    %6526 = vmatpush1.xpose.msra.mxu0 0.0
    %6527 = vmatprep.subr.mxu0 0.0
    %6528 = vmatpush1.xpose.msra.mxu0 0.0
    %6529 = vmatprep.subr.mxu0 0.0
    %6530 = vmatpush1.xpose.msra.mxu0 0.0
    %6531 = vmatprep.subr.mxu0 0.0
    %6532 = vmatpush1.xpose.msra.mxu0 0.0
    %6533 = vmatprep.subr.mxu0 0.0
    %6534 = vmatpush1.xpose.msra.mxu0 0.0
    %6535 = vmatprep.mubr.f32.mxu0 0.0
    %6536 = vmatmul.mubr.f32.gmra.mrb[0].mxu0 %v6467
    %v6537 = vpop.f32.mrb[0].mxu0
    %v6538 = vadd.f32 0.0, %v6537
    %v6539 = vpop.f32.mrb[0].mxu0
    %6540 = vdwg.mxu0
    %v6541 = vmul.f32 %v6304, 0.35355338
    %v6542 = vmul.f32 %v6382, 0.35355338
    %v6543 = vmul.f32 %v6460, 0.35355338
    %v6544 = vmul.f32 %v6538, 0.35355338
    %6545 = vrot.lane.b32.xlu0 %v3961, 40
    %v6546 = vpop.permute.xlu0 %6545
    %v6549 = vsel %vm393, %v6541, 0
    %6551 = vmatprep.subr.mxu0 0.0
    %6552 = vmatpush1.msra.mxu0 %v6546
    %6553 = vmatprep.subr.mxu0 0.0
    %6554 = vmatpush1.msra.mxu0 0.0
    %6555 = vmatprep.subr.mxu0 0.0
    %6556 = vmatpush1.msra.mxu0 0.0
    %6557 = vmatprep.subr.mxu0 0.0
    %6558 = vmatpush1.msra.mxu0 0.0
    %6559 = vmatprep.subr.mxu0 0.0
    %6560 = vmatpush1.msra.mxu0 0.0
    %6561 = vmatprep.subr.mxu0 0.0
    %6562 = vmatpush1.msra.mxu0 0.0
    %6563 = vmatprep.subr.mxu0 0.0
    %6564 = vmatpush1.msra.mxu0 0.0
    %6565 = vmatprep.subr.mxu0 0.0
    %6566 = vmatpush1.msra.mxu0 0.0
    %6567 = vmatprep.subr.mxu0 0.0
    %6568 = vmatpush1.msra.mxu0 0.0
    %6569 = vmatprep.subr.mxu0 0.0
    %6570 = vmatpush1.msra.mxu0 0.0
    %6571 = vmatprep.subr.mxu0 0.0
    %6572 = vmatpush1.msra.mxu0 0.0
    %6573 = vmatprep.subr.mxu0 0.0
    %6574 = vmatpush1.msra.mxu0 0.0
    %6575 = vmatprep.subr.mxu0 0.0
    %6576 = vmatpush1.msra.mxu0 0.0
    %6577 = vmatprep.subr.mxu0 0.0
    %6578 = vmatpush1.msra.mxu0 0.0
    %6579 = vmatprep.subr.mxu0 0.0
    %6580 = vmatpush1.msra.mxu0 0.0
    %6581 = vmatprep.subr.mxu0 0.0
    %6582 = vmatpush1.msra.mxu0 0.0
    %6583 = vmatprep.subr.mxu0 0.0
    %6584 = vmatpush1.msra.mxu0 0.0
    %6585 = vmatprep.subr.mxu0 0.0
    %6586 = vmatpush1.msra.mxu0 0.0
    %6587 = vmatprep.subr.mxu0 0.0
    %6588 = vmatpush1.msra.mxu0 0.0
    %6589 = vmatprep.subr.mxu0 0.0
    %6590 = vmatpush1.msra.mxu0 0.0
    %6591 = vmatprep.subr.mxu0 0.0
    %6592 = vmatpush1.msra.mxu0 0.0
    %6593 = vmatprep.subr.mxu0 0.0
    %6594 = vmatpush1.msra.mxu0 0.0
    %6595 = vmatprep.subr.mxu0 0.0
    %6596 = vmatpush1.msra.mxu0 0.0
    %6597 = vmatprep.subr.mxu0 0.0
    %6598 = vmatpush1.msra.mxu0 0.0
    %6599 = vmatprep.subr.mxu0 0.0
    %6600 = vmatpush1.msra.mxu0 0.0
    %6601 = vmatprep.subr.mxu0 0.0
    %6602 = vmatpush1.msra.mxu0 0.0
    %6603 = vmatprep.subr.mxu0 0.0
    %6604 = vmatpush1.msra.mxu0 0.0
    %6605 = vmatprep.subr.mxu0 0.0
    %6606 = vmatpush1.msra.mxu0 0.0
    %6607 = vmatprep.subr.mxu0 0.0
    %6608 = vmatpush1.msra.mxu0 0.0
    %6609 = vmatprep.subr.mxu0 0.0
    %6610 = vmatpush1.msra.mxu0 0.0
    %6611 = vmatprep.subr.mxu0 0.0
    %6612 = vmatpush1.msra.mxu0 0.0
    %6613 = vmatprep.subr.mxu0 0.0
    %6614 = vmatpush1.msra.mxu0 0.0
    %6615 = vmatprep.mubr.f32.mxu0 0.0
    %6616 = vmatmul.mubr.f32.gmra.mrb[0].mxu0 %v6549
    %v6617 = vpop.f32.mrb[0].mxu0
    %v6618 = vadd.f32 0.0, %v6617
    %v6619 = vpop.f32.mrb[0].mxu0
    %6620 = vdwg.mxu0
    %6621 = vrot.lane.b32.xlu0 %v3966, 40
    %v6622 = vpop.permute.xlu0 %6621
    %v6625 = vsel %vm393, %v6542, 0
    %6627 = vmatprep.subr.mxu0 0.0
    %6628 = vmatpush1.msra.mxu0 %v6622
    %6629 = vmatprep.subr.mxu0 0.0
    %6630 = vmatpush1.msra.mxu0 0.0
    %6631 = vmatprep.subr.mxu0 0.0
    %6632 = vmatpush1.msra.mxu0 0.0
    %6633 = vmatprep.subr.mxu0 0.0
    %6634 = vmatpush1.msra.mxu0 0.0
    %6635 = vmatprep.subr.mxu0 0.0
    %6636 = vmatpush1.msra.mxu0 0.0
    %6637 = vmatprep.subr.mxu0 0.0
    %6638 = vmatpush1.msra.mxu0 0.0
    %6639 = vmatprep.subr.mxu0 0.0
    %6640 = vmatpush1.msra.mxu0 0.0
    %6641 = vmatprep.subr.mxu0 0.0
    %6642 = vmatpush1.msra.mxu0 0.0
    %6643 = vmatprep.subr.mxu0 0.0
    %6644 = vmatpush1.msra.mxu0 0.0
    %6645 = vmatprep.subr.mxu0 0.0
    %6646 = vmatpush1.msra.mxu0 0.0
    %6647 = vmatprep.subr.mxu0 0.0
    %6648 = vmatpush1.msra.mxu0 0.0
    %6649 = vmatprep.subr.mxu0 0.0
    %6650 = vmatpush1.msra.mxu0 0.0
    %6651 = vmatprep.subr.mxu0 0.0
    %6652 = vmatpush1.msra.mxu0 0.0
    %6653 = vmatprep.subr.mxu0 0.0
    %6654 = vmatpush1.msra.mxu0 0.0
    %6655 = vmatprep.subr.mxu0 0.0
    %6656 = vmatpush1.msra.mxu0 0.0
    %6657 = vmatprep.subr.mxu0 0.0
    %6658 = vmatpush1.msra.mxu0 0.0
    %6659 = vmatprep.subr.mxu0 0.0
    %6660 = vmatpush1.msra.mxu0 0.0
    %6661 = vmatprep.subr.mxu0 0.0
    %6662 = vmatpush1.msra.mxu0 0.0
    %6663 = vmatprep.subr.mxu0 0.0
    %6664 = vmatpush1.msra.mxu0 0.0
    %6665 = vmatprep.subr.mxu0 0.0
    %6666 = vmatpush1.msra.mxu0 0.0
    %6667 = vmatprep.subr.mxu0 0.0
    %6668 = vmatpush1.msra.mxu0 0.0
    %6669 = vmatprep.subr.mxu0 0.0
    %6670 = vmatpush1.msra.mxu0 0.0
    %6671 = vmatprep.subr.mxu0 0.0
    %6672 = vmatpush1.msra.mxu0 0.0
    %6673 = vmatprep.subr.mxu0 0.0
    %6674 = vmatpush1.msra.mxu0 0.0
    %6675 = vmatprep.subr.mxu0 0.0
    %6676 = vmatpush1.msra.mxu0 0.0
    %6677 = vmatprep.subr.mxu0 0.0
    %6678 = vmatpush1.msra.mxu0 0.0
    %6679 = vmatprep.subr.mxu0 0.0
    %6680 = vmatpush1.msra.mxu0 0.0
    %6681 = vmatprep.subr.mxu0 0.0
    %6682 = vmatpush1.msra.mxu0 0.0
    %6683 = vmatprep.subr.mxu0 0.0
    %6684 = vmatpush1.msra.mxu0 0.0
    %6685 = vmatprep.subr.mxu0 0.0
    %6686 = vmatpush1.msra.mxu0 0.0
    %6687 = vmatprep.subr.mxu0 0.0
    %6688 = vmatpush1.msra.mxu0 0.0
    %6689 = vmatprep.subr.mxu0 0.0
    %6690 = vmatpush1.msra.mxu0 0.0
    %6691 = vmatprep.mubr.f32.mxu0 0.0
    %6692 = vmatmul.mubr.f32.gmra.mrb[0].mxu0 %v6625
    %v6693 = vpop.f32.mrb[0].mxu0
    %v6694 = vadd.f32 0.0, %v6693
    %v6695 = vpop.f32.mrb[0].mxu0
    %6696 = vdwg.mxu0
    %6697 = vrot.lane.b32.xlu0 %v3971, 40
    %v6698 = vpop.permute.xlu0 %6697
    %v6701 = vsel %vm393, %v6543, 0
    %6703 = vmatprep.subr.mxu0 0.0
    %6704 = vmatpush1.msra.mxu0 %v6698
    %6705 = vmatprep.subr.mxu0 0.0
    %6706 = vmatpush1.msra.mxu0 0.0
    %6707 = vmatprep.subr.mxu0 0.0
    %6708 = vmatpush1.msra.mxu0 0.0
    %6709 = vmatprep.subr.mxu0 0.0
    %6710 = vmatpush1.msra.mxu0 0.0
    %6711 = vmatprep.subr.mxu0 0.0
    %6712 = vmatpush1.msra.mxu0 0.0
    %6713 = vmatprep.subr.mxu0 0.0
    %6714 = vmatpush1.msra.mxu0 0.0
    %6715 = vmatprep.subr.mxu0 0.0
    %6716 = vmatpush1.msra.mxu0 0.0
    %6717 = vmatprep.subr.mxu0 0.0
    %6718 = vmatpush1.msra.mxu0 0.0
    %6719 = vmatprep.subr.mxu0 0.0
    %6720 = vmatpush1.msra.mxu0 0.0
    %6721 = vmatprep.subr.mxu0 0.0
    %6722 = vmatpush1.msra.mxu0 0.0
    %6723 = vmatprep.subr.mxu0 0.0
    %6724 = vmatpush1.msra.mxu0 0.0
    %6725 = vmatprep.subr.mxu0 0.0
    %6726 = vmatpush1.msra.mxu0 0.0
    %6727 = vmatprep.subr.mxu0 0.0
    %6728 = vmatpush1.msra.mxu0 0.0
    %6729 = vmatprep.subr.mxu0 0.0
    %6730 = vmatpush1.msra.mxu0 0.0
    %6731 = vmatprep.subr.mxu0 0.0
    %6732 = vmatpush1.msra.mxu0 0.0
    %6733 = vmatprep.subr.mxu0 0.0
    %6734 = vmatpush1.msra.mxu0 0.0
    %6735 = vmatprep.subr.mxu0 0.0
    %6736 = vmatpush1.msra.mxu0 0.0
    %6737 = vmatprep.subr.mxu0 0.0
    %6738 = vmatpush1.msra.mxu0 0.0
    %6739 = vmatprep.subr.mxu0 0.0
    %6740 = vmatpush1.msra.mxu0 0.0
    %6741 = vmatprep.subr.mxu0 0.0
    %6742 = vmatpush1.msra.mxu0 0.0
    %6743 = vmatprep.subr.mxu0 0.0
    %6744 = vmatpush1.msra.mxu0 0.0
    %6745 = vmatprep.subr.mxu0 0.0
    %6746 = vmatpush1.msra.mxu0 0.0
    %6747 = vmatprep.subr.mxu0 0.0
    %6748 = vmatpush1.msra.mxu0 0.0
    %6749 = vmatprep.subr.mxu0 0.0
    %6750 = vmatpush1.msra.mxu0 0.0
    %6751 = vmatprep.subr.mxu0 0.0
    %6752 = vmatpush1.msra.mxu0 0.0
    %6753 = vmatprep.subr.mxu0 0.0
    %6754 = vmatpush1.msra.mxu0 0.0
    %6755 = vmatprep.subr.mxu0 0.0
    %6756 = vmatpush1.msra.mxu0 0.0
    %6757 = vmatprep.subr.mxu0 0.0
    %6758 = vmatpush1.msra.mxu0 0.0
    %6759 = vmatprep.subr.mxu0 0.0
    %6760 = vmatpush1.msra.mxu0 0.0
    %6761 = vmatprep.subr.mxu0 0.0
    %6762 = vmatpush1.msra.mxu0 0.0
    %6763 = vmatprep.subr.mxu0 0.0
    %6764 = vmatpush1.msra.mxu0 0.0
    %6765 = vmatprep.subr.mxu0 0.0
    %6766 = vmatpush1.msra.mxu0 0.0
    %6767 = vmatprep.mubr.f32.mxu0 0.0
    %6768 = vmatmul.mubr.f32.gmra.mrb[0].mxu0 %v6701
    %v6769 = vpop.f32.mrb[0].mxu0
    %v6770 = vadd.f32 0.0, %v6769
    %v6771 = vpop.f32.mrb[0].mxu0
    %6772 = vdwg.mxu0
    %6773 = vrot.lane.b32.xlu0 %v3976, 40
    %v6774 = vpop.permute.xlu0 %6773
    %v6777 = vsel %vm393, %v6544, 0
    %6779 = vmatprep.subr.mxu0 0.0
    %6780 = vmatpush1.msra.mxu0 %v6774
    %6781 = vmatprep.subr.mxu0 0.0
    %6782 = vmatpush1.msra.mxu0 0.0
    %6783 = vmatprep.subr.mxu0 0.0
    %6784 = vmatpush1.msra.mxu0 0.0
    %6785 = vmatprep.subr.mxu0 0.0
    %6786 = vmatpush1.msra.mxu0 0.0
    %6787 = vmatprep.subr.mxu0 0.0
    %6788 = vmatpush1.msra.mxu0 0.0
    %6789 = vmatprep.subr.mxu0 0.0
    %6790 = vmatpush1.msra.mxu0 0.0
    %6791 = vmatprep.subr.mxu0 0.0
    %6792 = vmatpush1.msra.mxu0 0.0
    %6793 = vmatprep.subr.mxu0 0.0
    %6794 = vmatpush1.msra.mxu0 0.0
    %6795 = vmatprep.subr.mxu0 0.0
    %6796 = vmatpush1.msra.mxu0 0.0
    %6797 = vmatprep.subr.mxu0 0.0
    %6798 = vmatpush1.msra.mxu0 0.0
    %6799 = vmatprep.subr.mxu0 0.0
    %6800 = vmatpush1.msra.mxu0 0.0
    %6801 = vmatprep.subr.mxu0 0.0
    %6802 = vmatpush1.msra.mxu0 0.0
    %6803 = vmatprep.subr.mxu0 0.0
    %6804 = vmatpush1.msra.mxu0 0.0
    %6805 = vmatprep.subr.mxu0 0.0
    %6806 = vmatpush1.msra.mxu0 0.0
    %6807 = vmatprep.subr.mxu0 0.0
    %6808 = vmatpush1.msra.mxu0 0.0
    %6809 = vmatprep.subr.mxu0 0.0
    %6810 = vmatpush1.msra.mxu0 0.0
    %6811 = vmatprep.subr.mxu0 0.0
    %6812 = vmatpush1.msra.mxu0 0.0
    %6813 = vmatprep.subr.mxu0 0.0
    %6814 = vmatpush1.msra.mxu0 0.0
    %6815 = vmatprep.subr.mxu0 0.0
    %6816 = vmatpush1.msra.mxu0 0.0
    %6817 = vmatprep.subr.mxu0 0.0
    %6818 = vmatpush1.msra.mxu0 0.0
    %6819 = vmatprep.subr.mxu0 0.0
    %6820 = vmatpush1.msra.mxu0 0.0
    %6821 = vmatprep.subr.mxu0 0.0
    %6822 = vmatpush1.msra.mxu0 0.0
    %6823 = vmatprep.subr.mxu0 0.0
    %6824 = vmatpush1.msra.mxu0 0.0
    %6825 = vmatprep.subr.mxu0 0.0
    %6826 = vmatpush1.msra.mxu0 0.0
    %6827 = vmatprep.subr.mxu0 0.0
    %6828 = vmatpush1.msra.mxu0 0.0
    %6829 = vmatprep.subr.mxu0 0.0
    %6830 = vmatpush1.msra.mxu0 0.0
    %6831 = vmatprep.subr.mxu0 0.0
    %6832 = vmatpush1.msra.mxu0 0.0
    %6833 = vmatprep.subr.mxu0 0.0
    %6834 = vmatpush1.msra.mxu0 0.0
    %6835 = vmatprep.subr.mxu0 0.0
    %6836 = vmatpush1.msra.mxu0 0.0
    %6837 = vmatprep.subr.mxu0 0.0
    %6838 = vmatpush1.msra.mxu0 0.0
    %6839 = vmatprep.subr.mxu0 0.0
    %6840 = vmatpush1.msra.mxu0 0.0
    %6841 = vmatprep.subr.mxu0 0.0
    %6842 = vmatpush1.msra.mxu0 0.0
    %6843 = vmatprep.mubr.f32.mxu0 0.0
    %6844 = vmatmul.mubr.f32.gmra.mrb[0].mxu0 %v6777
    %v6845 = vpop.f32.mrb[0].mxu0
    %v6846 = vadd.f32 0.0, %v6845
    %v6847 = vpop.f32.mrb[0].mxu0
    %6848 = vdwg.mxu0
    %v6849 = vsel %vm393, %v6618, -inf
    %v6850 = vsel %vm393, %v6694, -inf
    %v6851 = vsel %vm393, %v6770, -inf
    %v6852 = vsel %vm393, %v6846, -inf
    %v6853 = vmax.f32 %v6849, %v6850
    %v6854 = vmax.f32 %v6851, %v6852
    %v6855 = vmax.f32 %v6853, %v6854
    %v6856 = vsub.f32 %v6618, %v6855
    %v6857 = vsub.f32 %v6694, %v6855
    %v6858 = vsub.f32 %v6770, %v6855
    %v6859 = vsub.f32 %v6846, %v6855
    %v6860 = vmul.f32 %v6856, 1.442695
    %v6861 = vpow.pop %v6860
    %v6862 = vmul.f32 %v6857, 1.442695
    %v6863 = vpow.pop %v6862
    %v6864 = vmul.f32 %v6858, 1.442695
    %v6865 = vpow.pop %v6864
    %v6866 = vmul.f32 %v6859, 1.442695
    %v6867 = vpow.pop %v6866
    %v6868 = vsel %vm393, %v6861, 0.0
    %v6869 = vsel %vm393, %v6863, 0.0
    %v6870 = vadd.f32 %v6868, %v6869
    %v6871 = vsel %vm393, %v6865, 0.0
    %v6872 = vadd.f32 %v6870, %v6871
    %v6873 = vsel %vm393, %v6867, 0.0
    %v6874 = vadd.f32 %v6872, %v6873
    %v6875 = vrcp.pop %v6874
    %v6876 = vmul.f32 %v6861, %v6875
    %v6877 = vmul.f32 %v6863, %v6875
    %v6878 = vmul.f32 %v6865, %v6875
    %v6879 = vmul.f32 %v6867, %v6875
    %s6880 = scalar_lea.vmem [#allocation8], 56
    %v6881 = vld [vmem:[%s6880] sm:$0xff]
    %v6883 = vsel %vm393, %v6876, 0
    %v6886 = vsel %vm393, %v6877, 0
    %v6889 = vsel %vm393, %v6878, 0
    %v6892 = vsel %vm393, %v6879, 0
    %6894 = vmatprep.subr.mxu0 0.0
    %6895 = vmatpush1.msra.mxu0 %v6881
    %6896 = vmatprep.subr.mxu0 0.0
    %6897 = vmatpush1.msra.mxu0 0.0
    %6898 = vmatprep.subr.mxu0 0.0
    %6899 = vmatpush1.msra.mxu0 0.0
    %6900 = vmatprep.subr.mxu0 0.0
    %6901 = vmatpush1.msra.mxu0 0.0
    %6902 = vmatprep.subr.mxu0 0.0
    %6903 = vmatpush1.msra.mxu0 0.0
    %6904 = vmatprep.subr.mxu0 0.0
    %6905 = vmatpush1.msra.mxu0 0.0
    %6906 = vmatprep.subr.mxu0 0.0
    %6907 = vmatpush1.msra.mxu0 0.0
    %6908 = vmatprep.subr.mxu0 0.0
    %6909 = vmatpush1.msra.mxu0 0.0
    %6910 = vmatprep.subr.mxu0 0.0
    %6911 = vmatpush1.msra.mxu0 0.0
    %6912 = vmatprep.subr.mxu0 0.0
    %6913 = vmatpush1.msra.mxu0 0.0
    %6914 = vmatprep.subr.mxu0 0.0
    %6915 = vmatpush1.msra.mxu0 0.0
    %6916 = vmatprep.subr.mxu0 0.0
    %6917 = vmatpush1.msra.mxu0 0.0
    %6918 = vmatprep.subr.mxu0 0.0
    %6919 = vmatpush1.msra.mxu0 0.0
    %6920 = vmatprep.subr.mxu0 0.0
    %6921 = vmatpush1.msra.mxu0 0.0
    %6922 = vmatprep.subr.mxu0 0.0
    %6923 = vmatpush1.msra.mxu0 0.0
    %6924 = vmatprep.subr.mxu0 0.0
    %6925 = vmatpush1.msra.mxu0 0.0
    %6926 = vmatprep.subr.mxu0 0.0
    %6927 = vmatpush1.msra.mxu0 0.0
    %6928 = vmatprep.subr.mxu0 0.0
    %6929 = vmatpush1.msra.mxu0 0.0
    %6930 = vmatprep.subr.mxu0 0.0
    %6931 = vmatpush1.msra.mxu0 0.0
    %6932 = vmatprep.subr.mxu0 0.0
    %6933 = vmatpush1.msra.mxu0 0.0
    %6934 = vmatprep.subr.mxu0 0.0
    %6935 = vmatpush1.msra.mxu0 0.0
    %6936 = vmatprep.subr.mxu0 0.0
    %6937 = vmatpush1.msra.mxu0 0.0
    %6938 = vmatprep.subr.mxu0 0.0
    %6939 = vmatpush1.msra.mxu0 0.0
    %6940 = vmatprep.subr.mxu0 0.0
    %6941 = vmatpush1.msra.mxu0 0.0
    %6942 = vmatprep.subr.mxu0 0.0
    %6943 = vmatpush1.msra.mxu0 0.0
    %6944 = vmatprep.subr.mxu0 0.0
    %6945 = vmatpush1.msra.mxu0 0.0
    %6946 = vmatprep.subr.mxu0 0.0
    %6947 = vmatpush1.msra.mxu0 0.0
    %6948 = vmatprep.subr.mxu0 0.0
    %6949 = vmatpush1.msra.mxu0 0.0
    %6950 = vmatprep.subr.mxu0 0.0
    %6951 = vmatpush1.msra.mxu0 0.0
    %6952 = vmatprep.subr.mxu0 0.0
    %6953 = vmatpush1.msra.mxu0 0.0
    %6954 = vmatprep.subr.mxu0 0.0
    %6955 = vmatpush1.msra.mxu0 0.0
    %6956 = vmatprep.subr.mxu0 0.0
    %6957 = vmatpush1.msra.mxu0 0.0
    %6958 = vmatprep.mubr.f32.mxu0 0.0
    %6959 = vmatmul.mubr.f32.gmra.mrb[0].mxu0 %v6883
    %v6960 = vpop.f32.mrb[0].mxu0
    %v6961 = vadd.f32 0.0, %v6960
    %v6962 = vpop.f32.mrb[0].mxu0
    %6963 = vmatprep.mubr.f32.mxu0 0.0
    %6964 = vmatmul.mubr.f32.gmra.mrb[0].mxu0 %v6886
    %v6965 = vpop.f32.mrb[0].mxu0
    %v6966 = vadd.f32 0.0, %v6965
    %v6967 = vpop.f32.mrb[0].mxu0
    %6968 = vmatprep.mubr.f32.mxu0 0.0
    %6969 = vmatmul.mubr.f32.gmra.mrb[0].mxu0 %v6889
    %v6970 = vpop.f32.mrb[0].mxu0
    %v6971 = vadd.f32 0.0, %v6970
    %v6972 = vpop.f32.mrb[0].mxu0
    %6973 = vmatprep.mubr.f32.mxu0 0.0
    %6974 = vmatmul.mubr.f32.gmra.mrb[0].mxu0 %v6892
    %v6975 = vpop.f32.mrb[0].mxu0
    %v6976 = vadd.f32 0.0, %v6975
    %v6977 = vpop.f32.mrb[0].mxu0
    %6978 = vdwg.mxu0
    %v6979 = vadd.f32 %v6225, %v6961
    %v6980 = vadd.f32 %v6226, %v6966
    %v6981 = vadd.f32 %v6227, %v6971
    %v6982 = vadd.f32 %v6228, %v6976
    %s6983 = scalar_lea.vmem [#allocation10], 1
    %v6984 = vld [vmem:[%s6983] sm:$0x1]
    %v6986 = vlaneseq
    %v6987 = vshrl.u32 %v6986, 7
    %v6988 = vsub.s32 0, %v6987
    %v6989 = vrot.slane %v6984, %v6988
    %v6991 = vadd.f32 %v6979, %v6989
    %v6992 = vadd.f32 %v6980, %v6989
    %v6993 = vadd.f32 %v6981, %v6989
    %v6994 = vadd.f32 %v6982, %v6989
    %v6995 = vadd.f32 %v6991, %v3521
    %v6996 = vadd.f32 %v6992, %v3522
    %v6997 = vadd.f32 %v6993, %v3523
    %v6998 = vadd.f32 %v6994, %v3524
    %v6999 = vsel %vm292, %v6995, 0.0
    %7000 = vadd.xlane.f32.xlu0 %v6999
    %v7001 = vpop.xlane.xlu0 %7000
    %v7002 = vsel %vm292, %v6996, 0.0
    %7003 = vadd.xlane.f32.xlu0 %v7002
    %v7004 = vpop.xlane.xlu0 %7003
    %v7005 = vsel %vm292, %v6997, 0.0
    %7006 = vadd.xlane.f32.xlu0 %v7005
    %v7007 = vpop.xlane.xlu0 %7006
    %v7008 = vsel %vm292, %v6998, 0.0
    %7009 = vadd.xlane.f32.xlu0 %v7008
    %v7010 = vpop.xlane.xlu0 %7009
    %v7011 = vrot.slane %v7001, 4
    %v7012 = vadd.f32 %v7001, %v7011
    %v7013 = vrot.slane %v7012, 2
    %v7014 = vadd.f32 %v7012, %v7013
    %v7015 = vrot.slane %v7014, 1
    %v7016 = vadd.f32 %v7014, %v7015
    %v7017 = vrot.slane %v7004, 4
    %v7018 = vadd.f32 %v7004, %v7017
    %v7019 = vrot.slane %v7018, 2
    %v7020 = vadd.f32 %v7018, %v7019
    %v7021 = vrot.slane %v7020, 1
    %v7022 = vadd.f32 %v7020, %v7021
    %v7023 = vrot.slane %v7007, 4
    %v7024 = vadd.f32 %v7007, %v7023
    %v7025 = vrot.slane %v7024, 2
    %v7026 = vadd.f32 %v7024, %v7025
    %v7027 = vrot.slane %v7026, 1
    %v7028 = vadd.f32 %v7026, %v7027
    %v7029 = vrot.slane %v7010, 4
    %v7030 = vadd.f32 %v7010, %v7029
    %v7031 = vrot.slane %v7030, 2
    %v7032 = vadd.f32 %v7030, %v7031
    %v7033 = vrot.slane %v7032, 1
    %v7034 = vadd.f32 %v7032, %v7033
    %v7035 = vmul.f32 %v6995, %v6995
    %v7036 = vmul.f32 %v6996, %v6996
    %v7037 = vmul.f32 %v6997, %v6997
    %v7038 = vmul.f32 %v6998, %v6998
    %v7039 = vsel %vm292, %v7035, 0.0
    %7040 = vadd.xlane.f32.xlu0 %v7039
    %v7041 = vpop.xlane.xlu0 %7040
    %v7042 = vsel %vm292, %v7036, 0.0
    %7043 = vadd.xlane.f32.xlu0 %v7042
    %v7044 = vpop.xlane.xlu0 %7043
    %v7045 = vsel %vm292, %v7037, 0.0
    %7046 = vadd.xlane.f32.xlu0 %v7045
    %v7047 = vpop.xlane.xlu0 %7046
    %v7048 = vsel %vm292, %v7038, 0.0
    %7049 = vadd.xlane.f32.xlu0 %v7048
    %v7050 = vpop.xlane.xlu0 %7049
    %v7051 = vrot.slane %v7041, 4
    %v7052 = vadd.f32 %v7041, %v7051
    %v7053 = vrot.slane %v7052, 2
    %v7054 = vadd.f32 %v7052, %v7053
    %v7055 = vrot.slane %v7054, 1
    %v7056 = vadd.f32 %v7054, %v7055
    %v7057 = vrot.slane %v7044, 4
    %v7058 = vadd.f32 %v7044, %v7057
    %v7059 = vrot.slane %v7058, 2
    %v7060 = vadd.f32 %v7058, %v7059
    %v7061 = vrot.slane %v7060, 1
    %v7062 = vadd.f32 %v7060, %v7061
    %v7063 = vrot.slane %v7047, 4
    %v7064 = vadd.f32 %v7047, %v7063
    %v7065 = vrot.slane %v7064, 2
    %v7066 = vadd.f32 %v7064, %v7065
    %v7067 = vrot.slane %v7066, 1
    %v7068 = vadd.f32 %v7066, %v7067
    %v7069 = vrot.slane %v7050, 4
    %v7070 = vadd.f32 %v7050, %v7069
    %v7071 = vrot.slane %v7070, 2
    %v7072 = vadd.f32 %v7070, %v7071
    %v7073 = vrot.slane %v7072, 1
    %v7074 = vadd.f32 %v7072, %v7073
    %v7075 = vmul.f32 %v7016, 0.00390625
    %v7076 = vmul.f32 %v7022, 0.00390625
    %v7077 = vmul.f32 %v7028, 0.00390625
    %v7078 = vmul.f32 %v7034, 0.00390625
    %v7079 = vmul.f32 %v7056, 0.00390625
    %v7080 = vmul.f32 %v7062, 0.00390625
    %v7081 = vmul.f32 %v7068, 0.00390625
    %v7082 = vmul.f32 %v7074, 0.00390625
    %v7083 = vmul.f32 %v7075, %v7075
    %v7084 = vmul.f32 %v7076, %v7076
    %v7085 = vmul.f32 %v7077, %v7077
    %v7086 = vmul.f32 %v7078, %v7078
    %v7087 = vsub.f32 %v7079, %v7083
    %v7088 = vsub.f32 %v7080, %v7084
    %v7089 = vsub.f32 %v7081, %v7085
    %v7090 = vsub.f32 %v7082, %v7086
    %v7091 = vsub.f32 %v6995, %v7075
    %v7092 = vsub.f32 %v6996, %v7076
    %v7093 = vsub.f32 %v6997, %v7077
    %v7094 = vsub.f32 %v6998, %v7078
    %v7095 = vadd.f32 %v7087, 1e-05
    %v7096 = vadd.f32 %v7088, 1e-05
    %v7097 = vadd.f32 %v7089, 1e-05
    %v7098 = vadd.f32 %v7090, 1e-05
    %v7099 = vrsqrt.pop %v7095
    %v7100 = vrsqrt.pop %v7096
    %v7101 = vrsqrt.pop %v7097
    %v7102 = vrsqrt.pop %v7098
    %v7103 = vmul.f32 %v7091, %v7099
    %v7104 = vmul.f32 %v7092, %v7100
    %v7105 = vmul.f32 %v7093, %v7101
    %v7106 = vmul.f32 %v7094, %v7102
    %v7107 = vmul.f32 %v7103, %v275
    %v7108 = vmul.f32 %v7104, %v275
    %v7109 = vmul.f32 %v7105, %v275
    %v7110 = vmul.f32 %v7106, %v275
    %v7111 = vadd.f32 %v7107, %v276
    %v7112 = vadd.f32 %v7108, %v276
    %v7113 = vadd.f32 %v7109, %v276
    %v7114 = vadd.f32 %v7110, %v276
    %s7115 = scalar_lea.vmem %s5, 32
    %v7116 = vld [vmem:[%s7115] sm:$0xff]
    %v7117 = vld [vmem:[%s7115 + $0x8] sm:$0xff]
    %v7118 = vld [vmem:[%s7115 + $0x10] sm:$0xff]
    %v7119 = vld [vmem:[%s7115 + $0x18] sm:$0xff]
    %s7120 = scalar_lea.vmem [#allocation11], 1
    %v7121 = vld [vmem:[%s7120] sm:$0x1]
    %s7122 = scalar_lea.vmem [#allocation13], 32
    %v7123 = vld [vmem:[%s7122] sm:$0xff]
    %v7124 = vld [vmem:[%s7122 + $0x8] sm:$0xff]
    %v7125 = vld [vmem:[%s7122 + $0x10] sm:$0xff]
    %v7126 = vld [vmem:[%s7122 + $0x18] sm:$0xff]
    %s7127 = scalar_lea.vmem [#allocation14], 1
    %v7128 = vld [vmem:[%s7127] sm:$0x1]
    %v7130 = vlaneseq
    %v7131 = vshrl.u32 %v7130, 7
    %v7132 = vsub.s32 0, %v7131
    %v7133 = vrot.slane %v7121, %v7132
    %v7136 = vsel %vm292, %v7111, 0
    %v7139 = vsel %vm292, %v7112, 0
    %v7142 = vsel %vm292, %v7113, 0
    %v7145 = vsel %vm292, %v7114, 0
    %7147 = vmatprep.subr.mxu0 0.0
    %7148 = vmatpush1.msra.mxu0 %v7116
    %7149 = vmatprep.subr.mxu0 0.0
    %7150 = vmatpush1.msra.mxu0 %v7117
    %7151 = vmatprep.subr.mxu0 0.0
    %7152 = vmatpush1.msra.mxu0 %v7118
    %7153 = vmatprep.subr.mxu0 0.0
    %7154 = vmatpush1.msra.mxu0 %v7119
    %7155 = vmatprep.subr.mxu0 0.0
    %7156 = vmatpush1.msra.mxu0 0.0
    %7157 = vmatprep.subr.mxu0 0.0
    %7158 = vmatpush1.msra.mxu0 0.0
    %7159 = vmatprep.subr.mxu0 0.0
    %7160 = vmatpush1.msra.mxu0 0.0
    %7161 = vmatprep.subr.mxu0 0.0
    %7162 = vmatpush1.msra.mxu0 0.0
    %7163 = vmatprep.subr.mxu0 0.0
    %7164 = vmatpush1.msra.mxu0 0.0
    %7165 = vmatprep.subr.mxu0 0.0
    %7166 = vmatpush1.msra.mxu0 0.0
    %7167 = vmatprep.subr.mxu0 0.0
    %7168 = vmatpush1.msra.mxu0 0.0
    %7169 = vmatprep.subr.mxu0 0.0
    %7170 = vmatpush1.msra.mxu0 0.0
    %7171 = vmatprep.subr.mxu0 0.0
    %7172 = vmatpush1.msra.mxu0 0.0
    %7173 = vmatprep.subr.mxu0 0.0
    %7174 = vmatpush1.msra.mxu0 0.0
    %7175 = vmatprep.subr.mxu0 0.0
    %7176 = vmatpush1.msra.mxu0 0.0
    %7177 = vmatprep.subr.mxu0 0.0
    %7178 = vmatpush1.msra.mxu0 0.0
    %7179 = vmatprep.subr.mxu0 0.0
    %7180 = vmatpush1.msra.mxu0 0.0
    %7181 = vmatprep.subr.mxu0 0.0
    %7182 = vmatpush1.msra.mxu0 0.0
    %7183 = vmatprep.subr.mxu0 0.0
    %7184 = vmatpush1.msra.mxu0 0.0
    %7185 = vmatprep.subr.mxu0 0.0
    %7186 = vmatpush1.msra.mxu0 0.0
    %7187 = vmatprep.subr.mxu0 0.0
    %7188 = vmatpush1.msra.mxu0 0.0
    %7189 = vmatprep.subr.mxu0 0.0
    %7190 = vmatpush1.msra.mxu0 0.0
    %7191 = vmatprep.subr.mxu0 0.0
    %7192 = vmatpush1.msra.mxu0 0.0
    %7193 = vmatprep.subr.mxu0 0.0
    %7194 = vmatpush1.msra.mxu0 0.0
    %7195 = vmatprep.subr.mxu0 0.0
    %7196 = vmatpush1.msra.mxu0 0.0
    %7197 = vmatprep.subr.mxu0 0.0
    %7198 = vmatpush1.msra.mxu0 0.0
    %7199 = vmatprep.subr.mxu0 0.0
    %7200 = vmatpush1.msra.mxu0 0.0
    %7201 = vmatprep.subr.mxu0 0.0
    %7202 = vmatpush1.msra.mxu0 0.0
    %7203 = vmatprep.subr.mxu0 0.0
    %7204 = vmatpush1.msra.mxu0 0.0
    %7205 = vmatprep.subr.mxu0 0.0
    %7206 = vmatpush1.msra.mxu0 0.0
    %7207 = vmatprep.subr.mxu0 0.0
    %7208 = vmatpush1.msra.mxu0 0.0
    %7209 = vmatprep.subr.mxu0 0.0
    %7210 = vmatpush1.msra.mxu0 0.0
    %7211 = vmatprep.mubr.f32.mxu0 0.0
    %7212 = vmatmul.mubr.f32.gmra.mrb[0].mxu0 %v7136
    %v7213 = vpop.f32.mrb[0].mxu0
    %v7214 = vadd.f32 %v7133, %v7213
    %v7215 = vpop.f32.mrb[0].mxu0
    %7216 = vmatprep.mubr.f32.mxu0 0.0
    %7217 = vmatmul.mubr.f32.gmra.mrb[0].mxu0 %v7139
    %v7218 = vpop.f32.mrb[0].mxu0
    %v7219 = vadd.f32 %v7133, %v7218
    %v7220 = vpop.f32.mrb[0].mxu0
    %7221 = vmatprep.mubr.f32.mxu0 0.0
    %7222 = vmatmul.mubr.f32.gmra.mrb[0].mxu0 %v7142
    %v7223 = vpop.f32.mrb[0].mxu0
    %v7224 = vadd.f32 %v7133, %v7223
    %v7225 = vpop.f32.mrb[0].mxu0
    %7226 = vmatprep.mubr.f32.mxu0 0.0
    %7227 = vmatmul.mubr.f32.gmra.mrb[0].mxu0 %v7145
    %v7228 = vpop.f32.mrb[0].mxu0
    %v7229 = vadd.f32 %v7133, %v7228
    %v7230 = vpop.f32.mrb[0].mxu0
    %7231 = vdwg.mxu0
    %v7232 = vmax.f32 %v7214, 0.0
    %v7233 = vmax.f32 %v7219, 0.0
    %v7234 = vmax.f32 %v7224, 0.0
    %v7235 = vmax.f32 %v7229, 0.0
    %v7237 = vlaneseq
    %v7238 = vshrl.u32 %v7237, 7
    %v7239 = vsub.s32 0, %v7238
    %v7240 = vrot.slane %v7128, %v7239
    %v7243 = vsel %vm292, %v7232, 0
    %v7246 = vsel %vm292, %v7233, 0
    %v7249 = vsel %vm292, %v7234, 0
    %v7252 = vsel %vm292, %v7235, 0
    %7254 = vmatprep.subr.mxu0 0.0
    %7255 = vmatpush1.msra.mxu0 %v7123
    %7256 = vmatprep.subr.mxu0 0.0
    %7257 = vmatpush1.msra.mxu0 %v7124
    %7258 = vmatprep.subr.mxu0 0.0
    %7259 = vmatpush1.msra.mxu0 %v7125
    %7260 = vmatprep.subr.mxu0 0.0
    %7261 = vmatpush1.msra.mxu0 %v7126
    %7262 = vmatprep.subr.mxu0 0.0
    %7263 = vmatpush1.msra.mxu0 0.0
    %7264 = vmatprep.subr.mxu0 0.0
    %7265 = vmatpush1.msra.mxu0 0.0
    %7266 = vmatprep.subr.mxu0 0.0
    %7267 = vmatpush1.msra.mxu0 0.0
    %7268 = vmatprep.subr.mxu0 0.0
    %7269 = vmatpush1.msra.mxu0 0.0
    %7270 = vmatprep.subr.mxu0 0.0
    %7271 = vmatpush1.msra.mxu0 0.0
    %7272 = vmatprep.subr.mxu0 0.0
    %7273 = vmatpush1.msra.mxu0 0.0
    %7274 = vmatprep.subr.mxu0 0.0
    %7275 = vmatpush1.msra.mxu0 0.0
    %7276 = vmatprep.subr.mxu0 0.0
    %7277 = vmatpush1.msra.mxu0 0.0
    %7278 = vmatprep.subr.mxu0 0.0
    %7279 = vmatpush1.msra.mxu0 0.0
    %7280 = vmatprep.subr.mxu0 0.0
    %7281 = vmatpush1.msra.mxu0 0.0
    %7282 = vmatprep.subr.mxu0 0.0
    %7283 = vmatpush1.msra.mxu0 0.0
    %7284 = vmatprep.subr.mxu0 0.0
    %7285 = vmatpush1.msra.mxu0 0.0
    %7286 = vmatprep.subr.mxu0 0.0
    %7287 = vmatpush1.msra.mxu0 0.0
    %7288 = vmatprep.subr.mxu0 0.0
    %7289 = vmatpush1.msra.mxu0 0.0
    %7290 = vmatprep.subr.mxu0 0.0
    %7291 = vmatpush1.msra.mxu0 0.0
    %7292 = vmatprep.subr.mxu0 0.0
    %7293 = vmatpush1.msra.mxu0 0.0
    %7294 = vmatprep.subr.mxu0 0.0
    %7295 = vmatpush1.msra.mxu0 0.0
    %7296 = vmatprep.subr.mxu0 0.0
    %7297 = vmatpush1.msra.mxu0 0.0
    %7298 = vmatprep.subr.mxu0 0.0
    %7299 = vmatpush1.msra.mxu0 0.0
    %7300 = vmatprep.subr.mxu0 0.0
    %7301 = vmatpush1.msra.mxu0 0.0
    %7302 = vmatprep.subr.mxu0 0.0
    %7303 = vmatpush1.msra.mxu0 0.0
    %7304 = vmatprep.subr.mxu0 0.0
    %7305 = vmatpush1.msra.mxu0 0.0
    %7306 = vmatprep.subr.mxu0 0.0
    %7307 = vmatpush1.msra.mxu0 0.0
    %7308 = vmatprep.subr.mxu0 0.0
    %7309 = vmatpush1.msra.mxu0 0.0
    %7310 = vmatprep.subr.mxu0 0.0
    %7311 = vmatpush1.msra.mxu0 0.0
    %7312 = vmatprep.subr.mxu0 0.0
    %7313 = vmatpush1.msra.mxu0 0.0
    %7314 = vmatprep.subr.mxu0 0.0
    %7315 = vmatpush1.msra.mxu0 0.0
    %7316 = vmatprep.subr.mxu0 0.0
    %7317 = vmatpush1.msra.mxu0 0.0
    %7318 = vmatprep.mubr.f32.mxu0 0.0
    %7319 = vmatmul.mubr.f32.gmra.mrb[0].mxu0 %v7243
    %v7320 = vpop.f32.mrb[0].mxu0
    %v7321 = vadd.f32 %v7240, %v7320
    %v7322 = vpop.f32.mrb[0].mxu0
    %7323 = vmatprep.mubr.f32.mxu0 0.0
    %7324 = vmatmul.mubr.f32.gmra.mrb[0].mxu0 %v7246
    %v7325 = vpop.f32.mrb[0].mxu0
    %v7326 = vadd.f32 %v7240, %v7325
    %v7327 = vpop.f32.mrb[0].mxu0
    %7328 = vmatprep.mubr.f32.mxu0 0.0
    %7329 = vmatmul.mubr.f32.gmra.mrb[0].mxu0 %v7249
    %v7330 = vpop.f32.mrb[0].mxu0
    %v7331 = vadd.f32 %v7240, %v7330
    %v7332 = vpop.f32.mrb[0].mxu0
    %7333 = vmatprep.mubr.f32.mxu0 0.0
    %7334 = vmatmul.mubr.f32.gmra.mrb[0].mxu0 %v7252
    %v7335 = vpop.f32.mrb[0].mxu0
    %v7336 = vadd.f32 %v7240, %v7335
    %v7337 = vpop.f32.mrb[0].mxu0
    %7338 = vdwg.mxu0
    %v7339 = vmax.f32 %v7321, 0.0
    %v7340 = vmax.f32 %v7326, 0.0
    %v7341 = vmax.f32 %v7331, 0.0
    %v7342 = vmax.f32 %v7336, 0.0
    %v7343 = vadd.f32 %v7339, %v7111
    %v7344 = vadd.f32 %v7340, %v7112
    %v7345 = vadd.f32 %v7341, %v7113
    %v7346 = vadd.f32 %v7342, %v7114
    %v7347 = vsel %vm292, %v7343, 0.0
    %7348 = vadd.xlane.f32.xlu0 %v7347
    %v7349 = vpop.xlane.xlu0 %7348
    %v7350 = vsel %vm292, %v7344, 0.0
    %7351 = vadd.xlane.f32.xlu0 %v7350
    %v7352 = vpop.xlane.xlu0 %7351
    %v7353 = vsel %vm292, %v7345, 0.0
    %7354 = vadd.xlane.f32.xlu0 %v7353
    %v7355 = vpop.xlane.xlu0 %7354
    %v7356 = vsel %vm292, %v7346, 0.0
    %7357 = vadd.xlane.f32.xlu0 %v7356
    %v7358 = vpop.xlane.xlu0 %7357
    %v7359 = vrot.slane %v7349, 4
    %v7360 = vadd.f32 %v7349, %v7359
    %v7361 = vrot.slane %v7360, 2
    %v7362 = vadd.f32 %v7360, %v7361
    %v7363 = vrot.slane %v7362, 1
    %v7364 = vadd.f32 %v7362, %v7363
    %v7365 = vrot.slane %v7352, 4
    %v7366 = vadd.f32 %v7352, %v7365
    %v7367 = vrot.slane %v7366, 2
    %v7368 = vadd.f32 %v7366, %v7367
    %v7369 = vrot.slane %v7368, 1
    %v7370 = vadd.f32 %v7368, %v7369
    %v7371 = vrot.slane %v7355, 4
    %v7372 = vadd.f32 %v7355, %v7371
    %v7373 = vrot.slane %v7372, 2
    %v7374 = vadd.f32 %v7372, %v7373
    %v7375 = vrot.slane %v7374, 1
    %v7376 = vadd.f32 %v7374, %v7375
    %v7377 = vrot.slane %v7358, 4
    %v7378 = vadd.f32 %v7358, %v7377
    %v7379 = vrot.slane %v7378, 2
    %v7380 = vadd.f32 %v7378, %v7379
    %v7381 = vrot.slane %v7380, 1
    %v7382 = vadd.f32 %v7380, %v7381
    %v7383 = vmul.f32 %v7343, %v7343
    %v7384 = vmul.f32 %v7344, %v7344
    %v7385 = vmul.f32 %v7345, %v7345
    %v7386 = vmul.f32 %v7346, %v7346
    %v7387 = vsel %vm292, %v7383, 0.0
    %7388 = vadd.xlane.f32.xlu0 %v7387
    %v7389 = vpop.xlane.xlu0 %7388
    %v7390 = vsel %vm292, %v7384, 0.0
    %7391 = vadd.xlane.f32.xlu0 %v7390
    %v7392 = vpop.xlane.xlu0 %7391
    %v7393 = vsel %vm292, %v7385, 0.0
    %7394 = vadd.xlane.f32.xlu0 %v7393
    %v7395 = vpop.xlane.xlu0 %7394
    %v7396 = vsel %vm292, %v7386, 0.0
    %7397 = vadd.xlane.f32.xlu0 %v7396
    %v7398 = vpop.xlane.xlu0 %7397
    %v7399 = vrot.slane %v7389, 4
    %v7400 = vadd.f32 %v7389, %v7399
    %v7401 = vrot.slane %v7400, 2
    %v7402 = vadd.f32 %v7400, %v7401
    %v7403 = vrot.slane %v7402, 1
    %v7404 = vadd.f32 %v7402, %v7403
    %v7405 = vrot.slane %v7392, 4
    %v7406 = vadd.f32 %v7392, %v7405
    %v7407 = vrot.slane %v7406, 2
    %v7408 = vadd.f32 %v7406, %v7407
    %v7409 = vrot.slane %v7408, 1
    %v7410 = vadd.f32 %v7408, %v7409
    %v7411 = vrot.slane %v7395, 4
    %v7412 = vadd.f32 %v7395, %v7411
    %v7413 = vrot.slane %v7412, 2
    %v7414 = vadd.f32 %v7412, %v7413
    %v7415 = vrot.slane %v7414, 1
    %v7416 = vadd.f32 %v7414, %v7415
    %v7417 = vrot.slane %v7398, 4
    %v7418 = vadd.f32 %v7398, %v7417
    %v7419 = vrot.slane %v7418, 2
    %v7420 = vadd.f32 %v7418, %v7419
    %v7421 = vrot.slane %v7420, 1
    %v7422 = vadd.f32 %v7420, %v7421
    %v7423 = vmul.f32 %v7364, 0.00390625
    %v7424 = vmul.f32 %v7370, 0.00390625
    %v7425 = vmul.f32 %v7376, 0.00390625
    %v7426 = vmul.f32 %v7382, 0.00390625
    %v7427 = vmul.f32 %v7404, 0.00390625
    %v7428 = vmul.f32 %v7410, 0.00390625
    %v7429 = vmul.f32 %v7416, 0.00390625
    %v7430 = vmul.f32 %v7422, 0.00390625
    %v7431 = vmul.f32 %v7423, %v7423
    %v7432 = vmul.f32 %v7424, %v7424
    %v7433 = vmul.f32 %v7425, %v7425
    %v7434 = vmul.f32 %v7426, %v7426
    %v7435 = vsub.f32 %v7427, %v7431
    %v7436 = vsub.f32 %v7428, %v7432
    %v7437 = vsub.f32 %v7429, %v7433
    %v7438 = vsub.f32 %v7430, %v7434
    %v7439 = vsub.f32 %v7343, %v7423
    %v7440 = vsub.f32 %v7344, %v7424
    %v7441 = vsub.f32 %v7345, %v7425
    %v7442 = vsub.f32 %v7346, %v7426
    %v7443 = vadd.f32 %v7435, 1e-05
    %v7444 = vadd.f32 %v7436, 1e-05
    %v7445 = vadd.f32 %v7437, 1e-05
    %v7446 = vadd.f32 %v7438, 1e-05
    %v7447 = vrsqrt.pop %v7443
    %v7448 = vrsqrt.pop %v7444
    %v7449 = vrsqrt.pop %v7445
    %v7450 = vrsqrt.pop %v7446
    %v7451 = vmul.f32 %v7439, %v7447
    %v7452 = vmul.f32 %v7440, %v7448
    %v7453 = vmul.f32 %v7441, %v7449
    %v7454 = vmul.f32 %v7442, %v7450
    %v7455 = vmul.f32 %v7451, %v275
    %v7456 = vmul.f32 %v7452, %v275
    %v7457 = vmul.f32 %v7453, %v275
    %v7458 = vmul.f32 %v7454, %v275
    %v7459 = vadd.f32 %v7455, %v276
    %v7460 = vadd.f32 %v7456, %v276
    %v7461 = vadd.f32 %v7457, %v276
    %v7462 = vadd.f32 %v7458, %v276
    %s7463 = scalar_lea.vmem [#allocation16], 8
    %v7464 = vld [vmem:[%s7463] sm:$0xff]
    %s7465 = scalar_lea.vmem [#allocation17], 32
    %v7466 = vld [vmem:[%s7465] sm:$0xff]
    %v7467 = vld [vmem:[%s7465 + $0x8] sm:$0xff]
    %v7468 = vld [vmem:[%s7465 + $0x10] sm:$0xff]
    %v7469 = vld [vmem:[%s7465 + $0x18] sm:$0xff]
    %s7470 = scalar_lea.vmem [#allocation19], 1
    %v7471 = vld [vmem:[%s7470] sm:$0x1]
    %v7473 = vlaneseq
    %v7474 = vshrl.u32 %v7473, 7
    %v7475 = vsub.s32 0, %v7474
    %v7476 = vrot.slane %v7471, %v7475
    %v7479 = vsel %vm292, %v7459, 0
    %v7482 = vsel %vm292, %v7460, 0
    %v7485 = vsel %vm292, %v7461, 0
    %v7488 = vsel %vm292, %v7462, 0
    %7490 = vmatprep.subr.mxu0 0.0
    %7491 = vmatpush1.msra.mxu0 %v7466
    %7492 = vmatprep.subr.mxu0 0.0
    %7493 = vmatpush1.msra.mxu0 %v7467
    %7494 = vmatprep.subr.mxu0 0.0
    %7495 = vmatpush1.msra.mxu0 %v7468
    %7496 = vmatprep.subr.mxu0 0.0
    %7497 = vmatpush1.msra.mxu0 %v7469
    %7498 = vmatprep.subr.mxu0 0.0
    %7499 = vmatpush1.msra.mxu0 0.0
    %7500 = vmatprep.subr.mxu0 0.0
    %7501 = vmatpush1.msra.mxu0 0.0
    %7502 = vmatprep.subr.mxu0 0.0
    %7503 = vmatpush1.msra.mxu0 0.0
    %7504 = vmatprep.subr.mxu0 0.0
    %7505 = vmatpush1.msra.mxu0 0.0
    %7506 = vmatprep.subr.mxu0 0.0
    %7507 = vmatpush1.msra.mxu0 0.0
    %7508 = vmatprep.subr.mxu0 0.0
    %7509 = vmatpush1.msra.mxu0 0.0
    %7510 = vmatprep.subr.mxu0 0.0
    %7511 = vmatpush1.msra.mxu0 0.0
    %7512 = vmatprep.subr.mxu0 0.0
    %7513 = vmatpush1.msra.mxu0 0.0
    %7514 = vmatprep.subr.mxu0 0.0
    %7515 = vmatpush1.msra.mxu0 0.0
    %7516 = vmatprep.subr.mxu0 0.0
    %7517 = vmatpush1.msra.mxu0 0.0
    %7518 = vmatprep.subr.mxu0 0.0
    %7519 = vmatpush1.msra.mxu0 0.0
    %7520 = vmatprep.subr.mxu0 0.0
    %7521 = vmatpush1.msra.mxu0 0.0
    %7522 = vmatprep.subr.mxu0 0.0
    %7523 = vmatpush1.msra.mxu0 0.0
    %7524 = vmatprep.subr.mxu0 0.0
    %7525 = vmatpush1.msra.mxu0 0.0
    %7526 = vmatprep.subr.mxu0 0.0
    %7527 = vmatpush1.msra.mxu0 0.0
    %7528 = vmatprep.subr.mxu0 0.0
    %7529 = vmatpush1.msra.mxu0 0.0
    %7530 = vmatprep.subr.mxu0 0.0
    %7531 = vmatpush1.msra.mxu0 0.0
    %7532 = vmatprep.subr.mxu0 0.0
    %7533 = vmatpush1.msra.mxu0 0.0
    %7534 = vmatprep.subr.mxu0 0.0
    %7535 = vmatpush1.msra.mxu0 0.0
    %7536 = vmatprep.subr.mxu0 0.0
    %7537 = vmatpush1.msra.mxu0 0.0
    %7538 = vmatprep.subr.mxu0 0.0
    %7539 = vmatpush1.msra.mxu0 0.0
    %7540 = vmatprep.subr.mxu0 0.0
    %7541 = vmatpush1.msra.mxu0 0.0
    %7542 = vmatprep.subr.mxu0 0.0
    %7543 = vmatpush1.msra.mxu0 0.0
    %7544 = vmatprep.subr.mxu0 0.0
    %7545 = vmatpush1.msra.mxu0 0.0
    %7546 = vmatprep.subr.mxu0 0.0
    %7547 = vmatpush1.msra.mxu0 0.0
    %7548 = vmatprep.subr.mxu0 0.0
    %7549 = vmatpush1.msra.mxu0 0.0
    %7550 = vmatprep.subr.mxu0 0.0
    %7551 = vmatpush1.msra.mxu0 0.0
    %7552 = vmatprep.subr.mxu0 0.0
    %7553 = vmatpush1.msra.mxu0 0.0
    %7554 = vmatprep.mubr.f32.mxu0 0.0
    %7555 = vmatmul.mubr.f32.gmra.mrb[0].mxu0 %v7479
    %v7556 = vpop.f32.mrb[0].mxu0
    %v7557 = vadd.f32 %v7476, %v7556
    %v7558 = vpop.f32.mrb[0].mxu0
    %7559 = vmatprep.mubr.f32.mxu0 0.0
    %7560 = vmatmul.mubr.f32.gmra.mrb[0].mxu0 %v7482
    %v7561 = vpop.f32.mrb[0].mxu0
    %v7562 = vadd.f32 %v7476, %v7561
    %v7563 = vpop.f32.mrb[0].mxu0
    %7564 = vmatprep.mubr.f32.mxu0 0.0
    %7565 = vmatmul.mubr.f32.gmra.mrb[0].mxu0 %v7485
    %v7566 = vpop.f32.mrb[0].mxu0
    %v7567 = vadd.f32 %v7476, %v7566
    %v7568 = vpop.f32.mrb[0].mxu0
    %7569 = vmatprep.mubr.f32.mxu0 0.0
    %7570 = vmatmul.mubr.f32.gmra.mrb[0].mxu0 %v7488
    %v7571 = vpop.f32.mrb[0].mxu0
    %v7572 = vadd.f32 %v7476, %v7571
    %v7573 = vpop.f32.mrb[0].mxu0
    %7574 = vdwg.mxu0
    %v7575 = vsel %vm292, %v7557, -inf
    %v7576 = vsel %vm292, %v7562, -inf
    %v7577 = vsel %vm292, %v7567, -inf
    %v7578 = vsel %vm292, %v7572, -inf
    %v7579 = vmax.f32 %v7575, %v7576
    %v7580 = vmax.f32 %v7577, %v7578
    %v7581 = vmax.f32 %v7579, %v7580
    %v7582 = vsub.f32 %v7557, %v7581
    %v7583 = vsub.f32 %v7562, %v7581
    %v7584 = vsub.f32 %v7567, %v7581
    %v7585 = vsub.f32 %v7572, %v7581
    %v7586 = vmul.f32 %v7582, 1.442695
    %v7587 = vpow.pop %v7586
    %v7588 = vmul.f32 %v7583, 1.442695
    %v7589 = vpow.pop %v7588
    %v7590 = vmul.f32 %v7584, 1.442695
    %v7591 = vpow.pop %v7590
    %v7592 = vmul.f32 %v7585, 1.442695
    %v7593 = vpow.pop %v7592
    %v7594 = vsel %vm292, %v7587, 0.0
    %v7595 = vsel %vm292, %v7589, 0.0
    %v7596 = vadd.f32 %v7594, %v7595
    %v7597 = vsel %vm292, %v7591, 0.0
    %v7598 = vadd.f32 %v7596, %v7597
    %v7599 = vsel %vm292, %v7593, 0.0
    %v7600 = vadd.f32 %v7598, %v7599
    %v7601 = vrcp.pop %v7600
    %v7602 = vmul.f32 %v7587, %v7601
    %v7603 = vmul.f32 %v7589, %v7601
    %v7604 = vmul.f32 %v7591, %v7601
    %v7605 = vmul.f32 %v7593, %v7601
    %s7606 = scalar_lea.vmem [#allocation20], 32
    %v7607 = vld [vmem:[%s7606] sm:$0xff]
    %v7608 = vld [vmem:[%s7606 + $0x8] sm:$0xff]
    %v7609 = vld [vmem:[%s7606 + $0x10] sm:$0xff]
    %v7610 = vld [vmem:[%s7606 + $0x18] sm:$0xff]
    %s7611 = scalar_lea.vmem [#allocation22], 1
    %v7612 = vld [vmem:[%s7611] sm:$0x1]
    %v7614 = vlaneseq
    %v7615 = vshrl.u32 %v7614, 7
    %v7616 = vsub.s32 0, %v7615
    %v7617 = vrot.slane %v7612, %v7616
    %v7620 = vsel %vm292, %v7602, 0
    %v7623 = vsel %vm292, %v7603, 0
    %v7626 = vsel %vm292, %v7604, 0
    %v7629 = vsel %vm292, %v7605, 0
    %7631 = vmatprep.subr.mxu0 0.0
    %7632 = vmatpush1.msra.mxu0 %v7607
    %7633 = vmatprep.subr.mxu0 0.0
    %7634 = vmatpush1.msra.mxu0 %v7608
    %7635 = vmatprep.subr.mxu0 0.0
    %7636 = vmatpush1.msra.mxu0 %v7609
    %7637 = vmatprep.subr.mxu0 0.0
    %7638 = vmatpush1.msra.mxu0 %v7610
    %7639 = vmatprep.subr.mxu0 0.0
    %7640 = vmatpush1.msra.mxu0 0.0
    %7641 = vmatprep.subr.mxu0 0.0
    %7642 = vmatpush1.msra.mxu0 0.0
    %7643 = vmatprep.subr.mxu0 0.0
    %7644 = vmatpush1.msra.mxu0 0.0
    %7645 = vmatprep.subr.mxu0 0.0
    %7646 = vmatpush1.msra.mxu0 0.0
    %7647 = vmatprep.subr.mxu0 0.0
    %7648 = vmatpush1.msra.mxu0 0.0
    %7649 = vmatprep.subr.mxu0 0.0
    %7650 = vmatpush1.msra.mxu0 0.0
    %7651 = vmatprep.subr.mxu0 0.0
    %7652 = vmatpush1.msra.mxu0 0.0
    %7653 = vmatprep.subr.mxu0 0.0
    %7654 = vmatpush1.msra.mxu0 0.0
    %7655 = vmatprep.subr.mxu0 0.0
    %7656 = vmatpush1.msra.mxu0 0.0
    %7657 = vmatprep.subr.mxu0 0.0
    %7658 = vmatpush1.msra.mxu0 0.0
    %7659 = vmatprep.subr.mxu0 0.0
    %7660 = vmatpush1.msra.mxu0 0.0
    %7661 = vmatprep.subr.mxu0 0.0
    %7662 = vmatpush1.msra.mxu0 0.0
    %7663 = vmatprep.subr.mxu0 0.0
    %7664 = vmatpush1.msra.mxu0 0.0
    %7665 = vmatprep.subr.mxu0 0.0
    %7666 = vmatpush1.msra.mxu0 0.0
    %7667 = vmatprep.subr.mxu0 0.0
    %7668 = vmatpush1.msra.mxu0 0.0
    %7669 = vmatprep.subr.mxu0 0.0
    %7670 = vmatpush1.msra.mxu0 0.0
    %7671 = vmatprep.subr.mxu0 0.0
    %7672 = vmatpush1.msra.mxu0 0.0
    %7673 = vmatprep.subr.mxu0 0.0
    %7674 = vmatpush1.msra.mxu0 0.0
    %7675 = vmatprep.subr.mxu0 0.0
    %7676 = vmatpush1.msra.mxu0 0.0
    %7677 = vmatprep.subr.mxu0 0.0
    %7678 = vmatpush1.msra.mxu0 0.0
    %7679 = vmatprep.subr.mxu0 0.0
    %7680 = vmatpush1.msra.mxu0 0.0
    %7681 = vmatprep.subr.mxu0 0.0
    %7682 = vmatpush1.msra.mxu0 0.0
    %7683 = vmatprep.subr.mxu0 0.0
    %7684 = vmatpush1.msra.mxu0 0.0
    %7685 = vmatprep.subr.mxu0 0.0
    %7686 = vmatpush1.msra.mxu0 0.0
    %7687 = vmatprep.subr.mxu0 0.0
    %7688 = vmatpush1.msra.mxu0 0.0
    %7689 = vmatprep.subr.mxu0 0.0
    %7690 = vmatpush1.msra.mxu0 0.0
    %7691 = vmatprep.subr.mxu0 0.0
    %7692 = vmatpush1.msra.mxu0 0.0
    %7693 = vmatprep.subr.mxu0 0.0
    %7694 = vmatpush1.msra.mxu0 0.0
    %7695 = vmatprep.mubr.f32.mxu0 0.0
    %7696 = vmatmul.mubr.f32.gmra.mrb[0].mxu0 %v7620
    %v7697 = vpop.f32.mrb[0].mxu0
    %v7698 = vadd.f32 %v7617, %v7697
    %v7699 = vpop.f32.mrb[0].mxu0
    %7700 = vmatprep.mubr.f32.mxu0 0.0
    %7701 = vmatmul.mubr.f32.gmra.mrb[0].mxu0 %v7623
    %v7702 = vpop.f32.mrb[0].mxu0
    %v7703 = vadd.f32 %v7617, %v7702
    %v7704 = vpop.f32.mrb[0].mxu0
    %7705 = vmatprep.mubr.f32.mxu0 0.0
    %7706 = vmatmul.mubr.f32.gmra.mrb[0].mxu0 %v7626
    %v7707 = vpop.f32.mrb[0].mxu0
    %v7708 = vadd.f32 %v7617, %v7707
    %v7709 = vpop.f32.mrb[0].mxu0
    %7710 = vmatprep.mubr.f32.mxu0 0.0
    %7711 = vmatmul.mubr.f32.gmra.mrb[0].mxu0 %v7629
    %v7712 = vpop.f32.mrb[0].mxu0
    %v7713 = vadd.f32 %v7617, %v7712
    %v7714 = vpop.f32.mrb[0].mxu0
    %7715 = vdwg.mxu0
    %v7716 = vadd.f32 %v7698, %v7464
    %v7717 = vadd.f32 %v7703, %v7464
    %v7718 = vadd.f32 %v7708, %v7464
    %v7719 = vadd.f32 %v7713, %v7464
    %v7720 = vsel %vm292, %v7716, 0.0
    %7721 = vadd.xlane.f32.xlu0 %v7720
    %v7722 = vpop.xlane.xlu0 %7721
    %v7723 = vsel %vm292, %v7717, 0.0
    %7724 = vadd.xlane.f32.xlu0 %v7723
    %v7725 = vpop.xlane.xlu0 %7724
    %v7726 = vsel %vm292, %v7718, 0.0
    %7727 = vadd.xlane.f32.xlu0 %v7726
    %v7728 = vpop.xlane.xlu0 %7727
    %v7729 = vsel %vm292, %v7719, 0.0
    %7730 = vadd.xlane.f32.xlu0 %v7729
    %v7731 = vpop.xlane.xlu0 %7730
    %v7732 = vrot.slane %v7722, 4
    %v7733 = vadd.f32 %v7722, %v7732
    %v7734 = vrot.slane %v7733, 2
    %v7735 = vadd.f32 %v7733, %v7734
    %v7736 = vrot.slane %v7735, 1
    %v7737 = vadd.f32 %v7735, %v7736
    %v7738 = vrot.slane %v7725, 4
    %v7739 = vadd.f32 %v7725, %v7738
    %v7740 = vrot.slane %v7739, 2
    %v7741 = vadd.f32 %v7739, %v7740
    %v7742 = vrot.slane %v7741, 1
    %v7743 = vadd.f32 %v7741, %v7742
    %v7744 = vrot.slane %v7728, 4
    %v7745 = vadd.f32 %v7728, %v7744
    %v7746 = vrot.slane %v7745, 2
    %v7747 = vadd.f32 %v7745, %v7746
    %v7748 = vrot.slane %v7747, 1
    %v7749 = vadd.f32 %v7747, %v7748
    %v7750 = vrot.slane %v7731, 4
    %v7751 = vadd.f32 %v7731, %v7750
    %v7752 = vrot.slane %v7751, 2
    %v7753 = vadd.f32 %v7751, %v7752
    %v7754 = vrot.slane %v7753, 1
    %v7755 = vadd.f32 %v7753, %v7754
    %v7756 = vmul.f32 %v7716, %v7716
    %v7757 = vmul.f32 %v7717, %v7717
    %v7758 = vmul.f32 %v7718, %v7718
    %v7759 = vmul.f32 %v7719, %v7719
    %v7760 = vsel %vm292, %v7756, 0.0
    %7761 = vadd.xlane.f32.xlu0 %v7760
    %v7762 = vpop.xlane.xlu0 %7761
    %v7763 = vsel %vm292, %v7757, 0.0
    %7764 = vadd.xlane.f32.xlu0 %v7763
    %v7765 = vpop.xlane.xlu0 %7764
    %v7766 = vsel %vm292, %v7758, 0.0
    %7767 = vadd.xlane.f32.xlu0 %v7766
    %v7768 = vpop.xlane.xlu0 %7767
    %v7769 = vsel %vm292, %v7759, 0.0
    %7770 = vadd.xlane.f32.xlu0 %v7769
    %v7771 = vpop.xlane.xlu0 %7770
    %v7772 = vrot.slane %v7762, 4
    %v7773 = vadd.f32 %v7762, %v7772
    %v7774 = vrot.slane %v7773, 2
    %v7775 = vadd.f32 %v7773, %v7774
    %v7776 = vrot.slane %v7775, 1
    %v7777 = vadd.f32 %v7775, %v7776
    %v7778 = vrot.slane %v7765, 4
    %v7779 = vadd.f32 %v7765, %v7778
    %v7780 = vrot.slane %v7779, 2
    %v7781 = vadd.f32 %v7779, %v7780
    %v7782 = vrot.slane %v7781, 1
    %v7783 = vadd.f32 %v7781, %v7782
    %v7784 = vrot.slane %v7768, 4
    %v7785 = vadd.f32 %v7768, %v7784
    %v7786 = vrot.slane %v7785, 2
    %v7787 = vadd.f32 %v7785, %v7786
    %v7788 = vrot.slane %v7787, 1
    %v7789 = vadd.f32 %v7787, %v7788
    %v7790 = vrot.slane %v7771, 4
    %v7791 = vadd.f32 %v7771, %v7790
    %v7792 = vrot.slane %v7791, 2
    %v7793 = vadd.f32 %v7791, %v7792
    %v7794 = vrot.slane %v7793, 1
    %v7795 = vadd.f32 %v7793, %v7794
    %v7796 = vmul.f32 %v7737, 0.00390625
    %v7797 = vmul.f32 %v7743, 0.00390625
    %v7798 = vmul.f32 %v7749, 0.00390625
    %v7799 = vmul.f32 %v7755, 0.00390625
    %v7800 = vmul.f32 %v7777, 0.00390625
    %v7801 = vmul.f32 %v7783, 0.00390625
    %v7802 = vmul.f32 %v7789, 0.00390625
    %v7803 = vmul.f32 %v7795, 0.00390625
    %v7804 = vmul.f32 %v7796, %v7796
    %v7805 = vmul.f32 %v7797, %v7797
    %v7806 = vmul.f32 %v7798, %v7798
    %v7807 = vmul.f32 %v7799, %v7799
    %v7808 = vsub.f32 %v7800, %v7804
    %v7809 = vsub.f32 %v7801, %v7805
    %v7810 = vsub.f32 %v7802, %v7806
    %v7811 = vsub.f32 %v7803, %v7807
    %v7812 = vsub.f32 %v7716, %v7796
    %v7813 = vsub.f32 %v7717, %v7797
    %v7814 = vsub.f32 %v7718, %v7798
    %v7815 = vsub.f32 %v7719, %v7799
    %v7816 = vadd.f32 %v7808, 1e-05
    %v7817 = vadd.f32 %v7809, 1e-05
    %v7818 = vadd.f32 %v7810, 1e-05
    %v7819 = vadd.f32 %v7811, 1e-05
    %v7820 = vrsqrt.pop %v7816
    %v7821 = vrsqrt.pop %v7817
    %v7822 = vrsqrt.pop %v7818
    %v7823 = vrsqrt.pop %v7819
    %v7824 = vmul.f32 %v7812, %v7820
    %v7825 = vmul.f32 %v7813, %v7821
    %v7826 = vmul.f32 %v7814, %v7822
    %v7827 = vmul.f32 %v7815, %v7823
    %v7828 = vmul.f32 %v7824, %v275
    %v7829 = vmul.f32 %v7825, %v275
    %v7830 = vmul.f32 %v7826, %v275
    %v7831 = vmul.f32 %v7827, %v275
    %v7832 = vadd.f32 %v7828, %v276
    %v7833 = vadd.f32 %v7829, %v276
    %v7834 = vadd.f32 %v7830, %v276
    %v7835 = vadd.f32 %v7831, %v276
    %s7836 = scalar_lea.vmem [#allocation23], 32
    %v7837 = vld [vmem:[%s7836] sm:$0xff]
    %v7838 = vld [vmem:[%s7836 + $0x8] sm:$0xff]
    %v7839 = vld [vmem:[%s7836 + $0x10] sm:$0xff]
    %v7840 = vld [vmem:[%s7836 + $0x18] sm:$0xff]
    %s7841 = scalar_lea.vmem %s15, 1
    %v7842 = vld [vmem:[%s7841] sm:$0x1]
    %s7843 = scalar_lea.vmem [#allocation25], 32
    %v7844 = vld [vmem:[%s7843] sm:$0xff]
    %v7845 = vld [vmem:[%s7843 + $0x8] sm:$0xff]
    %v7846 = vld [vmem:[%s7843 + $0x10] sm:$0xff]
    %v7847 = vld [vmem:[%s7843 + $0x18] sm:$0xff]
    %s7848 = scalar_lea.vmem %s17, 1
    %v7849 = vld [vmem:[%s7848] sm:$0x1]
    %v7851 = vlaneseq
    %v7852 = vshrl.u32 %v7851, 7
    %v7853 = vsub.s32 0, %v7852
    %v7854 = vrot.slane %v7842, %v7853
    %v7857 = vsel %vm292, %v7832, 0
    %v7860 = vsel %vm292, %v7833, 0
    %v7863 = vsel %vm292, %v7834, 0
    %v7866 = vsel %vm292, %v7835, 0
    %7868 = vmatprep.subr.mxu0 0.0
    %7869 = vmatpush1.msra.mxu0 %v7837
    %7870 = vmatprep.subr.mxu0 0.0
    %7871 = vmatpush1.msra.mxu0 %v7838
    %7872 = vmatprep.subr.mxu0 0.0
    %7873 = vmatpush1.msra.mxu0 %v7839
    %7874 = vmatprep.subr.mxu0 0.0
    %7875 = vmatpush1.msra.mxu0 %v7840
    %7876 = vmatprep.subr.mxu0 0.0
    %7877 = vmatpush1.msra.mxu0 0.0
    %7878 = vmatprep.subr.mxu0 0.0
    %7879 = vmatpush1.msra.mxu0 0.0
    %7880 = vmatprep.subr.mxu0 0.0
    %7881 = vmatpush1.msra.mxu0 0.0
    %7882 = vmatprep.subr.mxu0 0.0
    %7883 = vmatpush1.msra.mxu0 0.0
    %7884 = vmatprep.subr.mxu0 0.0
    %7885 = vmatpush1.msra.mxu0 0.0
    %7886 = vmatprep.subr.mxu0 0.0
    %7887 = vmatpush1.msra.mxu0 0.0
    %7888 = vmatprep.subr.mxu0 0.0
    %7889 = vmatpush1.msra.mxu0 0.0
    %7890 = vmatprep.subr.mxu0 0.0
    %7891 = vmatpush1.msra.mxu0 0.0
    %7892 = vmatprep.subr.mxu0 0.0
    %7893 = vmatpush1.msra.mxu0 0.0
    %7894 = vmatprep.subr.mxu0 0.0
    %7895 = vmatpush1.msra.mxu0 0.0
    %7896 = vmatprep.subr.mxu0 0.0
    %7897 = vmatpush1.msra.mxu0 0.0
    %7898 = vmatprep.subr.mxu0 0.0
    %7899 = vmatpush1.msra.mxu0 0.0
    %7900 = vmatprep.subr.mxu0 0.0
    %7901 = vmatpush1.msra.mxu0 0.0
    %7902 = vmatprep.subr.mxu0 0.0
    %7903 = vmatpush1.msra.mxu0 0.0
    %7904 = vmatprep.subr.mxu0 0.0
    %7905 = vmatpush1.msra.mxu0 0.0
    %7906 = vmatprep.subr.mxu0 0.0
    %7907 = vmatpush1.msra.mxu0 0.0
    %7908 = vmatprep.subr.mxu0 0.0
    %7909 = vmatpush1.msra.mxu0 0.0
    %7910 = vmatprep.subr.mxu0 0.0
    %7911 = vmatpush1.msra.mxu0 0.0
    %7912 = vmatprep.subr.mxu0 0.0
    %7913 = vmatpush1.msra.mxu0 0.0
    %7914 = vmatprep.subr.mxu0 0.0
    %7915 = vmatpush1.msra.mxu0 0.0
    %7916 = vmatprep.subr.mxu0 0.0
    %7917 = vmatpush1.msra.mxu0 0.0
    %7918 = vmatprep.subr.mxu0 0.0
    %7919 = vmatpush1.msra.mxu0 0.0
    %7920 = vmatprep.subr.mxu0 0.0
    %7921 = vmatpush1.msra.mxu0 0.0
    %7922 = vmatprep.subr.mxu0 0.0
    %7923 = vmatpush1.msra.mxu0 0.0
    %7924 = vmatprep.subr.mxu0 0.0
    %7925 = vmatpush1.msra.mxu0 0.0
    %7926 = vmatprep.subr.mxu0 0.0
    %7927 = vmatpush1.msra.mxu0 0.0
    %7928 = vmatprep.subr.mxu0 0.0
    %7929 = vmatpush1.msra.mxu0 0.0
    %7930 = vmatprep.subr.mxu0 0.0
    %7931 = vmatpush1.msra.mxu0 0.0
    %7932 = vmatprep.mubr.f32.mxu0 0.0
    %7933 = vmatmul.mubr.f32.gmra.mrb[0].mxu0 %v7857
    %v7934 = vpop.f32.mrb[0].mxu0
    %v7935 = vadd.f32 %v7854, %v7934
    %v7936 = vpop.f32.mrb[0].mxu0
    %7937 = vmatprep.mubr.f32.mxu0 0.0
    %7938 = vmatmul.mubr.f32.gmra.mrb[0].mxu0 %v7860
    %v7939 = vpop.f32.mrb[0].mxu0
    %v7940 = vadd.f32 %v7854, %v7939
    %v7941 = vpop.f32.mrb[0].mxu0
    %7942 = vmatprep.mubr.f32.mxu0 0.0
    %7943 = vmatmul.mubr.f32.gmra.mrb[0].mxu0 %v7863
    %v7944 = vpop.f32.mrb[0].mxu0
    %v7945 = vadd.f32 %v7854, %v7944
    %v7946 = vpop.f32.mrb[0].mxu0
    %7947 = vmatprep.mubr.f32.mxu0 0.0
    %7948 = vmatmul.mubr.f32.gmra.mrb[0].mxu0 %v7866
    %v7949 = vpop.f32.mrb[0].mxu0
    %v7950 = vadd.f32 %v7854, %v7949
    %v7951 = vpop.f32.mrb[0].mxu0
    %7952 = vdwg.mxu0
    %v7953 = vmax.f32 %v7935, 0.0
    %v7954 = vmax.f32 %v7940, 0.0
    %v7955 = vmax.f32 %v7945, 0.0
    %v7956 = vmax.f32 %v7950, 0.0
    %v7958 = vlaneseq
    %v7959 = vshrl.u32 %v7958, 7
    %v7960 = vsub.s32 0, %v7959
    %v7961 = vrot.slane %v7849, %v7960
    %v7964 = vsel %vm292, %v7953, 0
    %v7967 = vsel %vm292, %v7954, 0
    %v7970 = vsel %vm292, %v7955, 0
    %v7973 = vsel %vm292, %v7956, 0
    %7975 = vmatprep.subr.mxu0 0.0
    %7976 = vmatpush1.msra.mxu0 %v7844
    %7977 = vmatprep.subr.mxu0 0.0
    %7978 = vmatpush1.msra.mxu0 %v7845
    %7979 = vmatprep.subr.mxu0 0.0
    %7980 = vmatpush1.msra.mxu0 %v7846
    %7981 = vmatprep.subr.mxu0 0.0
    %7982 = vmatpush1.msra.mxu0 %v7847
    %7983 = vmatprep.subr.mxu0 0.0
    %7984 = vmatpush1.msra.mxu0 0.0
    %7985 = vmatprep.subr.mxu0 0.0
    %7986 = vmatpush1.msra.mxu0 0.0
    %7987 = vmatprep.subr.mxu0 0.0
    %7988 = vmatpush1.msra.mxu0 0.0
    %7989 = vmatprep.subr.mxu0 0.0
    %7990 = vmatpush1.msra.mxu0 0.0
    %7991 = vmatprep.subr.mxu0 0.0
    %7992 = vmatpush1.msra.mxu0 0.0
    %7993 = vmatprep.subr.mxu0 0.0
    %7994 = vmatpush1.msra.mxu0 0.0
    %7995 = vmatprep.subr.mxu0 0.0
    %7996 = vmatpush1.msra.mxu0 0.0
    %7997 = vmatprep.subr.mxu0 0.0
    %7998 = vmatpush1.msra.mxu0 0.0
    %7999 = vmatprep.subr.mxu0 0.0
    %8000 = vmatpush1.msra.mxu0 0.0
    %8001 = vmatprep.subr.mxu0 0.0
    %8002 = vmatpush1.msra.mxu0 0.0
    %8003 = vmatprep.subr.mxu0 0.0
    %8004 = vmatpush1.msra.mxu0 0.0
    %8005 = vmatprep.subr.mxu0 0.0
    %8006 = vmatpush1.msra.mxu0 0.0
    %8007 = vmatprep.subr.mxu0 0.0
    %8008 = vmatpush1.msra.mxu0 0.0
    %8009 = vmatprep.subr.mxu0 0.0
    %8010 = vmatpush1.msra.mxu0 0.0
    %8011 = vmatprep.subr.mxu0 0.0
    %8012 = vmatpush1.msra.mxu0 0.0
    %8013 = vmatprep.subr.mxu0 0.0
    %8014 = vmatpush1.msra.mxu0 0.0
    %8015 = vmatprep.subr.mxu0 0.0
    %8016 = vmatpush1.msra.mxu0 0.0
    %8017 = vmatprep.subr.mxu0 0.0
    %8018 = vmatpush1.msra.mxu0 0.0
    %8019 = vmatprep.subr.mxu0 0.0
    %8020 = vmatpush1.msra.mxu0 0.0
    %8021 = vmatprep.subr.mxu0 0.0
    %8022 = vmatpush1.msra.mxu0 0.0
    %8023 = vmatprep.subr.mxu0 0.0
    %8024 = vmatpush1.msra.mxu0 0.0
    %8025 = vmatprep.subr.mxu0 0.0
    %8026 = vmatpush1.msra.mxu0 0.0
    %8027 = vmatprep.subr.mxu0 0.0
    %8028 = vmatpush1.msra.mxu0 0.0
    %8029 = vmatprep.subr.mxu0 0.0
    %8030 = vmatpush1.msra.mxu0 0.0
    %8031 = vmatprep.subr.mxu0 0.0
    %8032 = vmatpush1.msra.mxu0 0.0
    %8033 = vmatprep.subr.mxu0 0.0
    %8034 = vmatpush1.msra.mxu0 0.0
    %8035 = vmatprep.subr.mxu0 0.0
    %8036 = vmatpush1.msra.mxu0 0.0
    %8037 = vmatprep.subr.mxu0 0.0
    %8038 = vmatpush1.msra.mxu0 0.0
    %8039 = vmatprep.mubr.f32.mxu0 0.0
    %8040 = vmatmul.mubr.f32.gmra.mrb[0].mxu0 %v7964
    %v8041 = vpop.f32.mrb[0].mxu0
    %v8042 = vadd.f32 %v7961, %v8041
    %v8043 = vpop.f32.mrb[0].mxu0
    %8044 = vmatprep.mubr.f32.mxu0 0.0
    %8045 = vmatmul.mubr.f32.gmra.mrb[0].mxu0 %v7967
    %v8046 = vpop.f32.mrb[0].mxu0
    %v8047 = vadd.f32 %v7961, %v8046
    %v8048 = vpop.f32.mrb[0].mxu0
    %8049 = vmatprep.mubr.f32.mxu0 0.0
    %8050 = vmatmul.mubr.f32.gmra.mrb[0].mxu0 %v7970
    %v8051 = vpop.f32.mrb[0].mxu0
    %v8052 = vadd.f32 %v7961, %v8051
    %v8053 = vpop.f32.mrb[0].mxu0
    %8054 = vmatprep.mubr.f32.mxu0 0.0
    %8055 = vmatmul.mubr.f32.gmra.mrb[0].mxu0 %v7973
    %v8056 = vpop.f32.mrb[0].mxu0
    %v8057 = vadd.f32 %v7961, %v8056
    %v8058 = vpop.f32.mrb[0].mxu0
    %8059 = vdwg.mxu0
    %v8060 = vmax.f32 %v8042, 0.0
    %v8061 = vmax.f32 %v8047, 0.0
    %v8062 = vmax.f32 %v8052, 0.0
    %v8063 = vmax.f32 %v8057, 0.0
    %v8064 = vadd.f32 %v8060, %v7832
    %v8065 = vadd.f32 %v8061, %v7833
    %v8066 = vadd.f32 %v8062, %v7834
    %v8067 = vadd.f32 %v8063, %v7835
    %v8068 = vsel %vm292, %v8064, 0.0
    %8069 = vadd.xlane.f32.xlu0 %v8068
    %v8070 = vpop.xlane.xlu0 %8069
    %v8071 = vsel %vm292, %v8065, 0.0
    %8072 = vadd.xlane.f32.xlu0 %v8071
    %v8073 = vpop.xlane.xlu0 %8072
    %v8074 = vsel %vm292, %v8066, 0.0
    %8075 = vadd.xlane.f32.xlu0 %v8074
    %v8076 = vpop.xlane.xlu0 %8075
    %v8077 = vsel %vm292, %v8067, 0.0
    %8078 = vadd.xlane.f32.xlu0 %v8077
    %v8079 = vpop.xlane.xlu0 %8078
    %v8080 = vrot.slane %v8070, 4
    %v8081 = vadd.f32 %v8070, %v8080
    %v8082 = vrot.slane %v8081, 2
    %v8083 = vadd.f32 %v8081, %v8082
    %v8084 = vrot.slane %v8083, 1
    %v8085 = vadd.f32 %v8083, %v8084
    %v8086 = vrot.slane %v8073, 4
    %v8087 = vadd.f32 %v8073, %v8086
    %v8088 = vrot.slane %v8087, 2
    %v8089 = vadd.f32 %v8087, %v8088
    %v8090 = vrot.slane %v8089, 1
    %v8091 = vadd.f32 %v8089, %v8090
    %v8092 = vrot.slane %v8076, 4
    %v8093 = vadd.f32 %v8076, %v8092
    %v8094 = vrot.slane %v8093, 2
    %v8095 = vadd.f32 %v8093, %v8094
    %v8096 = vrot.slane %v8095, 1
    %v8097 = vadd.f32 %v8095, %v8096
    %v8098 = vrot.slane %v8079, 4
    %v8099 = vadd.f32 %v8079, %v8098
    %v8100 = vrot.slane %v8099, 2
    %v8101 = vadd.f32 %v8099, %v8100
    %v8102 = vrot.slane %v8101, 1
    %v8103 = vadd.f32 %v8101, %v8102
    %v8104 = vmul.f32 %v8064, %v8064
    %v8105 = vmul.f32 %v8065, %v8065
    %v8106 = vmul.f32 %v8066, %v8066
    %v8107 = vmul.f32 %v8067, %v8067
    %v8108 = vsel %vm292, %v8104, 0.0
    %8109 = vadd.xlane.f32.xlu0 %v8108
    %v8110 = vpop.xlane.xlu0 %8109
    %v8111 = vsel %vm292, %v8105, 0.0
    %8112 = vadd.xlane.f32.xlu0 %v8111
    %v8113 = vpop.xlane.xlu0 %8112
    %v8114 = vsel %vm292, %v8106, 0.0
    %8115 = vadd.xlane.f32.xlu0 %v8114
    %v8116 = vpop.xlane.xlu0 %8115
    %v8117 = vsel %vm292, %v8107, 0.0
    %8118 = vadd.xlane.f32.xlu0 %v8117
    %v8119 = vpop.xlane.xlu0 %8118
    %v8120 = vrot.slane %v8110, 4
    %v8121 = vadd.f32 %v8110, %v8120
    %v8122 = vrot.slane %v8121, 2
    %v8123 = vadd.f32 %v8121, %v8122
    %v8124 = vrot.slane %v8123, 1
    %v8125 = vadd.f32 %v8123, %v8124
    %v8126 = vrot.slane %v8113, 4
    %v8127 = vadd.f32 %v8113, %v8126
    %v8128 = vrot.slane %v8127, 2
    %v8129 = vadd.f32 %v8127, %v8128
    %v8130 = vrot.slane %v8129, 1
    %v8131 = vadd.f32 %v8129, %v8130
    %v8132 = vrot.slane %v8116, 4
    %v8133 = vadd.f32 %v8116, %v8132
    %v8134 = vrot.slane %v8133, 2
    %v8135 = vadd.f32 %v8133, %v8134
    %v8136 = vrot.slane %v8135, 1
    %v8137 = vadd.f32 %v8135, %v8136
    %v8138 = vrot.slane %v8119, 4
    %v8139 = vadd.f32 %v8119, %v8138
    %v8140 = vrot.slane %v8139, 2
    %v8141 = vadd.f32 %v8139, %v8140
    %v8142 = vrot.slane %v8141, 1
    %v8143 = vadd.f32 %v8141, %v8142
    %v8144 = vmul.f32 %v8085, 0.00390625
    %v8145 = vmul.f32 %v8091, 0.00390625
    %v8146 = vmul.f32 %v8097, 0.00390625
    %v8147 = vmul.f32 %v8103, 0.00390625
    %v8148 = vmul.f32 %v8125, 0.00390625
    %v8149 = vmul.f32 %v8131, 0.00390625
    %v8150 = vmul.f32 %v8137, 0.00390625
    %v8151 = vmul.f32 %v8143, 0.00390625
    %v8152 = vmul.f32 %v8144, %v8144
    %v8153 = vmul.f32 %v8145, %v8145
    %v8154 = vmul.f32 %v8146, %v8146
    %v8155 = vmul.f32 %v8147, %v8147
    %v8156 = vsub.f32 %v8148, %v8152
    %v8157 = vsub.f32 %v8149, %v8153
    %v8158 = vsub.f32 %v8150, %v8154
    %v8159 = vsub.f32 %v8151, %v8155
    %v8160 = vsub.f32 %v8064, %v8144
    %v8161 = vsub.f32 %v8065, %v8145
    %v8162 = vsub.f32 %v8066, %v8146
    %v8163 = vsub.f32 %v8067, %v8147
    %v8164 = vadd.f32 %v8156, 1e-05
    %v8165 = vadd.f32 %v8157, 1e-05
    %v8166 = vadd.f32 %v8158, 1e-05
    %v8167 = vadd.f32 %v8159, 1e-05
    %v8168 = vrsqrt.pop %v8164
    %v8169 = vrsqrt.pop %v8165
    %v8170 = vrsqrt.pop %v8166
    %v8171 = vrsqrt.pop %v8167
    %v8172 = vmul.f32 %v8160, %v8168
    %v8173 = vmul.f32 %v8161, %v8169
    %v8174 = vmul.f32 %v8162, %v8170
    %v8175 = vmul.f32 %v8163, %v8171
    %v8176 = vmul.f32 %v8172, %v275
    %v8177 = vmul.f32 %v8173, %v275
    %v8178 = vmul.f32 %v8174, %v275
    %v8179 = vmul.f32 %v8175, %v275
    %v8180 = vadd.f32 %v8176, %v276
    %v8181 = vadd.f32 %v8177, %v276
    %v8182 = vadd.f32 %v8178, %v276
    %v8183 = vadd.f32 %v8179, %v276
    %v8184 = vld [vmem:[%s20] sm:$0xff]
    %v8185 = vld [vmem:[%s20 + $0x8] sm:$0xff]
    %v8186 = vld [vmem:[%s20 + $0x10] sm:$0xff]
    %v8187 = vld [vmem:[%s20 + $0x18] sm:$0xff]
    %v8188 = vld [vmem:[%s21] sm:$0x1]
    %v8190 = vlaneseq
    %v8191 = vshrl.u32 %v8190, 7
    %v8192 = vsub.s32 0, %v8191
    %v8193 = vrot.slane %v8188, %v8192
    %v8199 = vrot.slane %v8180, 1
    %vm8200 = vcmask 1041409
    %v8201 = vsel %vm8200, %v8181, %v8199
    %v8202 = vrot.slane %v8182, 7
    %vm8203 = vcmask 1042434
    %v8204 = vsel %vm8203, %v8202, %v8201
    %v8205 = vrot.slane %v8183, 6
    %vm8206 = vcmask 1043459
    %v8207 = vsel %vm8206, %v8205, %v8204
    %v8208 = vsel %vm292, %v8207, 0
    %8210 = vmatprep.subr.mxu0 0.0
    %8211 = vmatpush1.msra.mxu0 %v8184
    %8212 = vmatprep.subr.mxu0 0.0
    %8213 = vmatpush1.msra.mxu0 %v8185
    %8214 = vmatprep.subr.mxu0 0.0
    %8215 = vmatpush1.msra.mxu0 %v8186
    %8216 = vmatprep.subr.mxu0 0.0
    %8217 = vmatpush1.msra.mxu0 %v8187
    %8218 = vmatprep.subr.mxu0 0.0
    %8219 = vmatpush1.msra.mxu0 0.0
    %8220 = vmatprep.subr.mxu0 0.0
    %8221 = vmatpush1.msra.mxu0 0.0
    %8222 = vmatprep.subr.mxu0 0.0
    %8223 = vmatpush1.msra.mxu0 0.0
    %8224 = vmatprep.subr.mxu0 0.0
    %8225 = vmatpush1.msra.mxu0 0.0
    %8226 = vmatprep.subr.mxu0 0.0
    %8227 = vmatpush1.msra.mxu0 0.0
    %8228 = vmatprep.subr.mxu0 0.0
    %8229 = vmatpush1.msra.mxu0 0.0
    %8230 = vmatprep.subr.mxu0 0.0
    %8231 = vmatpush1.msra.mxu0 0.0
    %8232 = vmatprep.subr.mxu0 0.0
    %8233 = vmatpush1.msra.mxu0 0.0
    %8234 = vmatprep.subr.mxu0 0.0
    %8235 = vmatpush1.msra.mxu0 0.0
    %8236 = vmatprep.subr.mxu0 0.0
    %8237 = vmatpush1.msra.mxu0 0.0
    %8238 = vmatprep.subr.mxu0 0.0
    %8239 = vmatpush1.msra.mxu0 0.0
    %8240 = vmatprep.subr.mxu0 0.0
    %8241 = vmatpush1.msra.mxu0 0.0
    %8242 = vmatprep.subr.mxu0 0.0
    %8243 = vmatpush1.msra.mxu0 0.0
    %8244 = vmatprep.subr.mxu0 0.0
    %8245 = vmatpush1.msra.mxu0 0.0
    %8246 = vmatprep.subr.mxu0 0.0
    %8247 = vmatpush1.msra.mxu0 0.0
    %8248 = vmatprep.subr.mxu0 0.0
    %8249 = vmatpush1.msra.mxu0 0.0
    %8250 = vmatprep.subr.mxu0 0.0
    %8251 = vmatpush1.msra.mxu0 0.0
    %8252 = vmatprep.subr.mxu0 0.0
    %8253 = vmatpush1.msra.mxu0 0.0
    %8254 = vmatprep.subr.mxu0 0.0
    %8255 = vmatpush1.msra.mxu0 0.0
    %8256 = vmatprep.subr.mxu0 0.0
    %8257 = vmatpush1.msra.mxu0 0.0
    %8258 = vmatprep.subr.mxu0 0.0
    %8259 = vmatpush1.msra.mxu0 0.0
    %8260 = vmatprep.subr.mxu0 0.0
    %8261 = vmatpush1.msra.mxu0 0.0
    %8262 = vmatprep.subr.mxu0 0.0
    %8263 = vmatpush1.msra.mxu0 0.0
    %8264 = vmatprep.subr.mxu0 0.0
    %8265 = vmatpush1.msra.mxu0 0.0
    %8266 = vmatprep.subr.mxu0 0.0
    %8267 = vmatpush1.msra.mxu0 0.0
    %8268 = vmatprep.subr.mxu0 0.0
    %8269 = vmatpush1.msra.mxu0 0.0
    %8270 = vmatprep.subr.mxu0 0.0
    %8271 = vmatpush1.msra.mxu0 0.0
    %8272 = vmatprep.subr.mxu0 0.0
    %8273 = vmatpush1.msra.mxu0 0.0
    %8274 = vmatprep.mubr.f32.mxu0 0.0
    %8275 = vmatmul.mubr.f32.gmra.mrb[0].mxu0 %v8208
    %v8276 = vpop.f32.mrb[0].mxu0
    %v8277 = vadd.f32 %v8193, %v8276
    %v8278 = vpop.f32.mrb[0].mxu0
    %8279 = vdwg.mxu0
    %vm8280 = vcmask 125952
    %8281 = vst.msk [vmem:[#allocation26] sm:$0xf] %vm8280, %v8277
    // Predicated region
    $region150: #{tpu_custom_call.1} parent=1 // pred_check
      _
    $region151: #{tpu_custom_call.1} parent=1 // pred_check_branch
      %8283 = sbr.rel (0) target = $region153
    $region152: #{tpu_custom_call.1} parent=1 // pred_region
      %s8285 = ssub.s32 64, 64
      %8286 = vsyncadd [#allocation4], %s8285
      %s8288 = sshll.u32 [#allocation26], 4
      %s8289 = int_to_ptr.vmem [resolvable:$true] %s8288
      %8291 = dma.vmem_to_hbm [thread:$0]  %s8289, 64, %s22, [#allocation4]
    $region153: #{tpu_custom_call.1} parent=1 // pred_fallthru
      _
    // Predicated region
    $region154: #{tpu_custom_call.1} parent=1 // pred_check
      _
    $region155: #{tpu_custom_call.1} parent=1 // pred_check_branch
      %8293 = sbr.rel (0) target = $region157
    $region156: #{tpu_custom_call.1} parent=1 // pred_region
      %8294 = dma.done [#allocation4], 64
    $region157: #{tpu_custom_call.1} parent=1 // pred_fallthru
      _
    %8295 = vsyncpa [#allocation3], 1
    %8296 = vsyncpa [#allocation6], 1
    %8297 = vsyncpa [#allocation9], 1
    %8298 = vsyncpa [#allocation12], 1
    %8299 = vsyncpa [#allocation15], 1
    %8300 = vsyncpa [#allocation18], 1
    %8301 = vsyncpa [#allocation21], 1
    %8302 = vsyncpa [#allocation24], 1
    %8303 = vsyncpa [#allocation4], 1

</llo_original>
